<compile_context>
chip_gen: v7x
topology: tpu7x:2x2x1
jax: 0.10.0
libtpu: 0.0.40
codegen_flags: <defaults>
</compile_context>

<pallas_src>
import functools

import jax
import jax.numpy as jnp
import numpy as np
from jax.experimental import pallas as pl
from jax.experimental.pallas import tpu as pltpu

EMB = 32        # embedded size
HID = 128       # GRU hidden size
NHEAD = 4
HDIM = EMB // NHEAD   # 8


# ----------------------------- kernel helpers ------------------------------

def _mha_batched(q_flat, kv_flat, B, Tq, Tk, in_w_t, in_b, out_w_t, out_b):
    """PyTorch nn.MultiheadAttention forward (no dropout), batched over B.

    q_flat: (B*Tq, EMB), kv_flat: (B*Tk, EMB), rows batch-major.
    in_w_t: (EMB, 3*EMB) = [Wq^T | Wk^T | Wv^T], in_b: (1, 3*EMB)
    out_w_t: (EMB, EMB) = Wo^T, out_b: (1, EMB)
    returns (B*Tq, EMB), rows batch-major.
    """
    q = jnp.dot(q_flat, in_w_t[:, 0:EMB],
                preferred_element_type=jnp.float32) + in_b[:, 0:EMB]
    kv = jnp.dot(kv_flat, in_w_t[:, EMB:3 * EMB],
                 preferred_element_type=jnp.float32) + in_b[:, EMB:3 * EMB]
    q3 = q.reshape(B, Tq, EMB)
    k3 = kv[:, 0:EMB].reshape(B, Tk, EMB)
    v3 = kv[:, EMB:2 * EMB].reshape(B, Tk, EMB)

    scale = 1.0 / (float(HDIM) ** 0.5)
    # TODO(synk): a fully head-batched einsum ('bqhd,bkhd->bhqk') requires a
    # multi-batch-dim dot_general / 4-D major transpose which Mosaic does not
    # lower reliably; the static 4-head loop is retained (known to compile,
    # and each head matmul is tiny: Tq,Tk<=8, HDIM=8, executed once per call).
    head_outs = []
    for hd in range(NHEAD):
        sl = slice(hd * HDIM, (hd + 1) * HDIM)
        qh, kh, vh = q3[:, :, sl], k3[:, :, sl], v3[:, :, sl]
        s = jnp.einsum('bqd,bkd->bqk', qh, kh,
                       preferred_element_type=jnp.float32) * scale
        s = s - jnp.max(s, axis=-1, keepdims=True)
        p = jnp.exp(s)
        # exact divide kept: approx reciprocal (EUP) risks drifting past the
        # 1e-4 reference tolerance and this is not on the MXU critical slot.
        p = p / jnp.sum(p, axis=-1, keepdims=True)
        head_outs.append(jnp.einsum('bqk,bkd->bqd', p, vh,
                                    preferred_element_type=jnp.float32))
    o = jnp.concatenate(head_outs, axis=-1).reshape(B * Tq, EMB)
    # single output projection (== concat heads @ Wo)
    return jnp.dot(o, out_w_t, preferred_element_type=jnp.float32) + out_b


# --------------------------------- kernel ----------------------------------

def ci3pp_kernel(xt_ref, xc_ref, perm_ref,
                 w_et_ref, b_et_ref, w_ec_ref, b_ec_ref,
                 m1_inw_ref, m1_inb_ref, m1_ow_ref, m1_ob_ref,
                 m2_inw_ref, m2_inb_ref, m2_ow_ref, m2_ob_ref,
                 enc_wih_ref, enc_whh_ref, enc_bih_ref, enc_bhh_ref,
                 dec_w_ref, dec_b_ref,
                 dg_wih_ref, dg_whh_ref, dg_bih_ref, dg_bhh_ref,
                 hd_w_ref, hd_b_ref,
                 o_ref):
    B, T_obs, _ = xt_ref.shape
    T_car = xc_ref.shape[1]
    n_pred = o_ref.shape[0] // B

    # --- time-distributed Linear(2,32)+ReLU embedders on the VPU ------------
    xt = xt_ref[...].reshape(B * T_obs, 2)
    xc = xc_ref[...].reshape(B * T_car, 2)
    w_et = w_et_ref[...]
    w_ec = w_ec_ref[...]
    e_traj = jnp.maximum(
        xt[:, 0:1] * w_et[0:1, :] + xt[:, 1:2] * w_et[1:2, :] + b_et_ref[...], 0.0)
    e_car = jnp.maximum(
        xc[:, 0:1] * w_ec[0:1, :] + xc[:, 1:2] * w_ec[1:2, :] + b_ec_ref[...], 0.0)

    # --- cross attention both ways (batched over B) --------------------------
    mh_tc = _mha_batched(e_traj, e_car, B, T_obs, T_car,
                         m1_inw_ref[...], m1_inb_ref[...],
                         m1_ow_ref[...], m1_ob_ref[...])      # (B*T_obs, EMB)
    mh_ct = _mha_batched(e_car, e_traj, B, T_car, T_obs,
                         m2_inw_ref[...], m2_inb_ref[...],
                         m2_ow_ref[...], m2_ob_ref[...])      # (B*T_car, EMB)

    # --- fused encoder GRUs: block-diag weights, hidden = [h_traj | h_car] ---
    mh_both = jnp.concatenate([mh_tc, mh_ct], axis=-1)        # (B*T, 2*EMB) b-major
    # batch-major -> time-major row permutation done on the MXU with a tiny
    # constant 0/1 matrix (no strided gathers inside the recurrent loop).
    mh_tm = jnp.dot(perm_ref[...], mh_both,
                    preferred_element_type=jnp.float32)       # (T*B, 2*EMB) t-major
    xg_all = jnp.dot(mh_tm, enc_wih_ref[...],
                     preferred_element_type=jnp.float32) + enc_bih_ref[...]  # (T*B, 6*HID)

    HW = 2 * HID
    enc_whh = enc_whh_ref[...]
    enc_bhh_b = jnp.broadcast_to(enc_bhh_ref[...], (B, 3 * HW))   # hoisted broadcast
    h = jnp.zeros((B, HW), jnp.float32)
    for t in range(T_obs):                          # static, small trip count
        xg = xg_all[t * B:(t + 1) * B, :]           # contiguous (B, 6*HID) slab
        hg = jnp.dot(h, enc_whh, preferred_element_type=jnp.float32) + enc_bhh_b
        r = jax.nn.sigmoid(xg[:, 0:HW] + hg[:, 0:HW])
        z = jax.nn.sigmoid(xg[:, HW:2 * HW] + hg[:, HW:2 * HW])
        n = jnp.tanh(xg[:, 2 * HW:] + r * hg[:, 2 * HW:])
        h = (1.0 - z) * n + z * h

    # --- decoder Linear(256,128)+ReLU ----------------------------------------
    dec = jnp.maximum(
        jnp.dot(h, dec_w_ref[...],
                preferred_element_type=jnp.float32) + dec_b_ref[...], 0.0)  # (B, 128)

    # --- decoder GRU: same input vector fed at every predicted step ----------
    xg_dec = jnp.dot(dec, dg_wih_ref[...],
                     preferred_element_type=jnp.float32) + dg_bih_ref[...]  # (B, 384)
    dg_whh = dg_whh_ref[...]
    dg_bhh_b = jnp.broadcast_to(dg_bhh_ref[...], (B, 3 * HID))     # hoisted broadcast
    hd = jnp.zeros((B, HID), jnp.float32)
    hs = []                                          # hidden states stay in vregs
    for t in range(n_pred):
        hg = jnp.dot(hd, dg_whh, preferred_element_type=jnp.float32) + dg_bhh_b
        r = jax.nn.sigmoid(xg_dec[:, 0:HID] + hg[:, 0:HID])
        z = jax.nn.sigmoid(xg_dec[:, HID:2 * HID] + hg[:, HID:2 * HID])
        n = jnp.tanh(xg_dec[:, 2 * HID:] + r * hg[:, 2 * HID:])
        hd = (1.0 - z) * n + z * hd
        hs.append(hd)

    # --- prediction head: one consolidated matmul, flat output store ---------
    hall = jnp.concatenate(hs, axis=0)               # (n_pred*B, HID), time-major
    pred = jnp.dot(hall, hd_w_ref[...],
                   preferred_element_type=jnp.float32) + hd_b_ref[...]
    o_ref[...] = pred                                # flat (n_pred*B, 2)


# ----------------------------- params & wrapper -----------------------------

PARAM_SHAPES = [
    ("w_et", (2, EMB)), ("b_et", (1, EMB)),
    ("w_ec", (2, EMB)), ("b_ec", (1, EMB)),
    ("m1_inw", (EMB, 3 * EMB)), ("m1_inb", (1, 3 * EMB)), ("m1_ow", (EMB, EMB)), ("m1_ob", (1, EMB)),
    ("m2_inw", (EMB, 3 * EMB)), ("m2_inb", (1, 3 * EMB)), ("m2_ow", (EMB, EMB)), ("m2_ob", (1, EMB)),
    ("tg_wih", (EMB, 3 * HID)), ("tg_whh", (HID, 3 * HID)), ("tg_bih", (1, 3 * HID)), ("tg_bhh", (1, 3 * HID)),
    ("cg_wih", (EMB, 3 * HID)), ("cg_whh", (HID, 3 * HID)), ("cg_bih", (1, 3 * HID)), ("cg_bhh", (1, 3 * HID)),
    ("dec_w", (2 * HID, HID)), ("dec_b", (1, HID)),
    ("dg_wih", (HID, 3 * HID)), ("dg_whh", (HID, 3 * HID)), ("dg_bih", (1, 3 * HID)), ("dg_bhh", (1, 3 * HID)),
    ("hd_w", (HID, 2)), ("hd_b", (1, 2)),
]


def init_params(key):
    keys = jax.random.split(key, len(PARAM_SHAPES))
    params = {}
    for (name, shape), k in zip(PARAM_SHAPES, keys):
        scale = 0.05 if shape[0] == 1 else 0.1   # biases smaller
        params[name] = jax.random.normal(k, shape, jnp.float32) * scale
    return params


def _fuse_gru_w(tw, cw):
    """Block-diagonal [traj | car] GRU weight; columns ordered (r_t r_c | z_t z_c | n_t n_c)."""
    H = HID
    zt = jnp.zeros((tw.shape[0], H), jnp.float32)
    zc = jnp.zeros((cw.shape[0], H), jnp.float32)
    top = jnp.concatenate([tw[:, 0:H], zt, tw[:, H:2 * H], zt, tw[:, 2 * H:], zt], axis=1)
    bot = jnp.concatenate([zc, cw[:, 0:H], zc, cw[:, H:2 * H], zc, cw[:, 2 * H:]], axis=1)
    return jnp.concatenate([top, bot], axis=0)


def _fuse_gru_b(tb, cb):
    H = HID
    return jnp.concatenate([tb[:, 0:H], cb[:, 0:H],
                            tb[:, H:2 * H], cb[:, H:2 * H],
                            tb[:, 2 * H:], cb[:, 2 * H:]], axis=1)


def ci3pp_forward(x_traj, x_car, params, n_pred):
    B, T_obs, _ = x_traj.shape
    T_car = x_car.shape[1]
    # The two independent encoder GRUs are fused into one block-diagonal
    # recurrence, which requires equal observed sequence lengths.
    # TODO(synk): add an unfused (separate-recurrence) path if T_obs != T_car
    # is ever needed (also the preferred layout on v5e's 128-wide MXU).
    assert T_obs == T_car, "fused encoder GRUs require equal traj/car sequence lengths"

    enc_wih = _fuse_gru_w(params['tg_wih'], params['cg_wih'])   # (2*EMB, 6*HID)
    enc_whh = _fuse_gru_w(params['tg_whh'], params['cg_whh'])   # (2*HID, 6*HID)
    enc_bih = _fuse_gru_b(params['tg_bih'], params['cg_bih'])   # (1, 6*HID)
    enc_bhh = _fuse_gru_b(params['tg_bhh'], params['cg_bhh'])   # (1, 6*HID)

    # constant batch-major -> time-major row permutation matrix (applied on MXU)
    perm_np = np.zeros((T_obs * B, B * T_obs), np.float32)
    for t in range(T_obs):
        for b in range(B):
            perm_np[t * B + b, b * T_obs + t] = 1.0
    perm = jnp.asarray(perm_np)

    args = [
        x_traj, x_car, perm,
        params['w_et'], params['b_et'], params['w_ec'], params['b_ec'],
        params['m1_inw'], params['m1_inb'], params['m1_ow'], params['m1_ob'],
        params['m2_inw'], params['m2_inb'], params['m2_ow'], params['m2_ob'],
        enc_wih, enc_whh, enc_bih, enc_bhh,
        params['dec_w'], params['dec_b'],
        params['dg_wih'], params['dg_whh'], params['dg_bih'], params['dg_bhh'],
        params['hd_w'], params['hd_b'],
    ]

    def full_spec(shape):
        nd = len(shape)
        return pl.BlockSpec(shape, lambda i, _nd=nd: (0,) * _nd)

    out = pl.pallas_call(
        ci3pp_kernel,
        out_shape=jax.ShapeDtypeStruct((n_pred * B, 2), jnp.float32),
        grid=(1,),                                   # whole batch in one invocation
        in_specs=[full_spec(a.shape) for a in args],
        out_specs=full_spec((n_pred * B, 2)),
        compiler_params=pltpu.CompilerParams(dimension_semantics=("arbitrary",)),
    )(*args)
    # TODO(synk): on v7x, split the batch across the two TensorCores
    # (grid=(2,), B-sliced BlockSpecs, dimension_semantics=("parallel",)).
    return jnp.transpose(out.reshape(n_pred, B, 2), (1, 0, 2))   # (B, n_pred, 2)


# ------------------------- pure-JAX reference -------------------------------

def ref_single(xt, xc, p, n_pred):
    e_t = jax.nn.relu(xt @ p['w_et'] + p['b_et'][0])
    e_c = jax.nn.relu(xc @ p['w_ec'] + p['b_ec'][0])

    def mha(q_in, kv_in, inw, inb, ow, ob):
        q = q_in @ inw[:, :EMB] + inb[0, :EMB]
        k = kv_in @ inw[:, EMB:2 * EMB] + inb[0, EMB:2 * EMB]
        v = kv_in @ inw[:, 2 * EMB:] + inb[0, 2 * EMB:]
        Tq, Tk = q.shape[0], k.shape[0]
        qh = q.reshape(Tq, NHEAD, HDIM).transpose(1, 0, 2)
        kh = k.reshape(Tk, NHEAD, HDIM).transpose(1, 0, 2)
        vh = v.reshape(Tk, NHEAD, HDIM).transpose(1, 0, 2)
        s = jnp.einsum('hqd,hkd->hqk', qh, kh) / jnp.sqrt(jnp.float32(HDIM))
        a = jax.nn.softmax(s, axis=-1)
        oh = jnp.einsum('hqk,hkd->hqd', a, vh)
        o = oh.transpose(1, 0, 2).reshape(Tq, EMB)
        return o @ ow + ob[0]

    mh_tc = mha(e_t, e_c, p['m1_inw'], p['m1_inb'], p['m1_ow'], p['m1_ob'])
    mh_ct = mha(e_c, e_t, p['m2_inw'], p['m2_inb'], p['m2_ow'], p['m2_ob'])

    def gru(x, wih, whh, bih, bhh, steps=None, const_input=False):
        h = jnp.zeros((HID,), jnp.float32)
        outs = []
        T = steps if steps is not None else x.shape[0]
        for t in range(T):
            xt_ = x if const_input else x[t]
            xg = xt_ @ wih + bih[0]
            hg = h @ whh + bhh[0]
            r = jax.nn.sigmoid(xg[:HID] + hg[:HID])
            z = jax.nn.sigmoid(xg[HID:2 * HID] + hg[HID:2 * HID])
            n = jnp.tanh(xg[2 * HID:] + r * hg[2 * HID:])
            h = (1 - z) * n + z * h
            outs.append(h)
        return h, jnp.stack(outs)

    h_t, _ = gru(mh_tc, p['tg_wih'], p['tg_whh'], p['tg_bih'], p['tg_bhh'])
    h_c, _ = gru(mh_ct, p['cg_wih'], p['cg_whh'], p['cg_bih'], p['cg_bhh'])
    stacked = jnp.concatenate([h_t, h_c], axis=-1)
    dec = jax.nn.relu(stacked @ p['dec_w'] + p['dec_b'][0])
    _, hall = gru(dec, p['dg_wih'], p['dg_whh'], p['dg_bih'], p['dg_bhh'],
                  steps=n_pred, const_input=True)
    return hall @ p['hd_w'] + p['hd_b'][0]


# --------------------------------- main --------------------------------------

if __name__ == "__main__":
    key = jax.random.PRNGKey(0)
    B, n_obs, n_car, n_pred = 2, 8, 8, 8
    k1, k2, kp = jax.random.split(key, 3)
    x_traj = jax.random.normal(k1, (B, n_obs, 2), jnp.float32)
    x_car = jax.random.normal(k2, (B, n_car, 2), jnp.float32)
    params = init_params(kp)

    out = ci3pp_forward(x_traj, x_car, params, n_pred)
    out = jax.block_until_ready(out)
    assert out.shape == (B, n_pred, 2)

    ref = jax.vmap(functools.partial(ref_single, p=params, n_pred=n_pred))(x_traj, x_car)
    np.testing.assert_allclose(np.asarray(out), np.asarray(ref), atol=1e-4, rtol=1e-3)

    print("KERNEL_OK")
</pallas_src>

<mosaic_0001>
module attributes {stable_mosaic.version = 11 : i64} {
  func.func @ci3pp_kernel(%arg0: i32, %arg1: memref<2x8x2xf32, #tpu.memory_space<vmem>>, %arg2: memref<2x8x2xf32, #tpu.memory_space<vmem>>, %arg3: memref<16x16xf32, #tpu.memory_space<vmem>>, %arg4: memref<2x32xf32, #tpu.memory_space<vmem>>, %arg5: memref<1x32xf32, #tpu.memory_space<vmem>>, %arg6: memref<2x32xf32, #tpu.memory_space<vmem>>, %arg7: memref<1x32xf32, #tpu.memory_space<vmem>>, %arg8: memref<32x96xf32, #tpu.memory_space<vmem>>, %arg9: memref<1x96xf32, #tpu.memory_space<vmem>>, %arg10: memref<32x32xf32, #tpu.memory_space<vmem>>, %arg11: memref<1x32xf32, #tpu.memory_space<vmem>>, %arg12: memref<32x96xf32, #tpu.memory_space<vmem>>, %arg13: memref<1x96xf32, #tpu.memory_space<vmem>>, %arg14: memref<32x32xf32, #tpu.memory_space<vmem>>, %arg15: memref<1x32xf32, #tpu.memory_space<vmem>>, %arg16: memref<64x768xf32, #tpu.memory_space<vmem>>, %arg17: memref<256x768xf32, #tpu.memory_space<vmem>>, %arg18: memref<1x768xf32, #tpu.memory_space<vmem>>, %arg19: memref<1x768xf32, #tpu.memory_space<vmem>>, %arg20: memref<256x128xf32, #tpu.memory_space<vmem>>, %arg21: memref<1x128xf32, #tpu.memory_space<vmem>>, %arg22: memref<128x384xf32, #tpu.memory_space<vmem>>, %arg23: memref<128x384xf32, #tpu.memory_space<vmem>>, %arg24: memref<1x384xf32, #tpu.memory_space<vmem>>, %arg25: memref<1x384xf32, #tpu.memory_space<vmem>>, %arg26: memref<128x2xf32, #tpu.memory_space<vmem>>, %arg27: memref<1x2xf32, #tpu.memory_space<vmem>>, %arg28: memref<16x2xf32, #tpu.memory_space<vmem>>) attributes {dimension_semantics = [#tpu.dimension_semantics<arbitrary>], iteration_bounds = array<i64: 1>, scalar_prefetch = 0 : i64, scratch_operands = 0 : i64, tpu.core_type = #tpu.core_type<tc>, window_params = [{pipeline_mode = #tpu.pipeline_mode<synchronous>, transform_indices = @transform_0, window_bounds = array<i64: 2, 8, 2>}, {pipeline_mode = #tpu.pipeline_mode<synchronous>, transform_indices = @transform_1, window_bounds = array<i64: 2, 8, 2>}, {pipeline_mode = #tpu.pipeline_mode<synchronous>, transform_indices = @transform_2, window_bounds = array<i64: 16, 16>}, {pipeline_mode = #tpu.pipeline_mode<synchronous>, transform_indices = @transform_3, window_bounds = array<i64: 2, 32>}, {pipeline_mode = #tpu.pipeline_mode<synchronous>, transform_indices = @transform_4, window_bounds = array<i64: 1, 32>}, {pipeline_mode = #tpu.pipeline_mode<synchronous>, transform_indices = @transform_5, window_bounds = array<i64: 2, 32>}, {pipeline_mode = #tpu.pipeline_mode<synchronous>, transform_indices = @transform_6, window_bounds = array<i64: 1, 32>}, {pipeline_mode = #tpu.pipeline_mode<synchronous>, transform_indices = @transform_7, window_bounds = array<i64: 32, 96>}, {pipeline_mode = #tpu.pipeline_mode<synchronous>, transform_indices = @transform_8, window_bounds = array<i64: 1, 96>}, {pipeline_mode = #tpu.pipeline_mode<synchronous>, transform_indices = @transform_9, window_bounds = array<i64: 32, 32>}, {pipeline_mode = #tpu.pipeline_mode<synchronous>, transform_indices = @transform_10, window_bounds = array<i64: 1, 32>}, {pipeline_mode = #tpu.pipeline_mode<synchronous>, transform_indices = @transform_11, window_bounds = array<i64: 32, 96>}, {pipeline_mode = #tpu.pipeline_mode<synchronous>, transform_indices = @transform_12, window_bounds = array<i64: 1, 96>}, {pipeline_mode = #tpu.pipeline_mode<synchronous>, transform_indices = @transform_13, window_bounds = array<i64: 32, 32>}, {pipeline_mode = #tpu.pipeline_mode<synchronous>, transform_indices = @transform_14, window_bounds = array<i64: 1, 32>}, {pipeline_mode = #tpu.pipeline_mode<synchronous>, transform_indices = @transform_15, window_bounds = array<i64: 64, 768>}, {pipeline_mode = #tpu.pipeline_mode<synchronous>, transform_indices = @transform_16, window_bounds = array<i64: 256, 768>}, {pipeline_mode = #tpu.pipeline_mode<synchronous>, transform_indices = @transform_17, window_bounds = array<i64: 1, 768>}, {pipeline_mode = #tpu.pipeline_mode<synchronous>, transform_indices = @transform_18, window_bounds = array<i64: 1, 768>}, {pipeline_mode = #tpu.pipeline_mode<synchronous>, transform_indices = @transform_19, window_bounds = array<i64: 256, 128>}, {pipeline_mode = #tpu.pipeline_mode<synchronous>, transform_indices = @transform_20, window_bounds = array<i64: 1, 128>}, {pipeline_mode = #tpu.pipeline_mode<synchronous>, transform_indices = @transform_21, window_bounds = array<i64: 128, 384>}, {pipeline_mode = #tpu.pipeline_mode<synchronous>, transform_indices = @transform_22, window_bounds = array<i64: 128, 384>}, {pipeline_mode = #tpu.pipeline_mode<synchronous>, transform_indices = @transform_23, window_bounds = array<i64: 1, 384>}, {pipeline_mode = #tpu.pipeline_mode<synchronous>, transform_indices = @transform_24, window_bounds = array<i64: 1, 384>}, {pipeline_mode = #tpu.pipeline_mode<synchronous>, transform_indices = @transform_25, window_bounds = array<i64: 128, 2>}, {pipeline_mode = #tpu.pipeline_mode<synchronous>, transform_indices = @transform_26, window_bounds = array<i64: 1, 2>}, {pipeline_mode = #tpu.pipeline_mode<synchronous>, transform_indices = @transform_27, window_bounds = array<i64: 16, 2>}]} {
    %c0 = arith.constant 0 : index
    %c0_0 = arith.constant 0 : index
    %c0_1 = arith.constant 0 : index
    %0 = vector.load %arg1[%c0, %c0_0, %c0_1] : memref<2x8x2xf32, #tpu.memory_space<vmem>>, vector<2x8x2xf32>
    %1 = vector.shape_cast %0 : vector<2x8x2xf32> to vector<16x2xf32>
    %c0_2 = arith.constant 0 : index
    %c0_3 = arith.constant 0 : index
    %c0_4 = arith.constant 0 : index
    %2 = vector.load %arg2[%c0_2, %c0_3, %c0_4] : memref<2x8x2xf32, #tpu.memory_space<vmem>>, vector<2x8x2xf32>
    %3 = vector.shape_cast %2 : vector<2x8x2xf32> to vector<16x2xf32>
    %c0_5 = arith.constant 0 : index
    %c0_6 = arith.constant 0 : index
    %4 = vector.load %arg4[%c0_5, %c0_6] : memref<2x32xf32, #tpu.memory_space<vmem>>, vector<2x32xf32>
    %c0_7 = arith.constant 0 : index
    %c0_8 = arith.constant 0 : index
    %5 = vector.load %arg6[%c0_7, %c0_8] : memref<2x32xf32, #tpu.memory_space<vmem>>, vector<2x32xf32>
    %6 = vector.extract_strided_slice %1 {offsets = [0, 0], sizes = [16, 1], strides = [1, 1]} : vector<16x2xf32> to vector<16x1xf32>
    %7 = vector.extract_strided_slice %4 {offsets = [0, 0], sizes = [1, 32], strides = [1, 1]} : vector<2x32xf32> to vector<1x32xf32>
    %8 = vector.broadcast %6 : vector<16x1xf32> to vector<16x32xf32>
    %9 = vector.broadcast %7 : vector<1x32xf32> to vector<16x32xf32>
    %10 = arith.mulf %8, %9 : vector<16x32xf32>
    %11 = vector.extract_strided_slice %1 {offsets = [0, 1], sizes = [16, 1], strides = [1, 1]} : vector<16x2xf32> to vector<16x1xf32>
    %12 = vector.extract_strided_slice %4 {offsets = [1, 0], sizes = [1, 32], strides = [1, 1]} : vector<2x32xf32> to vector<1x32xf32>
    %13 = vector.broadcast %11 : vector<16x1xf32> to vector<16x32xf32>
    %14 = vector.broadcast %12 : vector<1x32xf32> to vector<16x32xf32>
    %15 = arith.mulf %13, %14 : vector<16x32xf32>
    %16 = arith.addf %10, %15 : vector<16x32xf32>
    %c0_9 = arith.constant 0 : index
    %c0_10 = arith.constant 0 : index
    %17 = vector.load %arg5[%c0_9, %c0_10] : memref<1x32xf32, #tpu.memory_space<vmem>>, vector<1x32xf32>
    %18 = vector.broadcast %17 : vector<1x32xf32> to vector<16x32xf32>
    %19 = arith.addf %16, %18 : vector<16x32xf32>
    %cst = arith.constant 0.000000e+00 : f32
    %20 = vector.broadcast %cst : f32 to vector<16x32xf32>
    %21 = arith.maximumf %19, %20 : vector<16x32xf32>
    %22 = vector.extract_strided_slice %3 {offsets = [0, 0], sizes = [16, 1], strides = [1, 1]} : vector<16x2xf32> to vector<16x1xf32>
    %23 = vector.extract_strided_slice %5 {offsets = [0, 0], sizes = [1, 32], strides = [1, 1]} : vector<2x32xf32> to vector<1x32xf32>
    %24 = vector.broadcast %22 : vector<16x1xf32> to vector<16x32xf32>
    %25 = vector.broadcast %23 : vector<1x32xf32> to vector<16x32xf32>
    %26 = arith.mulf %24, %25 : vector<16x32xf32>
    %27 = vector.extract_strided_slice %3 {offsets = [0, 1], sizes = [16, 1], strides = [1, 1]} : vector<16x2xf32> to vector<16x1xf32>
    %28 = vector.extract_strided_slice %5 {offsets = [1, 0], sizes = [1, 32], strides = [1, 1]} : vector<2x32xf32> to vector<1x32xf32>
    %29 = vector.broadcast %27 : vector<16x1xf32> to vector<16x32xf32>
    %30 = vector.broadcast %28 : vector<1x32xf32> to vector<16x32xf32>
    %31 = arith.mulf %29, %30 : vector<16x32xf32>
    %32 = arith.addf %26, %31 : vector<16x32xf32>
    %c0_11 = arith.constant 0 : index
    %c0_12 = arith.constant 0 : index
    %33 = vector.load %arg7[%c0_11, %c0_12] : memref<1x32xf32, #tpu.memory_space<vmem>>, vector<1x32xf32>
    %34 = vector.broadcast %33 : vector<1x32xf32> to vector<16x32xf32>
    %35 = arith.addf %32, %34 : vector<16x32xf32>
    %cst_13 = arith.constant 0.000000e+00 : f32
    %36 = vector.broadcast %cst_13 : f32 to vector<16x32xf32>
    %37 = arith.maximumf %35, %36 : vector<16x32xf32>
    %c0_14 = arith.constant 0 : index
    %c0_15 = arith.constant 0 : index
    %38 = vector.load %arg8[%c0_14, %c0_15] : memref<32x96xf32, #tpu.memory_space<vmem>>, vector<32x96xf32>
    %c0_16 = arith.constant 0 : index
    %c0_17 = arith.constant 0 : index
    %39 = vector.load %arg9[%c0_16, %c0_17] : memref<1x96xf32, #tpu.memory_space<vmem>>, vector<1x96xf32>
    %c0_18 = arith.constant 0 : index
    %c0_19 = arith.constant 0 : index
    %40 = vector.load %arg10[%c0_18, %c0_19] : memref<32x32xf32, #tpu.memory_space<vmem>>, vector<32x32xf32>
    %c0_20 = arith.constant 0 : index
    %c0_21 = arith.constant 0 : index
    %41 = vector.load %arg11[%c0_20, %c0_21] : memref<1x32xf32, #tpu.memory_space<vmem>>, vector<1x32xf32>
    %42 = vector.extract_strided_slice %38 {offsets = [0, 0], sizes = [32, 32], strides = [1, 1]} : vector<32x96xf32> to vector<32x32xf32>
    %cst_22 = arith.constant dense<0.000000e+00> : vector<16x32xf32>
    %43 = tpu.matmul %21, %42, %cst_22 {dimension_numbers = #tpu.dot_dimension_numbers<[1], [0], [0], [1], [0, 0, 1, 1], [], []>} : vector<16x32xf32>, vector<32x32xf32>, vector<16x32xf32> -> vector<16x32xf32>
    %44 = vector.extract_strided_slice %39 {offsets = [0, 0], sizes = [1, 32], strides = [1, 1]} : vector<1x96xf32> to vector<1x32xf32>
    %45 = vector.broadcast %44 : vector<1x32xf32> to vector<16x32xf32>
    %46 = arith.addf %43, %45 : vector<16x32xf32>
    %47 = vector.extract_strided_slice %38 {offsets = [0, 32], sizes = [32, 64], strides = [1, 1]} : vector<32x96xf32> to vector<32x64xf32>
    %cst_23 = arith.constant dense<0.000000e+00> : vector<16x64xf32>
    %48 = tpu.matmul %37, %47, %cst_23 {dimension_numbers = #tpu.dot_dimension_numbers<[1], [0], [0], [1], [0, 0, 1, 1], [], []>} : vector<16x32xf32>, vector<32x64xf32>, vector<16x64xf32> -> vector<16x64xf32>
    %49 = vector.extract_strided_slice %39 {offsets = [0, 32], sizes = [1, 64], strides = [1, 1]} : vector<1x96xf32> to vector<1x64xf32>
    %50 = vector.broadcast %49 : vector<1x64xf32> to vector<16x64xf32>
    %51 = arith.addf %48, %50 : vector<16x64xf32>
    %52 = vector.shape_cast %46 : vector<16x32xf32> to vector<2x8x32xf32>
    %53 = vector.extract_strided_slice %51 {offsets = [0, 0], sizes = [16, 32], strides = [1, 1]} : vector<16x64xf32> to vector<16x32xf32>
    %54 = vector.shape_cast %53 : vector<16x32xf32> to vector<2x8x32xf32>
    %55 = vector.extract_strided_slice %51 {offsets = [0, 32], sizes = [16, 32], strides = [1, 1]} : vector<16x64xf32> to vector<16x32xf32>
    %56 = vector.shape_cast %55 : vector<16x32xf32> to vector<2x8x32xf32>
    %57 = vector.extract_strided_slice %52 {offsets = [0, 0, 0], sizes = [2, 8, 8], strides = [1, 1, 1]} : vector<2x8x32xf32> to vector<2x8x8xf32>
    %58 = vector.extract_strided_slice %54 {offsets = [0, 0, 0], sizes = [2, 8, 8], strides = [1, 1, 1]} : vector<2x8x32xf32> to vector<2x8x8xf32>
    %59 = vector.extract_strided_slice %56 {offsets = [0, 0, 0], sizes = [2, 8, 8], strides = [1, 1, 1]} : vector<2x8x32xf32> to vector<2x8x8xf32>
    "tpu.trace_start"() <{level = 10 : i32, message = "bqd,bkd->bqk"}> : () -> ()
    %cst_24 = arith.constant dense<0.000000e+00> : vector<2x8x8xf32>
    %60 = tpu.matmul %57, %58, %cst_24 {dimension_numbers = #tpu.dot_dimension_numbers<[2], [2], [1], [1], [0, 0, 0, 1, 1, 1], [0], [0]>} : vector<2x8x8xf32>, vector<2x8x8xf32>, vector<2x8x8xf32> -> vector<2x8x8xf32>
    "tpu.trace_stop"() : () -> ()
    %cst_25 = arith.constant 0.353553385 : f32
    %61 = vector.broadcast %cst_25 : f32 to vector<2x8x8xf32>
    %62 = arith.mulf %60, %61 : vector<2x8x8xf32>
    %cst_26 = arith.constant dense<0xFF800000> : vector<2x8xf32>
    %63 = vector.multi_reduction <maximumf>, %62, %cst_26 [2] : vector<2x8x8xf32> to vector<2x8xf32>
    %64 = vector.shape_cast %63 : vector<2x8xf32> to vector<2x8x1xf32>
    %65 = vector.broadcast %64 : vector<2x8x1xf32> to vector<2x8x8xf32>
    %66 = arith.subf %62, %65 : vector<2x8x8xf32>
    %67 = math.exp %66 : vector<2x8x8xf32>
    %cst_27 = arith.constant dense<0.000000e+00> : vector<2x8xf32>
    %68 = vector.multi_reduction <add>, %67, %cst_27 [2] : vector<2x8x8xf32> to vector<2x8xf32>
    %69 = vector.shape_cast %68 : vector<2x8xf32> to vector<2x8x1xf32>
    %70 = vector.broadcast %69 : vector<2x8x1xf32> to vector<2x8x8xf32>
    %71 = arith.divf %67, %70 : vector<2x8x8xf32>
    "tpu.trace_start"() <{level = 10 : i32, message = "bqk,bkd->bqd"}> : () -> ()
    %cst_28 = arith.constant dense<0.000000e+00> : vector<2x8x8xf32>
    %72 = tpu.matmul %71, %59, %cst_28 {dimension_numbers = #tpu.dot_dimension_numbers<[2], [1], [1], [2], [0, 0, 0, 1, 1, 2], [0], [0]>} : vector<2x8x8xf32>, vector<2x8x8xf32>, vector<2x8x8xf32> -> vector<2x8x8xf32>
    "tpu.trace_stop"() : () -> ()
    %73 = vector.extract_strided_slice %52 {offsets = [0, 0, 8], sizes = [2, 8, 8], strides = [1, 1, 1]} : vector<2x8x32xf32> to vector<2x8x8xf32>
    %74 = vector.extract_strided_slice %54 {offsets = [0, 0, 8], sizes = [2, 8, 8], strides = [1, 1, 1]} : vector<2x8x32xf32> to vector<2x8x8xf32>
    %75 = vector.extract_strided_slice %56 {offsets = [0, 0, 8], sizes = [2, 8, 8], strides = [1, 1, 1]} : vector<2x8x32xf32> to vector<2x8x8xf32>
    "tpu.trace_start"() <{level = 10 : i32, message = "bqd,bkd->bqk"}> : () -> ()
    %cst_29 = arith.constant dense<0.000000e+00> : vector<2x8x8xf32>
    %76 = tpu.matmul %73, %74, %cst_29 {dimension_numbers = #tpu.dot_dimension_numbers<[2], [2], [1], [1], [0, 0, 0, 1, 1, 1], [0], [0]>} : vector<2x8x8xf32>, vector<2x8x8xf32>, vector<2x8x8xf32> -> vector<2x8x8xf32>
    "tpu.trace_stop"() : () -> ()
    %cst_30 = arith.constant 0.353553385 : f32
    %77 = vector.broadcast %cst_30 : f32 to vector<2x8x8xf32>
    %78 = arith.mulf %76, %77 : vector<2x8x8xf32>
    %cst_31 = arith.constant dense<0xFF800000> : vector<2x8xf32>
    %79 = vector.multi_reduction <maximumf>, %78, %cst_31 [2] : vector<2x8x8xf32> to vector<2x8xf32>
    %80 = vector.shape_cast %79 : vector<2x8xf32> to vector<2x8x1xf32>
    %81 = vector.broadcast %80 : vector<2x8x1xf32> to vector<2x8x8xf32>
    %82 = arith.subf %78, %81 : vector<2x8x8xf32>
    %83 = math.exp %82 : vector<2x8x8xf32>
    %cst_32 = arith.constant dense<0.000000e+00> : vector<2x8xf32>
    %84 = vector.multi_reduction <add>, %83, %cst_32 [2] : vector<2x8x8xf32> to vector<2x8xf32>
    %85 = vector.shape_cast %84 : vector<2x8xf32> to vector<2x8x1xf32>
    %86 = vector.broadcast %85 : vector<2x8x1xf32> to vector<2x8x8xf32>
    %87 = arith.divf %83, %86 : vector<2x8x8xf32>
    "tpu.trace_start"() <{level = 10 : i32, message = "bqk,bkd->bqd"}> : () -> ()
    %cst_33 = arith.constant dense<0.000000e+00> : vector<2x8x8xf32>
    %88 = tpu.matmul %87, %75, %cst_33 {dimension_numbers = #tpu.dot_dimension_numbers<[2], [1], [1], [2], [0, 0, 0, 1, 1, 2], [0], [0]>} : vector<2x8x8xf32>, vector<2x8x8xf32>, vector<2x8x8xf32> -> vector<2x8x8xf32>
    "tpu.trace_stop"() : () -> ()
    %89 = vector.extract_strided_slice %52 {offsets = [0, 0, 16], sizes = [2, 8, 8], strides = [1, 1, 1]} : vector<2x8x32xf32> to vector<2x8x8xf32>
    %90 = vector.extract_strided_slice %54 {offsets = [0, 0, 16], sizes = [2, 8, 8], strides = [1, 1, 1]} : vector<2x8x32xf32> to vector<2x8x8xf32>
    %91 = vector.extract_strided_slice %56 {offsets = [0, 0, 16], sizes = [2, 8, 8], strides = [1, 1, 1]} : vector<2x8x32xf32> to vector<2x8x8xf32>
    "tpu.trace_start"() <{level = 10 : i32, message = "bqd,bkd->bqk"}> : () -> ()
    %cst_34 = arith.constant dense<0.000000e+00> : vector<2x8x8xf32>
    %92 = tpu.matmul %89, %90, %cst_34 {dimension_numbers = #tpu.dot_dimension_numbers<[2], [2], [1], [1], [0, 0, 0, 1, 1, 1], [0], [0]>} : vector<2x8x8xf32>, vector<2x8x8xf32>, vector<2x8x8xf32> -> vector<2x8x8xf32>
    "tpu.trace_stop"() : () -> ()
    %cst_35 = arith.constant 0.353553385 : f32
    %93 = vector.broadcast %cst_35 : f32 to vector<2x8x8xf32>
    %94 = arith.mulf %92, %93 : vector<2x8x8xf32>
    %cst_36 = arith.constant dense<0xFF800000> : vector<2x8xf32>
    %95 = vector.multi_reduction <maximumf>, %94, %cst_36 [2] : vector<2x8x8xf32> to vector<2x8xf32>
    %96 = vector.shape_cast %95 : vector<2x8xf32> to vector<2x8x1xf32>
    %97 = vector.broadcast %96 : vector<2x8x1xf32> to vector<2x8x8xf32>
    %98 = arith.subf %94, %97 : vector<2x8x8xf32>
    %99 = math.exp %98 : vector<2x8x8xf32>
    %cst_37 = arith.constant dense<0.000000e+00> : vector<2x8xf32>
    %100 = vector.multi_reduction <add>, %99, %cst_37 [2] : vector<2x8x8xf32> to vector<2x8xf32>
    %101 = vector.shape_cast %100 : vector<2x8xf32> to vector<2x8x1xf32>
    %102 = vector.broadcast %101 : vector<2x8x1xf32> to vector<2x8x8xf32>
    %103 = arith.divf %99, %102 : vector<2x8x8xf32>
    "tpu.trace_start"() <{level = 10 : i32, message = "bqk,bkd->bqd"}> : () -> ()
    %cst_38 = arith.constant dense<0.000000e+00> : vector<2x8x8xf32>
    %104 = tpu.matmul %103, %91, %cst_38 {dimension_numbers = #tpu.dot_dimension_numbers<[2], [1], [1], [2], [0, 0, 0, 1, 1, 2], [0], [0]>} : vector<2x8x8xf32>, vector<2x8x8xf32>, vector<2x8x8xf32> -> vector<2x8x8xf32>
    "tpu.trace_stop"() : () -> ()
    %105 = vector.extract_strided_slice %52 {offsets = [0, 0, 24], sizes = [2, 8, 8], strides = [1, 1, 1]} : vector<2x8x32xf32> to vector<2x8x8xf32>
    %106 = vector.extract_strided_slice %54 {offsets = [0, 0, 24], sizes = [2, 8, 8], strides = [1, 1, 1]} : vector<2x8x32xf32> to vector<2x8x8xf32>
    %107 = vector.extract_strided_slice %56 {offsets = [0, 0, 24], sizes = [2, 8, 8], strides = [1, 1, 1]} : vector<2x8x32xf32> to vector<2x8x8xf32>
    "tpu.trace_start"() <{level = 10 : i32, message = "bqd,bkd->bqk"}> : () -> ()
    %cst_39 = arith.constant dense<0.000000e+00> : vector<2x8x8xf32>
    %108 = tpu.matmul %105, %106, %cst_39 {dimension_numbers = #tpu.dot_dimension_numbers<[2], [2], [1], [1], [0, 0, 0, 1, 1, 1], [0], [0]>} : vector<2x8x8xf32>, vector<2x8x8xf32>, vector<2x8x8xf32> -> vector<2x8x8xf32>
    "tpu.trace_stop"() : () -> ()
    %cst_40 = arith.constant 0.353553385 : f32
    %109 = vector.broadcast %cst_40 : f32 to vector<2x8x8xf32>
    %110 = arith.mulf %108, %109 : vector<2x8x8xf32>
    %cst_41 = arith.constant dense<0xFF800000> : vector<2x8xf32>
    %111 = vector.multi_reduction <maximumf>, %110, %cst_41 [2] : vector<2x8x8xf32> to vector<2x8xf32>
    %112 = vector.shape_cast %111 : vector<2x8xf32> to vector<2x8x1xf32>
    %113 = vector.broadcast %112 : vector<2x8x1xf32> to vector<2x8x8xf32>
    %114 = arith.subf %110, %113 : vector<2x8x8xf32>
    %115 = math.exp %114 : vector<2x8x8xf32>
    %cst_42 = arith.constant dense<0.000000e+00> : vector<2x8xf32>
    %116 = vector.multi_reduction <add>, %115, %cst_42 [2] : vector<2x8x8xf32> to vector<2x8xf32>
    %117 = vector.shape_cast %116 : vector<2x8xf32> to vector<2x8x1xf32>
    %118 = vector.broadcast %117 : vector<2x8x1xf32> to vector<2x8x8xf32>
    %119 = arith.divf %115, %118 : vector<2x8x8xf32>
    "tpu.trace_start"() <{level = 10 : i32, message = "bqk,bkd->bqd"}> : () -> ()
    %cst_43 = arith.constant dense<0.000000e+00> : vector<2x8x8xf32>
    %120 = tpu.matmul %119, %107, %cst_43 {dimension_numbers = #tpu.dot_dimension_numbers<[2], [1], [1], [2], [0, 0, 0, 1, 1, 2], [0], [0]>} : vector<2x8x8xf32>, vector<2x8x8xf32>, vector<2x8x8xf32> -> vector<2x8x8xf32>
    "tpu.trace_stop"() : () -> ()
    %121 = tpu.concatenate %72, %88, %104, %120 in 2 : vector<2x8x8xf32>, vector<2x8x8xf32>, vector<2x8x8xf32>, vector<2x8x8xf32> -> vector<2x8x32xf32>
    %122 = vector.shape_cast %121 : vector<2x8x32xf32> to vector<16x32xf32>
    %cst_44 = arith.constant dense<0.000000e+00> : vector<16x32xf32>
    %123 = tpu.matmul %122, %40, %cst_44 {dimension_numbers = #tpu.dot_dimension_numbers<[1], [0], [0], [1], [0, 0, 1, 1], [], []>} : vector<16x32xf32>, vector<32x32xf32>, vector<16x32xf32> -> vector<16x32xf32>
    %124 = vector.broadcast %41 : vector<1x32xf32> to vector<16x32xf32>
    %125 = arith.addf %123, %124 : vector<16x32xf32>
    %c0_45 = arith.constant 0 : index
    %c0_46 = arith.constant 0 : index
    %126 = vector.load %arg12[%c0_45, %c0_46] : memref<32x96xf32, #tpu.memory_space<vmem>>, vector<32x96xf32>
    %c0_47 = arith.constant 0 : index
    %c0_48 = arith.constant 0 : index
    %127 = vector.load %arg13[%c0_47, %c0_48] : memref<1x96xf32, #tpu.memory_space<vmem>>, vector<1x96xf32>
    %c0_49 = arith.constant 0 : index
    %c0_50 = arith.constant 0 : index
    %128 = vector.load %arg14[%c0_49, %c0_50] : memref<32x32xf32, #tpu.memory_space<vmem>>, vector<32x32xf32>
    %c0_51 = arith.constant 0 : index
    %c0_52 = arith.constant 0 : index
    %129 = vector.load %arg15[%c0_51, %c0_52] : memref<1x32xf32, #tpu.memory_space<vmem>>, vector<1x32xf32>
    %130 = vector.extract_strided_slice %126 {offsets = [0, 0], sizes = [32, 32], strides = [1, 1]} : vector<32x96xf32> to vector<32x32xf32>
    %cst_53 = arith.constant dense<0.000000e+00> : vector<16x32xf32>
    %131 = tpu.matmul %37, %130, %cst_53 {dimension_numbers = #tpu.dot_dimension_numbers<[1], [0], [0], [1], [0, 0, 1, 1], [], []>} : vector<16x32xf32>, vector<32x32xf32>, vector<16x32xf32> -> vector<16x32xf32>
    %132 = vector.extract_strided_slice %127 {offsets = [0, 0], sizes = [1, 32], strides = [1, 1]} : vector<1x96xf32> to vector<1x32xf32>
    %133 = vector.broadcast %132 : vector<1x32xf32> to vector<16x32xf32>
    %134 = arith.addf %131, %133 : vector<16x32xf32>
    %135 = vector.extract_strided_slice %126 {offsets = [0, 32], sizes = [32, 64], strides = [1, 1]} : vector<32x96xf32> to vector<32x64xf32>
    %cst_54 = arith.constant dense<0.000000e+00> : vector<16x64xf32>
    %136 = tpu.matmul %21, %135, %cst_54 {dimension_numbers = #tpu.dot_dimension_numbers<[1], [0], [0], [1], [0, 0, 1, 1], [], []>} : vector<16x32xf32>, vector<32x64xf32>, vector<16x64xf32> -> vector<16x64xf32>
    %137 = vector.extract_strided_slice %127 {offsets = [0, 32], sizes = [1, 64], strides = [1, 1]} : vector<1x96xf32> to vector<1x64xf32>
    %138 = vector.broadcast %137 : vector<1x64xf32> to vector<16x64xf32>
    %139 = arith.addf %136, %138 : vector<16x64xf32>
    %140 = vector.shape_cast %134 : vector<16x32xf32> to vector<2x8x32xf32>
    %141 = vector.extract_strided_slice %139 {offsets = [0, 0], sizes = [16, 32], strides = [1, 1]} : vector<16x64xf32> to vector<16x32xf32>
    %142 = vector.shape_cast %141 : vector<16x32xf32> to vector<2x8x32xf32>
    %143 = vector.extract_strided_slice %139 {offsets = [0, 32], sizes = [16, 32], strides = [1, 1]} : vector<16x64xf32> to vector<16x32xf32>
    %144 = vector.shape_cast %143 : vector<16x32xf32> to vector<2x8x32xf32>
    %145 = vector.extract_strided_slice %140 {offsets = [0, 0, 0], sizes = [2, 8, 8], strides = [1, 1, 1]} : vector<2x8x32xf32> to vector<2x8x8xf32>
    %146 = vector.extract_strided_slice %142 {offsets = [0, 0, 0], sizes = [2, 8, 8], strides = [1, 1, 1]} : vector<2x8x32xf32> to vector<2x8x8xf32>
    %147 = vector.extract_strided_slice %144 {offsets = [0, 0, 0], sizes = [2, 8, 8], strides = [1, 1, 1]} : vector<2x8x32xf32> to vector<2x8x8xf32>
    "tpu.trace_start"() <{level = 10 : i32, message = "bqd,bkd->bqk"}> : () -> ()
    %cst_55 = arith.constant dense<0.000000e+00> : vector<2x8x8xf32>
    %148 = tpu.matmul %145, %146, %cst_55 {dimension_numbers = #tpu.dot_dimension_numbers<[2], [2], [1], [1], [0, 0, 0, 1, 1, 1], [0], [0]>} : vector<2x8x8xf32>, vector<2x8x8xf32>, vector<2x8x8xf32> -> vector<2x8x8xf32>
    "tpu.trace_stop"() : () -> ()
    %cst_56 = arith.constant 0.353553385 : f32
    %149 = vector.broadcast %cst_56 : f32 to vector<2x8x8xf32>
    %150 = arith.mulf %148, %149 : vector<2x8x8xf32>
    %cst_57 = arith.constant dense<0xFF800000> : vector<2x8xf32>
    %151 = vector.multi_reduction <maximumf>, %150, %cst_57 [2] : vector<2x8x8xf32> to vector<2x8xf32>
    %152 = vector.shape_cast %151 : vector<2x8xf32> to vector<2x8x1xf32>
    %153 = vector.broadcast %152 : vector<2x8x1xf32> to vector<2x8x8xf32>
    %154 = arith.subf %150, %153 : vector<2x8x8xf32>
    %155 = math.exp %154 : vector<2x8x8xf32>
    %cst_58 = arith.constant dense<0.000000e+00> : vector<2x8xf32>
    %156 = vector.multi_reduction <add>, %155, %cst_58 [2] : vector<2x8x8xf32> to vector<2x8xf32>
    %157 = vector.shape_cast %156 : vector<2x8xf32> to vector<2x8x1xf32>
    %158 = vector.broadcast %157 : vector<2x8x1xf32> to vector<2x8x8xf32>
    %159 = arith.divf %155, %158 : vector<2x8x8xf32>
    "tpu.trace_start"() <{level = 10 : i32, message = "bqk,bkd->bqd"}> : () -> ()
    %cst_59 = arith.constant dense<0.000000e+00> : vector<2x8x8xf32>
    %160 = tpu.matmul %159, %147, %cst_59 {dimension_numbers = #tpu.dot_dimension_numbers<[2], [1], [1], [2], [0, 0, 0, 1, 1, 2], [0], [0]>} : vector<2x8x8xf32>, vector<2x8x8xf32>, vector<2x8x8xf32> -> vector<2x8x8xf32>
    "tpu.trace_stop"() : () -> ()
    %161 = vector.extract_strided_slice %140 {offsets = [0, 0, 8], sizes = [2, 8, 8], strides = [1, 1, 1]} : vector<2x8x32xf32> to vector<2x8x8xf32>
    %162 = vector.extract_strided_slice %142 {offsets = [0, 0, 8], sizes = [2, 8, 8], strides = [1, 1, 1]} : vector<2x8x32xf32> to vector<2x8x8xf32>
    %163 = vector.extract_strided_slice %144 {offsets = [0, 0, 8], sizes = [2, 8, 8], strides = [1, 1, 1]} : vector<2x8x32xf32> to vector<2x8x8xf32>
    "tpu.trace_start"() <{level = 10 : i32, message = "bqd,bkd->bqk"}> : () -> ()
    %cst_60 = arith.constant dense<0.000000e+00> : vector<2x8x8xf32>
    %164 = tpu.matmul %161, %162, %cst_60 {dimension_numbers = #tpu.dot_dimension_numbers<[2], [2], [1], [1], [0, 0, 0, 1, 1, 1], [0], [0]>} : vector<2x8x8xf32>, vector<2x8x8xf32>, vector<2x8x8xf32> -> vector<2x8x8xf32>
    "tpu.trace_stop"() : () -> ()
    %cst_61 = arith.constant 0.353553385 : f32
    %165 = vector.broadcast %cst_61 : f32 to vector<2x8x8xf32>
    %166 = arith.mulf %164, %165 : vector<2x8x8xf32>
    %cst_62 = arith.constant dense<0xFF800000> : vector<2x8xf32>
    %167 = vector.multi_reduction <maximumf>, %166, %cst_62 [2] : vector<2x8x8xf32> to vector<2x8xf32>
    %168 = vector.shape_cast %167 : vector<2x8xf32> to vector<2x8x1xf32>
    %169 = vector.broadcast %168 : vector<2x8x1xf32> to vector<2x8x8xf32>
    %170 = arith.subf %166, %169 : vector<2x8x8xf32>
    %171 = math.exp %170 : vector<2x8x8xf32>
    %cst_63 = arith.constant dense<0.000000e+00> : vector<2x8xf32>
    %172 = vector.multi_reduction <add>, %171, %cst_63 [2] : vector<2x8x8xf32> to vector<2x8xf32>
    %173 = vector.shape_cast %172 : vector<2x8xf32> to vector<2x8x1xf32>
    %174 = vector.broadcast %173 : vector<2x8x1xf32> to vector<2x8x8xf32>
    %175 = arith.divf %171, %174 : vector<2x8x8xf32>
    "tpu.trace_start"() <{level = 10 : i32, message = "bqk,bkd->bqd"}> : () -> ()
    %cst_64 = arith.constant dense<0.000000e+00> : vector<2x8x8xf32>
    %176 = tpu.matmul %175, %163, %cst_64 {dimension_numbers = #tpu.dot_dimension_numbers<[2], [1], [1], [2], [0, 0, 0, 1, 1, 2], [0], [0]>} : vector<2x8x8xf32>, vector<2x8x8xf32>, vector<2x8x8xf32> -> vector<2x8x8xf32>
    "tpu.trace_stop"() : () -> ()
    %177 = vector.extract_strided_slice %140 {offsets = [0, 0, 16], sizes = [2, 8, 8], strides = [1, 1, 1]} : vector<2x8x32xf32> to vector<2x8x8xf32>
    %178 = vector.extract_strided_slice %142 {offsets = [0, 0, 16], sizes = [2, 8, 8], strides = [1, 1, 1]} : vector<2x8x32xf32> to vector<2x8x8xf32>
    %179 = vector.extract_strided_slice %144 {offsets = [0, 0, 16], sizes = [2, 8, 8], strides = [1, 1, 1]} : vector<2x8x32xf32> to vector<2x8x8xf32>
    "tpu.trace_start"() <{level = 10 : i32, message = "bqd,bkd->bqk"}> : () -> ()
    %cst_65 = arith.constant dense<0.000000e+00> : vector<2x8x8xf32>
    %180 = tpu.matmul %177, %178, %cst_65 {dimension_numbers = #tpu.dot_dimension_numbers<[2], [2], [1], [1], [0, 0, 0, 1, 1, 1], [0], [0]>} : vector<2x8x8xf32>, vector<2x8x8xf32>, vector<2x8x8xf32> -> vector<2x8x8xf32>
    "tpu.trace_stop"() : () -> ()
    %cst_66 = arith.constant 0.353553385 : f32
    %181 = vector.broadcast %cst_66 : f32 to vector<2x8x8xf32>
    %182 = arith.mulf %180, %181 : vector<2x8x8xf32>
    %cst_67 = arith.constant dense<0xFF800000> : vector<2x8xf32>
    %183 = vector.multi_reduction <maximumf>, %182, %cst_67 [2] : vector<2x8x8xf32> to vector<2x8xf32>
    %184 = vector.shape_cast %183 : vector<2x8xf32> to vector<2x8x1xf32>
    %185 = vector.broadcast %184 : vector<2x8x1xf32> to vector<2x8x8xf32>
    %186 = arith.subf %182, %185 : vector<2x8x8xf32>
    %187 = math.exp %186 : vector<2x8x8xf32>
    %cst_68 = arith.constant dense<0.000000e+00> : vector<2x8xf32>
    %188 = vector.multi_reduction <add>, %187, %cst_68 [2] : vector<2x8x8xf32> to vector<2x8xf32>
    %189 = vector.shape_cast %188 : vector<2x8xf32> to vector<2x8x1xf32>
    %190 = vector.broadcast %189 : vector<2x8x1xf32> to vector<2x8x8xf32>
    %191 = arith.divf %187, %190 : vector<2x8x8xf32>
    "tpu.trace_start"() <{level = 10 : i32, message = "bqk,bkd->bqd"}> : () -> ()
    %cst_69 = arith.constant dense<0.000000e+00> : vector<2x8x8xf32>
    %192 = tpu.matmul %191, %179, %cst_69 {dimension_numbers = #tpu.dot_dimension_numbers<[2], [1], [1], [2], [0, 0, 0, 1, 1, 2], [0], [0]>} : vector<2x8x8xf32>, vector<2x8x8xf32>, vector<2x8x8xf32> -> vector<2x8x8xf32>
    "tpu.trace_stop"() : () -> ()
    %193 = vector.extract_strided_slice %140 {offsets = [0, 0, 24], sizes = [2, 8, 8], strides = [1, 1, 1]} : vector<2x8x32xf32> to vector<2x8x8xf32>
    %194 = vector.extract_strided_slice %142 {offsets = [0, 0, 24], sizes = [2, 8, 8], strides = [1, 1, 1]} : vector<2x8x32xf32> to vector<2x8x8xf32>
    %195 = vector.extract_strided_slice %144 {offsets = [0, 0, 24], sizes = [2, 8, 8], strides = [1, 1, 1]} : vector<2x8x32xf32> to vector<2x8x8xf32>
    "tpu.trace_start"() <{level = 10 : i32, message = "bqd,bkd->bqk"}> : () -> ()
    %cst_70 = arith.constant dense<0.000000e+00> : vector<2x8x8xf32>
    %196 = tpu.matmul %193, %194, %cst_70 {dimension_numbers = #tpu.dot_dimension_numbers<[2], [2], [1], [1], [0, 0, 0, 1, 1, 1], [0], [0]>} : vector<2x8x8xf32>, vector<2x8x8xf32>, vector<2x8x8xf32> -> vector<2x8x8xf32>
    "tpu.trace_stop"() : () -> ()
    %cst_71 = arith.constant 0.353553385 : f32
    %197 = vector.broadcast %cst_71 : f32 to vector<2x8x8xf32>
    %198 = arith.mulf %196, %197 : vector<2x8x8xf32>
    %cst_72 = arith.constant dense<0xFF800000> : vector<2x8xf32>
    %199 = vector.multi_reduction <maximumf>, %198, %cst_72 [2] : vector<2x8x8xf32> to vector<2x8xf32>
    %200 = vector.shape_cast %199 : vector<2x8xf32> to vector<2x8x1xf32>
    %201 = vector.broadcast %200 : vector<2x8x1xf32> to vector<2x8x8xf32>
    %202 = arith.subf %198, %201 : vector<2x8x8xf32>
    %203 = math.exp %202 : vector<2x8x8xf32>
    %cst_73 = arith.constant dense<0.000000e+00> : vector<2x8xf32>
    %204 = vector.multi_reduction <add>, %203, %cst_73 [2] : vector<2x8x8xf32> to vector<2x8xf32>
    %205 = vector.shape_cast %204 : vector<2x8xf32> to vector<2x8x1xf32>
    %206 = vector.broadcast %205 : vector<2x8x1xf32> to vector<2x8x8xf32>
    %207 = arith.divf %203, %206 : vector<2x8x8xf32>
    "tpu.trace_start"() <{level = 10 : i32, message = "bqk,bkd->bqd"}> : () -> ()
    %cst_74 = arith.constant dense<0.000000e+00> : vector<2x8x8xf32>
    %208 = tpu.matmul %207, %195, %cst_74 {dimension_numbers = #tpu.dot_dimension_numbers<[2], [1], [1], [2], [0, 0, 0, 1, 1, 2], [0], [0]>} : vector<2x8x8xf32>, vector<2x8x8xf32>, vector<2x8x8xf32> -> vector<2x8x8xf32>
    "tpu.trace_stop"() : () -> ()
    %209 = tpu.concatenate %160, %176, %192, %208 in 2 : vector<2x8x8xf32>, vector<2x8x8xf32>, vector<2x8x8xf32>, vector<2x8x8xf32> -> vector<2x8x32xf32>
    %210 = vector.shape_cast %209 : vector<2x8x32xf32> to vector<16x32xf32>
    %cst_75 = arith.constant dense<0.000000e+00> : vector<16x32xf32>
    %211 = tpu.matmul %210, %128, %cst_75 {dimension_numbers = #tpu.dot_dimension_numbers<[1], [0], [0], [1], [0, 0, 1, 1], [], []>} : vector<16x32xf32>, vector<32x32xf32>, vector<16x32xf32> -> vector<16x32xf32>
    %212 = vector.broadcast %129 : vector<1x32xf32> to vector<16x32xf32>
    %213 = arith.addf %211, %212 : vector<16x32xf32>
    %214 = tpu.concatenate %125, %213 in 1 : vector<16x32xf32>, vector<16x32xf32> -> vector<16x64xf32>
    %c0_76 = arith.constant 0 : index
    %c0_77 = arith.constant 0 : index
    %215 = vector.load %arg3[%c0_76, %c0_77] : memref<16x16xf32, #tpu.memory_space<vmem>>, vector<16x16xf32>
    %cst_78 = arith.constant dense<0.000000e+00> : vector<16x64xf32>
    %216 = tpu.matmul %215, %214, %cst_78 {dimension_numbers = #tpu.dot_dimension_numbers<[1], [0], [0], [1], [0, 0, 1, 1], [], []>} : vector<16x16xf32>, vector<16x64xf32>, vector<16x64xf32> -> vector<16x64xf32>
    %c0_79 = arith.constant 0 : index
    %c0_80 = arith.constant 0 : index
    %217 = vector.load %arg16[%c0_79, %c0_80] : memref<64x768xf32, #tpu.memory_space<vmem>>, vector<64x768xf32>
    %cst_81 = arith.constant dense<0.000000e+00> : vector<16x768xf32>
    %218 = tpu.matmul %216, %217, %cst_81 {dimension_numbers = #tpu.dot_dimension_numbers<[1], [0], [0], [1], [0, 0, 1, 1], [], []>} : vector<16x64xf32>, vector<64x768xf32>, vector<16x768xf32> -> vector<16x768xf32>
    %c0_82 = arith.constant 0 : index
    %c0_83 = arith.constant 0 : index
    %219 = vector.load %arg18[%c0_82, %c0_83] : memref<1x768xf32, #tpu.memory_space<vmem>>, vector<1x768xf32>
    %220 = vector.broadcast %219 : vector<1x768xf32> to vector<16x768xf32>
    %221 = arith.addf %218, %220 : vector<16x768xf32>
    %c0_84 = arith.constant 0 : index
    %c0_85 = arith.constant 0 : index
    %222 = vector.load %arg17[%c0_84, %c0_85] : memref<256x768xf32, #tpu.memory_space<vmem>>, vector<256x768xf32>
    %c0_86 = arith.constant 0 : index
    %c0_87 = arith.constant 0 : index
    %223 = vector.load %arg19[%c0_86, %c0_87] : memref<1x768xf32, #tpu.memory_space<vmem>>, vector<1x768xf32>
    %224 = vector.shape_cast %223 : vector<1x768xf32> to vector<1x768xf32>
    %225 = vector.broadcast %224 : vector<1x768xf32> to vector<2x768xf32>
    %cst_88 = arith.constant 0.000000e+00 : f32
    %226 = vector.broadcast %cst_88 : f32 to vector<2x256xf32>
    %227 = vector.extract_strided_slice %221 {offsets = [0, 0], sizes = [2, 768], strides = [1, 1]} : vector<16x768xf32> to vector<2x768xf32>
    %cst_89 = arith.constant dense<0.000000e+00> : vector<2x768xf32>
    %228 = tpu.matmul %226, %222, %cst_89 {dimension_numbers = #tpu.dot_dimension_numbers<[1], [0], [0], [1], [0, 0, 1, 1], [], []>} : vector<2x256xf32>, vector<256x768xf32>, vector<2x768xf32> -> vector<2x768xf32>
    %229 = arith.addf %228, %225 : vector<2x768xf32>
    %230 = vector.extract_strided_slice %227 {offsets = [0, 0], sizes = [2, 256], strides = [1, 1]} : vector<2x768xf32> to vector<2x256xf32>
    %231 = vector.extract_strided_slice %229 {offsets = [0, 0], sizes = [2, 256], strides = [1, 1]} : vector<2x768xf32> to vector<2x256xf32>
    %232 = arith.addf %230, %231 : vector<2x256xf32>
    %233 = arith.negf %232 : vector<2x256xf32>
    %234 = math.exp %233 : vector<2x256xf32>
    %cst_90 = arith.constant 1.000000e+00 : f32
    %235 = vector.broadcast %cst_90 : f32 to vector<2x256xf32>
    %236 = arith.addf %235, %234 : vector<2x256xf32>
    %237 = arith.divf %235, %236 : vector<2x256xf32>
    %238 = vector.extract_strided_slice %227 {offsets = [0, 256], sizes = [2, 256], strides = [1, 1]} : vector<2x768xf32> to vector<2x256xf32>
    %239 = vector.extract_strided_slice %229 {offsets = [0, 256], sizes = [2, 256], strides = [1, 1]} : vector<2x768xf32> to vector<2x256xf32>
    %240 = arith.addf %238, %239 : vector<2x256xf32>
    %241 = arith.negf %240 : vector<2x256xf32>
    %242 = math.exp %241 : vector<2x256xf32>
    %cst_91 = arith.constant 1.000000e+00 : f32
    %243 = vector.broadcast %cst_91 : f32 to vector<2x256xf32>
    %244 = arith.addf %243, %242 : vector<2x256xf32>
    %245 = arith.divf %243, %244 : vector<2x256xf32>
    %246 = vector.extract_strided_slice %227 {offsets = [0, 512], sizes = [2, 256], strides = [1, 1]} : vector<2x768xf32> to vector<2x256xf32>
    %247 = vector.extract_strided_slice %229 {offsets = [0, 512], sizes = [2, 256], strides = [1, 1]} : vector<2x768xf32> to vector<2x256xf32>
    %248 = arith.mulf %237, %247 : vector<2x256xf32>
    %249 = arith.addf %246, %248 : vector<2x256xf32>
    %250 = math.tanh %249 : vector<2x256xf32>
    %cst_92 = arith.constant 1.000000e+00 : f32
    %251 = vector.broadcast %cst_92 : f32 to vector<2x256xf32>
    %252 = arith.subf %251, %245 : vector<2x256xf32>
    %253 = arith.mulf %252, %250 : vector<2x256xf32>
    %254 = arith.mulf %245, %226 : vector<2x256xf32>
    %255 = arith.addf %253, %254 : vector<2x256xf32>
    %256 = vector.extract_strided_slice %221 {offsets = [2, 0], sizes = [2, 768], strides = [1, 1]} : vector<16x768xf32> to vector<2x768xf32>
    %cst_93 = arith.constant dense<0.000000e+00> : vector<2x768xf32>
    %257 = tpu.matmul %255, %222, %cst_93 {dimension_numbers = #tpu.dot_dimension_numbers<[1], [0], [0], [1], [0, 0, 1, 1], [], []>} : vector<2x256xf32>, vector<256x768xf32>, vector<2x768xf32> -> vector<2x768xf32>
    %258 = arith.addf %257, %225 : vector<2x768xf32>
    %259 = vector.extract_strided_slice %256 {offsets = [0, 0], sizes = [2, 256], strides = [1, 1]} : vector<2x768xf32> to vector<2x256xf32>
    %260 = vector.extract_strided_slice %258 {offsets = [0, 0], sizes = [2, 256], strides = [1, 1]} : vector<2x768xf32> to vector<2x256xf32>
    %261 = arith.addf %259, %260 : vector<2x256xf32>
    %262 = arith.negf %261 : vector<2x256xf32>
    %263 = math.exp %262 : vector<2x256xf32>
    %cst_94 = arith.constant 1.000000e+00 : f32
    %264 = vector.broadcast %cst_94 : f32 to vector<2x256xf32>
    %265 = arith.addf %264, %263 : vector<2x256xf32>
    %266 = arith.divf %264, %265 : vector<2x256xf32>
    %267 = vector.extract_strided_slice %256 {offsets = [0, 256], sizes = [2, 256], strides = [1, 1]} : vector<2x768xf32> to vector<2x256xf32>
    %268 = vector.extract_strided_slice %258 {offsets = [0, 256], sizes = [2, 256], strides = [1, 1]} : vector<2x768xf32> to vector<2x256xf32>
    %269 = arith.addf %267, %268 : vector<2x256xf32>
    %270 = arith.negf %269 : vector<2x256xf32>
    %271 = math.exp %270 : vector<2x256xf32>
    %cst_95 = arith.constant 1.000000e+00 : f32
    %272 = vector.broadcast %cst_95 : f32 to vector<2x256xf32>
    %273 = arith.addf %272, %271 : vector<2x256xf32>
    %274 = arith.divf %272, %273 : vector<2x256xf32>
    %275 = vector.extract_strided_slice %256 {offsets = [0, 512], sizes = [2, 256], strides = [1, 1]} : vector<2x768xf32> to vector<2x256xf32>
    %276 = vector.extract_strided_slice %258 {offsets = [0, 512], sizes = [2, 256], strides = [1, 1]} : vector<2x768xf32> to vector<2x256xf32>
    %277 = arith.mulf %266, %276 : vector<2x256xf32>
    %278 = arith.addf %275, %277 : vector<2x256xf32>
    %279 = math.tanh %278 : vector<2x256xf32>
    %cst_96 = arith.constant 1.000000e+00 : f32
    %280 = vector.broadcast %cst_96 : f32 to vector<2x256xf32>
    %281 = arith.subf %280, %274 : vector<2x256xf32>
    %282 = arith.mulf %281, %279 : vector<2x256xf32>
    %283 = arith.mulf %274, %255 : vector<2x256xf32>
    %284 = arith.addf %282, %283 : vector<2x256xf32>
    %285 = vector.extract_strided_slice %221 {offsets = [4, 0], sizes = [2, 768], strides = [1, 1]} : vector<16x768xf32> to vector<2x768xf32>
    %cst_97 = arith.constant dense<0.000000e+00> : vector<2x768xf32>
    %286 = tpu.matmul %284, %222, %cst_97 {dimension_numbers = #tpu.dot_dimension_numbers<[1], [0], [0], [1], [0, 0, 1, 1], [], []>} : vector<2x256xf32>, vector<256x768xf32>, vector<2x768xf32> -> vector<2x768xf32>
    %287 = arith.addf %286, %225 : vector<2x768xf32>
    %288 = vector.extract_strided_slice %285 {offsets = [0, 0], sizes = [2, 256], strides = [1, 1]} : vector<2x768xf32> to vector<2x256xf32>
    %289 = vector.extract_strided_slice %287 {offsets = [0, 0], sizes = [2, 256], strides = [1, 1]} : vector<2x768xf32> to vector<2x256xf32>
    %290 = arith.addf %288, %289 : vector<2x256xf32>
    %291 = arith.negf %290 : vector<2x256xf32>
    %292 = math.exp %291 : vector<2x256xf32>
    %cst_98 = arith.constant 1.000000e+00 : f32
    %293 = vector.broadcast %cst_98 : f32 to vector<2x256xf32>
    %294 = arith.addf %293, %292 : vector<2x256xf32>
    %295 = arith.divf %293, %294 : vector<2x256xf32>
    %296 = vector.extract_strided_slice %285 {offsets = [0, 256], sizes = [2, 256], strides = [1, 1]} : vector<2x768xf32> to vector<2x256xf32>
    %297 = vector.extract_strided_slice %287 {offsets = [0, 256], sizes = [2, 256], strides = [1, 1]} : vector<2x768xf32> to vector<2x256xf32>
    %298 = arith.addf %296, %297 : vector<2x256xf32>
    %299 = arith.negf %298 : vector<2x256xf32>
    %300 = math.exp %299 : vector<2x256xf32>
    %cst_99 = arith.constant 1.000000e+00 : f32
    %301 = vector.broadcast %cst_99 : f32 to vector<2x256xf32>
    %302 = arith.addf %301, %300 : vector<2x256xf32>
    %303 = arith.divf %301, %302 : vector<2x256xf32>
    %304 = vector.extract_strided_slice %285 {offsets = [0, 512], sizes = [2, 256], strides = [1, 1]} : vector<2x768xf32> to vector<2x256xf32>
    %305 = vector.extract_strided_slice %287 {offsets = [0, 512], sizes = [2, 256], strides = [1, 1]} : vector<2x768xf32> to vector<2x256xf32>
    %306 = arith.mulf %295, %305 : vector<2x256xf32>
    %307 = arith.addf %304, %306 : vector<2x256xf32>
    %308 = math.tanh %307 : vector<2x256xf32>
    %cst_100 = arith.constant 1.000000e+00 : f32
    %309 = vector.broadcast %cst_100 : f32 to vector<2x256xf32>
    %310 = arith.subf %309, %303 : vector<2x256xf32>
    %311 = arith.mulf %310, %308 : vector<2x256xf32>
    %312 = arith.mulf %303, %284 : vector<2x256xf32>
    %313 = arith.addf %311, %312 : vector<2x256xf32>
    %314 = vector.extract_strided_slice %221 {offsets = [6, 0], sizes = [2, 768], strides = [1, 1]} : vector<16x768xf32> to vector<2x768xf32>
    %cst_101 = arith.constant dense<0.000000e+00> : vector<2x768xf32>
    %315 = tpu.matmul %313, %222, %cst_101 {dimension_numbers = #tpu.dot_dimension_numbers<[1], [0], [0], [1], [0, 0, 1, 1], [], []>} : vector<2x256xf32>, vector<256x768xf32>, vector<2x768xf32> -> vector<2x768xf32>
    %316 = arith.addf %315, %225 : vector<2x768xf32>
    %317 = vector.extract_strided_slice %314 {offsets = [0, 0], sizes = [2, 256], strides = [1, 1]} : vector<2x768xf32> to vector<2x256xf32>
    %318 = vector.extract_strided_slice %316 {offsets = [0, 0], sizes = [2, 256], strides = [1, 1]} : vector<2x768xf32> to vector<2x256xf32>
    %319 = arith.addf %317, %318 : vector<2x256xf32>
    %320 = arith.negf %319 : vector<2x256xf32>
    %321 = math.exp %320 : vector<2x256xf32>
    %cst_102 = arith.constant 1.000000e+00 : f32
    %322 = vector.broadcast %cst_102 : f32 to vector<2x256xf32>
    %323 = arith.addf %322, %321 : vector<2x256xf32>
    %324 = arith.divf %322, %323 : vector<2x256xf32>
    %325 = vector.extract_strided_slice %314 {offsets = [0, 256], sizes = [2, 256], strides = [1, 1]} : vector<2x768xf32> to vector<2x256xf32>
    %326 = vector.extract_strided_slice %316 {offsets = [0, 256], sizes = [2, 256], strides = [1, 1]} : vector<2x768xf32> to vector<2x256xf32>
    %327 = arith.addf %325, %326 : vector<2x256xf32>
    %328 = arith.negf %327 : vector<2x256xf32>
    %329 = math.exp %328 : vector<2x256xf32>
    %cst_103 = arith.constant 1.000000e+00 : f32
    %330 = vector.broadcast %cst_103 : f32 to vector<2x256xf32>
    %331 = arith.addf %330, %329 : vector<2x256xf32>
    %332 = arith.divf %330, %331 : vector<2x256xf32>
    %333 = vector.extract_strided_slice %314 {offsets = [0, 512], sizes = [2, 256], strides = [1, 1]} : vector<2x768xf32> to vector<2x256xf32>
    %334 = vector.extract_strided_slice %316 {offsets = [0, 512], sizes = [2, 256], strides = [1, 1]} : vector<2x768xf32> to vector<2x256xf32>
    %335 = arith.mulf %324, %334 : vector<2x256xf32>
    %336 = arith.addf %333, %335 : vector<2x256xf32>
    %337 = math.tanh %336 : vector<2x256xf32>
    %cst_104 = arith.constant 1.000000e+00 : f32
    %338 = vector.broadcast %cst_104 : f32 to vector<2x256xf32>
    %339 = arith.subf %338, %332 : vector<2x256xf32>
    %340 = arith.mulf %339, %337 : vector<2x256xf32>
    %341 = arith.mulf %332, %313 : vector<2x256xf32>
    %342 = arith.addf %340, %341 : vector<2x256xf32>
    %343 = vector.extract_strided_slice %221 {offsets = [8, 0], sizes = [2, 768], strides = [1, 1]} : vector<16x768xf32> to vector<2x768xf32>
    %cst_105 = arith.constant dense<0.000000e+00> : vector<2x768xf32>
    %344 = tpu.matmul %342, %222, %cst_105 {dimension_numbers = #tpu.dot_dimension_numbers<[1], [0], [0], [1], [0, 0, 1, 1], [], []>} : vector<2x256xf32>, vector<256x768xf32>, vector<2x768xf32> -> vector<2x768xf32>
    %345 = arith.addf %344, %225 : vector<2x768xf32>
    %346 = vector.extract_strided_slice %343 {offsets = [0, 0], sizes = [2, 256], strides = [1, 1]} : vector<2x768xf32> to vector<2x256xf32>
    %347 = vector.extract_strided_slice %345 {offsets = [0, 0], sizes = [2, 256], strides = [1, 1]} : vector<2x768xf32> to vector<2x256xf32>
    %348 = arith.addf %346, %347 : vector<2x256xf32>
    %349 = arith.negf %348 : vector<2x256xf32>
    %350 = math.exp %349 : vector<2x256xf32>
    %cst_106 = arith.constant 1.000000e+00 : f32
    %351 = vector.broadcast %cst_106 : f32 to vector<2x256xf32>
    %352 = arith.addf %351, %350 : vector<2x256xf32>
    %353 = arith.divf %351, %352 : vector<2x256xf32>
    %354 = vector.extract_strided_slice %343 {offsets = [0, 256], sizes = [2, 256], strides = [1, 1]} : vector<2x768xf32> to vector<2x256xf32>
    %355 = vector.extract_strided_slice %345 {offsets = [0, 256], sizes = [2, 256], strides = [1, 1]} : vector<2x768xf32> to vector<2x256xf32>
    %356 = arith.addf %354, %355 : vector<2x256xf32>
    %357 = arith.negf %356 : vector<2x256xf32>
    %358 = math.exp %357 : vector<2x256xf32>
    %cst_107 = arith.constant 1.000000e+00 : f32
    %359 = vector.broadcast %cst_107 : f32 to vector<2x256xf32>
    %360 = arith.addf %359, %358 : vector<2x256xf32>
    %361 = arith.divf %359, %360 : vector<2x256xf32>
    %362 = vector.extract_strided_slice %343 {offsets = [0, 512], sizes = [2, 256], strides = [1, 1]} : vector<2x768xf32> to vector<2x256xf32>
    %363 = vector.extract_strided_slice %345 {offsets = [0, 512], sizes = [2, 256], strides = [1, 1]} : vector<2x768xf32> to vector<2x256xf32>
    %364 = arith.mulf %353, %363 : vector<2x256xf32>
    %365 = arith.addf %362, %364 : vector<2x256xf32>
    %366 = math.tanh %365 : vector<2x256xf32>
    %cst_108 = arith.constant 1.000000e+00 : f32
    %367 = vector.broadcast %cst_108 : f32 to vector<2x256xf32>
    %368 = arith.subf %367, %361 : vector<2x256xf32>
    %369 = arith.mulf %368, %366 : vector<2x256xf32>
    %370 = arith.mulf %361, %342 : vector<2x256xf32>
    %371 = arith.addf %369, %370 : vector<2x256xf32>
    %372 = vector.extract_strided_slice %221 {offsets = [10, 0], sizes = [2, 768], strides = [1, 1]} : vector<16x768xf32> to vector<2x768xf32>
    %cst_109 = arith.constant dense<0.000000e+00> : vector<2x768xf32>
    %373 = tpu.matmul %371, %222, %cst_109 {dimension_numbers = #tpu.dot_dimension_numbers<[1], [0], [0], [1], [0, 0, 1, 1], [], []>} : vector<2x256xf32>, vector<256x768xf32>, vector<2x768xf32> -> vector<2x768xf32>
    %374 = arith.addf %373, %225 : vector<2x768xf32>
    %375 = vector.extract_strided_slice %372 {offsets = [0, 0], sizes = [2, 256], strides = [1, 1]} : vector<2x768xf32> to vector<2x256xf32>
    %376 = vector.extract_strided_slice %374 {offsets = [0, 0], sizes = [2, 256], strides = [1, 1]} : vector<2x768xf32> to vector<2x256xf32>
    %377 = arith.addf %375, %376 : vector<2x256xf32>
    %378 = arith.negf %377 : vector<2x256xf32>
    %379 = math.exp %378 : vector<2x256xf32>
    %cst_110 = arith.constant 1.000000e+00 : f32
    %380 = vector.broadcast %cst_110 : f32 to vector<2x256xf32>
    %381 = arith.addf %380, %379 : vector<2x256xf32>
    %382 = arith.divf %380, %381 : vector<2x256xf32>
    %383 = vector.extract_strided_slice %372 {offsets = [0, 256], sizes = [2, 256], strides = [1, 1]} : vector<2x768xf32> to vector<2x256xf32>
    %384 = vector.extract_strided_slice %374 {offsets = [0, 256], sizes = [2, 256], strides = [1, 1]} : vector<2x768xf32> to vector<2x256xf32>
    %385 = arith.addf %383, %384 : vector<2x256xf32>
    %386 = arith.negf %385 : vector<2x256xf32>
    %387 = math.exp %386 : vector<2x256xf32>
    %cst_111 = arith.constant 1.000000e+00 : f32
    %388 = vector.broadcast %cst_111 : f32 to vector<2x256xf32>
    %389 = arith.addf %388, %387 : vector<2x256xf32>
    %390 = arith.divf %388, %389 : vector<2x256xf32>
    %391 = vector.extract_strided_slice %372 {offsets = [0, 512], sizes = [2, 256], strides = [1, 1]} : vector<2x768xf32> to vector<2x256xf32>
    %392 = vector.extract_strided_slice %374 {offsets = [0, 512], sizes = [2, 256], strides = [1, 1]} : vector<2x768xf32> to vector<2x256xf32>
    %393 = arith.mulf %382, %392 : vector<2x256xf32>
    %394 = arith.addf %391, %393 : vector<2x256xf32>
    %395 = math.tanh %394 : vector<2x256xf32>
    %cst_112 = arith.constant 1.000000e+00 : f32
    %396 = vector.broadcast %cst_112 : f32 to vector<2x256xf32>
    %397 = arith.subf %396, %390 : vector<2x256xf32>
    %398 = arith.mulf %397, %395 : vector<2x256xf32>
    %399 = arith.mulf %390, %371 : vector<2x256xf32>
    %400 = arith.addf %398, %399 : vector<2x256xf32>
    %401 = vector.extract_strided_slice %221 {offsets = [12, 0], sizes = [2, 768], strides = [1, 1]} : vector<16x768xf32> to vector<2x768xf32>
    %cst_113 = arith.constant dense<0.000000e+00> : vector<2x768xf32>
    %402 = tpu.matmul %400, %222, %cst_113 {dimension_numbers = #tpu.dot_dimension_numbers<[1], [0], [0], [1], [0, 0, 1, 1], [], []>} : vector<2x256xf32>, vector<256x768xf32>, vector<2x768xf32> -> vector<2x768xf32>
    %403 = arith.addf %402, %225 : vector<2x768xf32>
    %404 = vector.extract_strided_slice %401 {offsets = [0, 0], sizes = [2, 256], strides = [1, 1]} : vector<2x768xf32> to vector<2x256xf32>
    %405 = vector.extract_strided_slice %403 {offsets = [0, 0], sizes = [2, 256], strides = [1, 1]} : vector<2x768xf32> to vector<2x256xf32>
    %406 = arith.addf %404, %405 : vector<2x256xf32>
    %407 = arith.negf %406 : vector<2x256xf32>
    %408 = math.exp %407 : vector<2x256xf32>
    %cst_114 = arith.constant 1.000000e+00 : f32
    %409 = vector.broadcast %cst_114 : f32 to vector<2x256xf32>
    %410 = arith.addf %409, %408 : vector<2x256xf32>
    %411 = arith.divf %409, %410 : vector<2x256xf32>
    %412 = vector.extract_strided_slice %401 {offsets = [0, 256], sizes = [2, 256], strides = [1, 1]} : vector<2x768xf32> to vector<2x256xf32>
    %413 = vector.extract_strided_slice %403 {offsets = [0, 256], sizes = [2, 256], strides = [1, 1]} : vector<2x768xf32> to vector<2x256xf32>
    %414 = arith.addf %412, %413 : vector<2x256xf32>
    %415 = arith.negf %414 : vector<2x256xf32>
    %416 = math.exp %415 : vector<2x256xf32>
    %cst_115 = arith.constant 1.000000e+00 : f32
    %417 = vector.broadcast %cst_115 : f32 to vector<2x256xf32>
    %418 = arith.addf %417, %416 : vector<2x256xf32>
    %419 = arith.divf %417, %418 : vector<2x256xf32>
    %420 = vector.extract_strided_slice %401 {offsets = [0, 512], sizes = [2, 256], strides = [1, 1]} : vector<2x768xf32> to vector<2x256xf32>
    %421 = vector.extract_strided_slice %403 {offsets = [0, 512], sizes = [2, 256], strides = [1, 1]} : vector<2x768xf32> to vector<2x256xf32>
    %422 = arith.mulf %411, %421 : vector<2x256xf32>
    %423 = arith.addf %420, %422 : vector<2x256xf32>
    %424 = math.tanh %423 : vector<2x256xf32>
    %cst_116 = arith.constant 1.000000e+00 : f32
    %425 = vector.broadcast %cst_116 : f32 to vector<2x256xf32>
    %426 = arith.subf %425, %419 : vector<2x256xf32>
    %427 = arith.mulf %426, %424 : vector<2x256xf32>
    %428 = arith.mulf %419, %400 : vector<2x256xf32>
    %429 = arith.addf %427, %428 : vector<2x256xf32>
    %430 = vector.extract_strided_slice %221 {offsets = [14, 0], sizes = [2, 768], strides = [1, 1]} : vector<16x768xf32> to vector<2x768xf32>
    %cst_117 = arith.constant dense<0.000000e+00> : vector<2x768xf32>
    %431 = tpu.matmul %429, %222, %cst_117 {dimension_numbers = #tpu.dot_dimension_numbers<[1], [0], [0], [1], [0, 0, 1, 1], [], []>} : vector<2x256xf32>, vector<256x768xf32>, vector<2x768xf32> -> vector<2x768xf32>
    %432 = arith.addf %431, %225 : vector<2x768xf32>
    %433 = vector.extract_strided_slice %430 {offsets = [0, 0], sizes = [2, 256], strides = [1, 1]} : vector<2x768xf32> to vector<2x256xf32>
    %434 = vector.extract_strided_slice %432 {offsets = [0, 0], sizes = [2, 256], strides = [1, 1]} : vector<2x768xf32> to vector<2x256xf32>
    %435 = arith.addf %433, %434 : vector<2x256xf32>
    %436 = arith.negf %435 : vector<2x256xf32>
    %437 = math.exp %436 : vector<2x256xf32>
    %cst_118 = arith.constant 1.000000e+00 : f32
    %438 = vector.broadcast %cst_118 : f32 to vector<2x256xf32>
    %439 = arith.addf %438, %437 : vector<2x256xf32>
    %440 = arith.divf %438, %439 : vector<2x256xf32>
    %441 = vector.extract_strided_slice %430 {offsets = [0, 256], sizes = [2, 256], strides = [1, 1]} : vector<2x768xf32> to vector<2x256xf32>
    %442 = vector.extract_strided_slice %432 {offsets = [0, 256], sizes = [2, 256], strides = [1, 1]} : vector<2x768xf32> to vector<2x256xf32>
    %443 = arith.addf %441, %442 : vector<2x256xf32>
    %444 = arith.negf %443 : vector<2x256xf32>
    %445 = math.exp %444 : vector<2x256xf32>
    %cst_119 = arith.constant 1.000000e+00 : f32
    %446 = vector.broadcast %cst_119 : f32 to vector<2x256xf32>
    %447 = arith.addf %446, %445 : vector<2x256xf32>
    %448 = arith.divf %446, %447 : vector<2x256xf32>
    %449 = vector.extract_strided_slice %430 {offsets = [0, 512], sizes = [2, 256], strides = [1, 1]} : vector<2x768xf32> to vector<2x256xf32>
    %450 = vector.extract_strided_slice %432 {offsets = [0, 512], sizes = [2, 256], strides = [1, 1]} : vector<2x768xf32> to vector<2x256xf32>
    %451 = arith.mulf %440, %450 : vector<2x256xf32>
    %452 = arith.addf %449, %451 : vector<2x256xf32>
    %453 = math.tanh %452 : vector<2x256xf32>
    %cst_120 = arith.constant 1.000000e+00 : f32
    %454 = vector.broadcast %cst_120 : f32 to vector<2x256xf32>
    %455 = arith.subf %454, %448 : vector<2x256xf32>
    %456 = arith.mulf %455, %453 : vector<2x256xf32>
    %457 = arith.mulf %448, %429 : vector<2x256xf32>
    %458 = arith.addf %456, %457 : vector<2x256xf32>
    %c0_121 = arith.constant 0 : index
    %c0_122 = arith.constant 0 : index
    %459 = vector.load %arg20[%c0_121, %c0_122] : memref<256x128xf32, #tpu.memory_space<vmem>>, vector<256x128xf32>
    %cst_123 = arith.constant dense<0.000000e+00> : vector<2x128xf32>
    %460 = tpu.matmul %458, %459, %cst_123 {dimension_numbers = #tpu.dot_dimension_numbers<[1], [0], [0], [1], [0, 0, 1, 1], [], []>} : vector<2x256xf32>, vector<256x128xf32>, vector<2x128xf32> -> vector<2x128xf32>
    %c0_124 = arith.constant 0 : index
    %c0_125 = arith.constant 0 : index
    %461 = vector.load %arg21[%c0_124, %c0_125] : memref<1x128xf32, #tpu.memory_space<vmem>>, vector<1x128xf32>
    %462 = vector.broadcast %461 : vector<1x128xf32> to vector<2x128xf32>
    %463 = arith.addf %460, %462 : vector<2x128xf32>
    %cst_126 = arith.constant 0.000000e+00 : f32
    %464 = vector.broadcast %cst_126 : f32 to vector<2x128xf32>
    %465 = arith.maximumf %463, %464 : vector<2x128xf32>
    %c0_127 = arith.constant 0 : index
    %c0_128 = arith.constant 0 : index
    %466 = vector.load %arg22[%c0_127, %c0_128] : memref<128x384xf32, #tpu.memory_space<vmem>>, vector<128x384xf32>
    %cst_129 = arith.constant dense<0.000000e+00> : vector<2x384xf32>
    %467 = tpu.matmul %465, %466, %cst_129 {dimension_numbers = #tpu.dot_dimension_numbers<[1], [0], [0], [1], [0, 0, 1, 1], [], []>} : vector<2x128xf32>, vector<128x384xf32>, vector<2x384xf32> -> vector<2x384xf32>
    %c0_130 = arith.constant 0 : index
    %c0_131 = arith.constant 0 : index
    %468 = vector.load %arg24[%c0_130, %c0_131] : memref<1x384xf32, #tpu.memory_space<vmem>>, vector<1x384xf32>
    %469 = vector.broadcast %468 : vector<1x384xf32> to vector<2x384xf32>
    %470 = arith.addf %467, %469 : vector<2x384xf32>
    %c0_132 = arith.constant 0 : index
    %c0_133 = arith.constant 0 : index
    %471 = vector.load %arg23[%c0_132, %c0_133] : memref<128x384xf32, #tpu.memory_space<vmem>>, vector<128x384xf32>
    %c0_134 = arith.constant 0 : index
    %c0_135 = arith.constant 0 : index
    %472 = vector.load %arg25[%c0_134, %c0_135] : memref<1x384xf32, #tpu.memory_space<vmem>>, vector<1x384xf32>
    %473 = vector.shape_cast %472 : vector<1x384xf32> to vector<1x384xf32>
    %474 = vector.broadcast %473 : vector<1x384xf32> to vector<2x384xf32>
    %cst_136 = arith.constant 0.000000e+00 : f32
    %475 = vector.broadcast %cst_136 : f32 to vector<2x128xf32>
    %cst_137 = arith.constant dense<0.000000e+00> : vector<2x384xf32>
    %476 = tpu.matmul %475, %471, %cst_137 {dimension_numbers = #tpu.dot_dimension_numbers<[1], [0], [0], [1], [0, 0, 1, 1], [], []>} : vector<2x128xf32>, vector<128x384xf32>, vector<2x384xf32> -> vector<2x384xf32>
    %477 = arith.addf %476, %474 : vector<2x384xf32>
    %478 = vector.extract_strided_slice %470 {offsets = [0, 0], sizes = [2, 128], strides = [1, 1]} : vector<2x384xf32> to vector<2x128xf32>
    %479 = vector.extract_strided_slice %477 {offsets = [0, 0], sizes = [2, 128], strides = [1, 1]} : vector<2x384xf32> to vector<2x128xf32>
    %480 = arith.addf %478, %479 : vector<2x128xf32>
    %481 = arith.negf %480 : vector<2x128xf32>
    %482 = math.exp %481 : vector<2x128xf32>
    %cst_138 = arith.constant 1.000000e+00 : f32
    %483 = vector.broadcast %cst_138 : f32 to vector<2x128xf32>
    %484 = arith.addf %483, %482 : vector<2x128xf32>
    %485 = arith.divf %483, %484 : vector<2x128xf32>
    %486 = vector.extract_strided_slice %470 {offsets = [0, 128], sizes = [2, 128], strides = [1, 1]} : vector<2x384xf32> to vector<2x128xf32>
    %487 = vector.extract_strided_slice %477 {offsets = [0, 128], sizes = [2, 128], strides = [1, 1]} : vector<2x384xf32> to vector<2x128xf32>
    %488 = arith.addf %486, %487 : vector<2x128xf32>
    %489 = arith.negf %488 : vector<2x128xf32>
    %490 = math.exp %489 : vector<2x128xf32>
    %cst_139 = arith.constant 1.000000e+00 : f32
    %491 = vector.broadcast %cst_139 : f32 to vector<2x128xf32>
    %492 = arith.addf %491, %490 : vector<2x128xf32>
    %493 = arith.divf %491, %492 : vector<2x128xf32>
    %494 = vector.extract_strided_slice %470 {offsets = [0, 256], sizes = [2, 128], strides = [1, 1]} : vector<2x384xf32> to vector<2x128xf32>
    %495 = vector.extract_strided_slice %477 {offsets = [0, 256], sizes = [2, 128], strides = [1, 1]} : vector<2x384xf32> to vector<2x128xf32>
    %496 = arith.mulf %485, %495 : vector<2x128xf32>
    %497 = arith.addf %494, %496 : vector<2x128xf32>
    %498 = math.tanh %497 : vector<2x128xf32>
    %cst_140 = arith.constant 1.000000e+00 : f32
    %499 = vector.broadcast %cst_140 : f32 to vector<2x128xf32>
    %500 = arith.subf %499, %493 : vector<2x128xf32>
    %501 = arith.mulf %500, %498 : vector<2x128xf32>
    %502 = arith.mulf %493, %475 : vector<2x128xf32>
    %503 = arith.addf %501, %502 : vector<2x128xf32>
    %cst_141 = arith.constant dense<0.000000e+00> : vector<2x384xf32>
    %504 = tpu.matmul %503, %471, %cst_141 {dimension_numbers = #tpu.dot_dimension_numbers<[1], [0], [0], [1], [0, 0, 1, 1], [], []>} : vector<2x128xf32>, vector<128x384xf32>, vector<2x384xf32> -> vector<2x384xf32>
    %505 = arith.addf %504, %474 : vector<2x384xf32>
    %506 = vector.extract_strided_slice %470 {offsets = [0, 0], sizes = [2, 128], strides = [1, 1]} : vector<2x384xf32> to vector<2x128xf32>
    %507 = vector.extract_strided_slice %505 {offsets = [0, 0], sizes = [2, 128], strides = [1, 1]} : vector<2x384xf32> to vector<2x128xf32>
    %508 = arith.addf %506, %507 : vector<2x128xf32>
    %509 = arith.negf %508 : vector<2x128xf32>
    %510 = math.exp %509 : vector<2x128xf32>
    %cst_142 = arith.constant 1.000000e+00 : f32
    %511 = vector.broadcast %cst_142 : f32 to vector<2x128xf32>
    %512 = arith.addf %511, %510 : vector<2x128xf32>
    %513 = arith.divf %511, %512 : vector<2x128xf32>
    %514 = vector.extract_strided_slice %470 {offsets = [0, 128], sizes = [2, 128], strides = [1, 1]} : vector<2x384xf32> to vector<2x128xf32>
    %515 = vector.extract_strided_slice %505 {offsets = [0, 128], sizes = [2, 128], strides = [1, 1]} : vector<2x384xf32> to vector<2x128xf32>
    %516 = arith.addf %514, %515 : vector<2x128xf32>
    %517 = arith.negf %516 : vector<2x128xf32>
    %518 = math.exp %517 : vector<2x128xf32>
    %cst_143 = arith.constant 1.000000e+00 : f32
    %519 = vector.broadcast %cst_143 : f32 to vector<2x128xf32>
    %520 = arith.addf %519, %518 : vector<2x128xf32>
    %521 = arith.divf %519, %520 : vector<2x128xf32>
    %522 = vector.extract_strided_slice %470 {offsets = [0, 256], sizes = [2, 128], strides = [1, 1]} : vector<2x384xf32> to vector<2x128xf32>
    %523 = vector.extract_strided_slice %505 {offsets = [0, 256], sizes = [2, 128], strides = [1, 1]} : vector<2x384xf32> to vector<2x128xf32>
    %524 = arith.mulf %513, %523 : vector<2x128xf32>
    %525 = arith.addf %522, %524 : vector<2x128xf32>
    %526 = math.tanh %525 : vector<2x128xf32>
    %cst_144 = arith.constant 1.000000e+00 : f32
    %527 = vector.broadcast %cst_144 : f32 to vector<2x128xf32>
    %528 = arith.subf %527, %521 : vector<2x128xf32>
    %529 = arith.mulf %528, %526 : vector<2x128xf32>
    %530 = arith.mulf %521, %503 : vector<2x128xf32>
    %531 = arith.addf %529, %530 : vector<2x128xf32>
    %cst_145 = arith.constant dense<0.000000e+00> : vector<2x384xf32>
    %532 = tpu.matmul %531, %471, %cst_145 {dimension_numbers = #tpu.dot_dimension_numbers<[1], [0], [0], [1], [0, 0, 1, 1], [], []>} : vector<2x128xf32>, vector<128x384xf32>, vector<2x384xf32> -> vector<2x384xf32>
    %533 = arith.addf %532, %474 : vector<2x384xf32>
    %534 = vector.extract_strided_slice %470 {offsets = [0, 0], sizes = [2, 128], strides = [1, 1]} : vector<2x384xf32> to vector<2x128xf32>
    %535 = vector.extract_strided_slice %533 {offsets = [0, 0], sizes = [2, 128], strides = [1, 1]} : vector<2x384xf32> to vector<2x128xf32>
    %536 = arith.addf %534, %535 : vector<2x128xf32>
    %537 = arith.negf %536 : vector<2x128xf32>
    %538 = math.exp %537 : vector<2x128xf32>
    %cst_146 = arith.constant 1.000000e+00 : f32
    %539 = vector.broadcast %cst_146 : f32 to vector<2x128xf32>
    %540 = arith.addf %539, %538 : vector<2x128xf32>
    %541 = arith.divf %539, %540 : vector<2x128xf32>
    %542 = vector.extract_strided_slice %470 {offsets = [0, 128], sizes = [2, 128], strides = [1, 1]} : vector<2x384xf32> to vector<2x128xf32>
    %543 = vector.extract_strided_slice %533 {offsets = [0, 128], sizes = [2, 128], strides = [1, 1]} : vector<2x384xf32> to vector<2x128xf32>
    %544 = arith.addf %542, %543 : vector<2x128xf32>
    %545 = arith.negf %544 : vector<2x128xf32>
    %546 = math.exp %545 : vector<2x128xf32>
    %cst_147 = arith.constant 1.000000e+00 : f32
    %547 = vector.broadcast %cst_147 : f32 to vector<2x128xf32>
    %548 = arith.addf %547, %546 : vector<2x128xf32>
    %549 = arith.divf %547, %548 : vector<2x128xf32>
    %550 = vector.extract_strided_slice %470 {offsets = [0, 256], sizes = [2, 128], strides = [1, 1]} : vector<2x384xf32> to vector<2x128xf32>
    %551 = vector.extract_strided_slice %533 {offsets = [0, 256], sizes = [2, 128], strides = [1, 1]} : vector<2x384xf32> to vector<2x128xf32>
    %552 = arith.mulf %541, %551 : vector<2x128xf32>
    %553 = arith.addf %550, %552 : vector<2x128xf32>
    %554 = math.tanh %553 : vector<2x128xf32>
    %cst_148 = arith.constant 1.000000e+00 : f32
    %555 = vector.broadcast %cst_148 : f32 to vector<2x128xf32>
    %556 = arith.subf %555, %549 : vector<2x128xf32>
    %557 = arith.mulf %556, %554 : vector<2x128xf32>
    %558 = arith.mulf %549, %531 : vector<2x128xf32>
    %559 = arith.addf %557, %558 : vector<2x128xf32>
    %cst_149 = arith.constant dense<0.000000e+00> : vector<2x384xf32>
    %560 = tpu.matmul %559, %471, %cst_149 {dimension_numbers = #tpu.dot_dimension_numbers<[1], [0], [0], [1], [0, 0, 1, 1], [], []>} : vector<2x128xf32>, vector<128x384xf32>, vector<2x384xf32> -> vector<2x384xf32>
    %561 = arith.addf %560, %474 : vector<2x384xf32>
    %562 = vector.extract_strided_slice %470 {offsets = [0, 0], sizes = [2, 128], strides = [1, 1]} : vector<2x384xf32> to vector<2x128xf32>
    %563 = vector.extract_strided_slice %561 {offsets = [0, 0], sizes = [2, 128], strides = [1, 1]} : vector<2x384xf32> to vector<2x128xf32>
    %564 = arith.addf %562, %563 : vector<2x128xf32>
    %565 = arith.negf %564 : vector<2x128xf32>
    %566 = math.exp %565 : vector<2x128xf32>
    %cst_150 = arith.constant 1.000000e+00 : f32
    %567 = vector.broadcast %cst_150 : f32 to vector<2x128xf32>
    %568 = arith.addf %567, %566 : vector<2x128xf32>
    %569 = arith.divf %567, %568 : vector<2x128xf32>
    %570 = vector.extract_strided_slice %470 {offsets = [0, 128], sizes = [2, 128], strides = [1, 1]} : vector<2x384xf32> to vector<2x128xf32>
    %571 = vector.extract_strided_slice %561 {offsets = [0, 128], sizes = [2, 128], strides = [1, 1]} : vector<2x384xf32> to vector<2x128xf32>
    %572 = arith.addf %570, %571 : vector<2x128xf32>
    %573 = arith.negf %572 : vector<2x128xf32>
    %574 = math.exp %573 : vector<2x128xf32>
    %cst_151 = arith.constant 1.000000e+00 : f32
    %575 = vector.broadcast %cst_151 : f32 to vector<2x128xf32>
    %576 = arith.addf %575, %574 : vector<2x128xf32>
    %577 = arith.divf %575, %576 : vector<2x128xf32>
    %578 = vector.extract_strided_slice %470 {offsets = [0, 256], sizes = [2, 128], strides = [1, 1]} : vector<2x384xf32> to vector<2x128xf32>
    %579 = vector.extract_strided_slice %561 {offsets = [0, 256], sizes = [2, 128], strides = [1, 1]} : vector<2x384xf32> to vector<2x128xf32>
    %580 = arith.mulf %569, %579 : vector<2x128xf32>
    %581 = arith.addf %578, %580 : vector<2x128xf32>
    %582 = math.tanh %581 : vector<2x128xf32>
    %cst_152 = arith.constant 1.000000e+00 : f32
    %583 = vector.broadcast %cst_152 : f32 to vector<2x128xf32>
    %584 = arith.subf %583, %577 : vector<2x128xf32>
    %585 = arith.mulf %584, %582 : vector<2x128xf32>
    %586 = arith.mulf %577, %559 : vector<2x128xf32>
    %587 = arith.addf %585, %586 : vector<2x128xf32>
    %cst_153 = arith.constant dense<0.000000e+00> : vector<2x384xf32>
    %588 = tpu.matmul %587, %471, %cst_153 {dimension_numbers = #tpu.dot_dimension_numbers<[1], [0], [0], [1], [0, 0, 1, 1], [], []>} : vector<2x128xf32>, vector<128x384xf32>, vector<2x384xf32> -> vector<2x384xf32>
    %589 = arith.addf %588, %474 : vector<2x384xf32>
    %590 = vector.extract_strided_slice %470 {offsets = [0, 0], sizes = [2, 128], strides = [1, 1]} : vector<2x384xf32> to vector<2x128xf32>
    %591 = vector.extract_strided_slice %589 {offsets = [0, 0], sizes = [2, 128], strides = [1, 1]} : vector<2x384xf32> to vector<2x128xf32>
    %592 = arith.addf %590, %591 : vector<2x128xf32>
    %593 = arith.negf %592 : vector<2x128xf32>
    %594 = math.exp %593 : vector<2x128xf32>
    %cst_154 = arith.constant 1.000000e+00 : f32
    %595 = vector.broadcast %cst_154 : f32 to vector<2x128xf32>
    %596 = arith.addf %595, %594 : vector<2x128xf32>
    %597 = arith.divf %595, %596 : vector<2x128xf32>
    %598 = vector.extract_strided_slice %470 {offsets = [0, 128], sizes = [2, 128], strides = [1, 1]} : vector<2x384xf32> to vector<2x128xf32>
    %599 = vector.extract_strided_slice %589 {offsets = [0, 128], sizes = [2, 128], strides = [1, 1]} : vector<2x384xf32> to vector<2x128xf32>
    %600 = arith.addf %598, %599 : vector<2x128xf32>
    %601 = arith.negf %600 : vector<2x128xf32>
    %602 = math.exp %601 : vector<2x128xf32>
    %cst_155 = arith.constant 1.000000e+00 : f32
    %603 = vector.broadcast %cst_155 : f32 to vector<2x128xf32>
    %604 = arith.addf %603, %602 : vector<2x128xf32>
    %605 = arith.divf %603, %604 : vector<2x128xf32>
    %606 = vector.extract_strided_slice %470 {offsets = [0, 256], sizes = [2, 128], strides = [1, 1]} : vector<2x384xf32> to vector<2x128xf32>
    %607 = vector.extract_strided_slice %589 {offsets = [0, 256], sizes = [2, 128], strides = [1, 1]} : vector<2x384xf32> to vector<2x128xf32>
    %608 = arith.mulf %597, %607 : vector<2x128xf32>
    %609 = arith.addf %606, %608 : vector<2x128xf32>
    %610 = math.tanh %609 : vector<2x128xf32>
    %cst_156 = arith.constant 1.000000e+00 : f32
    %611 = vector.broadcast %cst_156 : f32 to vector<2x128xf32>
    %612 = arith.subf %611, %605 : vector<2x128xf32>
    %613 = arith.mulf %612, %610 : vector<2x128xf32>
    %614 = arith.mulf %605, %587 : vector<2x128xf32>
    %615 = arith.addf %613, %614 : vector<2x128xf32>
    %cst_157 = arith.constant dense<0.000000e+00> : vector<2x384xf32>
    %616 = tpu.matmul %615, %471, %cst_157 {dimension_numbers = #tpu.dot_dimension_numbers<[1], [0], [0], [1], [0, 0, 1, 1], [], []>} : vector<2x128xf32>, vector<128x384xf32>, vector<2x384xf32> -> vector<2x384xf32>
    %617 = arith.addf %616, %474 : vector<2x384xf32>
    %618 = vector.extract_strided_slice %470 {offsets = [0, 0], sizes = [2, 128], strides = [1, 1]} : vector<2x384xf32> to vector<2x128xf32>
    %619 = vector.extract_strided_slice %617 {offsets = [0, 0], sizes = [2, 128], strides = [1, 1]} : vector<2x384xf32> to vector<2x128xf32>
    %620 = arith.addf %618, %619 : vector<2x128xf32>
    %621 = arith.negf %620 : vector<2x128xf32>
    %622 = math.exp %621 : vector<2x128xf32>
    %cst_158 = arith.constant 1.000000e+00 : f32
    %623 = vector.broadcast %cst_158 : f32 to vector<2x128xf32>
    %624 = arith.addf %623, %622 : vector<2x128xf32>
    %625 = arith.divf %623, %624 : vector<2x128xf32>
    %626 = vector.extract_strided_slice %470 {offsets = [0, 128], sizes = [2, 128], strides = [1, 1]} : vector<2x384xf32> to vector<2x128xf32>
    %627 = vector.extract_strided_slice %617 {offsets = [0, 128], sizes = [2, 128], strides = [1, 1]} : vector<2x384xf32> to vector<2x128xf32>
    %628 = arith.addf %626, %627 : vector<2x128xf32>
    %629 = arith.negf %628 : vector<2x128xf32>
    %630 = math.exp %629 : vector<2x128xf32>
    %cst_159 = arith.constant 1.000000e+00 : f32
    %631 = vector.broadcast %cst_159 : f32 to vector<2x128xf32>
    %632 = arith.addf %631, %630 : vector<2x128xf32>
    %633 = arith.divf %631, %632 : vector<2x128xf32>
    %634 = vector.extract_strided_slice %470 {offsets = [0, 256], sizes = [2, 128], strides = [1, 1]} : vector<2x384xf32> to vector<2x128xf32>
    %635 = vector.extract_strided_slice %617 {offsets = [0, 256], sizes = [2, 128], strides = [1, 1]} : vector<2x384xf32> to vector<2x128xf32>
    %636 = arith.mulf %625, %635 : vector<2x128xf32>
    %637 = arith.addf %634, %636 : vector<2x128xf32>
    %638 = math.tanh %637 : vector<2x128xf32>
    %cst_160 = arith.constant 1.000000e+00 : f32
    %639 = vector.broadcast %cst_160 : f32 to vector<2x128xf32>
    %640 = arith.subf %639, %633 : vector<2x128xf32>
    %641 = arith.mulf %640, %638 : vector<2x128xf32>
    %642 = arith.mulf %633, %615 : vector<2x128xf32>
    %643 = arith.addf %641, %642 : vector<2x128xf32>
    %cst_161 = arith.constant dense<0.000000e+00> : vector<2x384xf32>
    %644 = tpu.matmul %643, %471, %cst_161 {dimension_numbers = #tpu.dot_dimension_numbers<[1], [0], [0], [1], [0, 0, 1, 1], [], []>} : vector<2x128xf32>, vector<128x384xf32>, vector<2x384xf32> -> vector<2x384xf32>
    %645 = arith.addf %644, %474 : vector<2x384xf32>
    %646 = vector.extract_strided_slice %470 {offsets = [0, 0], sizes = [2, 128], strides = [1, 1]} : vector<2x384xf32> to vector<2x128xf32>
    %647 = vector.extract_strided_slice %645 {offsets = [0, 0], sizes = [2, 128], strides = [1, 1]} : vector<2x384xf32> to vector<2x128xf32>
    %648 = arith.addf %646, %647 : vector<2x128xf32>
    %649 = arith.negf %648 : vector<2x128xf32>
    %650 = math.exp %649 : vector<2x128xf32>
    %cst_162 = arith.constant 1.000000e+00 : f32
    %651 = vector.broadcast %cst_162 : f32 to vector<2x128xf32>
    %652 = arith.addf %651, %650 : vector<2x128xf32>
    %653 = arith.divf %651, %652 : vector<2x128xf32>
    %654 = vector.extract_strided_slice %470 {offsets = [0, 128], sizes = [2, 128], strides = [1, 1]} : vector<2x384xf32> to vector<2x128xf32>
    %655 = vector.extract_strided_slice %645 {offsets = [0, 128], sizes = [2, 128], strides = [1, 1]} : vector<2x384xf32> to vector<2x128xf32>
    %656 = arith.addf %654, %655 : vector<2x128xf32>
    %657 = arith.negf %656 : vector<2x128xf32>
    %658 = math.exp %657 : vector<2x128xf32>
    %cst_163 = arith.constant 1.000000e+00 : f32
    %659 = vector.broadcast %cst_163 : f32 to vector<2x128xf32>
    %660 = arith.addf %659, %658 : vector<2x128xf32>
    %661 = arith.divf %659, %660 : vector<2x128xf32>
    %662 = vector.extract_strided_slice %470 {offsets = [0, 256], sizes = [2, 128], strides = [1, 1]} : vector<2x384xf32> to vector<2x128xf32>
    %663 = vector.extract_strided_slice %645 {offsets = [0, 256], sizes = [2, 128], strides = [1, 1]} : vector<2x384xf32> to vector<2x128xf32>
    %664 = arith.mulf %653, %663 : vector<2x128xf32>
    %665 = arith.addf %662, %664 : vector<2x128xf32>
    %666 = math.tanh %665 : vector<2x128xf32>
    %cst_164 = arith.constant 1.000000e+00 : f32
    %667 = vector.broadcast %cst_164 : f32 to vector<2x128xf32>
    %668 = arith.subf %667, %661 : vector<2x128xf32>
    %669 = arith.mulf %668, %666 : vector<2x128xf32>
    %670 = arith.mulf %661, %643 : vector<2x128xf32>
    %671 = arith.addf %669, %670 : vector<2x128xf32>
    %cst_165 = arith.constant dense<0.000000e+00> : vector<2x384xf32>
    %672 = tpu.matmul %671, %471, %cst_165 {dimension_numbers = #tpu.dot_dimension_numbers<[1], [0], [0], [1], [0, 0, 1, 1], [], []>} : vector<2x128xf32>, vector<128x384xf32>, vector<2x384xf32> -> vector<2x384xf32>
    %673 = arith.addf %672, %474 : vector<2x384xf32>
    %674 = vector.extract_strided_slice %470 {offsets = [0, 0], sizes = [2, 128], strides = [1, 1]} : vector<2x384xf32> to vector<2x128xf32>
    %675 = vector.extract_strided_slice %673 {offsets = [0, 0], sizes = [2, 128], strides = [1, 1]} : vector<2x384xf32> to vector<2x128xf32>
    %676 = arith.addf %674, %675 : vector<2x128xf32>
    %677 = arith.negf %676 : vector<2x128xf32>
    %678 = math.exp %677 : vector<2x128xf32>
    %cst_166 = arith.constant 1.000000e+00 : f32
    %679 = vector.broadcast %cst_166 : f32 to vector<2x128xf32>
    %680 = arith.addf %679, %678 : vector<2x128xf32>
    %681 = arith.divf %679, %680 : vector<2x128xf32>
    %682 = vector.extract_strided_slice %470 {offsets = [0, 128], sizes = [2, 128], strides = [1, 1]} : vector<2x384xf32> to vector<2x128xf32>
    %683 = vector.extract_strided_slice %673 {offsets = [0, 128], sizes = [2, 128], strides = [1, 1]} : vector<2x384xf32> to vector<2x128xf32>
    %684 = arith.addf %682, %683 : vector<2x128xf32>
    %685 = arith.negf %684 : vector<2x128xf32>
    %686 = math.exp %685 : vector<2x128xf32>
    %cst_167 = arith.constant 1.000000e+00 : f32
    %687 = vector.broadcast %cst_167 : f32 to vector<2x128xf32>
    %688 = arith.addf %687, %686 : vector<2x128xf32>
    %689 = arith.divf %687, %688 : vector<2x128xf32>
    %690 = vector.extract_strided_slice %470 {offsets = [0, 256], sizes = [2, 128], strides = [1, 1]} : vector<2x384xf32> to vector<2x128xf32>
    %691 = vector.extract_strided_slice %673 {offsets = [0, 256], sizes = [2, 128], strides = [1, 1]} : vector<2x384xf32> to vector<2x128xf32>
    %692 = arith.mulf %681, %691 : vector<2x128xf32>
    %693 = arith.addf %690, %692 : vector<2x128xf32>
    %694 = math.tanh %693 : vector<2x128xf32>
    %cst_168 = arith.constant 1.000000e+00 : f32
    %695 = vector.broadcast %cst_168 : f32 to vector<2x128xf32>
    %696 = arith.subf %695, %689 : vector<2x128xf32>
    %697 = arith.mulf %696, %694 : vector<2x128xf32>
    %698 = arith.mulf %689, %671 : vector<2x128xf32>
    %699 = arith.addf %697, %698 : vector<2x128xf32>
    %700 = tpu.concatenate %503, %531, %559, %587, %615, %643, %671, %699 in 0 : vector<2x128xf32>, vector<2x128xf32>, vector<2x128xf32>, vector<2x128xf32>, vector<2x128xf32>, vector<2x128xf32>, vector<2x128xf32>, vector<2x128xf32> -> vector<16x128xf32>
    %c0_169 = arith.constant 0 : index
    %c0_170 = arith.constant 0 : index
    %701 = vector.load %arg26[%c0_169, %c0_170] : memref<128x2xf32, #tpu.memory_space<vmem>>, vector<128x2xf32>
    %cst_171 = arith.constant dense<0.000000e+00> : vector<16x2xf32>
    %702 = tpu.matmul %700, %701, %cst_171 {dimension_numbers = #tpu.dot_dimension_numbers<[1], [0], [0], [1], [0, 0, 1, 1], [], []>} : vector<16x128xf32>, vector<128x2xf32>, vector<16x2xf32> -> vector<16x2xf32>
    %c0_172 = arith.constant 0 : index
    %c0_173 = arith.constant 0 : index
    %703 = vector.load %arg27[%c0_172, %c0_173] : memref<1x2xf32, #tpu.memory_space<vmem>>, vector<1x2xf32>
    %704 = vector.broadcast %703 : vector<1x2xf32> to vector<16x2xf32>
    %705 = arith.addf %702, %704 : vector<16x2xf32>
    %c0_174 = arith.constant 0 : index
    %c0_175 = arith.constant 0 : index
    %706 = vector.load %arg28[%c0_174, %c0_175] : memref<16x2xf32, #tpu.memory_space<vmem>>, vector<16x2xf32>
    tpu.vector_store %arg28[%c0_174, %c0_175], %705 {strides = array<i32>} : memref<16x2xf32, #tpu.memory_space<vmem>>, vector<16x2xf32>,
    return
  }
  func.func @transform_0(%arg0: i32) -> (i32, i32, i32) {
    %c0_i32 = arith.constant 0 : i32
    %c0_i32_0 = arith.constant 0 : i32
    %c0_i32_1 = arith.constant 0 : i32
    %c0_i32_2 = arith.constant 0 : i32
    return %c0_i32, %c0_i32_0, %c0_i32_1 : i32, i32, i32
  }
  func.func @transform_1(%arg0: i32) -> (i32, i32, i32) {
    %c0_i32 = arith.constant 0 : i32
    %c0_i32_0 = arith.constant 0 : i32
    %c0_i32_1 = arith.constant 0 : i32
    %c0_i32_2 = arith.constant 0 : i32
    return %c0_i32, %c0_i32_0, %c0_i32_1 : i32, i32, i32
  }
  func.func @transform_2(%arg0: i32) -> (i32, i32) {
    %c0_i32 = arith.constant 0 : i32
    %c0_i32_0 = arith.constant 0 : i32
    %c0_i32_1 = arith.constant 0 : i32
    return %c0_i32, %c0_i32_0 : i32, i32
  }
  func.func @transform_3(%arg0: i32) -> (i32, i32) {
    %c0_i32 = arith.constant 0 : i32
    %c0_i32_0 = arith.constant 0 : i32
    %c0_i32_1 = arith.constant 0 : i32
    return %c0_i32, %c0_i32_0 : i32, i32
  }
  func.func @transform_4(%arg0: i32) -> (i32, i32) {
    %c0_i32 = arith.constant 0 : i32
    %c0_i32_0 = arith.constant 0 : i32
    %c0_i32_1 = arith.constant 0 : i32
    return %c0_i32, %c0_i32_0 : i32, i32
  }
  func.func @transform_5(%arg0: i32) -> (i32, i32) {
    %c0_i32 = arith.constant 0 : i32
    %c0_i32_0 = arith.constant 0 : i32
    %c0_i32_1 = arith.constant 0 : i32
    return %c0_i32, %c0_i32_0 : i32, i32
  }
  func.func @transform_6(%arg0: i32) -> (i32, i32) {
    %c0_i32 = arith.constant 0 : i32
    %c0_i32_0 = arith.constant 0 : i32
    %c0_i32_1 = arith.constant 0 : i32
    return %c0_i32, %c0_i32_0 : i32, i32
  }
  func.func @transform_7(%arg0: i32) -> (i32, i32) {
    %c0_i32 = arith.constant 0 : i32
    %c0_i32_0 = arith.constant 0 : i32
    %c0_i32_1 = arith.constant 0 : i32
    return %c0_i32, %c0_i32_0 : i32, i32
  }
  func.func @transform_8(%arg0: i32) -> (i32, i32) {
    %c0_i32 = arith.constant 0 : i32
    %c0_i32_0 = arith.constant 0 : i32
    %c0_i32_1 = arith.constant 0 : i32
    return %c0_i32, %c0_i32_0 : i32, i32
  }
  func.func @transform_9(%arg0: i32) -> (i32, i32) {
    %c0_i32 = arith.constant 0 : i32
    %c0_i32_0 = arith.constant 0 : i32
    %c0_i32_1 = arith.constant 0 : i32
    return %c0_i32, %c0_i32_0 : i32, i32
  }
  func.func @transform_10(%arg0: i32) -> (i32, i32) {
    %c0_i32 = arith.constant 0 : i32
    %c0_i32_0 = arith.constant 0 : i32
    %c0_i32_1 = arith.constant 0 : i32
    return %c0_i32, %c0_i32_0 : i32, i32
  }
  func.func @transform_11(%arg0: i32) -> (i32, i32) {
    %c0_i32 = arith.constant 0 : i32
    %c0_i32_0 = arith.constant 0 : i32
    %c0_i32_1 = arith.constant 0 : i32
    return %c0_i32, %c0_i32_0 : i32, i32
  }
  func.func @transform_12(%arg0: i32) -> (i32, i32) {
    %c0_i32 = arith.constant 0 : i32
    %c0_i32_0 = arith.constant 0 : i32
    %c0_i32_1 = arith.constant 0 : i32
    return %c0_i32, %c0_i32_0 : i32, i32
  }
  func.func @transform_13(%arg0: i32) -> (i32, i32) {
    %c0_i32 = arith.constant 0 : i32
    %c0_i32_0 = arith.constant 0 : i32
    %c0_i32_1 = arith.constant 0 : i32
    return %c0_i32, %c0_i32_0 : i32, i32
  }
  func.func @transform_14(%arg0: i32) -> (i32, i32) {
    %c0_i32 = arith.constant 0 : i32
    %c0_i32_0 = arith.constant 0 : i32
    %c0_i32_1 = arith.constant 0 : i32
    return %c0_i32, %c0_i32_0 : i32, i32
  }
  func.func @transform_15(%arg0: i32) -> (i32, i32) {
    %c0_i32 = arith.constant 0 : i32
    %c0_i32_0 = arith.constant 0 : i32
    %c0_i32_1 = arith.constant 0 : i32
    return %c0_i32, %c0_i32_0 : i32, i32
  }
  func.func @transform_16(%arg0: i32) -> (i32, i32) {
    %c0_i32 = arith.constant 0 : i32
    %c0_i32_0 = arith.constant 0 : i32
    %c0_i32_1 = arith.constant 0 : i32
    return %c0_i32, %c0_i32_0 : i32, i32
  }
  func.func @transform_17(%arg0: i32) -> (i32, i32) {
    %c0_i32 = arith.constant 0 : i32
    %c0_i32_0 = arith.constant 0 : i32
    %c0_i32_1 = arith.constant 0 : i32
    return %c0_i32, %c0_i32_0 : i32, i32
  }
  func.func @transform_18(%arg0: i32) -> (i32, i32) {
    %c0_i32 = arith.constant 0 : i32
    %c0_i32_0 = arith.constant 0 : i32
    %c0_i32_1 = arith.constant 0 : i32
    return %c0_i32, %c0_i32_0 : i32, i32
  }
  func.func @transform_19(%arg0: i32) -> (i32, i32) {
    %c0_i32 = arith.constant 0 : i32
    %c0_i32_0 = arith.constant 0 : i32
    %c0_i32_1 = arith.constant 0 : i32
    return %c0_i32, %c0_i32_0 : i32, i32
  }
  func.func @transform_20(%arg0: i32) -> (i32, i32) {
    %c0_i32 = arith.constant 0 : i32
    %c0_i32_0 = arith.constant 0 : i32
    %c0_i32_1 = arith.constant 0 : i32
    return %c0_i32, %c0_i32_0 : i32, i32
  }
  func.func @transform_21(%arg0: i32) -> (i32, i32) {
    %c0_i32 = arith.constant 0 : i32
    %c0_i32_0 = arith.constant 0 : i32
    %c0_i32_1 = arith.constant 0 : i32
    return %c0_i32, %c0_i32_0 : i32, i32
  }
  func.func @transform_22(%arg0: i32) -> (i32, i32) {
    %c0_i32 = arith.constant 0 : i32
    %c0_i32_0 = arith.constant 0 : i32
    %c0_i32_1 = arith.constant 0 : i32
    return %c0_i32, %c0_i32_0 : i32, i32
  }
  func.func @transform_23(%arg0: i32) -> (i32, i32) {
    %c0_i32 = arith.constant 0 : i32
    %c0_i32_0 = arith.constant 0 : i32
    %c0_i32_1 = arith.constant 0 : i32
    return %c0_i32, %c0_i32_0 : i32, i32
  }
  func.func @transform_24(%arg0: i32) -> (i32, i32) {
    %c0_i32 = arith.constant 0 : i32
    %c0_i32_0 = arith.constant 0 : i32
    %c0_i32_1 = arith.constant 0 : i32
    return %c0_i32, %c0_i32_0 : i32, i32
  }
  func.func @transform_25(%arg0: i32) -> (i32, i32) {
    %c0_i32 = arith.constant 0 : i32
    %c0_i32_0 = arith.constant 0 : i32
    %c0_i32_1 = arith.constant 0 : i32
    return %c0_i32, %c0_i32_0 : i32, i32
  }
  func.func @transform_26(%arg0: i32) -> (i32, i32) {
    %c0_i32 = arith.constant 0 : i32
    %c0_i32_0 = arith.constant 0 : i32
    %c0_i32_1 = arith.constant 0 : i32
    return %c0_i32, %c0_i32_0 : i32, i32
  }
  func.func @transform_27(%arg0: i32) -> (i32, i32) {
    %c0_i32 = arith.constant 0 : i32
    %c0_i32_0 = arith.constant 0 : i32
    %c0_i32_1 = arith.constant 0 : i32
    return %c0_i32, %c0_i32_0 : i32, i32
  }
}

</mosaic_0001>

<llo_original>
// kernel: tpu_custom_call.1
$region0: #{tpu_custom_call.1}
  #allocation0 [shape = 'u32[]', space=smem, size = 0x4, offset = 0x4, fixed_abs, tag = 'smem constant byte address 0x4 - core index']
  #allocation1 [shape = 'u32[144,128]{1,0:T(1,128)}', space=vmem, size = 0x12000, scoped, tag = 'internal scratch']
  %s0 = inlined_call_operand.vmem [shape: f32[2,8,2], index: 0, kind: input, shape index: {}]
  %s1 = inlined_call_operand.vmem [shape: f32[2,8,2], index: 1, kind: input, shape index: {}]
  %s2 = inlined_call_operand.vmem [shape: f32[16,16], index: 2, kind: input, shape index: {}]
  %s3 = inlined_call_operand.vmem [shape: f32[2,32], index: 3, kind: input, shape index: {}]
  %s4 = inlined_call_operand.vmem [shape: f32[1,32], index: 4, kind: input, shape index: {}]
  %s5 = inlined_call_operand.vmem [shape: f32[2,32], index: 5, kind: input, shape index: {}]
  %s6 = inlined_call_operand.vmem [shape: f32[1,32], index: 6, kind: input, shape index: {}]
  %s7 = inlined_call_operand.vmem [shape: f32[32,96], index: 7, kind: input, shape index: {}]
  %s8 = inlined_call_operand.vmem [shape: f32[1,96], index: 8, kind: input, shape index: {}]
  %s9 = inlined_call_operand.vmem [shape: f32[32,32], index: 9, kind: input, shape index: {}]
  %s10 = inlined_call_operand.vmem [shape: f32[1,32], index: 10, kind: input, shape index: {}]
  %s11 = inlined_call_operand.vmem [shape: f32[32,96], index: 11, kind: input, shape index: {}]
  %s12 = inlined_call_operand.vmem [shape: f32[1,96], index: 12, kind: input, shape index: {}]
  %s13 = inlined_call_operand.vmem [shape: f32[32,32], index: 13, kind: input, shape index: {}]
  %s14 = inlined_call_operand.vmem [shape: f32[1,32], index: 14, kind: input, shape index: {}]
  %s15 = inlined_call_operand.hbm [shape: f32[64,768], index: 15, kind: input, shape index: {}]
  %s16 = inlined_call_operand.hbm [shape: f32[256,768], index: 16, kind: input, shape index: {}]
  %s17 = inlined_call_operand.vmem [shape: f32[1,768], index: 17, kind: input, shape index: {}]
  %s18 = inlined_call_operand.vmem [shape: f32[1,768], index: 18, kind: input, shape index: {}]
  %s19 = inlined_call_operand.hbm [shape: f32[256,128], index: 19, kind: input, shape index: {}]
  %s20 = inlined_call_operand.vmem [shape: f32[1,128], index: 20, kind: input, shape index: {}]
  %s21 = inlined_call_operand.hbm [shape: f32[128,384], index: 21, kind: input, shape index: {}]
  %s22 = inlined_call_operand.hbm [shape: f32[128,384], index: 22, kind: input, shape index: {}]
  %s23 = inlined_call_operand.vmem [shape: f32[1,384], index: 23, kind: input, shape index: {}]
  %s24 = inlined_call_operand.vmem [shape: f32[1,384], index: 24, kind: input, shape index: {}]
  %s25 = inlined_call_operand.vmem [shape: f32[128,2], index: 25, kind: input, shape index: {}]
  %s26 = inlined_call_operand.vmem [shape: f32[1,2], index: 26, kind: input, shape index: {}]
  %s27 = inlined_call_operand.vmem [shape: f32[16,2], index: 27, kind: output, shape index: {}]
  %s28 = sld [smem:[#allocation0]]
  $region138: #{tpu_custom_call.1} parent=0
    _
  %s30 = ssub.s32 1, %s28
  %s31 = scalar_select 0, %s30, %s28
  $region1: #{tpu_custom_call.1} parent=0
    #allocation2 [shape = 'u8[196608]{0}', space=vmem, size = 0x30000, scoped, tag = 'input window, operand 15, single buffered']
    #allocation3 [shape = 's32[1]{0}', space=sflag, size = 0x4, scoped, tag = 'scoped memory for tpu_custom_call.1']
    #allocation4 [shape = 'u8[786432]{0}', space=vmem, size = 0xc0000, scoped, tag = 'input window, operand 16, single buffered']
    #allocation5 [shape = 's32[1]{0}', space=sflag, size = 0x4, scoped, tag = 'scoped memory for tpu_custom_call.1']
    #allocation6 [shape = 'u8[131072]{0}', space=vmem, size = 0x20000, scoped, tag = 'input window, operand 19, single buffered']
    #allocation7 [shape = 'u8[196608]{0}', space=vmem, size = 0x30000, scoped, tag = 'input window, operand 21, single buffered']
    #allocation8 [shape = 's32[1]{0}', space=sflag, size = 0x4, scoped, tag = 'scoped memory for tpu_custom_call.1']
    #allocation9 [shape = 'u8[196608]{0}', space=vmem, size = 0x30000, scoped, tag = 'input window, operand 22, single buffered']
    %32 = vsyncpa [#allocation3], 0
    %33 = vsyncpa [#allocation5], 0
    %34 = vsyncpa [#allocation8], 0
    // Predicated region
    $region2: #{tpu_custom_call.1} parent=1 // pred_check
      _
    $region3: #{tpu_custom_call.1} parent=1 // pred_check_branch
      %36 = sbr.rel (0) target = $region5
    $region4: #{tpu_custom_call.1} parent=1 // pred_region
      _
    $region5: #{tpu_custom_call.1} parent=1 // pred_fallthru
      _
    // Predicated region
    $region6: #{tpu_custom_call.1} parent=1 // pred_check
      _
    $region7: #{tpu_custom_call.1} parent=1 // pred_check_branch
      %38 = sbr.rel (0) target = $region9
    $region8: #{tpu_custom_call.1} parent=1 // pred_region
      _
    $region9: #{tpu_custom_call.1} parent=1 // pred_fallthru
      _
    // Predicated region
    $region10: #{tpu_custom_call.1} parent=1 // pred_check
      _
    $region11: #{tpu_custom_call.1} parent=1 // pred_check_branch
      %40 = sbr.rel (0) target = $region13
    $region12: #{tpu_custom_call.1} parent=1 // pred_region
      _
    $region13: #{tpu_custom_call.1} parent=1 // pred_fallthru
      _
    // Predicated region
    $region14: #{tpu_custom_call.1} parent=1 // pred_check
      _
    $region15: #{tpu_custom_call.1} parent=1 // pred_check_branch
      %42 = sbr.rel (0) target = $region17
    $region16: #{tpu_custom_call.1} parent=1 // pred_region
      _
    $region17: #{tpu_custom_call.1} parent=1 // pred_fallthru
      _
    // Predicated region
    $region18: #{tpu_custom_call.1} parent=1 // pred_check
      _
    $region19: #{tpu_custom_call.1} parent=1 // pred_check_branch
      %44 = sbr.rel (0) target = $region21
    $region20: #{tpu_custom_call.1} parent=1 // pred_region
      _
    $region21: #{tpu_custom_call.1} parent=1 // pred_fallthru
      _
    // Predicated region
    $region22: #{tpu_custom_call.1} parent=1 // pred_check
      _
    $region23: #{tpu_custom_call.1} parent=1 // pred_check_branch
      %46 = sbr.rel (0) target = $region25
    $region24: #{tpu_custom_call.1} parent=1 // pred_region
      _
    $region25: #{tpu_custom_call.1} parent=1 // pred_fallthru
      _
    // Predicated region
    $region26: #{tpu_custom_call.1} parent=1 // pred_check
      _
    $region27: #{tpu_custom_call.1} parent=1 // pred_check_branch
      %48 = sbr.rel (0) target = $region29
    $region28: #{tpu_custom_call.1} parent=1 // pred_region
      _
    $region29: #{tpu_custom_call.1} parent=1 // pred_fallthru
      _
    // Predicated region
    $region30: #{tpu_custom_call.1} parent=1 // pred_check
      _
    $region31: #{tpu_custom_call.1} parent=1 // pred_check_branch
      %50 = sbr.rel (0) target = $region33
    $region32: #{tpu_custom_call.1} parent=1 // pred_region
      _
    $region33: #{tpu_custom_call.1} parent=1 // pred_fallthru
      _
    // Predicated region
    $region34: #{tpu_custom_call.1} parent=1 // pred_check
      _
    $region35: #{tpu_custom_call.1} parent=1 // pred_check_branch
      %52 = sbr.rel (0) target = $region37
    $region36: #{tpu_custom_call.1} parent=1 // pred_region
      _
    $region37: #{tpu_custom_call.1} parent=1 // pred_fallthru
      _
    // Predicated region
    $region38: #{tpu_custom_call.1} parent=1 // pred_check
      _
    $region39: #{tpu_custom_call.1} parent=1 // pred_check_branch
      %54 = sbr.rel (0) target = $region41
    $region40: #{tpu_custom_call.1} parent=1 // pred_region
      _
    $region41: #{tpu_custom_call.1} parent=1 // pred_fallthru
      _
    // Predicated region
    $region42: #{tpu_custom_call.1} parent=1 // pred_check
      _
    $region43: #{tpu_custom_call.1} parent=1 // pred_check_branch
      %56 = sbr.rel (0) target = $region45
    $region44: #{tpu_custom_call.1} parent=1 // pred_region
      _
    $region45: #{tpu_custom_call.1} parent=1 // pred_fallthru
      _
    // Predicated region
    $region46: #{tpu_custom_call.1} parent=1 // pred_check
      _
    $region47: #{tpu_custom_call.1} parent=1 // pred_check_branch
      %58 = sbr.rel (0) target = $region49
    $region48: #{tpu_custom_call.1} parent=1 // pred_region
      _
    $region49: #{tpu_custom_call.1} parent=1 // pred_fallthru
      _
    // Predicated region
    $region50: #{tpu_custom_call.1} parent=1 // pred_check
      _
    $region51: #{tpu_custom_call.1} parent=1 // pred_check_branch
      %60 = sbr.rel (0) target = $region53
    $region52: #{tpu_custom_call.1} parent=1 // pred_region
      _
    $region53: #{tpu_custom_call.1} parent=1 // pred_fallthru
      _
    // Predicated region
    $region54: #{tpu_custom_call.1} parent=1 // pred_check
      _
    $region55: #{tpu_custom_call.1} parent=1 // pred_check_branch
      %62 = sbr.rel (0) target = $region57
    $region56: #{tpu_custom_call.1} parent=1 // pred_region
      _
    $region57: #{tpu_custom_call.1} parent=1 // pred_fallthru
      _
    // Predicated region
    $region58: #{tpu_custom_call.1} parent=1 // pred_check
      _
    $region59: #{tpu_custom_call.1} parent=1 // pred_check_branch
      %64 = sbr.rel (0) target = $region61
    $region60: #{tpu_custom_call.1} parent=1 // pred_region
      _
    $region61: #{tpu_custom_call.1} parent=1 // pred_fallthru
      _
    // Predicated region
    $region62: #{tpu_custom_call.1} parent=1 // pred_check
      _
    $region63: #{tpu_custom_call.1} parent=1 // pred_check_branch
      %66 = sbr.rel (0) target = $region65
    $region64: #{tpu_custom_call.1} parent=1 // pred_region
      %s68 = ssub.s32 6144, 6144
      %69 = vsyncadd [#allocation3], %s68
      %s70 = sshll.u32 [#allocation2], 4
      %s71 = int_to_ptr.vmem [resolvable:$true] %s70
      %76 = dma.hbm_to_vmem [thread:$0]  %s15, 6144, %s71, [#allocation3], 768, 768, 48
    $region65: #{tpu_custom_call.1} parent=1 // pred_fallthru
      _
    // Predicated region
    $region66: #{tpu_custom_call.1} parent=1 // pred_check
      _
    $region67: #{tpu_custom_call.1} parent=1 // pred_check_branch
      %78 = sbr.rel (0) target = $region69
    $region68: #{tpu_custom_call.1} parent=1 // pred_region
      %s80 = ssub.s32 24576, 24576
      %81 = vsyncadd [#allocation5], %s80
      %s82 = sshll.u32 [#allocation4], 4
      %s83 = int_to_ptr.vmem [resolvable:$true] %s82
      %88 = dma.hbm_to_vmem [thread:$0]  %s16, 24576, %s83, [#allocation5], 768, 768, 48
    $region69: #{tpu_custom_call.1} parent=1 // pred_fallthru
      _
    // Predicated region
    $region70: #{tpu_custom_call.1} parent=1 // pred_check
      _
    $region71: #{tpu_custom_call.1} parent=1 // pred_check_branch
      %90 = sbr.rel (0) target = $region73
    $region72: #{tpu_custom_call.1} parent=1 // pred_region
      _
    $region73: #{tpu_custom_call.1} parent=1 // pred_fallthru
      _
    // Predicated region
    $region74: #{tpu_custom_call.1} parent=1 // pred_check
      _
    $region75: #{tpu_custom_call.1} parent=1 // pred_check_branch
      %92 = sbr.rel (0) target = $region77
    $region76: #{tpu_custom_call.1} parent=1 // pred_region
      _
    $region77: #{tpu_custom_call.1} parent=1 // pred_fallthru
      _
    // Predicated region
    $region78: #{tpu_custom_call.1} parent=1 // pred_check
      _
    $region79: #{tpu_custom_call.1} parent=1 // pred_check_branch
      %94 = sbr.rel (0) target = $region81
    $region80: #{tpu_custom_call.1} parent=1 // pred_region
      %s96 = ssub.s32 4096, 4096
      %97 = vsyncadd [#allocation5], %s96
      %s98 = sshll.u32 [#allocation6], 4
      %s99 = int_to_ptr.vmem [resolvable:$true] %s98
      %104 = dma.hbm_to_vmem [thread:$0]  %s19, 4096, %s99, [#allocation5], 128, 128, 8
    $region81: #{tpu_custom_call.1} parent=1 // pred_fallthru
      _
    // Predicated region
    $region82: #{tpu_custom_call.1} parent=1 // pred_check
      _
    $region83: #{tpu_custom_call.1} parent=1 // pred_check_branch
      %106 = sbr.rel (0) target = $region85
    $region84: #{tpu_custom_call.1} parent=1 // pred_region
      _
    $region85: #{tpu_custom_call.1} parent=1 // pred_fallthru
      _
    // Predicated region
    $region86: #{tpu_custom_call.1} parent=1 // pred_check
      _
    $region87: #{tpu_custom_call.1} parent=1 // pred_check_branch
      %108 = sbr.rel (0) target = $region89
    $region88: #{tpu_custom_call.1} parent=1 // pred_region
      %s110 = ssub.s32 6144, 6144
      %111 = vsyncadd [#allocation8], %s110
      %s112 = sshll.u32 [#allocation7], 4
      %s113 = int_to_ptr.vmem [resolvable:$true] %s112
      %118 = dma.hbm_to_vmem [thread:$0]  %s21, 6144, %s113, [#allocation8], 384, 384, 24
    $region89: #{tpu_custom_call.1} parent=1 // pred_fallthru
      _
    // Predicated region
    $region90: #{tpu_custom_call.1} parent=1 // pred_check
      _
    $region91: #{tpu_custom_call.1} parent=1 // pred_check_branch
      %120 = sbr.rel (0) target = $region93
    $region92: #{tpu_custom_call.1} parent=1 // pred_region
      %s122 = ssub.s32 6144, 6144
      %123 = vsyncadd [#allocation8], %s122
      %s124 = sshll.u32 [#allocation9], 4
      %s125 = int_to_ptr.vmem [resolvable:$true] %s124
      %130 = dma.hbm_to_vmem [thread:$0]  %s22, 6144, %s125, [#allocation8], 384, 384, 24
    $region93: #{tpu_custom_call.1} parent=1 // pred_fallthru
      _
    // Predicated region
    $region94: #{tpu_custom_call.1} parent=1 // pred_check
      _
    $region95: #{tpu_custom_call.1} parent=1 // pred_check_branch
      %132 = sbr.rel (0) target = $region97
    $region96: #{tpu_custom_call.1} parent=1 // pred_region
      _
    $region97: #{tpu_custom_call.1} parent=1 // pred_fallthru
      _
    // Predicated region
    $region98: #{tpu_custom_call.1} parent=1 // pred_check
      _
    $region99: #{tpu_custom_call.1} parent=1 // pred_check_branch
      %134 = sbr.rel (0) target = $region101
    $region100: #{tpu_custom_call.1} parent=1 // pred_region
      _
    $region101: #{tpu_custom_call.1} parent=1 // pred_fallthru
      _
    // Predicated region
    $region102: #{tpu_custom_call.1} parent=1 // pred_check
      _
    $region103: #{tpu_custom_call.1} parent=1 // pred_check_branch
      %136 = sbr.rel (0) target = $region105
    $region104: #{tpu_custom_call.1} parent=1 // pred_region
      _
    $region105: #{tpu_custom_call.1} parent=1 // pred_fallthru
      _
    // Predicated region
    $region106: #{tpu_custom_call.1} parent=1 // pred_check
      _
    $region107: #{tpu_custom_call.1} parent=1 // pred_check_branch
      %138 = sbr.rel (0) target = $region109
    $region108: #{tpu_custom_call.1} parent=1 // pred_region
      _
    $region109: #{tpu_custom_call.1} parent=1 // pred_fallthru
      _
    // Predicated region
    $region110: #{tpu_custom_call.1} parent=1 // pred_check
      _
    $region111: #{tpu_custom_call.1} parent=1 // pred_check_branch
      %140 = sbr.rel (0) target = $region113
    $region112: #{tpu_custom_call.1} parent=1 // pred_region
      %141 = dma.done [#allocation3], 6144
    $region113: #{tpu_custom_call.1} parent=1 // pred_fallthru
      _
    // Predicated region
    $region114: #{tpu_custom_call.1} parent=1 // pred_check
      _
    $region115: #{tpu_custom_call.1} parent=1 // pred_check_branch
      %143 = sbr.rel (0) target = $region117
    $region116: #{tpu_custom_call.1} parent=1 // pred_region
      %144 = dma.done [#allocation5], 24576
    $region117: #{tpu_custom_call.1} parent=1 // pred_fallthru
      _
    // Predicated region
    $region118: #{tpu_custom_call.1} parent=1 // pred_check
      _
    $region119: #{tpu_custom_call.1} parent=1 // pred_check_branch
      %146 = sbr.rel (0) target = $region121
    $region120: #{tpu_custom_call.1} parent=1 // pred_region
      %147 = dma.done [#allocation5], 4096
    $region121: #{tpu_custom_call.1} parent=1 // pred_fallthru
      _
    // Predicated region
    $region122: #{tpu_custom_call.1} parent=1 // pred_check
      _
    $region123: #{tpu_custom_call.1} parent=1 // pred_check_branch
      %149 = sbr.rel (0) target = $region125
    $region124: #{tpu_custom_call.1} parent=1 // pred_region
      %150 = dma.done [#allocation8], 6144
    $region125: #{tpu_custom_call.1} parent=1 // pred_fallthru
      _
    // Predicated region
    $region126: #{tpu_custom_call.1} parent=1 // pred_check
      _
    $region127: #{tpu_custom_call.1} parent=1 // pred_check_branch
      %152 = sbr.rel (0) target = $region129
    $region128: #{tpu_custom_call.1} parent=1 // pred_region
      %153 = dma.done [#allocation8], 6144
    $region129: #{tpu_custom_call.1} parent=1 // pred_fallthru
      _
    %v154 = vld [vmem:[%s0] sm:$0xff]
    %v155 = vld [vmem:[%s0 + $0x8] sm:$0xff]
    %v156 = vld [vmem:[%s1] sm:$0xff]
    %v157 = vld [vmem:[%s1 + $0x8] sm:$0xff]
    %v158 = vld [vmem:[%s3] sm:$0x3]
    %v159 = vld [vmem:[%s5] sm:$0x3]
    %161 = vset.pattern.permute.xlu0 0
    %162 = vperm.xlu0 %161, %v154
    %v163 = vpop.permute.xlu0 %162
    %166 = vset.pattern.permute.xlu0 0
    %167 = vperm.xlu0 %166, %v155
    %v168 = vpop.permute.xlu0 %167
    %v170 = vlaneseq
    %v171 = vshrl.u32 %v170, 7
    %v172 = vsub.s32 0, %v171
    %v173 = vrot.slane %v158, %v172
    %v174 = vmul.f32 %v163, %v173
    %v175 = vmul.f32 %v168, %v173
    %176 = vset.pattern.permute.xlu0 1
    %177 = vperm.xlu0 %176, %v154
    %v178 = vpop.permute.xlu0 %177
    %180 = vset.pattern.permute.xlu0 1
    %181 = vperm.xlu0 %180, %v155
    %v182 = vpop.permute.xlu0 %181
    %v184 = vlaneseq
    %v185 = vshrl.u32 %v184, 7
    %v186 = vsub.s32 1, %v185
    %v187 = vrot.slane %v158, %v186
    %v188 = vmul.f32 %v178, %v187
    %v189 = vmul.f32 %v182, %v187
    %v190 = vadd.f32 %v174, %v188
    %v191 = vadd.f32 %v175, %v189
    %v192 = vld [vmem:[%s4] sm:$0x1]
    %v194 = vlaneseq
    %v195 = vshrl.u32 %v194, 7
    %v196 = vsub.s32 0, %v195
    %v197 = vrot.slane %v192, %v196
    %v199 = vadd.f32 %v190, %v197
    %v200 = vadd.f32 %v191, %v197
    %v201 = vmax.f32 %v199, 0.0
    %v202 = vmax.f32 %v200, 0.0
    %204 = vset.pattern.permute.xlu0 0
    %205 = vperm.xlu0 %204, %v156
    %v206 = vpop.permute.xlu0 %205
    %209 = vset.pattern.permute.xlu0 0
    %210 = vperm.xlu0 %209, %v157
    %v211 = vpop.permute.xlu0 %210
    %v213 = vlaneseq
    %v214 = vshrl.u32 %v213, 7
    %v215 = vsub.s32 0, %v214
    %v216 = vrot.slane %v159, %v215
    %v217 = vmul.f32 %v206, %v216
    %v218 = vmul.f32 %v211, %v216
    %219 = vset.pattern.permute.xlu0 1
    %220 = vperm.xlu0 %219, %v156
    %v221 = vpop.permute.xlu0 %220
    %223 = vset.pattern.permute.xlu0 1
    %224 = vperm.xlu0 %223, %v157
    %v225 = vpop.permute.xlu0 %224
    %v227 = vlaneseq
    %v228 = vshrl.u32 %v227, 7
    %v229 = vsub.s32 1, %v228
    %v230 = vrot.slane %v159, %v229
    %v231 = vmul.f32 %v221, %v230
    %v232 = vmul.f32 %v225, %v230
    %v233 = vadd.f32 %v217, %v231
    %v234 = vadd.f32 %v218, %v232
    %v235 = vld [vmem:[%s6] sm:$0x1]
    %v237 = vlaneseq
    %v238 = vshrl.u32 %v237, 7
    %v239 = vsub.s32 0, %v238
    %v240 = vrot.slane %v235, %v239
    %v242 = vadd.f32 %v233, %v240
    %v243 = vadd.f32 %v234, %v240
    %v244 = vmax.f32 %v242, 0.0
    %v245 = vmax.f32 %v243, 0.0
    %v246 = vld [vmem:[%s7] sm:$0xff]
    %v247 = vld [vmem:[%s7 + $0x8] sm:$0xff]
    %v248 = vld [vmem:[%s7 + $0x10] sm:$0xff]
    %v249 = vld [vmem:[%s7 + $0x18] sm:$0xff]
    %v250 = vld [vmem:[%s8] sm:$0x1]
    %v251 = vld [vmem:[%s9] sm:$0xff]
    %v252 = vld [vmem:[%s9 + $0x8] sm:$0xff]
    %v253 = vld [vmem:[%s9 + $0x10] sm:$0xff]
    %v254 = vld [vmem:[%s9 + $0x18] sm:$0xff]
    %v255 = vld [vmem:[%s10] sm:$0x1]
    %v257 = vlaneseq
    %v258 = vshrl.u32 %v257, 7
    %v259 = vsub.s32 0, %v258
    %v260 = vrot.slane %v250, %v259
    %vm262 = vcmask 261120
    %v264 = vsel %vm262, %v201, 0
    %v267 = vsel %vm262, %v202, 0
    %269 = vmatprep.subr.mxu0 0.0
    %270 = vmatpush1.msra.mxu0 %v246
    %271 = vmatprep.subr.mxu0 0.0
    %272 = vmatpush1.msra.mxu0 %v247
    %273 = vmatprep.subr.mxu0 0.0
    %274 = vmatpush1.msra.mxu0 %v248
    %275 = vmatprep.subr.mxu0 0.0
    %276 = vmatpush1.msra.mxu0 %v249
    %277 = vmatprep.subr.mxu0 0.0
    %278 = vmatpush1.msra.mxu0 0.0
    %279 = vmatprep.subr.mxu0 0.0
    %280 = vmatpush1.msra.mxu0 0.0
    %281 = vmatprep.subr.mxu0 0.0
    %282 = vmatpush1.msra.mxu0 0.0
    %283 = vmatprep.subr.mxu0 0.0
    %284 = vmatpush1.msra.mxu0 0.0
    %285 = vmatprep.subr.mxu0 0.0
    %286 = vmatpush1.msra.mxu0 0.0
    %287 = vmatprep.subr.mxu0 0.0
    %288 = vmatpush1.msra.mxu0 0.0
    %289 = vmatprep.subr.mxu0 0.0
    %290 = vmatpush1.msra.mxu0 0.0
    %291 = vmatprep.subr.mxu0 0.0
    %292 = vmatpush1.msra.mxu0 0.0
    %293 = vmatprep.subr.mxu0 0.0
    %294 = vmatpush1.msra.mxu0 0.0
    %295 = vmatprep.subr.mxu0 0.0
    %296 = vmatpush1.msra.mxu0 0.0
    %297 = vmatprep.subr.mxu0 0.0
    %298 = vmatpush1.msra.mxu0 0.0
    %299 = vmatprep.subr.mxu0 0.0
    %300 = vmatpush1.msra.mxu0 0.0
    %301 = vmatprep.subr.mxu0 0.0
    %302 = vmatpush1.msra.mxu0 0.0
    %303 = vmatprep.subr.mxu0 0.0
    %304 = vmatpush1.msra.mxu0 0.0
    %305 = vmatprep.subr.mxu0 0.0
    %306 = vmatpush1.msra.mxu0 0.0
    %307 = vmatprep.subr.mxu0 0.0
    %308 = vmatpush1.msra.mxu0 0.0
    %309 = vmatprep.subr.mxu0 0.0
    %310 = vmatpush1.msra.mxu0 0.0
    %311 = vmatprep.subr.mxu0 0.0
    %312 = vmatpush1.msra.mxu0 0.0
    %313 = vmatprep.subr.mxu0 0.0
    %314 = vmatpush1.msra.mxu0 0.0
    %315 = vmatprep.subr.mxu0 0.0
    %316 = vmatpush1.msra.mxu0 0.0
    %317 = vmatprep.subr.mxu0 0.0
    %318 = vmatpush1.msra.mxu0 0.0
    %319 = vmatprep.subr.mxu0 0.0
    %320 = vmatpush1.msra.mxu0 0.0
    %321 = vmatprep.subr.mxu0 0.0
    %322 = vmatpush1.msra.mxu0 0.0
    %323 = vmatprep.subr.mxu0 0.0
    %324 = vmatpush1.msra.mxu0 0.0
    %325 = vmatprep.subr.mxu0 0.0
    %326 = vmatpush1.msra.mxu0 0.0
    %327 = vmatprep.subr.mxu0 0.0
    %328 = vmatpush1.msra.mxu0 0.0
    %329 = vmatprep.subr.mxu0 0.0
    %330 = vmatpush1.msra.mxu0 0.0
    %331 = vmatprep.subr.mxu0 0.0
    %332 = vmatpush1.msra.mxu0 0.0
    %333 = vmatprep.mubr.f32.mxu0 0.0
    %334 = vmatmul.mubr.f32.gmra.mrb[0].mxu0 %v264
    %v335 = vpop.f32.mrb[0].mxu0
    %v336 = vadd.f32 %v260, %v335
    %v337 = vpop.f32.mrb[0].mxu0
    %338 = vmatprep.mubr.f32.mxu0 0.0
    %339 = vmatmul.mubr.f32.gmra.mrb[0].mxu0 %v267
    %v340 = vpop.f32.mrb[0].mxu0
    %v341 = vadd.f32 %v260, %v340
    %v342 = vpop.f32.mrb[0].mxu0
    %343 = vdwg.mxu0
    %348 = vrot.lane.b32.xlu0 %v246, 96
    %v349 = vpop.permute.xlu0 %348
    %350 = vrot.lane.b32.xlu0 %v247, 96
    %v351 = vpop.permute.xlu0 %350
    %352 = vrot.lane.b32.xlu0 %v248, 96
    %v353 = vpop.permute.xlu0 %352
    %354 = vrot.lane.b32.xlu0 %v249, 96
    %v355 = vpop.permute.xlu0 %354
    %360 = vrot.lane.b32.xlu0 %v260, 96
    %v361 = vpop.permute.xlu0 %360
    %v364 = vsel %vm262, %v244, 0
    %v367 = vsel %vm262, %v245, 0
    %369 = vmatprep.subr.mxu0 0.0
    %370 = vmatpush1.msra.mxu0 %v349
    %371 = vmatprep.subr.mxu0 0.0
    %372 = vmatpush1.msra.mxu0 %v351
    %373 = vmatprep.subr.mxu0 0.0
    %374 = vmatpush1.msra.mxu0 %v353
    %375 = vmatprep.subr.mxu0 0.0
    %376 = vmatpush1.msra.mxu0 %v355
    %377 = vmatprep.subr.mxu0 0.0
    %378 = vmatpush1.msra.mxu0 0.0
    %379 = vmatprep.subr.mxu0 0.0
    %380 = vmatpush1.msra.mxu0 0.0
    %381 = vmatprep.subr.mxu0 0.0
    %382 = vmatpush1.msra.mxu0 0.0
    %383 = vmatprep.subr.mxu0 0.0
    %384 = vmatpush1.msra.mxu0 0.0
    %385 = vmatprep.subr.mxu0 0.0
    %386 = vmatpush1.msra.mxu0 0.0
    %387 = vmatprep.subr.mxu0 0.0
    %388 = vmatpush1.msra.mxu0 0.0
    %389 = vmatprep.subr.mxu0 0.0
    %390 = vmatpush1.msra.mxu0 0.0
    %391 = vmatprep.subr.mxu0 0.0
    %392 = vmatpush1.msra.mxu0 0.0
    %393 = vmatprep.subr.mxu0 0.0
    %394 = vmatpush1.msra.mxu0 0.0
    %395 = vmatprep.subr.mxu0 0.0
    %396 = vmatpush1.msra.mxu0 0.0
    %397 = vmatprep.subr.mxu0 0.0
    %398 = vmatpush1.msra.mxu0 0.0
    %399 = vmatprep.subr.mxu0 0.0
    %400 = vmatpush1.msra.mxu0 0.0
    %401 = vmatprep.subr.mxu0 0.0
    %402 = vmatpush1.msra.mxu0 0.0
    %403 = vmatprep.subr.mxu0 0.0
    %404 = vmatpush1.msra.mxu0 0.0
    %405 = vmatprep.subr.mxu0 0.0
    %406 = vmatpush1.msra.mxu0 0.0
    %407 = vmatprep.subr.mxu0 0.0
    %408 = vmatpush1.msra.mxu0 0.0
    %409 = vmatprep.subr.mxu0 0.0
    %410 = vmatpush1.msra.mxu0 0.0
    %411 = vmatprep.subr.mxu0 0.0
    %412 = vmatpush1.msra.mxu0 0.0
    %413 = vmatprep.subr.mxu0 0.0
    %414 = vmatpush1.msra.mxu0 0.0
    %415 = vmatprep.subr.mxu0 0.0
    %416 = vmatpush1.msra.mxu0 0.0
    %417 = vmatprep.subr.mxu0 0.0
    %418 = vmatpush1.msra.mxu0 0.0
    %419 = vmatprep.subr.mxu0 0.0
    %420 = vmatpush1.msra.mxu0 0.0
    %421 = vmatprep.subr.mxu0 0.0
    %422 = vmatpush1.msra.mxu0 0.0
    %423 = vmatprep.subr.mxu0 0.0
    %424 = vmatpush1.msra.mxu0 0.0
    %425 = vmatprep.subr.mxu0 0.0
    %426 = vmatpush1.msra.mxu0 0.0
    %427 = vmatprep.subr.mxu0 0.0
    %428 = vmatpush1.msra.mxu0 0.0
    %429 = vmatprep.subr.mxu0 0.0
    %430 = vmatpush1.msra.mxu0 0.0
    %431 = vmatprep.subr.mxu0 0.0
    %432 = vmatpush1.msra.mxu0 0.0
    %433 = vmatprep.mubr.f32.mxu0 0.0
    %434 = vmatmul.mubr.f32.gmra.mrb[0].mxu0 %v364
    %v435 = vpop.f32.mrb[0].mxu0
    %v436 = vadd.f32 %v361, %v435
    %v437 = vpop.f32.mrb[0].mxu0
    %438 = vmatprep.mubr.f32.mxu0 0.0
    %439 = vmatmul.mubr.f32.gmra.mrb[0].mxu0 %v367
    %v440 = vpop.f32.mrb[0].mxu0
    %v441 = vadd.f32 %v361, %v440
    %v442 = vpop.f32.mrb[0].mxu0
    %443 = vdwg.mxu0
    %vm444 = vcmask 64512
    %v446 = vsel %vm444, %v336, 0
    %v449 = vsel %vm444, %v436, 0
    %451 = vmatprep.subr.mxu0 0.0
    %452 = vmatpush1.xpose.msra.mxu0 %v449
    %453 = vmatprep.subr.mxu0 0.0
    %454 = vmatpush1.xpose.msra.mxu0 0.0
    %455 = vmatprep.subr.mxu0 0.0
    %456 = vmatpush1.xpose.msra.mxu0 0.0
    %457 = vmatprep.subr.mxu0 0.0
    %458 = vmatpush1.xpose.msra.mxu0 0.0
    %459 = vmatprep.subr.mxu0 0.0
    %460 = vmatpush1.xpose.msra.mxu0 0.0
    %461 = vmatprep.subr.mxu0 0.0
    %462 = vmatpush1.xpose.msra.mxu0 0.0
    %463 = vmatprep.subr.mxu0 0.0
    %464 = vmatpush1.xpose.msra.mxu0 0.0
    %465 = vmatprep.subr.mxu0 0.0
    %466 = vmatpush1.xpose.msra.mxu0 0.0
    %467 = vmatprep.subr.mxu0 0.0
    %468 = vmatpush1.xpose.msra.mxu0 0.0
    %469 = vmatprep.subr.mxu0 0.0
    %470 = vmatpush1.xpose.msra.mxu0 0.0
    %471 = vmatprep.subr.mxu0 0.0
    %472 = vmatpush1.xpose.msra.mxu0 0.0
    %473 = vmatprep.subr.mxu0 0.0
    %474 = vmatpush1.xpose.msra.mxu0 0.0
    %475 = vmatprep.subr.mxu0 0.0
    %476 = vmatpush1.xpose.msra.mxu0 0.0
    %477 = vmatprep.subr.mxu0 0.0
    %478 = vmatpush1.xpose.msra.mxu0 0.0
    %479 = vmatprep.subr.mxu0 0.0
    %480 = vmatpush1.xpose.msra.mxu0 0.0
    %481 = vmatprep.subr.mxu0 0.0
    %482 = vmatpush1.xpose.msra.mxu0 0.0
    %483 = vmatprep.subr.mxu0 0.0
    %484 = vmatpush1.xpose.msra.mxu0 0.0
    %485 = vmatprep.subr.mxu0 0.0
    %486 = vmatpush1.xpose.msra.mxu0 0.0
    %487 = vmatprep.subr.mxu0 0.0
    %488 = vmatpush1.xpose.msra.mxu0 0.0
    %489 = vmatprep.subr.mxu0 0.0
    %490 = vmatpush1.xpose.msra.mxu0 0.0
    %491 = vmatprep.subr.mxu0 0.0
    %492 = vmatpush1.xpose.msra.mxu0 0.0
    %493 = vmatprep.subr.mxu0 0.0
    %494 = vmatpush1.xpose.msra.mxu0 0.0
    %495 = vmatprep.subr.mxu0 0.0
    %496 = vmatpush1.xpose.msra.mxu0 0.0
    %497 = vmatprep.subr.mxu0 0.0
    %498 = vmatpush1.xpose.msra.mxu0 0.0
    %499 = vmatprep.subr.mxu0 0.0
    %500 = vmatpush1.xpose.msra.mxu0 0.0
    %501 = vmatprep.subr.mxu0 0.0
    %502 = vmatpush1.xpose.msra.mxu0 0.0
    %503 = vmatprep.subr.mxu0 0.0
    %504 = vmatpush1.xpose.msra.mxu0 0.0
    %505 = vmatprep.subr.mxu0 0.0
    %506 = vmatpush1.xpose.msra.mxu0 0.0
    %507 = vmatprep.subr.mxu0 0.0
    %508 = vmatpush1.xpose.msra.mxu0 0.0
    %509 = vmatprep.subr.mxu0 0.0
    %510 = vmatpush1.xpose.msra.mxu0 0.0
    %511 = vmatprep.subr.mxu0 0.0
    %512 = vmatpush1.xpose.msra.mxu0 0.0
    %513 = vmatprep.subr.mxu0 0.0
    %514 = vmatpush1.xpose.msra.mxu0 0.0
    %515 = vmatprep.mubr.f32.mxu0 0.0
    %516 = vmatmul.mubr.f32.gmra.mrb[0].mxu0 %v446
    %v517 = vpop.f32.mrb[0].mxu0
    %v518 = vadd.f32 0.0, %v517
    %v519 = vpop.f32.mrb[0].mxu0
    %520 = vdwg.mxu0
    %v522 = vsel %vm444, %v341, 0
    %v525 = vsel %vm444, %v441, 0
    %527 = vmatprep.subr.mxu0 0.0
    %528 = vmatpush1.xpose.msra.mxu0 %v525
    %529 = vmatprep.subr.mxu0 0.0
    %530 = vmatpush1.xpose.msra.mxu0 0.0
    %531 = vmatprep.subr.mxu0 0.0
    %532 = vmatpush1.xpose.msra.mxu0 0.0
    %533 = vmatprep.subr.mxu0 0.0
    %534 = vmatpush1.xpose.msra.mxu0 0.0
    %535 = vmatprep.subr.mxu0 0.0
    %536 = vmatpush1.xpose.msra.mxu0 0.0
    %537 = vmatprep.subr.mxu0 0.0
    %538 = vmatpush1.xpose.msra.mxu0 0.0
    %539 = vmatprep.subr.mxu0 0.0
    %540 = vmatpush1.xpose.msra.mxu0 0.0
    %541 = vmatprep.subr.mxu0 0.0
    %542 = vmatpush1.xpose.msra.mxu0 0.0
    %543 = vmatprep.subr.mxu0 0.0
    %544 = vmatpush1.xpose.msra.mxu0 0.0
    %545 = vmatprep.subr.mxu0 0.0
    %546 = vmatpush1.xpose.msra.mxu0 0.0
    %547 = vmatprep.subr.mxu0 0.0
    %548 = vmatpush1.xpose.msra.mxu0 0.0
    %549 = vmatprep.subr.mxu0 0.0
    %550 = vmatpush1.xpose.msra.mxu0 0.0
    %551 = vmatprep.subr.mxu0 0.0
    %552 = vmatpush1.xpose.msra.mxu0 0.0
    %553 = vmatprep.subr.mxu0 0.0
    %554 = vmatpush1.xpose.msra.mxu0 0.0
    %555 = vmatprep.subr.mxu0 0.0
    %556 = vmatpush1.xpose.msra.mxu0 0.0
    %557 = vmatprep.subr.mxu0 0.0
    %558 = vmatpush1.xpose.msra.mxu0 0.0
    %559 = vmatprep.subr.mxu0 0.0
    %560 = vmatpush1.xpose.msra.mxu0 0.0
    %561 = vmatprep.subr.mxu0 0.0
    %562 = vmatpush1.xpose.msra.mxu0 0.0
    %563 = vmatprep.subr.mxu0 0.0
    %564 = vmatpush1.xpose.msra.mxu0 0.0
    %565 = vmatprep.subr.mxu0 0.0
    %566 = vmatpush1.xpose.msra.mxu0 0.0
    %567 = vmatprep.subr.mxu0 0.0
    %568 = vmatpush1.xpose.msra.mxu0 0.0
    %569 = vmatprep.subr.mxu0 0.0
    %570 = vmatpush1.xpose.msra.mxu0 0.0
    %571 = vmatprep.subr.mxu0 0.0
    %572 = vmatpush1.xpose.msra.mxu0 0.0
    %573 = vmatprep.subr.mxu0 0.0
    %574 = vmatpush1.xpose.msra.mxu0 0.0
    %575 = vmatprep.subr.mxu0 0.0
    %576 = vmatpush1.xpose.msra.mxu0 0.0
    %577 = vmatprep.subr.mxu0 0.0
    %578 = vmatpush1.xpose.msra.mxu0 0.0
    %579 = vmatprep.subr.mxu0 0.0
    %580 = vmatpush1.xpose.msra.mxu0 0.0
    %581 = vmatprep.subr.mxu0 0.0
    %582 = vmatpush1.xpose.msra.mxu0 0.0
    %583 = vmatprep.subr.mxu0 0.0
    %584 = vmatpush1.xpose.msra.mxu0 0.0
    %585 = vmatprep.subr.mxu0 0.0
    %586 = vmatpush1.xpose.msra.mxu0 0.0
    %587 = vmatprep.subr.mxu0 0.0
    %588 = vmatpush1.xpose.msra.mxu0 0.0
    %589 = vmatprep.subr.mxu0 0.0
    %590 = vmatpush1.xpose.msra.mxu0 0.0
    %591 = vmatprep.mubr.f32.mxu0 0.0
    %592 = vmatmul.mubr.f32.gmra.mrb[0].mxu0 %v522
    %v593 = vpop.f32.mrb[0].mxu0
    %v594 = vadd.f32 0.0, %v593
    %v595 = vpop.f32.mrb[0].mxu0
    %596 = vdwg.mxu0
    %v597 = vmul.f32 %v518, 0.35355338
    %v598 = vmul.f32 %v594, 0.35355338
    %v599 = vsel %vm444, %v597, -inf
    %600 = vmax.xlane.f32.xlu0 %v599
    %v601 = vpop.xlane.xlu0 %600
    %v602 = vsel %vm444, %v598, -inf
    %603 = vmax.xlane.f32.xlu0 %v602
    %v604 = vpop.xlane.xlu0 %603
    %v605 = vsub.f32 %v597, %v601
    %v606 = vsub.f32 %v598, %v604
    %v607 = vmul.f32 %v605, 1.442695
    %v608 = vpow.pop %v607
    %v609 = vmul.f32 %v606, 1.442695
    %v610 = vpow.pop %v609
    %v611 = vsel %vm444, %v608, 0.0
    %612 = vadd.xlane.f32.xlu0 %v611
    %v613 = vpop.xlane.xlu0 %612
    %v614 = vsel %vm444, %v610, 0.0
    %615 = vadd.xlane.f32.xlu0 %v614
    %v616 = vpop.xlane.xlu0 %615
    %v617 = vrcp.pop %v613
    %v618 = vmul.f32 %v608, %v617
    %v619 = vrcp.pop %v616
    %v620 = vmul.f32 %v610, %v619
    %621 = vrot.lane.b32.xlu0 %v436, 96
    %v622 = vpop.permute.xlu0 %621
    %v625 = vsel %vm444, %v618, 0
    %627 = vmatprep.subr.mxu0 0.0
    %628 = vmatpush1.msra.mxu0 %v622
    %629 = vmatprep.subr.mxu0 0.0
    %630 = vmatpush1.msra.mxu0 0.0
    %631 = vmatprep.subr.mxu0 0.0
    %632 = vmatpush1.msra.mxu0 0.0
    %633 = vmatprep.subr.mxu0 0.0
    %634 = vmatpush1.msra.mxu0 0.0
    %635 = vmatprep.subr.mxu0 0.0
    %636 = vmatpush1.msra.mxu0 0.0
    %637 = vmatprep.subr.mxu0 0.0
    %638 = vmatpush1.msra.mxu0 0.0
    %639 = vmatprep.subr.mxu0 0.0
    %640 = vmatpush1.msra.mxu0 0.0
    %641 = vmatprep.subr.mxu0 0.0
    %642 = vmatpush1.msra.mxu0 0.0
    %643 = vmatprep.subr.mxu0 0.0
    %644 = vmatpush1.msra.mxu0 0.0
    %645 = vmatprep.subr.mxu0 0.0
    %646 = vmatpush1.msra.mxu0 0.0
    %647 = vmatprep.subr.mxu0 0.0
    %648 = vmatpush1.msra.mxu0 0.0
    %649 = vmatprep.subr.mxu0 0.0
    %650 = vmatpush1.msra.mxu0 0.0
    %651 = vmatprep.subr.mxu0 0.0
    %652 = vmatpush1.msra.mxu0 0.0
    %653 = vmatprep.subr.mxu0 0.0
    %654 = vmatpush1.msra.mxu0 0.0
    %655 = vmatprep.subr.mxu0 0.0
    %656 = vmatpush1.msra.mxu0 0.0
    %657 = vmatprep.subr.mxu0 0.0
    %658 = vmatpush1.msra.mxu0 0.0
    %659 = vmatprep.subr.mxu0 0.0
    %660 = vmatpush1.msra.mxu0 0.0
    %661 = vmatprep.subr.mxu0 0.0
    %662 = vmatpush1.msra.mxu0 0.0
    %663 = vmatprep.subr.mxu0 0.0
    %664 = vmatpush1.msra.mxu0 0.0
    %665 = vmatprep.subr.mxu0 0.0
    %666 = vmatpush1.msra.mxu0 0.0
    %667 = vmatprep.subr.mxu0 0.0
    %668 = vmatpush1.msra.mxu0 0.0
    %669 = vmatprep.subr.mxu0 0.0
    %670 = vmatpush1.msra.mxu0 0.0
    %671 = vmatprep.subr.mxu0 0.0
    %672 = vmatpush1.msra.mxu0 0.0
    %673 = vmatprep.subr.mxu0 0.0
    %674 = vmatpush1.msra.mxu0 0.0
    %675 = vmatprep.subr.mxu0 0.0
    %676 = vmatpush1.msra.mxu0 0.0
    %677 = vmatprep.subr.mxu0 0.0
    %678 = vmatpush1.msra.mxu0 0.0
    %679 = vmatprep.subr.mxu0 0.0
    %680 = vmatpush1.msra.mxu0 0.0
    %681 = vmatprep.subr.mxu0 0.0
    %682 = vmatpush1.msra.mxu0 0.0
    %683 = vmatprep.subr.mxu0 0.0
    %684 = vmatpush1.msra.mxu0 0.0
    %685 = vmatprep.subr.mxu0 0.0
    %686 = vmatpush1.msra.mxu0 0.0
    %687 = vmatprep.subr.mxu0 0.0
    %688 = vmatpush1.msra.mxu0 0.0
    %689 = vmatprep.subr.mxu0 0.0
    %690 = vmatpush1.msra.mxu0 0.0
    %691 = vmatprep.mubr.f32.mxu0 0.0
    %692 = vmatmul.mubr.f32.gmra.mrb[0].mxu0 %v625
    %v693 = vpop.f32.mrb[0].mxu0
    %v694 = vadd.f32 0.0, %v693
    %v695 = vpop.f32.mrb[0].mxu0
    %696 = vdwg.mxu0
    %697 = vrot.lane.b32.xlu0 %v441, 96
    %v698 = vpop.permute.xlu0 %697
    %v701 = vsel %vm444, %v620, 0
    %703 = vmatprep.subr.mxu0 0.0
    %704 = vmatpush1.msra.mxu0 %v698
    %705 = vmatprep.subr.mxu0 0.0
    %706 = vmatpush1.msra.mxu0 0.0
    %707 = vmatprep.subr.mxu0 0.0
    %708 = vmatpush1.msra.mxu0 0.0
    %709 = vmatprep.subr.mxu0 0.0
    %710 = vmatpush1.msra.mxu0 0.0
    %711 = vmatprep.subr.mxu0 0.0
    %712 = vmatpush1.msra.mxu0 0.0
    %713 = vmatprep.subr.mxu0 0.0
    %714 = vmatpush1.msra.mxu0 0.0
    %715 = vmatprep.subr.mxu0 0.0
    %716 = vmatpush1.msra.mxu0 0.0
    %717 = vmatprep.subr.mxu0 0.0
    %718 = vmatpush1.msra.mxu0 0.0
    %719 = vmatprep.subr.mxu0 0.0
    %720 = vmatpush1.msra.mxu0 0.0
    %721 = vmatprep.subr.mxu0 0.0
    %722 = vmatpush1.msra.mxu0 0.0
    %723 = vmatprep.subr.mxu0 0.0
    %724 = vmatpush1.msra.mxu0 0.0
    %725 = vmatprep.subr.mxu0 0.0
    %726 = vmatpush1.msra.mxu0 0.0
    %727 = vmatprep.subr.mxu0 0.0
    %728 = vmatpush1.msra.mxu0 0.0
    %729 = vmatprep.subr.mxu0 0.0
    %730 = vmatpush1.msra.mxu0 0.0
    %731 = vmatprep.subr.mxu0 0.0
    %732 = vmatpush1.msra.mxu0 0.0
    %733 = vmatprep.subr.mxu0 0.0
    %734 = vmatpush1.msra.mxu0 0.0
    %735 = vmatprep.subr.mxu0 0.0
    %736 = vmatpush1.msra.mxu0 0.0
    %737 = vmatprep.subr.mxu0 0.0
    %738 = vmatpush1.msra.mxu0 0.0
    %739 = vmatprep.subr.mxu0 0.0
    %740 = vmatpush1.msra.mxu0 0.0
    %741 = vmatprep.subr.mxu0 0.0
    %742 = vmatpush1.msra.mxu0 0.0
    %743 = vmatprep.subr.mxu0 0.0
    %744 = vmatpush1.msra.mxu0 0.0
    %745 = vmatprep.subr.mxu0 0.0
    %746 = vmatpush1.msra.mxu0 0.0
    %747 = vmatprep.subr.mxu0 0.0
    %748 = vmatpush1.msra.mxu0 0.0
    %749 = vmatprep.subr.mxu0 0.0
    %750 = vmatpush1.msra.mxu0 0.0
    %751 = vmatprep.subr.mxu0 0.0
    %752 = vmatpush1.msra.mxu0 0.0
    %753 = vmatprep.subr.mxu0 0.0
    %754 = vmatpush1.msra.mxu0 0.0
    %755 = vmatprep.subr.mxu0 0.0
    %756 = vmatpush1.msra.mxu0 0.0
    %757 = vmatprep.subr.mxu0 0.0
    %758 = vmatpush1.msra.mxu0 0.0
    %759 = vmatprep.subr.mxu0 0.0
    %760 = vmatpush1.msra.mxu0 0.0
    %761 = vmatprep.subr.mxu0 0.0
    %762 = vmatpush1.msra.mxu0 0.0
    %763 = vmatprep.subr.mxu0 0.0
    %764 = vmatpush1.msra.mxu0 0.0
    %765 = vmatprep.subr.mxu0 0.0
    %766 = vmatpush1.msra.mxu0 0.0
    %767 = vmatprep.mubr.f32.mxu0 0.0
    %768 = vmatmul.mubr.f32.gmra.mrb[0].mxu0 %v701
    %v769 = vpop.f32.mrb[0].mxu0
    %v770 = vadd.f32 0.0, %v769
    %v771 = vpop.f32.mrb[0].mxu0
    %772 = vdwg.mxu0
    %773 = vrot.lane.b32.xlu0 %v336, 120
    %v774 = vpop.permute.xlu0 %773
    %775 = vrot.lane.b32.xlu0 %v436, 120
    %v776 = vpop.permute.xlu0 %775
    %v777 = vsel %vm444, %v774, 0
    %v779 = vsel %vm444, %v776, 0
    %781 = vmatprep.subr.mxu0 0.0
    %782 = vmatpush1.xpose.msra.mxu0 %v779
    %783 = vmatprep.subr.mxu0 0.0
    %784 = vmatpush1.xpose.msra.mxu0 0.0
    %785 = vmatprep.subr.mxu0 0.0
    %786 = vmatpush1.xpose.msra.mxu0 0.0
    %787 = vmatprep.subr.mxu0 0.0
    %788 = vmatpush1.xpose.msra.mxu0 0.0
    %789 = vmatprep.subr.mxu0 0.0
    %790 = vmatpush1.xpose.msra.mxu0 0.0
    %791 = vmatprep.subr.mxu0 0.0
    %792 = vmatpush1.xpose.msra.mxu0 0.0
    %793 = vmatprep.subr.mxu0 0.0
    %794 = vmatpush1.xpose.msra.mxu0 0.0
    %795 = vmatprep.subr.mxu0 0.0
    %796 = vmatpush1.xpose.msra.mxu0 0.0
    %797 = vmatprep.subr.mxu0 0.0
    %798 = vmatpush1.xpose.msra.mxu0 0.0
    %799 = vmatprep.subr.mxu0 0.0
    %800 = vmatpush1.xpose.msra.mxu0 0.0
    %801 = vmatprep.subr.mxu0 0.0
    %802 = vmatpush1.xpose.msra.mxu0 0.0
    %803 = vmatprep.subr.mxu0 0.0
    %804 = vmatpush1.xpose.msra.mxu0 0.0
    %805 = vmatprep.subr.mxu0 0.0
    %806 = vmatpush1.xpose.msra.mxu0 0.0
    %807 = vmatprep.subr.mxu0 0.0
    %808 = vmatpush1.xpose.msra.mxu0 0.0
    %809 = vmatprep.subr.mxu0 0.0
    %810 = vmatpush1.xpose.msra.mxu0 0.0
    %811 = vmatprep.subr.mxu0 0.0
    %812 = vmatpush1.xpose.msra.mxu0 0.0
    %813 = vmatprep.subr.mxu0 0.0
    %814 = vmatpush1.xpose.msra.mxu0 0.0
    %815 = vmatprep.subr.mxu0 0.0
    %816 = vmatpush1.xpose.msra.mxu0 0.0
    %817 = vmatprep.subr.mxu0 0.0
    %818 = vmatpush1.xpose.msra.mxu0 0.0
    %819 = vmatprep.subr.mxu0 0.0
    %820 = vmatpush1.xpose.msra.mxu0 0.0
    %821 = vmatprep.subr.mxu0 0.0
    %822 = vmatpush1.xpose.msra.mxu0 0.0
    %823 = vmatprep.subr.mxu0 0.0
    %824 = vmatpush1.xpose.msra.mxu0 0.0
    %825 = vmatprep.subr.mxu0 0.0
    %826 = vmatpush1.xpose.msra.mxu0 0.0
    %827 = vmatprep.subr.mxu0 0.0
    %828 = vmatpush1.xpose.msra.mxu0 0.0
    %829 = vmatprep.subr.mxu0 0.0
    %830 = vmatpush1.xpose.msra.mxu0 0.0
    %831 = vmatprep.subr.mxu0 0.0
    %832 = vmatpush1.xpose.msra.mxu0 0.0
    %833 = vmatprep.subr.mxu0 0.0
    %834 = vmatpush1.xpose.msra.mxu0 0.0
    %835 = vmatprep.subr.mxu0 0.0
    %836 = vmatpush1.xpose.msra.mxu0 0.0
    %837 = vmatprep.subr.mxu0 0.0
    %838 = vmatpush1.xpose.msra.mxu0 0.0
    %839 = vmatprep.subr.mxu0 0.0
    %840 = vmatpush1.xpose.msra.mxu0 0.0
    %841 = vmatprep.subr.mxu0 0.0
    %842 = vmatpush1.xpose.msra.mxu0 0.0
    %843 = vmatprep.subr.mxu0 0.0
    %844 = vmatpush1.xpose.msra.mxu0 0.0
    %845 = vmatprep.mubr.f32.mxu0 0.0
    %846 = vmatmul.mubr.f32.gmra.mrb[0].mxu0 %v777
    %v847 = vpop.f32.mrb[0].mxu0
    %v848 = vadd.f32 0.0, %v847
    %v849 = vpop.f32.mrb[0].mxu0
    %850 = vdwg.mxu0
    %851 = vrot.lane.b32.xlu0 %v341, 120
    %v852 = vpop.permute.xlu0 %851
    %853 = vrot.lane.b32.xlu0 %v441, 120
    %v854 = vpop.permute.xlu0 %853
    %v855 = vsel %vm444, %v852, 0
    %v857 = vsel %vm444, %v854, 0
    %859 = vmatprep.subr.mxu0 0.0
    %860 = vmatpush1.xpose.msra.mxu0 %v857
    %861 = vmatprep.subr.mxu0 0.0
    %862 = vmatpush1.xpose.msra.mxu0 0.0
    %863 = vmatprep.subr.mxu0 0.0
    %864 = vmatpush1.xpose.msra.mxu0 0.0
    %865 = vmatprep.subr.mxu0 0.0
    %866 = vmatpush1.xpose.msra.mxu0 0.0
    %867 = vmatprep.subr.mxu0 0.0
    %868 = vmatpush1.xpose.msra.mxu0 0.0
    %869 = vmatprep.subr.mxu0 0.0
    %870 = vmatpush1.xpose.msra.mxu0 0.0
    %871 = vmatprep.subr.mxu0 0.0
    %872 = vmatpush1.xpose.msra.mxu0 0.0
    %873 = vmatprep.subr.mxu0 0.0
    %874 = vmatpush1.xpose.msra.mxu0 0.0
    %875 = vmatprep.subr.mxu0 0.0
    %876 = vmatpush1.xpose.msra.mxu0 0.0
    %877 = vmatprep.subr.mxu0 0.0
    %878 = vmatpush1.xpose.msra.mxu0 0.0
    %879 = vmatprep.subr.mxu0 0.0
    %880 = vmatpush1.xpose.msra.mxu0 0.0
    %881 = vmatprep.subr.mxu0 0.0
    %882 = vmatpush1.xpose.msra.mxu0 0.0
    %883 = vmatprep.subr.mxu0 0.0
    %884 = vmatpush1.xpose.msra.mxu0 0.0
    %885 = vmatprep.subr.mxu0 0.0
    %886 = vmatpush1.xpose.msra.mxu0 0.0
    %887 = vmatprep.subr.mxu0 0.0
    %888 = vmatpush1.xpose.msra.mxu0 0.0
    %889 = vmatprep.subr.mxu0 0.0
    %890 = vmatpush1.xpose.msra.mxu0 0.0
    %891 = vmatprep.subr.mxu0 0.0
    %892 = vmatpush1.xpose.msra.mxu0 0.0
    %893 = vmatprep.subr.mxu0 0.0
    %894 = vmatpush1.xpose.msra.mxu0 0.0
    %895 = vmatprep.subr.mxu0 0.0
    %896 = vmatpush1.xpose.msra.mxu0 0.0
    %897 = vmatprep.subr.mxu0 0.0
    %898 = vmatpush1.xpose.msra.mxu0 0.0
    %899 = vmatprep.subr.mxu0 0.0
    %900 = vmatpush1.xpose.msra.mxu0 0.0
    %901 = vmatprep.subr.mxu0 0.0
    %902 = vmatpush1.xpose.msra.mxu0 0.0
    %903 = vmatprep.subr.mxu0 0.0
    %904 = vmatpush1.xpose.msra.mxu0 0.0
    %905 = vmatprep.subr.mxu0 0.0
    %906 = vmatpush1.xpose.msra.mxu0 0.0
    %907 = vmatprep.subr.mxu0 0.0
    %908 = vmatpush1.xpose.msra.mxu0 0.0
    %909 = vmatprep.subr.mxu0 0.0
    %910 = vmatpush1.xpose.msra.mxu0 0.0
    %911 = vmatprep.subr.mxu0 0.0
    %912 = vmatpush1.xpose.msra.mxu0 0.0
    %913 = vmatprep.subr.mxu0 0.0
    %914 = vmatpush1.xpose.msra.mxu0 0.0
    %915 = vmatprep.subr.mxu0 0.0
    %916 = vmatpush1.xpose.msra.mxu0 0.0
    %917 = vmatprep.subr.mxu0 0.0
    %918 = vmatpush1.xpose.msra.mxu0 0.0
    %919 = vmatprep.subr.mxu0 0.0
    %920 = vmatpush1.xpose.msra.mxu0 0.0
    %921 = vmatprep.subr.mxu0 0.0
    %922 = vmatpush1.xpose.msra.mxu0 0.0
    %923 = vmatprep.mubr.f32.mxu0 0.0
    %924 = vmatmul.mubr.f32.gmra.mrb[0].mxu0 %v855
    %v925 = vpop.f32.mrb[0].mxu0
    %v926 = vadd.f32 0.0, %v925
    %v927 = vpop.f32.mrb[0].mxu0
    %928 = vdwg.mxu0
    %v929 = vmul.f32 %v848, 0.35355338
    %v930 = vmul.f32 %v926, 0.35355338
    %v931 = vsel %vm444, %v929, -inf
    %932 = vmax.xlane.f32.xlu0 %v931
    %v933 = vpop.xlane.xlu0 %932
    %v934 = vsel %vm444, %v930, -inf
    %935 = vmax.xlane.f32.xlu0 %v934
    %v936 = vpop.xlane.xlu0 %935
    %v937 = vsub.f32 %v929, %v933
    %v938 = vsub.f32 %v930, %v936
    %v939 = vmul.f32 %v937, 1.442695
    %v940 = vpow.pop %v939
    %v941 = vmul.f32 %v938, 1.442695
    %v942 = vpow.pop %v941
    %v943 = vsel %vm444, %v940, 0.0
    %944 = vadd.xlane.f32.xlu0 %v943
    %v945 = vpop.xlane.xlu0 %944
    %v946 = vsel %vm444, %v942, 0.0
    %947 = vadd.xlane.f32.xlu0 %v946
    %v948 = vpop.xlane.xlu0 %947
    %v949 = vrcp.pop %v945
    %v950 = vmul.f32 %v940, %v949
    %v951 = vrcp.pop %v948
    %v952 = vmul.f32 %v942, %v951
    %953 = vrot.lane.b32.xlu0 %v436, 88
    %v954 = vpop.permute.xlu0 %953
    %v957 = vsel %vm444, %v950, 0
    %959 = vmatprep.subr.mxu0 0.0
    %960 = vmatpush1.msra.mxu0 %v954
    %961 = vmatprep.subr.mxu0 0.0
    %962 = vmatpush1.msra.mxu0 0.0
    %963 = vmatprep.subr.mxu0 0.0
    %964 = vmatpush1.msra.mxu0 0.0
    %965 = vmatprep.subr.mxu0 0.0
    %966 = vmatpush1.msra.mxu0 0.0
    %967 = vmatprep.subr.mxu0 0.0
    %968 = vmatpush1.msra.mxu0 0.0
    %969 = vmatprep.subr.mxu0 0.0
    %970 = vmatpush1.msra.mxu0 0.0
    %971 = vmatprep.subr.mxu0 0.0
    %972 = vmatpush1.msra.mxu0 0.0
    %973 = vmatprep.subr.mxu0 0.0
    %974 = vmatpush1.msra.mxu0 0.0
    %975 = vmatprep.subr.mxu0 0.0
    %976 = vmatpush1.msra.mxu0 0.0
    %977 = vmatprep.subr.mxu0 0.0
    %978 = vmatpush1.msra.mxu0 0.0
    %979 = vmatprep.subr.mxu0 0.0
    %980 = vmatpush1.msra.mxu0 0.0
    %981 = vmatprep.subr.mxu0 0.0
    %982 = vmatpush1.msra.mxu0 0.0
    %983 = vmatprep.subr.mxu0 0.0
    %984 = vmatpush1.msra.mxu0 0.0
    %985 = vmatprep.subr.mxu0 0.0
    %986 = vmatpush1.msra.mxu0 0.0
    %987 = vmatprep.subr.mxu0 0.0
    %988 = vmatpush1.msra.mxu0 0.0
    %989 = vmatprep.subr.mxu0 0.0
    %990 = vmatpush1.msra.mxu0 0.0
    %991 = vmatprep.subr.mxu0 0.0
    %992 = vmatpush1.msra.mxu0 0.0
    %993 = vmatprep.subr.mxu0 0.0
    %994 = vmatpush1.msra.mxu0 0.0
    %995 = vmatprep.subr.mxu0 0.0
    %996 = vmatpush1.msra.mxu0 0.0
    %997 = vmatprep.subr.mxu0 0.0
    %998 = vmatpush1.msra.mxu0 0.0
    %999 = vmatprep.subr.mxu0 0.0
    %1000 = vmatpush1.msra.mxu0 0.0
    %1001 = vmatprep.subr.mxu0 0.0
    %1002 = vmatpush1.msra.mxu0 0.0
    %1003 = vmatprep.subr.mxu0 0.0
    %1004 = vmatpush1.msra.mxu0 0.0
    %1005 = vmatprep.subr.mxu0 0.0
    %1006 = vmatpush1.msra.mxu0 0.0
    %1007 = vmatprep.subr.mxu0 0.0
    %1008 = vmatpush1.msra.mxu0 0.0
    %1009 = vmatprep.subr.mxu0 0.0
    %1010 = vmatpush1.msra.mxu0 0.0
    %1011 = vmatprep.subr.mxu0 0.0
    %1012 = vmatpush1.msra.mxu0 0.0
    %1013 = vmatprep.subr.mxu0 0.0
    %1014 = vmatpush1.msra.mxu0 0.0
    %1015 = vmatprep.subr.mxu0 0.0
    %1016 = vmatpush1.msra.mxu0 0.0
    %1017 = vmatprep.subr.mxu0 0.0
    %1018 = vmatpush1.msra.mxu0 0.0
    %1019 = vmatprep.subr.mxu0 0.0
    %1020 = vmatpush1.msra.mxu0 0.0
    %1021 = vmatprep.subr.mxu0 0.0
    %1022 = vmatpush1.msra.mxu0 0.0
    %1023 = vmatprep.mubr.f32.mxu0 0.0
    %1024 = vmatmul.mubr.f32.gmra.mrb[0].mxu0 %v957
    %v1025 = vpop.f32.mrb[0].mxu0
    %v1026 = vadd.f32 0.0, %v1025
    %v1027 = vpop.f32.mrb[0].mxu0
    %1028 = vdwg.mxu0
    %1029 = vrot.lane.b32.xlu0 %v441, 88
    %v1030 = vpop.permute.xlu0 %1029
    %v1033 = vsel %vm444, %v952, 0
    %1035 = vmatprep.subr.mxu0 0.0
    %1036 = vmatpush1.msra.mxu0 %v1030
    %1037 = vmatprep.subr.mxu0 0.0
    %1038 = vmatpush1.msra.mxu0 0.0
    %1039 = vmatprep.subr.mxu0 0.0
    %1040 = vmatpush1.msra.mxu0 0.0
    %1041 = vmatprep.subr.mxu0 0.0
    %1042 = vmatpush1.msra.mxu0 0.0
    %1043 = vmatprep.subr.mxu0 0.0
    %1044 = vmatpush1.msra.mxu0 0.0
    %1045 = vmatprep.subr.mxu0 0.0
    %1046 = vmatpush1.msra.mxu0 0.0
    %1047 = vmatprep.subr.mxu0 0.0
    %1048 = vmatpush1.msra.mxu0 0.0
    %1049 = vmatprep.subr.mxu0 0.0
    %1050 = vmatpush1.msra.mxu0 0.0
    %1051 = vmatprep.subr.mxu0 0.0
    %1052 = vmatpush1.msra.mxu0 0.0
    %1053 = vmatprep.subr.mxu0 0.0
    %1054 = vmatpush1.msra.mxu0 0.0
    %1055 = vmatprep.subr.mxu0 0.0
    %1056 = vmatpush1.msra.mxu0 0.0
    %1057 = vmatprep.subr.mxu0 0.0
    %1058 = vmatpush1.msra.mxu0 0.0
    %1059 = vmatprep.subr.mxu0 0.0
    %1060 = vmatpush1.msra.mxu0 0.0
    %1061 = vmatprep.subr.mxu0 0.0
    %1062 = vmatpush1.msra.mxu0 0.0
    %1063 = vmatprep.subr.mxu0 0.0
    %1064 = vmatpush1.msra.mxu0 0.0
    %1065 = vmatprep.subr.mxu0 0.0
    %1066 = vmatpush1.msra.mxu0 0.0
    %1067 = vmatprep.subr.mxu0 0.0
    %1068 = vmatpush1.msra.mxu0 0.0
    %1069 = vmatprep.subr.mxu0 0.0
    %1070 = vmatpush1.msra.mxu0 0.0
    %1071 = vmatprep.subr.mxu0 0.0
    %1072 = vmatpush1.msra.mxu0 0.0
    %1073 = vmatprep.subr.mxu0 0.0
    %1074 = vmatpush1.msra.mxu0 0.0
    %1075 = vmatprep.subr.mxu0 0.0
    %1076 = vmatpush1.msra.mxu0 0.0
    %1077 = vmatprep.subr.mxu0 0.0
    %1078 = vmatpush1.msra.mxu0 0.0
    %1079 = vmatprep.subr.mxu0 0.0
    %1080 = vmatpush1.msra.mxu0 0.0
    %1081 = vmatprep.subr.mxu0 0.0
    %1082 = vmatpush1.msra.mxu0 0.0
    %1083 = vmatprep.subr.mxu0 0.0
    %1084 = vmatpush1.msra.mxu0 0.0
    %1085 = vmatprep.subr.mxu0 0.0
    %1086 = vmatpush1.msra.mxu0 0.0
    %1087 = vmatprep.subr.mxu0 0.0
    %1088 = vmatpush1.msra.mxu0 0.0
    %1089 = vmatprep.subr.mxu0 0.0
    %1090 = vmatpush1.msra.mxu0 0.0
    %1091 = vmatprep.subr.mxu0 0.0
    %1092 = vmatpush1.msra.mxu0 0.0
    %1093 = vmatprep.subr.mxu0 0.0
    %1094 = vmatpush1.msra.mxu0 0.0
    %1095 = vmatprep.subr.mxu0 0.0
    %1096 = vmatpush1.msra.mxu0 0.0
    %1097 = vmatprep.subr.mxu0 0.0
    %1098 = vmatpush1.msra.mxu0 0.0
    %1099 = vmatprep.mubr.f32.mxu0 0.0
    %1100 = vmatmul.mubr.f32.gmra.mrb[0].mxu0 %v1033
    %v1101 = vpop.f32.mrb[0].mxu0
    %v1102 = vadd.f32 0.0, %v1101
    %v1103 = vpop.f32.mrb[0].mxu0
    %1104 = vdwg.mxu0
    %1105 = vrot.lane.b32.xlu0 %v336, 112
    %v1106 = vpop.permute.xlu0 %1105
    %1107 = vrot.lane.b32.xlu0 %v436, 112
    %v1108 = vpop.permute.xlu0 %1107
    %v1109 = vsel %vm444, %v1106, 0
    %v1111 = vsel %vm444, %v1108, 0
    %1113 = vmatprep.subr.mxu0 0.0
    %1114 = vmatpush1.xpose.msra.mxu0 %v1111
    %1115 = vmatprep.subr.mxu0 0.0
    %1116 = vmatpush1.xpose.msra.mxu0 0.0
    %1117 = vmatprep.subr.mxu0 0.0
    %1118 = vmatpush1.xpose.msra.mxu0 0.0
    %1119 = vmatprep.subr.mxu0 0.0
    %1120 = vmatpush1.xpose.msra.mxu0 0.0
    %1121 = vmatprep.subr.mxu0 0.0
    %1122 = vmatpush1.xpose.msra.mxu0 0.0
    %1123 = vmatprep.subr.mxu0 0.0
    %1124 = vmatpush1.xpose.msra.mxu0 0.0
    %1125 = vmatprep.subr.mxu0 0.0
    %1126 = vmatpush1.xpose.msra.mxu0 0.0
    %1127 = vmatprep.subr.mxu0 0.0
    %1128 = vmatpush1.xpose.msra.mxu0 0.0
    %1129 = vmatprep.subr.mxu0 0.0
    %1130 = vmatpush1.xpose.msra.mxu0 0.0
    %1131 = vmatprep.subr.mxu0 0.0
    %1132 = vmatpush1.xpose.msra.mxu0 0.0
    %1133 = vmatprep.subr.mxu0 0.0
    %1134 = vmatpush1.xpose.msra.mxu0 0.0
    %1135 = vmatprep.subr.mxu0 0.0
    %1136 = vmatpush1.xpose.msra.mxu0 0.0
    %1137 = vmatprep.subr.mxu0 0.0
    %1138 = vmatpush1.xpose.msra.mxu0 0.0
    %1139 = vmatprep.subr.mxu0 0.0
    %1140 = vmatpush1.xpose.msra.mxu0 0.0
    %1141 = vmatprep.subr.mxu0 0.0
    %1142 = vmatpush1.xpose.msra.mxu0 0.0
    %1143 = vmatprep.subr.mxu0 0.0
    %1144 = vmatpush1.xpose.msra.mxu0 0.0
    %1145 = vmatprep.subr.mxu0 0.0
    %1146 = vmatpush1.xpose.msra.mxu0 0.0
    %1147 = vmatprep.subr.mxu0 0.0
    %1148 = vmatpush1.xpose.msra.mxu0 0.0
    %1149 = vmatprep.subr.mxu0 0.0
    %1150 = vmatpush1.xpose.msra.mxu0 0.0
    %1151 = vmatprep.subr.mxu0 0.0
    %1152 = vmatpush1.xpose.msra.mxu0 0.0
    %1153 = vmatprep.subr.mxu0 0.0
    %1154 = vmatpush1.xpose.msra.mxu0 0.0
    %1155 = vmatprep.subr.mxu0 0.0
    %1156 = vmatpush1.xpose.msra.mxu0 0.0
    %1157 = vmatprep.subr.mxu0 0.0
    %1158 = vmatpush1.xpose.msra.mxu0 0.0
    %1159 = vmatprep.subr.mxu0 0.0
    %1160 = vmatpush1.xpose.msra.mxu0 0.0
    %1161 = vmatprep.subr.mxu0 0.0
    %1162 = vmatpush1.xpose.msra.mxu0 0.0
    %1163 = vmatprep.subr.mxu0 0.0
    %1164 = vmatpush1.xpose.msra.mxu0 0.0
    %1165 = vmatprep.subr.mxu0 0.0
    %1166 = vmatpush1.xpose.msra.mxu0 0.0
    %1167 = vmatprep.subr.mxu0 0.0
    %1168 = vmatpush1.xpose.msra.mxu0 0.0
    %1169 = vmatprep.subr.mxu0 0.0
    %1170 = vmatpush1.xpose.msra.mxu0 0.0
    %1171 = vmatprep.subr.mxu0 0.0
    %1172 = vmatpush1.xpose.msra.mxu0 0.0
    %1173 = vmatprep.subr.mxu0 0.0
    %1174 = vmatpush1.xpose.msra.mxu0 0.0
    %1175 = vmatprep.subr.mxu0 0.0
    %1176 = vmatpush1.xpose.msra.mxu0 0.0
    %1177 = vmatprep.mubr.f32.mxu0 0.0
    %1178 = vmatmul.mubr.f32.gmra.mrb[0].mxu0 %v1109
    %v1179 = vpop.f32.mrb[0].mxu0
    %v1180 = vadd.f32 0.0, %v1179
    %v1181 = vpop.f32.mrb[0].mxu0
    %1182 = vdwg.mxu0
    %1183 = vrot.lane.b32.xlu0 %v341, 112
    %v1184 = vpop.permute.xlu0 %1183
    %1185 = vrot.lane.b32.xlu0 %v441, 112
    %v1186 = vpop.permute.xlu0 %1185
    %v1187 = vsel %vm444, %v1184, 0
    %v1189 = vsel %vm444, %v1186, 0
    %1191 = vmatprep.subr.mxu0 0.0
    %1192 = vmatpush1.xpose.msra.mxu0 %v1189
    %1193 = vmatprep.subr.mxu0 0.0
    %1194 = vmatpush1.xpose.msra.mxu0 0.0
    %1195 = vmatprep.subr.mxu0 0.0
    %1196 = vmatpush1.xpose.msra.mxu0 0.0
    %1197 = vmatprep.subr.mxu0 0.0
    %1198 = vmatpush1.xpose.msra.mxu0 0.0
    %1199 = vmatprep.subr.mxu0 0.0
    %1200 = vmatpush1.xpose.msra.mxu0 0.0
    %1201 = vmatprep.subr.mxu0 0.0
    %1202 = vmatpush1.xpose.msra.mxu0 0.0
    %1203 = vmatprep.subr.mxu0 0.0
    %1204 = vmatpush1.xpose.msra.mxu0 0.0
    %1205 = vmatprep.subr.mxu0 0.0
    %1206 = vmatpush1.xpose.msra.mxu0 0.0
    %1207 = vmatprep.subr.mxu0 0.0
    %1208 = vmatpush1.xpose.msra.mxu0 0.0
    %1209 = vmatprep.subr.mxu0 0.0
    %1210 = vmatpush1.xpose.msra.mxu0 0.0
    %1211 = vmatprep.subr.mxu0 0.0
    %1212 = vmatpush1.xpose.msra.mxu0 0.0
    %1213 = vmatprep.subr.mxu0 0.0
    %1214 = vmatpush1.xpose.msra.mxu0 0.0
    %1215 = vmatprep.subr.mxu0 0.0
    %1216 = vmatpush1.xpose.msra.mxu0 0.0
    %1217 = vmatprep.subr.mxu0 0.0
    %1218 = vmatpush1.xpose.msra.mxu0 0.0
    %1219 = vmatprep.subr.mxu0 0.0
    %1220 = vmatpush1.xpose.msra.mxu0 0.0
    %1221 = vmatprep.subr.mxu0 0.0
    %1222 = vmatpush1.xpose.msra.mxu0 0.0
    %1223 = vmatprep.subr.mxu0 0.0
    %1224 = vmatpush1.xpose.msra.mxu0 0.0
    %1225 = vmatprep.subr.mxu0 0.0
    %1226 = vmatpush1.xpose.msra.mxu0 0.0
    %1227 = vmatprep.subr.mxu0 0.0
    %1228 = vmatpush1.xpose.msra.mxu0 0.0
    %1229 = vmatprep.subr.mxu0 0.0
    %1230 = vmatpush1.xpose.msra.mxu0 0.0
    %1231 = vmatprep.subr.mxu0 0.0
    %1232 = vmatpush1.xpose.msra.mxu0 0.0
    %1233 = vmatprep.subr.mxu0 0.0
    %1234 = vmatpush1.xpose.msra.mxu0 0.0
    %1235 = vmatprep.subr.mxu0 0.0
    %1236 = vmatpush1.xpose.msra.mxu0 0.0
    %1237 = vmatprep.subr.mxu0 0.0
    %1238 = vmatpush1.xpose.msra.mxu0 0.0
    %1239 = vmatprep.subr.mxu0 0.0
    %1240 = vmatpush1.xpose.msra.mxu0 0.0
    %1241 = vmatprep.subr.mxu0 0.0
    %1242 = vmatpush1.xpose.msra.mxu0 0.0
    %1243 = vmatprep.subr.mxu0 0.0
    %1244 = vmatpush1.xpose.msra.mxu0 0.0
    %1245 = vmatprep.subr.mxu0 0.0
    %1246 = vmatpush1.xpose.msra.mxu0 0.0
    %1247 = vmatprep.subr.mxu0 0.0
    %1248 = vmatpush1.xpose.msra.mxu0 0.0
    %1249 = vmatprep.subr.mxu0 0.0
    %1250 = vmatpush1.xpose.msra.mxu0 0.0
    %1251 = vmatprep.subr.mxu0 0.0
    %1252 = vmatpush1.xpose.msra.mxu0 0.0
    %1253 = vmatprep.subr.mxu0 0.0
    %1254 = vmatpush1.xpose.msra.mxu0 0.0
    %1255 = vmatprep.mubr.f32.mxu0 0.0
    %1256 = vmatmul.mubr.f32.gmra.mrb[0].mxu0 %v1187
    %v1257 = vpop.f32.mrb[0].mxu0
    %v1258 = vadd.f32 0.0, %v1257
    %v1259 = vpop.f32.mrb[0].mxu0
    %1260 = vdwg.mxu0
    %v1261 = vmul.f32 %v1180, 0.35355338
    %v1262 = vmul.f32 %v1258, 0.35355338
    %v1263 = vsel %vm444, %v1261, -inf
    %1264 = vmax.xlane.f32.xlu0 %v1263
    %v1265 = vpop.xlane.xlu0 %1264
    %v1266 = vsel %vm444, %v1262, -inf
    %1267 = vmax.xlane.f32.xlu0 %v1266
    %v1268 = vpop.xlane.xlu0 %1267
    %v1269 = vsub.f32 %v1261, %v1265
    %v1270 = vsub.f32 %v1262, %v1268
    %v1271 = vmul.f32 %v1269, 1.442695
    %v1272 = vpow.pop %v1271
    %v1273 = vmul.f32 %v1270, 1.442695
    %v1274 = vpow.pop %v1273
    %v1275 = vsel %vm444, %v1272, 0.0
    %1276 = vadd.xlane.f32.xlu0 %v1275
    %v1277 = vpop.xlane.xlu0 %1276
    %v1278 = vsel %vm444, %v1274, 0.0
    %1279 = vadd.xlane.f32.xlu0 %v1278
    %v1280 = vpop.xlane.xlu0 %1279
    %v1281 = vrcp.pop %v1277
    %v1282 = vmul.f32 %v1272, %v1281
    %v1283 = vrcp.pop %v1280
    %v1284 = vmul.f32 %v1274, %v1283
    %1285 = vrot.lane.b32.xlu0 %v436, 80
    %v1286 = vpop.permute.xlu0 %1285
    %v1289 = vsel %vm444, %v1282, 0
    %1291 = vmatprep.subr.mxu0 0.0
    %1292 = vmatpush1.msra.mxu0 %v1286
    %1293 = vmatprep.subr.mxu0 0.0
    %1294 = vmatpush1.msra.mxu0 0.0
    %1295 = vmatprep.subr.mxu0 0.0
    %1296 = vmatpush1.msra.mxu0 0.0
    %1297 = vmatprep.subr.mxu0 0.0
    %1298 = vmatpush1.msra.mxu0 0.0
    %1299 = vmatprep.subr.mxu0 0.0
    %1300 = vmatpush1.msra.mxu0 0.0
    %1301 = vmatprep.subr.mxu0 0.0
    %1302 = vmatpush1.msra.mxu0 0.0
    %1303 = vmatprep.subr.mxu0 0.0
    %1304 = vmatpush1.msra.mxu0 0.0
    %1305 = vmatprep.subr.mxu0 0.0
    %1306 = vmatpush1.msra.mxu0 0.0
    %1307 = vmatprep.subr.mxu0 0.0
    %1308 = vmatpush1.msra.mxu0 0.0
    %1309 = vmatprep.subr.mxu0 0.0
    %1310 = vmatpush1.msra.mxu0 0.0
    %1311 = vmatprep.subr.mxu0 0.0
    %1312 = vmatpush1.msra.mxu0 0.0
    %1313 = vmatprep.subr.mxu0 0.0
    %1314 = vmatpush1.msra.mxu0 0.0
    %1315 = vmatprep.subr.mxu0 0.0
    %1316 = vmatpush1.msra.mxu0 0.0
    %1317 = vmatprep.subr.mxu0 0.0
    %1318 = vmatpush1.msra.mxu0 0.0
    %1319 = vmatprep.subr.mxu0 0.0
    %1320 = vmatpush1.msra.mxu0 0.0
    %1321 = vmatprep.subr.mxu0 0.0
    %1322 = vmatpush1.msra.mxu0 0.0
    %1323 = vmatprep.subr.mxu0 0.0
    %1324 = vmatpush1.msra.mxu0 0.0
    %1325 = vmatprep.subr.mxu0 0.0
    %1326 = vmatpush1.msra.mxu0 0.0
    %1327 = vmatprep.subr.mxu0 0.0
    %1328 = vmatpush1.msra.mxu0 0.0
    %1329 = vmatprep.subr.mxu0 0.0
    %1330 = vmatpush1.msra.mxu0 0.0
    %1331 = vmatprep.subr.mxu0 0.0
    %1332 = vmatpush1.msra.mxu0 0.0
    %1333 = vmatprep.subr.mxu0 0.0
    %1334 = vmatpush1.msra.mxu0 0.0
    %1335 = vmatprep.subr.mxu0 0.0
    %1336 = vmatpush1.msra.mxu0 0.0
    %1337 = vmatprep.subr.mxu0 0.0
    %1338 = vmatpush1.msra.mxu0 0.0
    %1339 = vmatprep.subr.mxu0 0.0
    %1340 = vmatpush1.msra.mxu0 0.0
    %1341 = vmatprep.subr.mxu0 0.0
    %1342 = vmatpush1.msra.mxu0 0.0
    %1343 = vmatprep.subr.mxu0 0.0
    %1344 = vmatpush1.msra.mxu0 0.0
    %1345 = vmatprep.subr.mxu0 0.0
    %1346 = vmatpush1.msra.mxu0 0.0
    %1347 = vmatprep.subr.mxu0 0.0
    %1348 = vmatpush1.msra.mxu0 0.0
    %1349 = vmatprep.subr.mxu0 0.0
    %1350 = vmatpush1.msra.mxu0 0.0
    %1351 = vmatprep.subr.mxu0 0.0
    %1352 = vmatpush1.msra.mxu0 0.0
    %1353 = vmatprep.subr.mxu0 0.0
    %1354 = vmatpush1.msra.mxu0 0.0
    %1355 = vmatprep.mubr.f32.mxu0 0.0
    %1356 = vmatmul.mubr.f32.gmra.mrb[0].mxu0 %v1289
    %v1357 = vpop.f32.mrb[0].mxu0
    %v1358 = vadd.f32 0.0, %v1357
    %v1359 = vpop.f32.mrb[0].mxu0
    %1360 = vdwg.mxu0
    %1361 = vrot.lane.b32.xlu0 %v441, 80
    %v1362 = vpop.permute.xlu0 %1361
    %v1365 = vsel %vm444, %v1284, 0
    %1367 = vmatprep.subr.mxu0 0.0
    %1368 = vmatpush1.msra.mxu0 %v1362
    %1369 = vmatprep.subr.mxu0 0.0
    %1370 = vmatpush1.msra.mxu0 0.0
    %1371 = vmatprep.subr.mxu0 0.0
    %1372 = vmatpush1.msra.mxu0 0.0
    %1373 = vmatprep.subr.mxu0 0.0
    %1374 = vmatpush1.msra.mxu0 0.0
    %1375 = vmatprep.subr.mxu0 0.0
    %1376 = vmatpush1.msra.mxu0 0.0
    %1377 = vmatprep.subr.mxu0 0.0
    %1378 = vmatpush1.msra.mxu0 0.0
    %1379 = vmatprep.subr.mxu0 0.0
    %1380 = vmatpush1.msra.mxu0 0.0
    %1381 = vmatprep.subr.mxu0 0.0
    %1382 = vmatpush1.msra.mxu0 0.0
    %1383 = vmatprep.subr.mxu0 0.0
    %1384 = vmatpush1.msra.mxu0 0.0
    %1385 = vmatprep.subr.mxu0 0.0
    %1386 = vmatpush1.msra.mxu0 0.0
    %1387 = vmatprep.subr.mxu0 0.0
    %1388 = vmatpush1.msra.mxu0 0.0
    %1389 = vmatprep.subr.mxu0 0.0
    %1390 = vmatpush1.msra.mxu0 0.0
    %1391 = vmatprep.subr.mxu0 0.0
    %1392 = vmatpush1.msra.mxu0 0.0
    %1393 = vmatprep.subr.mxu0 0.0
    %1394 = vmatpush1.msra.mxu0 0.0
    %1395 = vmatprep.subr.mxu0 0.0
    %1396 = vmatpush1.msra.mxu0 0.0
    %1397 = vmatprep.subr.mxu0 0.0
    %1398 = vmatpush1.msra.mxu0 0.0
    %1399 = vmatprep.subr.mxu0 0.0
    %1400 = vmatpush1.msra.mxu0 0.0
    %1401 = vmatprep.subr.mxu0 0.0
    %1402 = vmatpush1.msra.mxu0 0.0
    %1403 = vmatprep.subr.mxu0 0.0
    %1404 = vmatpush1.msra.mxu0 0.0
    %1405 = vmatprep.subr.mxu0 0.0
    %1406 = vmatpush1.msra.mxu0 0.0
    %1407 = vmatprep.subr.mxu0 0.0
    %1408 = vmatpush1.msra.mxu0 0.0
    %1409 = vmatprep.subr.mxu0 0.0
    %1410 = vmatpush1.msra.mxu0 0.0
    %1411 = vmatprep.subr.mxu0 0.0
    %1412 = vmatpush1.msra.mxu0 0.0
    %1413 = vmatprep.subr.mxu0 0.0
    %1414 = vmatpush1.msra.mxu0 0.0
    %1415 = vmatprep.subr.mxu0 0.0
    %1416 = vmatpush1.msra.mxu0 0.0
    %1417 = vmatprep.subr.mxu0 0.0
    %1418 = vmatpush1.msra.mxu0 0.0
    %1419 = vmatprep.subr.mxu0 0.0
    %1420 = vmatpush1.msra.mxu0 0.0
    %1421 = vmatprep.subr.mxu0 0.0
    %1422 = vmatpush1.msra.mxu0 0.0
    %1423 = vmatprep.subr.mxu0 0.0
    %1424 = vmatpush1.msra.mxu0 0.0
    %1425 = vmatprep.subr.mxu0 0.0
    %1426 = vmatpush1.msra.mxu0 0.0
    %1427 = vmatprep.subr.mxu0 0.0
    %1428 = vmatpush1.msra.mxu0 0.0
    %1429 = vmatprep.subr.mxu0 0.0
    %1430 = vmatpush1.msra.mxu0 0.0
    %1431 = vmatprep.mubr.f32.mxu0 0.0
    %1432 = vmatmul.mubr.f32.gmra.mrb[0].mxu0 %v1365
    %v1433 = vpop.f32.mrb[0].mxu0
    %v1434 = vadd.f32 0.0, %v1433
    %v1435 = vpop.f32.mrb[0].mxu0
    %1436 = vdwg.mxu0
    %1437 = vrot.lane.b32.xlu0 %v336, 104
    %v1438 = vpop.permute.xlu0 %1437
    %1439 = vrot.lane.b32.xlu0 %v436, 104
    %v1440 = vpop.permute.xlu0 %1439
    %v1441 = vsel %vm444, %v1438, 0
    %v1443 = vsel %vm444, %v1440, 0
    %1445 = vmatprep.subr.mxu0 0.0
    %1446 = vmatpush1.xpose.msra.mxu0 %v1443
    %1447 = vmatprep.subr.mxu0 0.0
    %1448 = vmatpush1.xpose.msra.mxu0 0.0
    %1449 = vmatprep.subr.mxu0 0.0
    %1450 = vmatpush1.xpose.msra.mxu0 0.0
    %1451 = vmatprep.subr.mxu0 0.0
    %1452 = vmatpush1.xpose.msra.mxu0 0.0
    %1453 = vmatprep.subr.mxu0 0.0
    %1454 = vmatpush1.xpose.msra.mxu0 0.0
    %1455 = vmatprep.subr.mxu0 0.0
    %1456 = vmatpush1.xpose.msra.mxu0 0.0
    %1457 = vmatprep.subr.mxu0 0.0
    %1458 = vmatpush1.xpose.msra.mxu0 0.0
    %1459 = vmatprep.subr.mxu0 0.0
    %1460 = vmatpush1.xpose.msra.mxu0 0.0
    %1461 = vmatprep.subr.mxu0 0.0
    %1462 = vmatpush1.xpose.msra.mxu0 0.0
    %1463 = vmatprep.subr.mxu0 0.0
    %1464 = vmatpush1.xpose.msra.mxu0 0.0
    %1465 = vmatprep.subr.mxu0 0.0
    %1466 = vmatpush1.xpose.msra.mxu0 0.0
    %1467 = vmatprep.subr.mxu0 0.0
    %1468 = vmatpush1.xpose.msra.mxu0 0.0
    %1469 = vmatprep.subr.mxu0 0.0
    %1470 = vmatpush1.xpose.msra.mxu0 0.0
    %1471 = vmatprep.subr.mxu0 0.0
    %1472 = vmatpush1.xpose.msra.mxu0 0.0
    %1473 = vmatprep.subr.mxu0 0.0
    %1474 = vmatpush1.xpose.msra.mxu0 0.0
    %1475 = vmatprep.subr.mxu0 0.0
    %1476 = vmatpush1.xpose.msra.mxu0 0.0
    %1477 = vmatprep.subr.mxu0 0.0
    %1478 = vmatpush1.xpose.msra.mxu0 0.0
    %1479 = vmatprep.subr.mxu0 0.0
    %1480 = vmatpush1.xpose.msra.mxu0 0.0
    %1481 = vmatprep.subr.mxu0 0.0
    %1482 = vmatpush1.xpose.msra.mxu0 0.0
    %1483 = vmatprep.subr.mxu0 0.0
    %1484 = vmatpush1.xpose.msra.mxu0 0.0
    %1485 = vmatprep.subr.mxu0 0.0
    %1486 = vmatpush1.xpose.msra.mxu0 0.0
    %1487 = vmatprep.subr.mxu0 0.0
    %1488 = vmatpush1.xpose.msra.mxu0 0.0
    %1489 = vmatprep.subr.mxu0 0.0
    %1490 = vmatpush1.xpose.msra.mxu0 0.0
    %1491 = vmatprep.subr.mxu0 0.0
    %1492 = vmatpush1.xpose.msra.mxu0 0.0
    %1493 = vmatprep.subr.mxu0 0.0
    %1494 = vmatpush1.xpose.msra.mxu0 0.0
    %1495 = vmatprep.subr.mxu0 0.0
    %1496 = vmatpush1.xpose.msra.mxu0 0.0
    %1497 = vmatprep.subr.mxu0 0.0
    %1498 = vmatpush1.xpose.msra.mxu0 0.0
    %1499 = vmatprep.subr.mxu0 0.0
    %1500 = vmatpush1.xpose.msra.mxu0 0.0
    %1501 = vmatprep.subr.mxu0 0.0
    %1502 = vmatpush1.xpose.msra.mxu0 0.0
    %1503 = vmatprep.subr.mxu0 0.0
    %1504 = vmatpush1.xpose.msra.mxu0 0.0
    %1505 = vmatprep.subr.mxu0 0.0
    %1506 = vmatpush1.xpose.msra.mxu0 0.0
    %1507 = vmatprep.subr.mxu0 0.0
    %1508 = vmatpush1.xpose.msra.mxu0 0.0
    %1509 = vmatprep.mubr.f32.mxu0 0.0
    %1510 = vmatmul.mubr.f32.gmra.mrb[0].mxu0 %v1441
    %v1511 = vpop.f32.mrb[0].mxu0
    %v1512 = vadd.f32 0.0, %v1511
    %v1513 = vpop.f32.mrb[0].mxu0
    %1514 = vdwg.mxu0
    %1515 = vrot.lane.b32.xlu0 %v341, 104
    %v1516 = vpop.permute.xlu0 %1515
    %1517 = vrot.lane.b32.xlu0 %v441, 104
    %v1518 = vpop.permute.xlu0 %1517
    %v1519 = vsel %vm444, %v1516, 0
    %v1521 = vsel %vm444, %v1518, 0
    %1523 = vmatprep.subr.mxu0 0.0
    %1524 = vmatpush1.xpose.msra.mxu0 %v1521
    %1525 = vmatprep.subr.mxu0 0.0
    %1526 = vmatpush1.xpose.msra.mxu0 0.0
    %1527 = vmatprep.subr.mxu0 0.0
    %1528 = vmatpush1.xpose.msra.mxu0 0.0
    %1529 = vmatprep.subr.mxu0 0.0
    %1530 = vmatpush1.xpose.msra.mxu0 0.0
    %1531 = vmatprep.subr.mxu0 0.0
    %1532 = vmatpush1.xpose.msra.mxu0 0.0
    %1533 = vmatprep.subr.mxu0 0.0
    %1534 = vmatpush1.xpose.msra.mxu0 0.0
    %1535 = vmatprep.subr.mxu0 0.0
    %1536 = vmatpush1.xpose.msra.mxu0 0.0
    %1537 = vmatprep.subr.mxu0 0.0
    %1538 = vmatpush1.xpose.msra.mxu0 0.0
    %1539 = vmatprep.subr.mxu0 0.0
    %1540 = vmatpush1.xpose.msra.mxu0 0.0
    %1541 = vmatprep.subr.mxu0 0.0
    %1542 = vmatpush1.xpose.msra.mxu0 0.0
    %1543 = vmatprep.subr.mxu0 0.0
    %1544 = vmatpush1.xpose.msra.mxu0 0.0
    %1545 = vmatprep.subr.mxu0 0.0
    %1546 = vmatpush1.xpose.msra.mxu0 0.0
    %1547 = vmatprep.subr.mxu0 0.0
    %1548 = vmatpush1.xpose.msra.mxu0 0.0
    %1549 = vmatprep.subr.mxu0 0.0
    %1550 = vmatpush1.xpose.msra.mxu0 0.0
    %1551 = vmatprep.subr.mxu0 0.0
    %1552 = vmatpush1.xpose.msra.mxu0 0.0
    %1553 = vmatprep.subr.mxu0 0.0
    %1554 = vmatpush1.xpose.msra.mxu0 0.0
    %1555 = vmatprep.subr.mxu0 0.0
    %1556 = vmatpush1.xpose.msra.mxu0 0.0
    %1557 = vmatprep.subr.mxu0 0.0
    %1558 = vmatpush1.xpose.msra.mxu0 0.0
    %1559 = vmatprep.subr.mxu0 0.0
    %1560 = vmatpush1.xpose.msra.mxu0 0.0
    %1561 = vmatprep.subr.mxu0 0.0
    %1562 = vmatpush1.xpose.msra.mxu0 0.0
    %1563 = vmatprep.subr.mxu0 0.0
    %1564 = vmatpush1.xpose.msra.mxu0 0.0
    %1565 = vmatprep.subr.mxu0 0.0
    %1566 = vmatpush1.xpose.msra.mxu0 0.0
    %1567 = vmatprep.subr.mxu0 0.0
    %1568 = vmatpush1.xpose.msra.mxu0 0.0
    %1569 = vmatprep.subr.mxu0 0.0
    %1570 = vmatpush1.xpose.msra.mxu0 0.0
    %1571 = vmatprep.subr.mxu0 0.0
    %1572 = vmatpush1.xpose.msra.mxu0 0.0
    %1573 = vmatprep.subr.mxu0 0.0
    %1574 = vmatpush1.xpose.msra.mxu0 0.0
    %1575 = vmatprep.subr.mxu0 0.0
    %1576 = vmatpush1.xpose.msra.mxu0 0.0
    %1577 = vmatprep.subr.mxu0 0.0
    %1578 = vmatpush1.xpose.msra.mxu0 0.0
    %1579 = vmatprep.subr.mxu0 0.0
    %1580 = vmatpush1.xpose.msra.mxu0 0.0
    %1581 = vmatprep.subr.mxu0 0.0
    %1582 = vmatpush1.xpose.msra.mxu0 0.0
    %1583 = vmatprep.subr.mxu0 0.0
    %1584 = vmatpush1.xpose.msra.mxu0 0.0
    %1585 = vmatprep.subr.mxu0 0.0
    %1586 = vmatpush1.xpose.msra.mxu0 0.0
    %1587 = vmatprep.mubr.f32.mxu0 0.0
    %1588 = vmatmul.mubr.f32.gmra.mrb[0].mxu0 %v1519
    %v1589 = vpop.f32.mrb[0].mxu0
    %v1590 = vadd.f32 0.0, %v1589
    %v1591 = vpop.f32.mrb[0].mxu0
    %1592 = vdwg.mxu0
    %v1593 = vmul.f32 %v1512, 0.35355338
    %v1594 = vmul.f32 %v1590, 0.35355338
    %v1595 = vsel %vm444, %v1593, -inf
    %1596 = vmax.xlane.f32.xlu0 %v1595
    %v1597 = vpop.xlane.xlu0 %1596
    %v1598 = vsel %vm444, %v1594, -inf
    %1599 = vmax.xlane.f32.xlu0 %v1598
    %v1600 = vpop.xlane.xlu0 %1599
    %v1601 = vsub.f32 %v1593, %v1597
    %v1602 = vsub.f32 %v1594, %v1600
    %v1603 = vmul.f32 %v1601, 1.442695
    %v1604 = vpow.pop %v1603
    %v1605 = vmul.f32 %v1602, 1.442695
    %v1606 = vpow.pop %v1605
    %v1607 = vsel %vm444, %v1604, 0.0
    %1608 = vadd.xlane.f32.xlu0 %v1607
    %v1609 = vpop.xlane.xlu0 %1608
    %v1610 = vsel %vm444, %v1606, 0.0
    %1611 = vadd.xlane.f32.xlu0 %v1610
    %v1612 = vpop.xlane.xlu0 %1611
    %v1613 = vrcp.pop %v1609
    %v1614 = vmul.f32 %v1604, %v1613
    %v1615 = vrcp.pop %v1612
    %v1616 = vmul.f32 %v1606, %v1615
    %1617 = vrot.lane.b32.xlu0 %v436, 72
    %v1618 = vpop.permute.xlu0 %1617
    %v1621 = vsel %vm444, %v1614, 0
    %1623 = vmatprep.subr.mxu0 0.0
    %1624 = vmatpush1.msra.mxu0 %v1618
    %1625 = vmatprep.subr.mxu0 0.0
    %1626 = vmatpush1.msra.mxu0 0.0
    %1627 = vmatprep.subr.mxu0 0.0
    %1628 = vmatpush1.msra.mxu0 0.0
    %1629 = vmatprep.subr.mxu0 0.0
    %1630 = vmatpush1.msra.mxu0 0.0
    %1631 = vmatprep.subr.mxu0 0.0
    %1632 = vmatpush1.msra.mxu0 0.0
    %1633 = vmatprep.subr.mxu0 0.0
    %1634 = vmatpush1.msra.mxu0 0.0
    %1635 = vmatprep.subr.mxu0 0.0
    %1636 = vmatpush1.msra.mxu0 0.0
    %1637 = vmatprep.subr.mxu0 0.0
    %1638 = vmatpush1.msra.mxu0 0.0
    %1639 = vmatprep.subr.mxu0 0.0
    %1640 = vmatpush1.msra.mxu0 0.0
    %1641 = vmatprep.subr.mxu0 0.0
    %1642 = vmatpush1.msra.mxu0 0.0
    %1643 = vmatprep.subr.mxu0 0.0
    %1644 = vmatpush1.msra.mxu0 0.0
    %1645 = vmatprep.subr.mxu0 0.0
    %1646 = vmatpush1.msra.mxu0 0.0
    %1647 = vmatprep.subr.mxu0 0.0
    %1648 = vmatpush1.msra.mxu0 0.0
    %1649 = vmatprep.subr.mxu0 0.0
    %1650 = vmatpush1.msra.mxu0 0.0
    %1651 = vmatprep.subr.mxu0 0.0
    %1652 = vmatpush1.msra.mxu0 0.0
    %1653 = vmatprep.subr.mxu0 0.0
    %1654 = vmatpush1.msra.mxu0 0.0
    %1655 = vmatprep.subr.mxu0 0.0
    %1656 = vmatpush1.msra.mxu0 0.0
    %1657 = vmatprep.subr.mxu0 0.0
    %1658 = vmatpush1.msra.mxu0 0.0
    %1659 = vmatprep.subr.mxu0 0.0
    %1660 = vmatpush1.msra.mxu0 0.0
    %1661 = vmatprep.subr.mxu0 0.0
    %1662 = vmatpush1.msra.mxu0 0.0
    %1663 = vmatprep.subr.mxu0 0.0
    %1664 = vmatpush1.msra.mxu0 0.0
    %1665 = vmatprep.subr.mxu0 0.0
    %1666 = vmatpush1.msra.mxu0 0.0
    %1667 = vmatprep.subr.mxu0 0.0
    %1668 = vmatpush1.msra.mxu0 0.0
    %1669 = vmatprep.subr.mxu0 0.0
    %1670 = vmatpush1.msra.mxu0 0.0
    %1671 = vmatprep.subr.mxu0 0.0
    %1672 = vmatpush1.msra.mxu0 0.0
    %1673 = vmatprep.subr.mxu0 0.0
    %1674 = vmatpush1.msra.mxu0 0.0
    %1675 = vmatprep.subr.mxu0 0.0
    %1676 = vmatpush1.msra.mxu0 0.0
    %1677 = vmatprep.subr.mxu0 0.0
    %1678 = vmatpush1.msra.mxu0 0.0
    %1679 = vmatprep.subr.mxu0 0.0
    %1680 = vmatpush1.msra.mxu0 0.0
    %1681 = vmatprep.subr.mxu0 0.0
    %1682 = vmatpush1.msra.mxu0 0.0
    %1683 = vmatprep.subr.mxu0 0.0
    %1684 = vmatpush1.msra.mxu0 0.0
    %1685 = vmatprep.subr.mxu0 0.0
    %1686 = vmatpush1.msra.mxu0 0.0
    %1687 = vmatprep.mubr.f32.mxu0 0.0
    %1688 = vmatmul.mubr.f32.gmra.mrb[0].mxu0 %v1621
    %v1689 = vpop.f32.mrb[0].mxu0
    %v1690 = vadd.f32 0.0, %v1689
    %v1691 = vpop.f32.mrb[0].mxu0
    %1692 = vdwg.mxu0
    %1693 = vrot.lane.b32.xlu0 %v441, 72
    %v1694 = vpop.permute.xlu0 %1693
    %v1697 = vsel %vm444, %v1616, 0
    %1699 = vmatprep.subr.mxu0 0.0
    %1700 = vmatpush1.msra.mxu0 %v1694
    %1701 = vmatprep.subr.mxu0 0.0
    %1702 = vmatpush1.msra.mxu0 0.0
    %1703 = vmatprep.subr.mxu0 0.0
    %1704 = vmatpush1.msra.mxu0 0.0
    %1705 = vmatprep.subr.mxu0 0.0
    %1706 = vmatpush1.msra.mxu0 0.0
    %1707 = vmatprep.subr.mxu0 0.0
    %1708 = vmatpush1.msra.mxu0 0.0
    %1709 = vmatprep.subr.mxu0 0.0
    %1710 = vmatpush1.msra.mxu0 0.0
    %1711 = vmatprep.subr.mxu0 0.0
    %1712 = vmatpush1.msra.mxu0 0.0
    %1713 = vmatprep.subr.mxu0 0.0
    %1714 = vmatpush1.msra.mxu0 0.0
    %1715 = vmatprep.subr.mxu0 0.0
    %1716 = vmatpush1.msra.mxu0 0.0
    %1717 = vmatprep.subr.mxu0 0.0
    %1718 = vmatpush1.msra.mxu0 0.0
    %1719 = vmatprep.subr.mxu0 0.0
    %1720 = vmatpush1.msra.mxu0 0.0
    %1721 = vmatprep.subr.mxu0 0.0
    %1722 = vmatpush1.msra.mxu0 0.0
    %1723 = vmatprep.subr.mxu0 0.0
    %1724 = vmatpush1.msra.mxu0 0.0
    %1725 = vmatprep.subr.mxu0 0.0
    %1726 = vmatpush1.msra.mxu0 0.0
    %1727 = vmatprep.subr.mxu0 0.0
    %1728 = vmatpush1.msra.mxu0 0.0
    %1729 = vmatprep.subr.mxu0 0.0
    %1730 = vmatpush1.msra.mxu0 0.0
    %1731 = vmatprep.subr.mxu0 0.0
    %1732 = vmatpush1.msra.mxu0 0.0
    %1733 = vmatprep.subr.mxu0 0.0
    %1734 = vmatpush1.msra.mxu0 0.0
    %1735 = vmatprep.subr.mxu0 0.0
    %1736 = vmatpush1.msra.mxu0 0.0
    %1737 = vmatprep.subr.mxu0 0.0
    %1738 = vmatpush1.msra.mxu0 0.0
    %1739 = vmatprep.subr.mxu0 0.0
    %1740 = vmatpush1.msra.mxu0 0.0
    %1741 = vmatprep.subr.mxu0 0.0
    %1742 = vmatpush1.msra.mxu0 0.0
    %1743 = vmatprep.subr.mxu0 0.0
    %1744 = vmatpush1.msra.mxu0 0.0
    %1745 = vmatprep.subr.mxu0 0.0
    %1746 = vmatpush1.msra.mxu0 0.0
    %1747 = vmatprep.subr.mxu0 0.0
    %1748 = vmatpush1.msra.mxu0 0.0
    %1749 = vmatprep.subr.mxu0 0.0
    %1750 = vmatpush1.msra.mxu0 0.0
    %1751 = vmatprep.subr.mxu0 0.0
    %1752 = vmatpush1.msra.mxu0 0.0
    %1753 = vmatprep.subr.mxu0 0.0
    %1754 = vmatpush1.msra.mxu0 0.0
    %1755 = vmatprep.subr.mxu0 0.0
    %1756 = vmatpush1.msra.mxu0 0.0
    %1757 = vmatprep.subr.mxu0 0.0
    %1758 = vmatpush1.msra.mxu0 0.0
    %1759 = vmatprep.subr.mxu0 0.0
    %1760 = vmatpush1.msra.mxu0 0.0
    %1761 = vmatprep.subr.mxu0 0.0
    %1762 = vmatpush1.msra.mxu0 0.0
    %1763 = vmatprep.mubr.f32.mxu0 0.0
    %1764 = vmatmul.mubr.f32.gmra.mrb[0].mxu0 %v1697
    %v1765 = vpop.f32.mrb[0].mxu0
    %v1766 = vadd.f32 0.0, %v1765
    %v1767 = vpop.f32.mrb[0].mxu0
    %1768 = vdwg.mxu0
    %1771 = vrot.lane.b32.xlu0 %v1026, 8
    %v1772 = vpop.permute.xlu0 %1771
    %1773 = vrot.lane.b32.xlu0 %v1102, 8
    %v1774 = vpop.permute.xlu0 %1773
    %1779 = vrot.lane.b32.xlu0 %v1358, 16
    %v1780 = vpop.permute.xlu0 %1779
    %1781 = vrot.lane.b32.xlu0 %v1434, 16
    %v1782 = vpop.permute.xlu0 %1781
    %1787 = vrot.lane.b32.xlu0 %v1690, 24
    %v1788 = vpop.permute.xlu0 %1787
    %1789 = vrot.lane.b32.xlu0 %v1766, 24
    %v1790 = vpop.permute.xlu0 %1789
    %v1793 = vsel %vm444, %v694, %v1772
    %v1794 = vsel %vm444, %v770, %v1774
    %vm1795 = vcmask 130048
    %v1796 = vsel %vm1795, %v1793, %v1780
    %v1797 = vsel %vm1795, %v1794, %v1782
    %vm1798 = vcmask 195584
    %v1799 = vsel %vm1798, %v1796, %v1788
    %v1800 = vsel %vm1798, %v1797, %v1790
    %v1802 = vlaneseq
    %v1803 = vshrl.u32 %v1802, 7
    %v1804 = vsub.s32 0, %v1803
    %v1805 = vrot.slane %v255, %v1804
    %v1808 = vsel %vm262, %v1799, 0
    %v1811 = vsel %vm262, %v1800, 0
    %1813 = vmatprep.subr.mxu0 0.0
    %1814 = vmatpush1.msra.mxu0 %v251
    %1815 = vmatprep.subr.mxu0 0.0
    %1816 = vmatpush1.msra.mxu0 %v252
    %1817 = vmatprep.subr.mxu0 0.0
    %1818 = vmatpush1.msra.mxu0 %v253
    %1819 = vmatprep.subr.mxu0 0.0
    %1820 = vmatpush1.msra.mxu0 %v254
    %1821 = vmatprep.subr.mxu0 0.0
    %1822 = vmatpush1.msra.mxu0 0.0
    %1823 = vmatprep.subr.mxu0 0.0
    %1824 = vmatpush1.msra.mxu0 0.0
    %1825 = vmatprep.subr.mxu0 0.0
    %1826 = vmatpush1.msra.mxu0 0.0
    %1827 = vmatprep.subr.mxu0 0.0
    %1828 = vmatpush1.msra.mxu0 0.0
    %1829 = vmatprep.subr.mxu0 0.0
    %1830 = vmatpush1.msra.mxu0 0.0
    %1831 = vmatprep.subr.mxu0 0.0
    %1832 = vmatpush1.msra.mxu0 0.0
    %1833 = vmatprep.subr.mxu0 0.0
    %1834 = vmatpush1.msra.mxu0 0.0
    %1835 = vmatprep.subr.mxu0 0.0
    %1836 = vmatpush1.msra.mxu0 0.0
    %1837 = vmatprep.subr.mxu0 0.0
    %1838 = vmatpush1.msra.mxu0 0.0
    %1839 = vmatprep.subr.mxu0 0.0
    %1840 = vmatpush1.msra.mxu0 0.0
    %1841 = vmatprep.subr.mxu0 0.0
    %1842 = vmatpush1.msra.mxu0 0.0
    %1843 = vmatprep.subr.mxu0 0.0
    %1844 = vmatpush1.msra.mxu0 0.0
    %1845 = vmatprep.subr.mxu0 0.0
    %1846 = vmatpush1.msra.mxu0 0.0
    %1847 = vmatprep.subr.mxu0 0.0
    %1848 = vmatpush1.msra.mxu0 0.0
    %1849 = vmatprep.subr.mxu0 0.0
    %1850 = vmatpush1.msra.mxu0 0.0
    %1851 = vmatprep.subr.mxu0 0.0
    %1852 = vmatpush1.msra.mxu0 0.0
    %1853 = vmatprep.subr.mxu0 0.0
    %1854 = vmatpush1.msra.mxu0 0.0
    %1855 = vmatprep.subr.mxu0 0.0
    %1856 = vmatpush1.msra.mxu0 0.0
    %1857 = vmatprep.subr.mxu0 0.0
    %1858 = vmatpush1.msra.mxu0 0.0
    %1859 = vmatprep.subr.mxu0 0.0
    %1860 = vmatpush1.msra.mxu0 0.0
    %1861 = vmatprep.subr.mxu0 0.0
    %1862 = vmatpush1.msra.mxu0 0.0
    %1863 = vmatprep.subr.mxu0 0.0
    %1864 = vmatpush1.msra.mxu0 0.0
    %1865 = vmatprep.subr.mxu0 0.0
    %1866 = vmatpush1.msra.mxu0 0.0
    %1867 = vmatprep.subr.mxu0 0.0
    %1868 = vmatpush1.msra.mxu0 0.0
    %1869 = vmatprep.subr.mxu0 0.0
    %1870 = vmatpush1.msra.mxu0 0.0
    %1871 = vmatprep.subr.mxu0 0.0
    %1872 = vmatpush1.msra.mxu0 0.0
    %1873 = vmatprep.subr.mxu0 0.0
    %1874 = vmatpush1.msra.mxu0 0.0
    %1875 = vmatprep.subr.mxu0 0.0
    %1876 = vmatpush1.msra.mxu0 0.0
    %1877 = vmatprep.mubr.f32.mxu0 0.0
    %1878 = vmatmul.mubr.f32.gmra.mrb[0].mxu0 %v1808
    %v1879 = vpop.f32.mrb[0].mxu0
    %v1880 = vadd.f32 %v1805, %v1879
    %v1881 = vpop.f32.mrb[0].mxu0
    %1882 = vmatprep.mubr.f32.mxu0 0.0
    %1883 = vmatmul.mubr.f32.gmra.mrb[0].mxu0 %v1811
    %v1884 = vpop.f32.mrb[0].mxu0
    %v1885 = vadd.f32 %v1805, %v1884
    %v1886 = vpop.f32.mrb[0].mxu0
    %1887 = vdwg.mxu0
    %v1888 = vld [vmem:[%s11] sm:$0xff]
    %v1889 = vld [vmem:[%s11 + $0x8] sm:$0xff]
    %v1890 = vld [vmem:[%s11 + $0x10] sm:$0xff]
    %v1891 = vld [vmem:[%s11 + $0x18] sm:$0xff]
    %v1892 = vld [vmem:[%s12] sm:$0x1]
    %v1893 = vld [vmem:[%s13] sm:$0xff]
    %v1894 = vld [vmem:[%s13 + $0x8] sm:$0xff]
    %v1895 = vld [vmem:[%s13 + $0x10] sm:$0xff]
    %v1896 = vld [vmem:[%s13 + $0x18] sm:$0xff]
    %v1897 = vld [vmem:[%s14] sm:$0x1]
    %v1899 = vlaneseq
    %v1900 = vshrl.u32 %v1899, 7
    %v1901 = vsub.s32 0, %v1900
    %v1902 = vrot.slane %v1892, %v1901
    %1904 = vmatprep.subr.mxu0 0.0
    %1905 = vmatpush1.msra.mxu0 %v1888
    %1906 = vmatprep.subr.mxu0 0.0
    %1907 = vmatpush1.msra.mxu0 %v1889
    %1908 = vmatprep.subr.mxu0 0.0
    %1909 = vmatpush1.msra.mxu0 %v1890
    %1910 = vmatprep.subr.mxu0 0.0
    %1911 = vmatpush1.msra.mxu0 %v1891
    %1912 = vmatprep.subr.mxu0 0.0
    %1913 = vmatpush1.msra.mxu0 0.0
    %1914 = vmatprep.subr.mxu0 0.0
    %1915 = vmatpush1.msra.mxu0 0.0
    %1916 = vmatprep.subr.mxu0 0.0
    %1917 = vmatpush1.msra.mxu0 0.0
    %1918 = vmatprep.subr.mxu0 0.0
    %1919 = vmatpush1.msra.mxu0 0.0
    %1920 = vmatprep.subr.mxu0 0.0
    %1921 = vmatpush1.msra.mxu0 0.0
    %1922 = vmatprep.subr.mxu0 0.0
    %1923 = vmatpush1.msra.mxu0 0.0
    %1924 = vmatprep.subr.mxu0 0.0
    %1925 = vmatpush1.msra.mxu0 0.0
    %1926 = vmatprep.subr.mxu0 0.0
    %1927 = vmatpush1.msra.mxu0 0.0
    %1928 = vmatprep.subr.mxu0 0.0
    %1929 = vmatpush1.msra.mxu0 0.0
    %1930 = vmatprep.subr.mxu0 0.0
    %1931 = vmatpush1.msra.mxu0 0.0
    %1932 = vmatprep.subr.mxu0 0.0
    %1933 = vmatpush1.msra.mxu0 0.0
    %1934 = vmatprep.subr.mxu0 0.0
    %1935 = vmatpush1.msra.mxu0 0.0
    %1936 = vmatprep.subr.mxu0 0.0
    %1937 = vmatpush1.msra.mxu0 0.0
    %1938 = vmatprep.subr.mxu0 0.0
    %1939 = vmatpush1.msra.mxu0 0.0
    %1940 = vmatprep.subr.mxu0 0.0
    %1941 = vmatpush1.msra.mxu0 0.0
    %1942 = vmatprep.subr.mxu0 0.0
    %1943 = vmatpush1.msra.mxu0 0.0
    %1944 = vmatprep.subr.mxu0 0.0
    %1945 = vmatpush1.msra.mxu0 0.0
    %1946 = vmatprep.subr.mxu0 0.0
    %1947 = vmatpush1.msra.mxu0 0.0
    %1948 = vmatprep.subr.mxu0 0.0
    %1949 = vmatpush1.msra.mxu0 0.0
    %1950 = vmatprep.subr.mxu0 0.0
    %1951 = vmatpush1.msra.mxu0 0.0
    %1952 = vmatprep.subr.mxu0 0.0
    %1953 = vmatpush1.msra.mxu0 0.0
    %1954 = vmatprep.subr.mxu0 0.0
    %1955 = vmatpush1.msra.mxu0 0.0
    %1956 = vmatprep.subr.mxu0 0.0
    %1957 = vmatpush1.msra.mxu0 0.0
    %1958 = vmatprep.subr.mxu0 0.0
    %1959 = vmatpush1.msra.mxu0 0.0
    %1960 = vmatprep.subr.mxu0 0.0
    %1961 = vmatpush1.msra.mxu0 0.0
    %1962 = vmatprep.subr.mxu0 0.0
    %1963 = vmatpush1.msra.mxu0 0.0
    %1964 = vmatprep.subr.mxu0 0.0
    %1965 = vmatpush1.msra.mxu0 0.0
    %1966 = vmatprep.subr.mxu0 0.0
    %1967 = vmatpush1.msra.mxu0 0.0
    %1968 = vmatprep.mubr.f32.mxu0 0.0
    %1969 = vmatmul.mubr.f32.gmra.mrb[0].mxu0 %v364
    %v1970 = vpop.f32.mrb[0].mxu0
    %v1971 = vadd.f32 %v1902, %v1970
    %v1972 = vpop.f32.mrb[0].mxu0
    %1973 = vmatprep.mubr.f32.mxu0 0.0
    %1974 = vmatmul.mubr.f32.gmra.mrb[0].mxu0 %v367
    %v1975 = vpop.f32.mrb[0].mxu0
    %v1976 = vadd.f32 %v1902, %v1975
    %v1977 = vpop.f32.mrb[0].mxu0
    %1978 = vdwg.mxu0
    %1983 = vrot.lane.b32.xlu0 %v1888, 96
    %v1984 = vpop.permute.xlu0 %1983
    %1985 = vrot.lane.b32.xlu0 %v1889, 96
    %v1986 = vpop.permute.xlu0 %1985
    %1987 = vrot.lane.b32.xlu0 %v1890, 96
    %v1988 = vpop.permute.xlu0 %1987
    %1989 = vrot.lane.b32.xlu0 %v1891, 96
    %v1990 = vpop.permute.xlu0 %1989
    %1995 = vrot.lane.b32.xlu0 %v1902, 96
    %v1996 = vpop.permute.xlu0 %1995
    %1998 = vmatprep.subr.mxu0 0.0
    %1999 = vmatpush1.msra.mxu0 %v1984
    %2000 = vmatprep.subr.mxu0 0.0
    %2001 = vmatpush1.msra.mxu0 %v1986
    %2002 = vmatprep.subr.mxu0 0.0
    %2003 = vmatpush1.msra.mxu0 %v1988
    %2004 = vmatprep.subr.mxu0 0.0
    %2005 = vmatpush1.msra.mxu0 %v1990
    %2006 = vmatprep.subr.mxu0 0.0
    %2007 = vmatpush1.msra.mxu0 0.0
    %2008 = vmatprep.subr.mxu0 0.0
    %2009 = vmatpush1.msra.mxu0 0.0
    %2010 = vmatprep.subr.mxu0 0.0
    %2011 = vmatpush1.msra.mxu0 0.0
    %2012 = vmatprep.subr.mxu0 0.0
    %2013 = vmatpush1.msra.mxu0 0.0
    %2014 = vmatprep.subr.mxu0 0.0
    %2015 = vmatpush1.msra.mxu0 0.0
    %2016 = vmatprep.subr.mxu0 0.0
    %2017 = vmatpush1.msra.mxu0 0.0
    %2018 = vmatprep.subr.mxu0 0.0
    %2019 = vmatpush1.msra.mxu0 0.0
    %2020 = vmatprep.subr.mxu0 0.0
    %2021 = vmatpush1.msra.mxu0 0.0
    %2022 = vmatprep.subr.mxu0 0.0
    %2023 = vmatpush1.msra.mxu0 0.0
    %2024 = vmatprep.subr.mxu0 0.0
    %2025 = vmatpush1.msra.mxu0 0.0
    %2026 = vmatprep.subr.mxu0 0.0
    %2027 = vmatpush1.msra.mxu0 0.0
    %2028 = vmatprep.subr.mxu0 0.0
    %2029 = vmatpush1.msra.mxu0 0.0
    %2030 = vmatprep.subr.mxu0 0.0
    %2031 = vmatpush1.msra.mxu0 0.0
    %2032 = vmatprep.subr.mxu0 0.0
    %2033 = vmatpush1.msra.mxu0 0.0
    %2034 = vmatprep.subr.mxu0 0.0
    %2035 = vmatpush1.msra.mxu0 0.0
    %2036 = vmatprep.subr.mxu0 0.0
    %2037 = vmatpush1.msra.mxu0 0.0
    %2038 = vmatprep.subr.mxu0 0.0
    %2039 = vmatpush1.msra.mxu0 0.0
    %2040 = vmatprep.subr.mxu0 0.0
    %2041 = vmatpush1.msra.mxu0 0.0
    %2042 = vmatprep.subr.mxu0 0.0
    %2043 = vmatpush1.msra.mxu0 0.0
    %2044 = vmatprep.subr.mxu0 0.0
    %2045 = vmatpush1.msra.mxu0 0.0
    %2046 = vmatprep.subr.mxu0 0.0
    %2047 = vmatpush1.msra.mxu0 0.0
    %2048 = vmatprep.subr.mxu0 0.0
    %2049 = vmatpush1.msra.mxu0 0.0
    %2050 = vmatprep.subr.mxu0 0.0
    %2051 = vmatpush1.msra.mxu0 0.0
    %2052 = vmatprep.subr.mxu0 0.0
    %2053 = vmatpush1.msra.mxu0 0.0
    %2054 = vmatprep.subr.mxu0 0.0
    %2055 = vmatpush1.msra.mxu0 0.0
    %2056 = vmatprep.subr.mxu0 0.0
    %2057 = vmatpush1.msra.mxu0 0.0
    %2058 = vmatprep.subr.mxu0 0.0
    %2059 = vmatpush1.msra.mxu0 0.0
    %2060 = vmatprep.subr.mxu0 0.0
    %2061 = vmatpush1.msra.mxu0 0.0
    %2062 = vmatprep.mubr.f32.mxu0 0.0
    %2063 = vmatmul.mubr.f32.gmra.mrb[0].mxu0 %v264
    %v2064 = vpop.f32.mrb[0].mxu0
    %v2065 = vadd.f32 %v1996, %v2064
    %v2066 = vpop.f32.mrb[0].mxu0
    %2067 = vmatprep.mubr.f32.mxu0 0.0
    %2068 = vmatmul.mubr.f32.gmra.mrb[0].mxu0 %v267
    %v2069 = vpop.f32.mrb[0].mxu0
    %v2070 = vadd.f32 %v1996, %v2069
    %v2071 = vpop.f32.mrb[0].mxu0
    %2072 = vdwg.mxu0
    %v2074 = vsel %vm444, %v1971, 0
    %v2077 = vsel %vm444, %v2065, 0
    %2079 = vmatprep.subr.mxu0 0.0
    %2080 = vmatpush1.xpose.msra.mxu0 %v2077
    %2081 = vmatprep.subr.mxu0 0.0
    %2082 = vmatpush1.xpose.msra.mxu0 0.0
    %2083 = vmatprep.subr.mxu0 0.0
    %2084 = vmatpush1.xpose.msra.mxu0 0.0
    %2085 = vmatprep.subr.mxu0 0.0
    %2086 = vmatpush1.xpose.msra.mxu0 0.0
    %2087 = vmatprep.subr.mxu0 0.0
    %2088 = vmatpush1.xpose.msra.mxu0 0.0
    %2089 = vmatprep.subr.mxu0 0.0
    %2090 = vmatpush1.xpose.msra.mxu0 0.0
    %2091 = vmatprep.subr.mxu0 0.0
    %2092 = vmatpush1.xpose.msra.mxu0 0.0
    %2093 = vmatprep.subr.mxu0 0.0
    %2094 = vmatpush1.xpose.msra.mxu0 0.0
    %2095 = vmatprep.subr.mxu0 0.0
    %2096 = vmatpush1.xpose.msra.mxu0 0.0
    %2097 = vmatprep.subr.mxu0 0.0
    %2098 = vmatpush1.xpose.msra.mxu0 0.0
    %2099 = vmatprep.subr.mxu0 0.0
    %2100 = vmatpush1.xpose.msra.mxu0 0.0
    %2101 = vmatprep.subr.mxu0 0.0
    %2102 = vmatpush1.xpose.msra.mxu0 0.0
    %2103 = vmatprep.subr.mxu0 0.0
    %2104 = vmatpush1.xpose.msra.mxu0 0.0
    %2105 = vmatprep.subr.mxu0 0.0
    %2106 = vmatpush1.xpose.msra.mxu0 0.0
    %2107 = vmatprep.subr.mxu0 0.0
    %2108 = vmatpush1.xpose.msra.mxu0 0.0
    %2109 = vmatprep.subr.mxu0 0.0
    %2110 = vmatpush1.xpose.msra.mxu0 0.0
    %2111 = vmatprep.subr.mxu0 0.0
    %2112 = vmatpush1.xpose.msra.mxu0 0.0
    %2113 = vmatprep.subr.mxu0 0.0
    %2114 = vmatpush1.xpose.msra.mxu0 0.0
    %2115 = vmatprep.subr.mxu0 0.0
    %2116 = vmatpush1.xpose.msra.mxu0 0.0
    %2117 = vmatprep.subr.mxu0 0.0
    %2118 = vmatpush1.xpose.msra.mxu0 0.0
    %2119 = vmatprep.subr.mxu0 0.0
    %2120 = vmatpush1.xpose.msra.mxu0 0.0
    %2121 = vmatprep.subr.mxu0 0.0
    %2122 = vmatpush1.xpose.msra.mxu0 0.0
    %2123 = vmatprep.subr.mxu0 0.0
    %2124 = vmatpush1.xpose.msra.mxu0 0.0
    %2125 = vmatprep.subr.mxu0 0.0
    %2126 = vmatpush1.xpose.msra.mxu0 0.0
    %2127 = vmatprep.subr.mxu0 0.0
    %2128 = vmatpush1.xpose.msra.mxu0 0.0
    %2129 = vmatprep.subr.mxu0 0.0
    %2130 = vmatpush1.xpose.msra.mxu0 0.0
    %2131 = vmatprep.subr.mxu0 0.0
    %2132 = vmatpush1.xpose.msra.mxu0 0.0
    %2133 = vmatprep.subr.mxu0 0.0
    %2134 = vmatpush1.xpose.msra.mxu0 0.0
    %2135 = vmatprep.subr.mxu0 0.0
    %2136 = vmatpush1.xpose.msra.mxu0 0.0
    %2137 = vmatprep.subr.mxu0 0.0
    %2138 = vmatpush1.xpose.msra.mxu0 0.0
    %2139 = vmatprep.subr.mxu0 0.0
    %2140 = vmatpush1.xpose.msra.mxu0 0.0
    %2141 = vmatprep.subr.mxu0 0.0
    %2142 = vmatpush1.xpose.msra.mxu0 0.0
    %2143 = vmatprep.mubr.f32.mxu0 0.0
    %2144 = vmatmul.mubr.f32.gmra.mrb[0].mxu0 %v2074
    %v2145 = vpop.f32.mrb[0].mxu0
    %v2146 = vadd.f32 0.0, %v2145
    %v2147 = vpop.f32.mrb[0].mxu0
    %2148 = vdwg.mxu0
    %v2150 = vsel %vm444, %v1976, 0
    %v2153 = vsel %vm444, %v2070, 0
    %2155 = vmatprep.subr.mxu0 0.0
    %2156 = vmatpush1.xpose.msra.mxu0 %v2153
    %2157 = vmatprep.subr.mxu0 0.0
    %2158 = vmatpush1.xpose.msra.mxu0 0.0
    %2159 = vmatprep.subr.mxu0 0.0
    %2160 = vmatpush1.xpose.msra.mxu0 0.0
    %2161 = vmatprep.subr.mxu0 0.0
    %2162 = vmatpush1.xpose.msra.mxu0 0.0
    %2163 = vmatprep.subr.mxu0 0.0
    %2164 = vmatpush1.xpose.msra.mxu0 0.0
    %2165 = vmatprep.subr.mxu0 0.0
    %2166 = vmatpush1.xpose.msra.mxu0 0.0
    %2167 = vmatprep.subr.mxu0 0.0
    %2168 = vmatpush1.xpose.msra.mxu0 0.0
    %2169 = vmatprep.subr.mxu0 0.0
    %2170 = vmatpush1.xpose.msra.mxu0 0.0
    %2171 = vmatprep.subr.mxu0 0.0
    %2172 = vmatpush1.xpose.msra.mxu0 0.0
    %2173 = vmatprep.subr.mxu0 0.0
    %2174 = vmatpush1.xpose.msra.mxu0 0.0
    %2175 = vmatprep.subr.mxu0 0.0
    %2176 = vmatpush1.xpose.msra.mxu0 0.0
    %2177 = vmatprep.subr.mxu0 0.0
    %2178 = vmatpush1.xpose.msra.mxu0 0.0
    %2179 = vmatprep.subr.mxu0 0.0
    %2180 = vmatpush1.xpose.msra.mxu0 0.0
    %2181 = vmatprep.subr.mxu0 0.0
    %2182 = vmatpush1.xpose.msra.mxu0 0.0
    %2183 = vmatprep.subr.mxu0 0.0
    %2184 = vmatpush1.xpose.msra.mxu0 0.0
    %2185 = vmatprep.subr.mxu0 0.0
    %2186 = vmatpush1.xpose.msra.mxu0 0.0
    %2187 = vmatprep.subr.mxu0 0.0
    %2188 = vmatpush1.xpose.msra.mxu0 0.0
    %2189 = vmatprep.subr.mxu0 0.0
    %2190 = vmatpush1.xpose.msra.mxu0 0.0
    %2191 = vmatprep.subr.mxu0 0.0
    %2192 = vmatpush1.xpose.msra.mxu0 0.0
    %2193 = vmatprep.subr.mxu0 0.0
    %2194 = vmatpush1.xpose.msra.mxu0 0.0
    %2195 = vmatprep.subr.mxu0 0.0
    %2196 = vmatpush1.xpose.msra.mxu0 0.0
    %2197 = vmatprep.subr.mxu0 0.0
    %2198 = vmatpush1.xpose.msra.mxu0 0.0
    %2199 = vmatprep.subr.mxu0 0.0
    %2200 = vmatpush1.xpose.msra.mxu0 0.0
    %2201 = vmatprep.subr.mxu0 0.0
    %2202 = vmatpush1.xpose.msra.mxu0 0.0
    %2203 = vmatprep.subr.mxu0 0.0
    %2204 = vmatpush1.xpose.msra.mxu0 0.0
    %2205 = vmatprep.subr.mxu0 0.0
    %2206 = vmatpush1.xpose.msra.mxu0 0.0
    %2207 = vmatprep.subr.mxu0 0.0
    %2208 = vmatpush1.xpose.msra.mxu0 0.0
    %2209 = vmatprep.subr.mxu0 0.0
    %2210 = vmatpush1.xpose.msra.mxu0 0.0
    %2211 = vmatprep.subr.mxu0 0.0
    %2212 = vmatpush1.xpose.msra.mxu0 0.0
    %2213 = vmatprep.subr.mxu0 0.0
    %2214 = vmatpush1.xpose.msra.mxu0 0.0
    %2215 = vmatprep.subr.mxu0 0.0
    %2216 = vmatpush1.xpose.msra.mxu0 0.0
    %2217 = vmatprep.subr.mxu0 0.0
    %2218 = vmatpush1.xpose.msra.mxu0 0.0
    %2219 = vmatprep.mubr.f32.mxu0 0.0
    %2220 = vmatmul.mubr.f32.gmra.mrb[0].mxu0 %v2150
    %v2221 = vpop.f32.mrb[0].mxu0
    %v2222 = vadd.f32 0.0, %v2221
    %v2223 = vpop.f32.mrb[0].mxu0
    %2224 = vdwg.mxu0
    %v2225 = vmul.f32 %v2146, 0.35355338
    %v2226 = vmul.f32 %v2222, 0.35355338
    %v2227 = vsel %vm444, %v2225, -inf
    %2228 = vmax.xlane.f32.xlu0 %v2227
    %v2229 = vpop.xlane.xlu0 %2228
    %v2230 = vsel %vm444, %v2226, -inf
    %2231 = vmax.xlane.f32.xlu0 %v2230
    %v2232 = vpop.xlane.xlu0 %2231
    %v2233 = vsub.f32 %v2225, %v2229
    %v2234 = vsub.f32 %v2226, %v2232
    %v2235 = vmul.f32 %v2233, 1.442695
    %v2236 = vpow.pop %v2235
    %v2237 = vmul.f32 %v2234, 1.442695
    %v2238 = vpow.pop %v2237
    %v2239 = vsel %vm444, %v2236, 0.0
    %2240 = vadd.xlane.f32.xlu0 %v2239
    %v2241 = vpop.xlane.xlu0 %2240
    %v2242 = vsel %vm444, %v2238, 0.0
    %2243 = vadd.xlane.f32.xlu0 %v2242
    %v2244 = vpop.xlane.xlu0 %2243
    %v2245 = vrcp.pop %v2241
    %v2246 = vmul.f32 %v2236, %v2245
    %v2247 = vrcp.pop %v2244
    %v2248 = vmul.f32 %v2238, %v2247
    %2249 = vrot.lane.b32.xlu0 %v2065, 96
    %v2250 = vpop.permute.xlu0 %2249
    %v2253 = vsel %vm444, %v2246, 0
    %2255 = vmatprep.subr.mxu0 0.0
    %2256 = vmatpush1.msra.mxu0 %v2250
    %2257 = vmatprep.subr.mxu0 0.0
    %2258 = vmatpush1.msra.mxu0 0.0
    %2259 = vmatprep.subr.mxu0 0.0
    %2260 = vmatpush1.msra.mxu0 0.0
    %2261 = vmatprep.subr.mxu0 0.0
    %2262 = vmatpush1.msra.mxu0 0.0
    %2263 = vmatprep.subr.mxu0 0.0
    %2264 = vmatpush1.msra.mxu0 0.0
    %2265 = vmatprep.subr.mxu0 0.0
    %2266 = vmatpush1.msra.mxu0 0.0
    %2267 = vmatprep.subr.mxu0 0.0
    %2268 = vmatpush1.msra.mxu0 0.0
    %2269 = vmatprep.subr.mxu0 0.0
    %2270 = vmatpush1.msra.mxu0 0.0
    %2271 = vmatprep.subr.mxu0 0.0
    %2272 = vmatpush1.msra.mxu0 0.0
    %2273 = vmatprep.subr.mxu0 0.0
    %2274 = vmatpush1.msra.mxu0 0.0
    %2275 = vmatprep.subr.mxu0 0.0
    %2276 = vmatpush1.msra.mxu0 0.0
    %2277 = vmatprep.subr.mxu0 0.0
    %2278 = vmatpush1.msra.mxu0 0.0
    %2279 = vmatprep.subr.mxu0 0.0
    %2280 = vmatpush1.msra.mxu0 0.0
    %2281 = vmatprep.subr.mxu0 0.0
    %2282 = vmatpush1.msra.mxu0 0.0
    %2283 = vmatprep.subr.mxu0 0.0
    %2284 = vmatpush1.msra.mxu0 0.0
    %2285 = vmatprep.subr.mxu0 0.0
    %2286 = vmatpush1.msra.mxu0 0.0
    %2287 = vmatprep.subr.mxu0 0.0
    %2288 = vmatpush1.msra.mxu0 0.0
    %2289 = vmatprep.subr.mxu0 0.0
    %2290 = vmatpush1.msra.mxu0 0.0
    %2291 = vmatprep.subr.mxu0 0.0
    %2292 = vmatpush1.msra.mxu0 0.0
    %2293 = vmatprep.subr.mxu0 0.0
    %2294 = vmatpush1.msra.mxu0 0.0
    %2295 = vmatprep.subr.mxu0 0.0
    %2296 = vmatpush1.msra.mxu0 0.0
    %2297 = vmatprep.subr.mxu0 0.0
    %2298 = vmatpush1.msra.mxu0 0.0
    %2299 = vmatprep.subr.mxu0 0.0
    %2300 = vmatpush1.msra.mxu0 0.0
    %2301 = vmatprep.subr.mxu0 0.0
    %2302 = vmatpush1.msra.mxu0 0.0
    %2303 = vmatprep.subr.mxu0 0.0
    %2304 = vmatpush1.msra.mxu0 0.0
    %2305 = vmatprep.subr.mxu0 0.0
    %2306 = vmatpush1.msra.mxu0 0.0
    %2307 = vmatprep.subr.mxu0 0.0
    %2308 = vmatpush1.msra.mxu0 0.0
    %2309 = vmatprep.subr.mxu0 0.0
    %2310 = vmatpush1.msra.mxu0 0.0
    %2311 = vmatprep.subr.mxu0 0.0
    %2312 = vmatpush1.msra.mxu0 0.0
    %2313 = vmatprep.subr.mxu0 0.0
    %2314 = vmatpush1.msra.mxu0 0.0
    %2315 = vmatprep.subr.mxu0 0.0
    %2316 = vmatpush1.msra.mxu0 0.0
    %2317 = vmatprep.subr.mxu0 0.0
    %2318 = vmatpush1.msra.mxu0 0.0
    %2319 = vmatprep.mubr.f32.mxu0 0.0
    %2320 = vmatmul.mubr.f32.gmra.mrb[0].mxu0 %v2253
    %v2321 = vpop.f32.mrb[0].mxu0
    %v2322 = vadd.f32 0.0, %v2321
    %v2323 = vpop.f32.mrb[0].mxu0
    %2324 = vdwg.mxu0
    %2325 = vrot.lane.b32.xlu0 %v2070, 96
    %v2326 = vpop.permute.xlu0 %2325
    %v2329 = vsel %vm444, %v2248, 0
    %2331 = vmatprep.subr.mxu0 0.0
    %2332 = vmatpush1.msra.mxu0 %v2326
    %2333 = vmatprep.subr.mxu0 0.0
    %2334 = vmatpush1.msra.mxu0 0.0
    %2335 = vmatprep.subr.mxu0 0.0
    %2336 = vmatpush1.msra.mxu0 0.0
    %2337 = vmatprep.subr.mxu0 0.0
    %2338 = vmatpush1.msra.mxu0 0.0
    %2339 = vmatprep.subr.mxu0 0.0
    %2340 = vmatpush1.msra.mxu0 0.0
    %2341 = vmatprep.subr.mxu0 0.0
    %2342 = vmatpush1.msra.mxu0 0.0
    %2343 = vmatprep.subr.mxu0 0.0
    %2344 = vmatpush1.msra.mxu0 0.0
    %2345 = vmatprep.subr.mxu0 0.0
    %2346 = vmatpush1.msra.mxu0 0.0
    %2347 = vmatprep.subr.mxu0 0.0
    %2348 = vmatpush1.msra.mxu0 0.0
    %2349 = vmatprep.subr.mxu0 0.0
    %2350 = vmatpush1.msra.mxu0 0.0
    %2351 = vmatprep.subr.mxu0 0.0
    %2352 = vmatpush1.msra.mxu0 0.0
    %2353 = vmatprep.subr.mxu0 0.0
    %2354 = vmatpush1.msra.mxu0 0.0
    %2355 = vmatprep.subr.mxu0 0.0
    %2356 = vmatpush1.msra.mxu0 0.0
    %2357 = vmatprep.subr.mxu0 0.0
    %2358 = vmatpush1.msra.mxu0 0.0
    %2359 = vmatprep.subr.mxu0 0.0
    %2360 = vmatpush1.msra.mxu0 0.0
    %2361 = vmatprep.subr.mxu0 0.0
    %2362 = vmatpush1.msra.mxu0 0.0
    %2363 = vmatprep.subr.mxu0 0.0
    %2364 = vmatpush1.msra.mxu0 0.0
    %2365 = vmatprep.subr.mxu0 0.0
    %2366 = vmatpush1.msra.mxu0 0.0
    %2367 = vmatprep.subr.mxu0 0.0
    %2368 = vmatpush1.msra.mxu0 0.0
    %2369 = vmatprep.subr.mxu0 0.0
    %2370 = vmatpush1.msra.mxu0 0.0
    %2371 = vmatprep.subr.mxu0 0.0
    %2372 = vmatpush1.msra.mxu0 0.0
    %2373 = vmatprep.subr.mxu0 0.0
    %2374 = vmatpush1.msra.mxu0 0.0
    %2375 = vmatprep.subr.mxu0 0.0
    %2376 = vmatpush1.msra.mxu0 0.0
    %2377 = vmatprep.subr.mxu0 0.0
    %2378 = vmatpush1.msra.mxu0 0.0
    %2379 = vmatprep.subr.mxu0 0.0
    %2380 = vmatpush1.msra.mxu0 0.0
    %2381 = vmatprep.subr.mxu0 0.0
    %2382 = vmatpush1.msra.mxu0 0.0
    %2383 = vmatprep.subr.mxu0 0.0
    %2384 = vmatpush1.msra.mxu0 0.0
    %2385 = vmatprep.subr.mxu0 0.0
    %2386 = vmatpush1.msra.mxu0 0.0
    %2387 = vmatprep.subr.mxu0 0.0
    %2388 = vmatpush1.msra.mxu0 0.0
    %2389 = vmatprep.subr.mxu0 0.0
    %2390 = vmatpush1.msra.mxu0 0.0
    %2391 = vmatprep.subr.mxu0 0.0
    %2392 = vmatpush1.msra.mxu0 0.0
    %2393 = vmatprep.subr.mxu0 0.0
    %2394 = vmatpush1.msra.mxu0 0.0
    %2395 = vmatprep.mubr.f32.mxu0 0.0
    %2396 = vmatmul.mubr.f32.gmra.mrb[0].mxu0 %v2329
    %v2397 = vpop.f32.mrb[0].mxu0
    %v2398 = vadd.f32 0.0, %v2397
    %v2399 = vpop.f32.mrb[0].mxu0
    %2400 = vdwg.mxu0
    %2401 = vrot.lane.b32.xlu0 %v1971, 120
    %v2402 = vpop.permute.xlu0 %2401
    %2403 = vrot.lane.b32.xlu0 %v2065, 120
    %v2404 = vpop.permute.xlu0 %2403
    %v2405 = vsel %vm444, %v2402, 0
    %v2407 = vsel %vm444, %v2404, 0
    %2409 = vmatprep.subr.mxu0 0.0
    %2410 = vmatpush1.xpose.msra.mxu0 %v2407
    %2411 = vmatprep.subr.mxu0 0.0
    %2412 = vmatpush1.xpose.msra.mxu0 0.0
    %2413 = vmatprep.subr.mxu0 0.0
    %2414 = vmatpush1.xpose.msra.mxu0 0.0
    %2415 = vmatprep.subr.mxu0 0.0
    %2416 = vmatpush1.xpose.msra.mxu0 0.0
    %2417 = vmatprep.subr.mxu0 0.0
    %2418 = vmatpush1.xpose.msra.mxu0 0.0
    %2419 = vmatprep.subr.mxu0 0.0
    %2420 = vmatpush1.xpose.msra.mxu0 0.0
    %2421 = vmatprep.subr.mxu0 0.0
    %2422 = vmatpush1.xpose.msra.mxu0 0.0
    %2423 = vmatprep.subr.mxu0 0.0
    %2424 = vmatpush1.xpose.msra.mxu0 0.0
    %2425 = vmatprep.subr.mxu0 0.0
    %2426 = vmatpush1.xpose.msra.mxu0 0.0
    %2427 = vmatprep.subr.mxu0 0.0
    %2428 = vmatpush1.xpose.msra.mxu0 0.0
    %2429 = vmatprep.subr.mxu0 0.0
    %2430 = vmatpush1.xpose.msra.mxu0 0.0
    %2431 = vmatprep.subr.mxu0 0.0
    %2432 = vmatpush1.xpose.msra.mxu0 0.0
    %2433 = vmatprep.subr.mxu0 0.0
    %2434 = vmatpush1.xpose.msra.mxu0 0.0
    %2435 = vmatprep.subr.mxu0 0.0
    %2436 = vmatpush1.xpose.msra.mxu0 0.0
    %2437 = vmatprep.subr.mxu0 0.0
    %2438 = vmatpush1.xpose.msra.mxu0 0.0
    %2439 = vmatprep.subr.mxu0 0.0
    %2440 = vmatpush1.xpose.msra.mxu0 0.0
    %2441 = vmatprep.subr.mxu0 0.0
    %2442 = vmatpush1.xpose.msra.mxu0 0.0
    %2443 = vmatprep.subr.mxu0 0.0
    %2444 = vmatpush1.xpose.msra.mxu0 0.0
    %2445 = vmatprep.subr.mxu0 0.0
    %2446 = vmatpush1.xpose.msra.mxu0 0.0
    %2447 = vmatprep.subr.mxu0 0.0
    %2448 = vmatpush1.xpose.msra.mxu0 0.0
    %2449 = vmatprep.subr.mxu0 0.0
    %2450 = vmatpush1.xpose.msra.mxu0 0.0
    %2451 = vmatprep.subr.mxu0 0.0
    %2452 = vmatpush1.xpose.msra.mxu0 0.0
    %2453 = vmatprep.subr.mxu0 0.0
    %2454 = vmatpush1.xpose.msra.mxu0 0.0
    %2455 = vmatprep.subr.mxu0 0.0
    %2456 = vmatpush1.xpose.msra.mxu0 0.0
    %2457 = vmatprep.subr.mxu0 0.0
    %2458 = vmatpush1.xpose.msra.mxu0 0.0
    %2459 = vmatprep.subr.mxu0 0.0
    %2460 = vmatpush1.xpose.msra.mxu0 0.0
    %2461 = vmatprep.subr.mxu0 0.0
    %2462 = vmatpush1.xpose.msra.mxu0 0.0
    %2463 = vmatprep.subr.mxu0 0.0
    %2464 = vmatpush1.xpose.msra.mxu0 0.0
    %2465 = vmatprep.subr.mxu0 0.0
    %2466 = vmatpush1.xpose.msra.mxu0 0.0
    %2467 = vmatprep.subr.mxu0 0.0
    %2468 = vmatpush1.xpose.msra.mxu0 0.0
    %2469 = vmatprep.subr.mxu0 0.0
    %2470 = vmatpush1.xpose.msra.mxu0 0.0
    %2471 = vmatprep.subr.mxu0 0.0
    %2472 = vmatpush1.xpose.msra.mxu0 0.0
    %2473 = vmatprep.mubr.f32.mxu0 0.0
    %2474 = vmatmul.mubr.f32.gmra.mrb[0].mxu0 %v2405
    %v2475 = vpop.f32.mrb[0].mxu0
    %v2476 = vadd.f32 0.0, %v2475
    %v2477 = vpop.f32.mrb[0].mxu0
    %2478 = vdwg.mxu0
    %2479 = vrot.lane.b32.xlu0 %v1976, 120
    %v2480 = vpop.permute.xlu0 %2479
    %2481 = vrot.lane.b32.xlu0 %v2070, 120
    %v2482 = vpop.permute.xlu0 %2481
    %v2483 = vsel %vm444, %v2480, 0
    %v2485 = vsel %vm444, %v2482, 0
    %2487 = vmatprep.subr.mxu0 0.0
    %2488 = vmatpush1.xpose.msra.mxu0 %v2485
    %2489 = vmatprep.subr.mxu0 0.0
    %2490 = vmatpush1.xpose.msra.mxu0 0.0
    %2491 = vmatprep.subr.mxu0 0.0
    %2492 = vmatpush1.xpose.msra.mxu0 0.0
    %2493 = vmatprep.subr.mxu0 0.0
    %2494 = vmatpush1.xpose.msra.mxu0 0.0
    %2495 = vmatprep.subr.mxu0 0.0
    %2496 = vmatpush1.xpose.msra.mxu0 0.0
    %2497 = vmatprep.subr.mxu0 0.0
    %2498 = vmatpush1.xpose.msra.mxu0 0.0
    %2499 = vmatprep.subr.mxu0 0.0
    %2500 = vmatpush1.xpose.msra.mxu0 0.0
    %2501 = vmatprep.subr.mxu0 0.0
    %2502 = vmatpush1.xpose.msra.mxu0 0.0
    %2503 = vmatprep.subr.mxu0 0.0
    %2504 = vmatpush1.xpose.msra.mxu0 0.0
    %2505 = vmatprep.subr.mxu0 0.0
    %2506 = vmatpush1.xpose.msra.mxu0 0.0
    %2507 = vmatprep.subr.mxu0 0.0
    %2508 = vmatpush1.xpose.msra.mxu0 0.0
    %2509 = vmatprep.subr.mxu0 0.0
    %2510 = vmatpush1.xpose.msra.mxu0 0.0
    %2511 = vmatprep.subr.mxu0 0.0
    %2512 = vmatpush1.xpose.msra.mxu0 0.0
    %2513 = vmatprep.subr.mxu0 0.0
    %2514 = vmatpush1.xpose.msra.mxu0 0.0
    %2515 = vmatprep.subr.mxu0 0.0
    %2516 = vmatpush1.xpose.msra.mxu0 0.0
    %2517 = vmatprep.subr.mxu0 0.0
    %2518 = vmatpush1.xpose.msra.mxu0 0.0
    %2519 = vmatprep.subr.mxu0 0.0
    %2520 = vmatpush1.xpose.msra.mxu0 0.0
    %2521 = vmatprep.subr.mxu0 0.0
    %2522 = vmatpush1.xpose.msra.mxu0 0.0
    %2523 = vmatprep.subr.mxu0 0.0
    %2524 = vmatpush1.xpose.msra.mxu0 0.0
    %2525 = vmatprep.subr.mxu0 0.0
    %2526 = vmatpush1.xpose.msra.mxu0 0.0
    %2527 = vmatprep.subr.mxu0 0.0
    %2528 = vmatpush1.xpose.msra.mxu0 0.0
    %2529 = vmatprep.subr.mxu0 0.0
    %2530 = vmatpush1.xpose.msra.mxu0 0.0
    %2531 = vmatprep.subr.mxu0 0.0
    %2532 = vmatpush1.xpose.msra.mxu0 0.0
    %2533 = vmatprep.subr.mxu0 0.0
    %2534 = vmatpush1.xpose.msra.mxu0 0.0
    %2535 = vmatprep.subr.mxu0 0.0
    %2536 = vmatpush1.xpose.msra.mxu0 0.0
    %2537 = vmatprep.subr.mxu0 0.0
    %2538 = vmatpush1.xpose.msra.mxu0 0.0
    %2539 = vmatprep.subr.mxu0 0.0
    %2540 = vmatpush1.xpose.msra.mxu0 0.0
    %2541 = vmatprep.subr.mxu0 0.0
    %2542 = vmatpush1.xpose.msra.mxu0 0.0
    %2543 = vmatprep.subr.mxu0 0.0
    %2544 = vmatpush1.xpose.msra.mxu0 0.0
    %2545 = vmatprep.subr.mxu0 0.0
    %2546 = vmatpush1.xpose.msra.mxu0 0.0
    %2547 = vmatprep.subr.mxu0 0.0
    %2548 = vmatpush1.xpose.msra.mxu0 0.0
    %2549 = vmatprep.subr.mxu0 0.0
    %2550 = vmatpush1.xpose.msra.mxu0 0.0
    %2551 = vmatprep.mubr.f32.mxu0 0.0
    %2552 = vmatmul.mubr.f32.gmra.mrb[0].mxu0 %v2483
    %v2553 = vpop.f32.mrb[0].mxu0
    %v2554 = vadd.f32 0.0, %v2553
    %v2555 = vpop.f32.mrb[0].mxu0
    %2556 = vdwg.mxu0
    %v2557 = vmul.f32 %v2476, 0.35355338
    %v2558 = vmul.f32 %v2554, 0.35355338
    %v2559 = vsel %vm444, %v2557, -inf
    %2560 = vmax.xlane.f32.xlu0 %v2559
    %v2561 = vpop.xlane.xlu0 %2560
    %v2562 = vsel %vm444, %v2558, -inf
    %2563 = vmax.xlane.f32.xlu0 %v2562
    %v2564 = vpop.xlane.xlu0 %2563
    %v2565 = vsub.f32 %v2557, %v2561
    %v2566 = vsub.f32 %v2558, %v2564
    %v2567 = vmul.f32 %v2565, 1.442695
    %v2568 = vpow.pop %v2567
    %v2569 = vmul.f32 %v2566, 1.442695
    %v2570 = vpow.pop %v2569
    %v2571 = vsel %vm444, %v2568, 0.0
    %2572 = vadd.xlane.f32.xlu0 %v2571
    %v2573 = vpop.xlane.xlu0 %2572
    %v2574 = vsel %vm444, %v2570, 0.0
    %2575 = vadd.xlane.f32.xlu0 %v2574
    %v2576 = vpop.xlane.xlu0 %2575
    %v2577 = vrcp.pop %v2573
    %v2578 = vmul.f32 %v2568, %v2577
    %v2579 = vrcp.pop %v2576
    %v2580 = vmul.f32 %v2570, %v2579
    %2581 = vrot.lane.b32.xlu0 %v2065, 88
    %v2582 = vpop.permute.xlu0 %2581
    %v2585 = vsel %vm444, %v2578, 0
    %2587 = vmatprep.subr.mxu0 0.0
    %2588 = vmatpush1.msra.mxu0 %v2582
    %2589 = vmatprep.subr.mxu0 0.0
    %2590 = vmatpush1.msra.mxu0 0.0
    %2591 = vmatprep.subr.mxu0 0.0
    %2592 = vmatpush1.msra.mxu0 0.0
    %2593 = vmatprep.subr.mxu0 0.0
    %2594 = vmatpush1.msra.mxu0 0.0
    %2595 = vmatprep.subr.mxu0 0.0
    %2596 = vmatpush1.msra.mxu0 0.0
    %2597 = vmatprep.subr.mxu0 0.0
    %2598 = vmatpush1.msra.mxu0 0.0
    %2599 = vmatprep.subr.mxu0 0.0
    %2600 = vmatpush1.msra.mxu0 0.0
    %2601 = vmatprep.subr.mxu0 0.0
    %2602 = vmatpush1.msra.mxu0 0.0
    %2603 = vmatprep.subr.mxu0 0.0
    %2604 = vmatpush1.msra.mxu0 0.0
    %2605 = vmatprep.subr.mxu0 0.0
    %2606 = vmatpush1.msra.mxu0 0.0
    %2607 = vmatprep.subr.mxu0 0.0
    %2608 = vmatpush1.msra.mxu0 0.0
    %2609 = vmatprep.subr.mxu0 0.0
    %2610 = vmatpush1.msra.mxu0 0.0
    %2611 = vmatprep.subr.mxu0 0.0
    %2612 = vmatpush1.msra.mxu0 0.0
    %2613 = vmatprep.subr.mxu0 0.0
    %2614 = vmatpush1.msra.mxu0 0.0
    %2615 = vmatprep.subr.mxu0 0.0
    %2616 = vmatpush1.msra.mxu0 0.0
    %2617 = vmatprep.subr.mxu0 0.0
    %2618 = vmatpush1.msra.mxu0 0.0
    %2619 = vmatprep.subr.mxu0 0.0
    %2620 = vmatpush1.msra.mxu0 0.0
    %2621 = vmatprep.subr.mxu0 0.0
    %2622 = vmatpush1.msra.mxu0 0.0
    %2623 = vmatprep.subr.mxu0 0.0
    %2624 = vmatpush1.msra.mxu0 0.0
    %2625 = vmatprep.subr.mxu0 0.0
    %2626 = vmatpush1.msra.mxu0 0.0
    %2627 = vmatprep.subr.mxu0 0.0
    %2628 = vmatpush1.msra.mxu0 0.0
    %2629 = vmatprep.subr.mxu0 0.0
    %2630 = vmatpush1.msra.mxu0 0.0
    %2631 = vmatprep.subr.mxu0 0.0
    %2632 = vmatpush1.msra.mxu0 0.0
    %2633 = vmatprep.subr.mxu0 0.0
    %2634 = vmatpush1.msra.mxu0 0.0
    %2635 = vmatprep.subr.mxu0 0.0
    %2636 = vmatpush1.msra.mxu0 0.0
    %2637 = vmatprep.subr.mxu0 0.0
    %2638 = vmatpush1.msra.mxu0 0.0
    %2639 = vmatprep.subr.mxu0 0.0
    %2640 = vmatpush1.msra.mxu0 0.0
    %2641 = vmatprep.subr.mxu0 0.0
    %2642 = vmatpush1.msra.mxu0 0.0
    %2643 = vmatprep.subr.mxu0 0.0
    %2644 = vmatpush1.msra.mxu0 0.0
    %2645 = vmatprep.subr.mxu0 0.0
    %2646 = vmatpush1.msra.mxu0 0.0
    %2647 = vmatprep.subr.mxu0 0.0
    %2648 = vmatpush1.msra.mxu0 0.0
    %2649 = vmatprep.subr.mxu0 0.0
    %2650 = vmatpush1.msra.mxu0 0.0
    %2651 = vmatprep.mubr.f32.mxu0 0.0
    %2652 = vmatmul.mubr.f32.gmra.mrb[0].mxu0 %v2585
    %v2653 = vpop.f32.mrb[0].mxu0
    %v2654 = vadd.f32 0.0, %v2653
    %v2655 = vpop.f32.mrb[0].mxu0
    %2656 = vdwg.mxu0
    %2657 = vrot.lane.b32.xlu0 %v2070, 88
    %v2658 = vpop.permute.xlu0 %2657
    %v2661 = vsel %vm444, %v2580, 0
    %2663 = vmatprep.subr.mxu0 0.0
    %2664 = vmatpush1.msra.mxu0 %v2658
    %2665 = vmatprep.subr.mxu0 0.0
    %2666 = vmatpush1.msra.mxu0 0.0
    %2667 = vmatprep.subr.mxu0 0.0
    %2668 = vmatpush1.msra.mxu0 0.0
    %2669 = vmatprep.subr.mxu0 0.0
    %2670 = vmatpush1.msra.mxu0 0.0
    %2671 = vmatprep.subr.mxu0 0.0
    %2672 = vmatpush1.msra.mxu0 0.0
    %2673 = vmatprep.subr.mxu0 0.0
    %2674 = vmatpush1.msra.mxu0 0.0
    %2675 = vmatprep.subr.mxu0 0.0
    %2676 = vmatpush1.msra.mxu0 0.0
    %2677 = vmatprep.subr.mxu0 0.0
    %2678 = vmatpush1.msra.mxu0 0.0
    %2679 = vmatprep.subr.mxu0 0.0
    %2680 = vmatpush1.msra.mxu0 0.0
    %2681 = vmatprep.subr.mxu0 0.0
    %2682 = vmatpush1.msra.mxu0 0.0
    %2683 = vmatprep.subr.mxu0 0.0
    %2684 = vmatpush1.msra.mxu0 0.0
    %2685 = vmatprep.subr.mxu0 0.0
    %2686 = vmatpush1.msra.mxu0 0.0
    %2687 = vmatprep.subr.mxu0 0.0
    %2688 = vmatpush1.msra.mxu0 0.0
    %2689 = vmatprep.subr.mxu0 0.0
    %2690 = vmatpush1.msra.mxu0 0.0
    %2691 = vmatprep.subr.mxu0 0.0
    %2692 = vmatpush1.msra.mxu0 0.0
    %2693 = vmatprep.subr.mxu0 0.0
    %2694 = vmatpush1.msra.mxu0 0.0
    %2695 = vmatprep.subr.mxu0 0.0
    %2696 = vmatpush1.msra.mxu0 0.0
    %2697 = vmatprep.subr.mxu0 0.0
    %2698 = vmatpush1.msra.mxu0 0.0
    %2699 = vmatprep.subr.mxu0 0.0
    %2700 = vmatpush1.msra.mxu0 0.0
    %2701 = vmatprep.subr.mxu0 0.0
    %2702 = vmatpush1.msra.mxu0 0.0
    %2703 = vmatprep.subr.mxu0 0.0
    %2704 = vmatpush1.msra.mxu0 0.0
    %2705 = vmatprep.subr.mxu0 0.0
    %2706 = vmatpush1.msra.mxu0 0.0
    %2707 = vmatprep.subr.mxu0 0.0
    %2708 = vmatpush1.msra.mxu0 0.0
    %2709 = vmatprep.subr.mxu0 0.0
    %2710 = vmatpush1.msra.mxu0 0.0
    %2711 = vmatprep.subr.mxu0 0.0
    %2712 = vmatpush1.msra.mxu0 0.0
    %2713 = vmatprep.subr.mxu0 0.0
    %2714 = vmatpush1.msra.mxu0 0.0
    %2715 = vmatprep.subr.mxu0 0.0
    %2716 = vmatpush1.msra.mxu0 0.0
    %2717 = vmatprep.subr.mxu0 0.0
    %2718 = vmatpush1.msra.mxu0 0.0
    %2719 = vmatprep.subr.mxu0 0.0
    %2720 = vmatpush1.msra.mxu0 0.0
    %2721 = vmatprep.subr.mxu0 0.0
    %2722 = vmatpush1.msra.mxu0 0.0
    %2723 = vmatprep.subr.mxu0 0.0
    %2724 = vmatpush1.msra.mxu0 0.0
    %2725 = vmatprep.subr.mxu0 0.0
    %2726 = vmatpush1.msra.mxu0 0.0
    %2727 = vmatprep.mubr.f32.mxu0 0.0
    %2728 = vmatmul.mubr.f32.gmra.mrb[0].mxu0 %v2661
    %v2729 = vpop.f32.mrb[0].mxu0
    %v2730 = vadd.f32 0.0, %v2729
    %v2731 = vpop.f32.mrb[0].mxu0
    %2732 = vdwg.mxu0
    %2733 = vrot.lane.b32.xlu0 %v1971, 112
    %v2734 = vpop.permute.xlu0 %2733
    %2735 = vrot.lane.b32.xlu0 %v2065, 112
    %v2736 = vpop.permute.xlu0 %2735
    %v2737 = vsel %vm444, %v2734, 0
    %v2739 = vsel %vm444, %v2736, 0
    %2741 = vmatprep.subr.mxu0 0.0
    %2742 = vmatpush1.xpose.msra.mxu0 %v2739
    %2743 = vmatprep.subr.mxu0 0.0
    %2744 = vmatpush1.xpose.msra.mxu0 0.0
    %2745 = vmatprep.subr.mxu0 0.0
    %2746 = vmatpush1.xpose.msra.mxu0 0.0
    %2747 = vmatprep.subr.mxu0 0.0
    %2748 = vmatpush1.xpose.msra.mxu0 0.0
    %2749 = vmatprep.subr.mxu0 0.0
    %2750 = vmatpush1.xpose.msra.mxu0 0.0
    %2751 = vmatprep.subr.mxu0 0.0
    %2752 = vmatpush1.xpose.msra.mxu0 0.0
    %2753 = vmatprep.subr.mxu0 0.0
    %2754 = vmatpush1.xpose.msra.mxu0 0.0
    %2755 = vmatprep.subr.mxu0 0.0
    %2756 = vmatpush1.xpose.msra.mxu0 0.0
    %2757 = vmatprep.subr.mxu0 0.0
    %2758 = vmatpush1.xpose.msra.mxu0 0.0
    %2759 = vmatprep.subr.mxu0 0.0
    %2760 = vmatpush1.xpose.msra.mxu0 0.0
    %2761 = vmatprep.subr.mxu0 0.0
    %2762 = vmatpush1.xpose.msra.mxu0 0.0
    %2763 = vmatprep.subr.mxu0 0.0
    %2764 = vmatpush1.xpose.msra.mxu0 0.0
    %2765 = vmatprep.subr.mxu0 0.0
    %2766 = vmatpush1.xpose.msra.mxu0 0.0
    %2767 = vmatprep.subr.mxu0 0.0
    %2768 = vmatpush1.xpose.msra.mxu0 0.0
    %2769 = vmatprep.subr.mxu0 0.0
    %2770 = vmatpush1.xpose.msra.mxu0 0.0
    %2771 = vmatprep.subr.mxu0 0.0
    %2772 = vmatpush1.xpose.msra.mxu0 0.0
    %2773 = vmatprep.subr.mxu0 0.0
    %2774 = vmatpush1.xpose.msra.mxu0 0.0
    %2775 = vmatprep.subr.mxu0 0.0
    %2776 = vmatpush1.xpose.msra.mxu0 0.0
    %2777 = vmatprep.subr.mxu0 0.0
    %2778 = vmatpush1.xpose.msra.mxu0 0.0
    %2779 = vmatprep.subr.mxu0 0.0
    %2780 = vmatpush1.xpose.msra.mxu0 0.0
    %2781 = vmatprep.subr.mxu0 0.0
    %2782 = vmatpush1.xpose.msra.mxu0 0.0
    %2783 = vmatprep.subr.mxu0 0.0
    %2784 = vmatpush1.xpose.msra.mxu0 0.0
    %2785 = vmatprep.subr.mxu0 0.0
    %2786 = vmatpush1.xpose.msra.mxu0 0.0
    %2787 = vmatprep.subr.mxu0 0.0
    %2788 = vmatpush1.xpose.msra.mxu0 0.0
    %2789 = vmatprep.subr.mxu0 0.0
    %2790 = vmatpush1.xpose.msra.mxu0 0.0
    %2791 = vmatprep.subr.mxu0 0.0
    %2792 = vmatpush1.xpose.msra.mxu0 0.0
    %2793 = vmatprep.subr.mxu0 0.0
    %2794 = vmatpush1.xpose.msra.mxu0 0.0
    %2795 = vmatprep.subr.mxu0 0.0
    %2796 = vmatpush1.xpose.msra.mxu0 0.0
    %2797 = vmatprep.subr.mxu0 0.0
    %2798 = vmatpush1.xpose.msra.mxu0 0.0
    %2799 = vmatprep.subr.mxu0 0.0
    %2800 = vmatpush1.xpose.msra.mxu0 0.0
    %2801 = vmatprep.subr.mxu0 0.0
    %2802 = vmatpush1.xpose.msra.mxu0 0.0
    %2803 = vmatprep.subr.mxu0 0.0
    %2804 = vmatpush1.xpose.msra.mxu0 0.0
    %2805 = vmatprep.mubr.f32.mxu0 0.0
    %2806 = vmatmul.mubr.f32.gmra.mrb[0].mxu0 %v2737
    %v2807 = vpop.f32.mrb[0].mxu0
    %v2808 = vadd.f32 0.0, %v2807
    %v2809 = vpop.f32.mrb[0].mxu0
    %2810 = vdwg.mxu0
    %2811 = vrot.lane.b32.xlu0 %v1976, 112
    %v2812 = vpop.permute.xlu0 %2811
    %2813 = vrot.lane.b32.xlu0 %v2070, 112
    %v2814 = vpop.permute.xlu0 %2813
    %v2815 = vsel %vm444, %v2812, 0
    %v2817 = vsel %vm444, %v2814, 0
    %2819 = vmatprep.subr.mxu0 0.0
    %2820 = vmatpush1.xpose.msra.mxu0 %v2817
    %2821 = vmatprep.subr.mxu0 0.0
    %2822 = vmatpush1.xpose.msra.mxu0 0.0
    %2823 = vmatprep.subr.mxu0 0.0
    %2824 = vmatpush1.xpose.msra.mxu0 0.0
    %2825 = vmatprep.subr.mxu0 0.0
    %2826 = vmatpush1.xpose.msra.mxu0 0.0
    %2827 = vmatprep.subr.mxu0 0.0
    %2828 = vmatpush1.xpose.msra.mxu0 0.0
    %2829 = vmatprep.subr.mxu0 0.0
    %2830 = vmatpush1.xpose.msra.mxu0 0.0
    %2831 = vmatprep.subr.mxu0 0.0
    %2832 = vmatpush1.xpose.msra.mxu0 0.0
    %2833 = vmatprep.subr.mxu0 0.0
    %2834 = vmatpush1.xpose.msra.mxu0 0.0
    %2835 = vmatprep.subr.mxu0 0.0
    %2836 = vmatpush1.xpose.msra.mxu0 0.0
    %2837 = vmatprep.subr.mxu0 0.0
    %2838 = vmatpush1.xpose.msra.mxu0 0.0
    %2839 = vmatprep.subr.mxu0 0.0
    %2840 = vmatpush1.xpose.msra.mxu0 0.0
    %2841 = vmatprep.subr.mxu0 0.0
    %2842 = vmatpush1.xpose.msra.mxu0 0.0
    %2843 = vmatprep.subr.mxu0 0.0
    %2844 = vmatpush1.xpose.msra.mxu0 0.0
    %2845 = vmatprep.subr.mxu0 0.0
    %2846 = vmatpush1.xpose.msra.mxu0 0.0
    %2847 = vmatprep.subr.mxu0 0.0
    %2848 = vmatpush1.xpose.msra.mxu0 0.0
    %2849 = vmatprep.subr.mxu0 0.0
    %2850 = vmatpush1.xpose.msra.mxu0 0.0
    %2851 = vmatprep.subr.mxu0 0.0
    %2852 = vmatpush1.xpose.msra.mxu0 0.0
    %2853 = vmatprep.subr.mxu0 0.0
    %2854 = vmatpush1.xpose.msra.mxu0 0.0
    %2855 = vmatprep.subr.mxu0 0.0
    %2856 = vmatpush1.xpose.msra.mxu0 0.0
    %2857 = vmatprep.subr.mxu0 0.0
    %2858 = vmatpush1.xpose.msra.mxu0 0.0
    %2859 = vmatprep.subr.mxu0 0.0
    %2860 = vmatpush1.xpose.msra.mxu0 0.0
    %2861 = vmatprep.subr.mxu0 0.0
    %2862 = vmatpush1.xpose.msra.mxu0 0.0
    %2863 = vmatprep.subr.mxu0 0.0
    %2864 = vmatpush1.xpose.msra.mxu0 0.0
    %2865 = vmatprep.subr.mxu0 0.0
    %2866 = vmatpush1.xpose.msra.mxu0 0.0
    %2867 = vmatprep.subr.mxu0 0.0
    %2868 = vmatpush1.xpose.msra.mxu0 0.0
    %2869 = vmatprep.subr.mxu0 0.0
    %2870 = vmatpush1.xpose.msra.mxu0 0.0
    %2871 = vmatprep.subr.mxu0 0.0
    %2872 = vmatpush1.xpose.msra.mxu0 0.0
    %2873 = vmatprep.subr.mxu0 0.0
    %2874 = vmatpush1.xpose.msra.mxu0 0.0
    %2875 = vmatprep.subr.mxu0 0.0
    %2876 = vmatpush1.xpose.msra.mxu0 0.0
    %2877 = vmatprep.subr.mxu0 0.0
    %2878 = vmatpush1.xpose.msra.mxu0 0.0
    %2879 = vmatprep.subr.mxu0 0.0
    %2880 = vmatpush1.xpose.msra.mxu0 0.0
    %2881 = vmatprep.subr.mxu0 0.0
    %2882 = vmatpush1.xpose.msra.mxu0 0.0
    %2883 = vmatprep.mubr.f32.mxu0 0.0
    %2884 = vmatmul.mubr.f32.gmra.mrb[0].mxu0 %v2815
    %v2885 = vpop.f32.mrb[0].mxu0
    %v2886 = vadd.f32 0.0, %v2885
    %v2887 = vpop.f32.mrb[0].mxu0
    %2888 = vdwg.mxu0
    %v2889 = vmul.f32 %v2808, 0.35355338
    %v2890 = vmul.f32 %v2886, 0.35355338
    %v2891 = vsel %vm444, %v2889, -inf
    %2892 = vmax.xlane.f32.xlu0 %v2891
    %v2893 = vpop.xlane.xlu0 %2892
    %v2894 = vsel %vm444, %v2890, -inf
    %2895 = vmax.xlane.f32.xlu0 %v2894
    %v2896 = vpop.xlane.xlu0 %2895
    %v2897 = vsub.f32 %v2889, %v2893
    %v2898 = vsub.f32 %v2890, %v2896
    %v2899 = vmul.f32 %v2897, 1.442695
    %v2900 = vpow.pop %v2899
    %v2901 = vmul.f32 %v2898, 1.442695
    %v2902 = vpow.pop %v2901
    %v2903 = vsel %vm444, %v2900, 0.0
    %2904 = vadd.xlane.f32.xlu0 %v2903
    %v2905 = vpop.xlane.xlu0 %2904
    %v2906 = vsel %vm444, %v2902, 0.0
    %2907 = vadd.xlane.f32.xlu0 %v2906
    %v2908 = vpop.xlane.xlu0 %2907
    %v2909 = vrcp.pop %v2905
    %v2910 = vmul.f32 %v2900, %v2909
    %v2911 = vrcp.pop %v2908
    %v2912 = vmul.f32 %v2902, %v2911
    %2913 = vrot.lane.b32.xlu0 %v2065, 80
    %v2914 = vpop.permute.xlu0 %2913
    %v2917 = vsel %vm444, %v2910, 0
    %2919 = vmatprep.subr.mxu0 0.0
    %2920 = vmatpush1.msra.mxu0 %v2914
    %2921 = vmatprep.subr.mxu0 0.0
    %2922 = vmatpush1.msra.mxu0 0.0
    %2923 = vmatprep.subr.mxu0 0.0
    %2924 = vmatpush1.msra.mxu0 0.0
    %2925 = vmatprep.subr.mxu0 0.0
    %2926 = vmatpush1.msra.mxu0 0.0
    %2927 = vmatprep.subr.mxu0 0.0
    %2928 = vmatpush1.msra.mxu0 0.0
    %2929 = vmatprep.subr.mxu0 0.0
    %2930 = vmatpush1.msra.mxu0 0.0
    %2931 = vmatprep.subr.mxu0 0.0
    %2932 = vmatpush1.msra.mxu0 0.0
    %2933 = vmatprep.subr.mxu0 0.0
    %2934 = vmatpush1.msra.mxu0 0.0
    %2935 = vmatprep.subr.mxu0 0.0
    %2936 = vmatpush1.msra.mxu0 0.0
    %2937 = vmatprep.subr.mxu0 0.0
    %2938 = vmatpush1.msra.mxu0 0.0
    %2939 = vmatprep.subr.mxu0 0.0
    %2940 = vmatpush1.msra.mxu0 0.0
    %2941 = vmatprep.subr.mxu0 0.0
    %2942 = vmatpush1.msra.mxu0 0.0
    %2943 = vmatprep.subr.mxu0 0.0
    %2944 = vmatpush1.msra.mxu0 0.0
    %2945 = vmatprep.subr.mxu0 0.0
    %2946 = vmatpush1.msra.mxu0 0.0
    %2947 = vmatprep.subr.mxu0 0.0
    %2948 = vmatpush1.msra.mxu0 0.0
    %2949 = vmatprep.subr.mxu0 0.0
    %2950 = vmatpush1.msra.mxu0 0.0
    %2951 = vmatprep.subr.mxu0 0.0
    %2952 = vmatpush1.msra.mxu0 0.0
    %2953 = vmatprep.subr.mxu0 0.0
    %2954 = vmatpush1.msra.mxu0 0.0
    %2955 = vmatprep.subr.mxu0 0.0
    %2956 = vmatpush1.msra.mxu0 0.0
    %2957 = vmatprep.subr.mxu0 0.0
    %2958 = vmatpush1.msra.mxu0 0.0
    %2959 = vmatprep.subr.mxu0 0.0
    %2960 = vmatpush1.msra.mxu0 0.0
    %2961 = vmatprep.subr.mxu0 0.0
    %2962 = vmatpush1.msra.mxu0 0.0
    %2963 = vmatprep.subr.mxu0 0.0
    %2964 = vmatpush1.msra.mxu0 0.0
    %2965 = vmatprep.subr.mxu0 0.0
    %2966 = vmatpush1.msra.mxu0 0.0
    %2967 = vmatprep.subr.mxu0 0.0
    %2968 = vmatpush1.msra.mxu0 0.0
    %2969 = vmatprep.subr.mxu0 0.0
    %2970 = vmatpush1.msra.mxu0 0.0
    %2971 = vmatprep.subr.mxu0 0.0
    %2972 = vmatpush1.msra.mxu0 0.0
    %2973 = vmatprep.subr.mxu0 0.0
    %2974 = vmatpush1.msra.mxu0 0.0
    %2975 = vmatprep.subr.mxu0 0.0
    %2976 = vmatpush1.msra.mxu0 0.0
    %2977 = vmatprep.subr.mxu0 0.0
    %2978 = vmatpush1.msra.mxu0 0.0
    %2979 = vmatprep.subr.mxu0 0.0
    %2980 = vmatpush1.msra.mxu0 0.0
    %2981 = vmatprep.subr.mxu0 0.0
    %2982 = vmatpush1.msra.mxu0 0.0
    %2983 = vmatprep.mubr.f32.mxu0 0.0
    %2984 = vmatmul.mubr.f32.gmra.mrb[0].mxu0 %v2917
    %v2985 = vpop.f32.mrb[0].mxu0
    %v2986 = vadd.f32 0.0, %v2985
    %v2987 = vpop.f32.mrb[0].mxu0
    %2988 = vdwg.mxu0
    %2989 = vrot.lane.b32.xlu0 %v2070, 80
    %v2990 = vpop.permute.xlu0 %2989
    %v2993 = vsel %vm444, %v2912, 0
    %2995 = vmatprep.subr.mxu0 0.0
    %2996 = vmatpush1.msra.mxu0 %v2990
    %2997 = vmatprep.subr.mxu0 0.0
    %2998 = vmatpush1.msra.mxu0 0.0
    %2999 = vmatprep.subr.mxu0 0.0
    %3000 = vmatpush1.msra.mxu0 0.0
    %3001 = vmatprep.subr.mxu0 0.0
    %3002 = vmatpush1.msra.mxu0 0.0
    %3003 = vmatprep.subr.mxu0 0.0
    %3004 = vmatpush1.msra.mxu0 0.0
    %3005 = vmatprep.subr.mxu0 0.0
    %3006 = vmatpush1.msra.mxu0 0.0
    %3007 = vmatprep.subr.mxu0 0.0
    %3008 = vmatpush1.msra.mxu0 0.0
    %3009 = vmatprep.subr.mxu0 0.0
    %3010 = vmatpush1.msra.mxu0 0.0
    %3011 = vmatprep.subr.mxu0 0.0
    %3012 = vmatpush1.msra.mxu0 0.0
    %3013 = vmatprep.subr.mxu0 0.0
    %3014 = vmatpush1.msra.mxu0 0.0
    %3015 = vmatprep.subr.mxu0 0.0
    %3016 = vmatpush1.msra.mxu0 0.0
    %3017 = vmatprep.subr.mxu0 0.0
    %3018 = vmatpush1.msra.mxu0 0.0
    %3019 = vmatprep.subr.mxu0 0.0
    %3020 = vmatpush1.msra.mxu0 0.0
    %3021 = vmatprep.subr.mxu0 0.0
    %3022 = vmatpush1.msra.mxu0 0.0
    %3023 = vmatprep.subr.mxu0 0.0
    %3024 = vmatpush1.msra.mxu0 0.0
    %3025 = vmatprep.subr.mxu0 0.0
    %3026 = vmatpush1.msra.mxu0 0.0
    %3027 = vmatprep.subr.mxu0 0.0
    %3028 = vmatpush1.msra.mxu0 0.0
    %3029 = vmatprep.subr.mxu0 0.0
    %3030 = vmatpush1.msra.mxu0 0.0
    %3031 = vmatprep.subr.mxu0 0.0
    %3032 = vmatpush1.msra.mxu0 0.0
    %3033 = vmatprep.subr.mxu0 0.0
    %3034 = vmatpush1.msra.mxu0 0.0
    %3035 = vmatprep.subr.mxu0 0.0
    %3036 = vmatpush1.msra.mxu0 0.0
    %3037 = vmatprep.subr.mxu0 0.0
    %3038 = vmatpush1.msra.mxu0 0.0
    %3039 = vmatprep.subr.mxu0 0.0
    %3040 = vmatpush1.msra.mxu0 0.0
    %3041 = vmatprep.subr.mxu0 0.0
    %3042 = vmatpush1.msra.mxu0 0.0
    %3043 = vmatprep.subr.mxu0 0.0
    %3044 = vmatpush1.msra.mxu0 0.0
    %3045 = vmatprep.subr.mxu0 0.0
    %3046 = vmatpush1.msra.mxu0 0.0
    %3047 = vmatprep.subr.mxu0 0.0
    %3048 = vmatpush1.msra.mxu0 0.0
    %3049 = vmatprep.subr.mxu0 0.0
    %3050 = vmatpush1.msra.mxu0 0.0
    %3051 = vmatprep.subr.mxu0 0.0
    %3052 = vmatpush1.msra.mxu0 0.0
    %3053 = vmatprep.subr.mxu0 0.0
    %3054 = vmatpush1.msra.mxu0 0.0
    %3055 = vmatprep.subr.mxu0 0.0
    %3056 = vmatpush1.msra.mxu0 0.0
    %3057 = vmatprep.subr.mxu0 0.0
    %3058 = vmatpush1.msra.mxu0 0.0
    %3059 = vmatprep.mubr.f32.mxu0 0.0
    %3060 = vmatmul.mubr.f32.gmra.mrb[0].mxu0 %v2993
    %v3061 = vpop.f32.mrb[0].mxu0
    %v3062 = vadd.f32 0.0, %v3061
    %v3063 = vpop.f32.mrb[0].mxu0
    %3064 = vdwg.mxu0
    %3065 = vrot.lane.b32.xlu0 %v1971, 104
    %v3066 = vpop.permute.xlu0 %3065
    %3067 = vrot.lane.b32.xlu0 %v2065, 104
    %v3068 = vpop.permute.xlu0 %3067
    %v3069 = vsel %vm444, %v3066, 0
    %v3071 = vsel %vm444, %v3068, 0
    %3073 = vmatprep.subr.mxu0 0.0
    %3074 = vmatpush1.xpose.msra.mxu0 %v3071
    %3075 = vmatprep.subr.mxu0 0.0
    %3076 = vmatpush1.xpose.msra.mxu0 0.0
    %3077 = vmatprep.subr.mxu0 0.0
    %3078 = vmatpush1.xpose.msra.mxu0 0.0
    %3079 = vmatprep.subr.mxu0 0.0
    %3080 = vmatpush1.xpose.msra.mxu0 0.0
    %3081 = vmatprep.subr.mxu0 0.0
    %3082 = vmatpush1.xpose.msra.mxu0 0.0
    %3083 = vmatprep.subr.mxu0 0.0
    %3084 = vmatpush1.xpose.msra.mxu0 0.0
    %3085 = vmatprep.subr.mxu0 0.0
    %3086 = vmatpush1.xpose.msra.mxu0 0.0
    %3087 = vmatprep.subr.mxu0 0.0
    %3088 = vmatpush1.xpose.msra.mxu0 0.0
    %3089 = vmatprep.subr.mxu0 0.0
    %3090 = vmatpush1.xpose.msra.mxu0 0.0
    %3091 = vmatprep.subr.mxu0 0.0
    %3092 = vmatpush1.xpose.msra.mxu0 0.0
    %3093 = vmatprep.subr.mxu0 0.0
    %3094 = vmatpush1.xpose.msra.mxu0 0.0
    %3095 = vmatprep.subr.mxu0 0.0
    %3096 = vmatpush1.xpose.msra.mxu0 0.0
    %3097 = vmatprep.subr.mxu0 0.0
    %3098 = vmatpush1.xpose.msra.mxu0 0.0
    %3099 = vmatprep.subr.mxu0 0.0
    %3100 = vmatpush1.xpose.msra.mxu0 0.0
    %3101 = vmatprep.subr.mxu0 0.0
    %3102 = vmatpush1.xpose.msra.mxu0 0.0
    %3103 = vmatprep.subr.mxu0 0.0
    %3104 = vmatpush1.xpose.msra.mxu0 0.0
    %3105 = vmatprep.subr.mxu0 0.0
    %3106 = vmatpush1.xpose.msra.mxu0 0.0
    %3107 = vmatprep.subr.mxu0 0.0
    %3108 = vmatpush1.xpose.msra.mxu0 0.0
    %3109 = vmatprep.subr.mxu0 0.0
    %3110 = vmatpush1.xpose.msra.mxu0 0.0
    %3111 = vmatprep.subr.mxu0 0.0
    %3112 = vmatpush1.xpose.msra.mxu0 0.0
    %3113 = vmatprep.subr.mxu0 0.0
    %3114 = vmatpush1.xpose.msra.mxu0 0.0
    %3115 = vmatprep.subr.mxu0 0.0
    %3116 = vmatpush1.xpose.msra.mxu0 0.0
    %3117 = vmatprep.subr.mxu0 0.0
    %3118 = vmatpush1.xpose.msra.mxu0 0.0
    %3119 = vmatprep.subr.mxu0 0.0
    %3120 = vmatpush1.xpose.msra.mxu0 0.0
    %3121 = vmatprep.subr.mxu0 0.0
    %3122 = vmatpush1.xpose.msra.mxu0 0.0
    %3123 = vmatprep.subr.mxu0 0.0
    %3124 = vmatpush1.xpose.msra.mxu0 0.0
    %3125 = vmatprep.subr.mxu0 0.0
    %3126 = vmatpush1.xpose.msra.mxu0 0.0
    %3127 = vmatprep.subr.mxu0 0.0
    %3128 = vmatpush1.xpose.msra.mxu0 0.0
    %3129 = vmatprep.subr.mxu0 0.0
    %3130 = vmatpush1.xpose.msra.mxu0 0.0
    %3131 = vmatprep.subr.mxu0 0.0
    %3132 = vmatpush1.xpose.msra.mxu0 0.0
    %3133 = vmatprep.subr.mxu0 0.0
    %3134 = vmatpush1.xpose.msra.mxu0 0.0
    %3135 = vmatprep.subr.mxu0 0.0
    %3136 = vmatpush1.xpose.msra.mxu0 0.0
    %3137 = vmatprep.mubr.f32.mxu0 0.0
    %3138 = vmatmul.mubr.f32.gmra.mrb[0].mxu0 %v3069
    %v3139 = vpop.f32.mrb[0].mxu0
    %v3140 = vadd.f32 0.0, %v3139
    %v3141 = vpop.f32.mrb[0].mxu0
    %3142 = vdwg.mxu0
    %3143 = vrot.lane.b32.xlu0 %v1976, 104
    %v3144 = vpop.permute.xlu0 %3143
    %3145 = vrot.lane.b32.xlu0 %v2070, 104
    %v3146 = vpop.permute.xlu0 %3145
    %v3147 = vsel %vm444, %v3144, 0
    %v3149 = vsel %vm444, %v3146, 0
    %3151 = vmatprep.subr.mxu0 0.0
    %3152 = vmatpush1.xpose.msra.mxu0 %v3149
    %3153 = vmatprep.subr.mxu0 0.0
    %3154 = vmatpush1.xpose.msra.mxu0 0.0
    %3155 = vmatprep.subr.mxu0 0.0
    %3156 = vmatpush1.xpose.msra.mxu0 0.0
    %3157 = vmatprep.subr.mxu0 0.0
    %3158 = vmatpush1.xpose.msra.mxu0 0.0
    %3159 = vmatprep.subr.mxu0 0.0
    %3160 = vmatpush1.xpose.msra.mxu0 0.0
    %3161 = vmatprep.subr.mxu0 0.0
    %3162 = vmatpush1.xpose.msra.mxu0 0.0
    %3163 = vmatprep.subr.mxu0 0.0
    %3164 = vmatpush1.xpose.msra.mxu0 0.0
    %3165 = vmatprep.subr.mxu0 0.0
    %3166 = vmatpush1.xpose.msra.mxu0 0.0
    %3167 = vmatprep.subr.mxu0 0.0
    %3168 = vmatpush1.xpose.msra.mxu0 0.0
    %3169 = vmatprep.subr.mxu0 0.0
    %3170 = vmatpush1.xpose.msra.mxu0 0.0
    %3171 = vmatprep.subr.mxu0 0.0
    %3172 = vmatpush1.xpose.msra.mxu0 0.0
    %3173 = vmatprep.subr.mxu0 0.0
    %3174 = vmatpush1.xpose.msra.mxu0 0.0
    %3175 = vmatprep.subr.mxu0 0.0
    %3176 = vmatpush1.xpose.msra.mxu0 0.0
    %3177 = vmatprep.subr.mxu0 0.0
    %3178 = vmatpush1.xpose.msra.mxu0 0.0
    %3179 = vmatprep.subr.mxu0 0.0
    %3180 = vmatpush1.xpose.msra.mxu0 0.0
    %3181 = vmatprep.subr.mxu0 0.0
    %3182 = vmatpush1.xpose.msra.mxu0 0.0
    %3183 = vmatprep.subr.mxu0 0.0
    %3184 = vmatpush1.xpose.msra.mxu0 0.0
    %3185 = vmatprep.subr.mxu0 0.0
    %3186 = vmatpush1.xpose.msra.mxu0 0.0
    %3187 = vmatprep.subr.mxu0 0.0
    %3188 = vmatpush1.xpose.msra.mxu0 0.0
    %3189 = vmatprep.subr.mxu0 0.0
    %3190 = vmatpush1.xpose.msra.mxu0 0.0
    %3191 = vmatprep.subr.mxu0 0.0
    %3192 = vmatpush1.xpose.msra.mxu0 0.0
    %3193 = vmatprep.subr.mxu0 0.0
    %3194 = vmatpush1.xpose.msra.mxu0 0.0
    %3195 = vmatprep.subr.mxu0 0.0
    %3196 = vmatpush1.xpose.msra.mxu0 0.0
    %3197 = vmatprep.subr.mxu0 0.0
    %3198 = vmatpush1.xpose.msra.mxu0 0.0
    %3199 = vmatprep.subr.mxu0 0.0
    %3200 = vmatpush1.xpose.msra.mxu0 0.0
    %3201 = vmatprep.subr.mxu0 0.0
    %3202 = vmatpush1.xpose.msra.mxu0 0.0
    %3203 = vmatprep.subr.mxu0 0.0
    %3204 = vmatpush1.xpose.msra.mxu0 0.0
    %3205 = vmatprep.subr.mxu0 0.0
    %3206 = vmatpush1.xpose.msra.mxu0 0.0
    %3207 = vmatprep.subr.mxu0 0.0
    %3208 = vmatpush1.xpose.msra.mxu0 0.0
    %3209 = vmatprep.subr.mxu0 0.0
    %3210 = vmatpush1.xpose.msra.mxu0 0.0
    %3211 = vmatprep.subr.mxu0 0.0
    %3212 = vmatpush1.xpose.msra.mxu0 0.0
    %3213 = vmatprep.subr.mxu0 0.0
    %3214 = vmatpush1.xpose.msra.mxu0 0.0
    %3215 = vmatprep.mubr.f32.mxu0 0.0
    %3216 = vmatmul.mubr.f32.gmra.mrb[0].mxu0 %v3147
    %v3217 = vpop.f32.mrb[0].mxu0
    %v3218 = vadd.f32 0.0, %v3217
    %v3219 = vpop.f32.mrb[0].mxu0
    %3220 = vdwg.mxu0
    %v3221 = vmul.f32 %v3140, 0.35355338
    %v3222 = vmul.f32 %v3218, 0.35355338
    %v3223 = vsel %vm444, %v3221, -inf
    %3224 = vmax.xlane.f32.xlu0 %v3223
    %v3225 = vpop.xlane.xlu0 %3224
    %v3226 = vsel %vm444, %v3222, -inf
    %3227 = vmax.xlane.f32.xlu0 %v3226
    %v3228 = vpop.xlane.xlu0 %3227
    %v3229 = vsub.f32 %v3221, %v3225
    %v3230 = vsub.f32 %v3222, %v3228
    %v3231 = vmul.f32 %v3229, 1.442695
    %v3232 = vpow.pop %v3231
    %v3233 = vmul.f32 %v3230, 1.442695
    %v3234 = vpow.pop %v3233
    %v3235 = vsel %vm444, %v3232, 0.0
    %3236 = vadd.xlane.f32.xlu0 %v3235
    %v3237 = vpop.xlane.xlu0 %3236
    %v3238 = vsel %vm444, %v3234, 0.0
    %3239 = vadd.xlane.f32.xlu0 %v3238
    %v3240 = vpop.xlane.xlu0 %3239
    %v3241 = vrcp.pop %v3237
    %v3242 = vmul.f32 %v3232, %v3241
    %v3243 = vrcp.pop %v3240
    %v3244 = vmul.f32 %v3234, %v3243
    %3245 = vrot.lane.b32.xlu0 %v2065, 72
    %v3246 = vpop.permute.xlu0 %3245
    %v3249 = vsel %vm444, %v3242, 0
    %3251 = vmatprep.subr.mxu0 0.0
    %3252 = vmatpush1.msra.mxu0 %v3246
    %3253 = vmatprep.subr.mxu0 0.0
    %3254 = vmatpush1.msra.mxu0 0.0
    %3255 = vmatprep.subr.mxu0 0.0
    %3256 = vmatpush1.msra.mxu0 0.0
    %3257 = vmatprep.subr.mxu0 0.0
    %3258 = vmatpush1.msra.mxu0 0.0
    %3259 = vmatprep.subr.mxu0 0.0
    %3260 = vmatpush1.msra.mxu0 0.0
    %3261 = vmatprep.subr.mxu0 0.0
    %3262 = vmatpush1.msra.mxu0 0.0
    %3263 = vmatprep.subr.mxu0 0.0
    %3264 = vmatpush1.msra.mxu0 0.0
    %3265 = vmatprep.subr.mxu0 0.0
    %3266 = vmatpush1.msra.mxu0 0.0
    %3267 = vmatprep.subr.mxu0 0.0
    %3268 = vmatpush1.msra.mxu0 0.0
    %3269 = vmatprep.subr.mxu0 0.0
    %3270 = vmatpush1.msra.mxu0 0.0
    %3271 = vmatprep.subr.mxu0 0.0
    %3272 = vmatpush1.msra.mxu0 0.0
    %3273 = vmatprep.subr.mxu0 0.0
    %3274 = vmatpush1.msra.mxu0 0.0
    %3275 = vmatprep.subr.mxu0 0.0
    %3276 = vmatpush1.msra.mxu0 0.0
    %3277 = vmatprep.subr.mxu0 0.0
    %3278 = vmatpush1.msra.mxu0 0.0
    %3279 = vmatprep.subr.mxu0 0.0
    %3280 = vmatpush1.msra.mxu0 0.0
    %3281 = vmatprep.subr.mxu0 0.0
    %3282 = vmatpush1.msra.mxu0 0.0
    %3283 = vmatprep.subr.mxu0 0.0
    %3284 = vmatpush1.msra.mxu0 0.0
    %3285 = vmatprep.subr.mxu0 0.0
    %3286 = vmatpush1.msra.mxu0 0.0
    %3287 = vmatprep.subr.mxu0 0.0
    %3288 = vmatpush1.msra.mxu0 0.0
    %3289 = vmatprep.subr.mxu0 0.0
    %3290 = vmatpush1.msra.mxu0 0.0
    %3291 = vmatprep.subr.mxu0 0.0
    %3292 = vmatpush1.msra.mxu0 0.0
    %3293 = vmatprep.subr.mxu0 0.0
    %3294 = vmatpush1.msra.mxu0 0.0
    %3295 = vmatprep.subr.mxu0 0.0
    %3296 = vmatpush1.msra.mxu0 0.0
    %3297 = vmatprep.subr.mxu0 0.0
    %3298 = vmatpush1.msra.mxu0 0.0
    %3299 = vmatprep.subr.mxu0 0.0
    %3300 = vmatpush1.msra.mxu0 0.0
    %3301 = vmatprep.subr.mxu0 0.0
    %3302 = vmatpush1.msra.mxu0 0.0
    %3303 = vmatprep.subr.mxu0 0.0
    %3304 = vmatpush1.msra.mxu0 0.0
    %3305 = vmatprep.subr.mxu0 0.0
    %3306 = vmatpush1.msra.mxu0 0.0
    %3307 = vmatprep.subr.mxu0 0.0
    %3308 = vmatpush1.msra.mxu0 0.0
    %3309 = vmatprep.subr.mxu0 0.0
    %3310 = vmatpush1.msra.mxu0 0.0
    %3311 = vmatprep.subr.mxu0 0.0
    %3312 = vmatpush1.msra.mxu0 0.0
    %3313 = vmatprep.subr.mxu0 0.0
    %3314 = vmatpush1.msra.mxu0 0.0
    %3315 = vmatprep.mubr.f32.mxu0 0.0
    %3316 = vmatmul.mubr.f32.gmra.mrb[0].mxu0 %v3249
    %v3317 = vpop.f32.mrb[0].mxu0
    %v3318 = vadd.f32 0.0, %v3317
    %v3319 = vpop.f32.mrb[0].mxu0
    %3320 = vdwg.mxu0
    %3321 = vrot.lane.b32.xlu0 %v2070, 72
    %v3322 = vpop.permute.xlu0 %3321
    %v3325 = vsel %vm444, %v3244, 0
    %3327 = vmatprep.subr.mxu0 0.0
    %3328 = vmatpush1.msra.mxu0 %v3322
    %3329 = vmatprep.subr.mxu0 0.0
    %3330 = vmatpush1.msra.mxu0 0.0
    %3331 = vmatprep.subr.mxu0 0.0
    %3332 = vmatpush1.msra.mxu0 0.0
    %3333 = vmatprep.subr.mxu0 0.0
    %3334 = vmatpush1.msra.mxu0 0.0
    %3335 = vmatprep.subr.mxu0 0.0
    %3336 = vmatpush1.msra.mxu0 0.0
    %3337 = vmatprep.subr.mxu0 0.0
    %3338 = vmatpush1.msra.mxu0 0.0
    %3339 = vmatprep.subr.mxu0 0.0
    %3340 = vmatpush1.msra.mxu0 0.0
    %3341 = vmatprep.subr.mxu0 0.0
    %3342 = vmatpush1.msra.mxu0 0.0
    %3343 = vmatprep.subr.mxu0 0.0
    %3344 = vmatpush1.msra.mxu0 0.0
    %3345 = vmatprep.subr.mxu0 0.0
    %3346 = vmatpush1.msra.mxu0 0.0
    %3347 = vmatprep.subr.mxu0 0.0
    %3348 = vmatpush1.msra.mxu0 0.0
    %3349 = vmatprep.subr.mxu0 0.0
    %3350 = vmatpush1.msra.mxu0 0.0
    %3351 = vmatprep.subr.mxu0 0.0
    %3352 = vmatpush1.msra.mxu0 0.0
    %3353 = vmatprep.subr.mxu0 0.0
    %3354 = vmatpush1.msra.mxu0 0.0
    %3355 = vmatprep.subr.mxu0 0.0
    %3356 = vmatpush1.msra.mxu0 0.0
    %3357 = vmatprep.subr.mxu0 0.0
    %3358 = vmatpush1.msra.mxu0 0.0
    %3359 = vmatprep.subr.mxu0 0.0
    %3360 = vmatpush1.msra.mxu0 0.0
    %3361 = vmatprep.subr.mxu0 0.0
    %3362 = vmatpush1.msra.mxu0 0.0
    %3363 = vmatprep.subr.mxu0 0.0
    %3364 = vmatpush1.msra.mxu0 0.0
    %3365 = vmatprep.subr.mxu0 0.0
    %3366 = vmatpush1.msra.mxu0 0.0
    %3367 = vmatprep.subr.mxu0 0.0
    %3368 = vmatpush1.msra.mxu0 0.0
    %3369 = vmatprep.subr.mxu0 0.0
    %3370 = vmatpush1.msra.mxu0 0.0
    %3371 = vmatprep.subr.mxu0 0.0
    %3372 = vmatpush1.msra.mxu0 0.0
    %3373 = vmatprep.subr.mxu0 0.0
    %3374 = vmatpush1.msra.mxu0 0.0
    %3375 = vmatprep.subr.mxu0 0.0
    %3376 = vmatpush1.msra.mxu0 0.0
    %3377 = vmatprep.subr.mxu0 0.0
    %3378 = vmatpush1.msra.mxu0 0.0
    %3379 = vmatprep.subr.mxu0 0.0
    %3380 = vmatpush1.msra.mxu0 0.0
    %3381 = vmatprep.subr.mxu0 0.0
    %3382 = vmatpush1.msra.mxu0 0.0
    %3383 = vmatprep.subr.mxu0 0.0
    %3384 = vmatpush1.msra.mxu0 0.0
    %3385 = vmatprep.subr.mxu0 0.0
    %3386 = vmatpush1.msra.mxu0 0.0
    %3387 = vmatprep.subr.mxu0 0.0
    %3388 = vmatpush1.msra.mxu0 0.0
    %3389 = vmatprep.subr.mxu0 0.0
    %3390 = vmatpush1.msra.mxu0 0.0
    %3391 = vmatprep.mubr.f32.mxu0 0.0
    %3392 = vmatmul.mubr.f32.gmra.mrb[0].mxu0 %v3325
    %v3393 = vpop.f32.mrb[0].mxu0
    %v3394 = vadd.f32 0.0, %v3393
    %v3395 = vpop.f32.mrb[0].mxu0
    %3396 = vdwg.mxu0
    %3399 = vrot.lane.b32.xlu0 %v2654, 8
    %v3400 = vpop.permute.xlu0 %3399
    %3401 = vrot.lane.b32.xlu0 %v2730, 8
    %v3402 = vpop.permute.xlu0 %3401
    %3407 = vrot.lane.b32.xlu0 %v2986, 16
    %v3408 = vpop.permute.xlu0 %3407
    %3409 = vrot.lane.b32.xlu0 %v3062, 16
    %v3410 = vpop.permute.xlu0 %3409
    %3415 = vrot.lane.b32.xlu0 %v3318, 24
    %v3416 = vpop.permute.xlu0 %3415
    %3417 = vrot.lane.b32.xlu0 %v3394, 24
    %v3418 = vpop.permute.xlu0 %3417
    %v3421 = vsel %vm444, %v2322, %v3400
    %v3422 = vsel %vm444, %v2398, %v3402
    %v3423 = vsel %vm1795, %v3421, %v3408
    %v3424 = vsel %vm1795, %v3422, %v3410
    %v3425 = vsel %vm1798, %v3423, %v3416
    %v3426 = vsel %vm1798, %v3424, %v3418
    %v3428 = vlaneseq
    %v3429 = vshrl.u32 %v3428, 7
    %v3430 = vsub.s32 0, %v3429
    %v3431 = vrot.slane %v1897, %v3430
    %v3434 = vsel %vm262, %v3425, 0
    %v3437 = vsel %vm262, %v3426, 0
    %3439 = vmatprep.subr.mxu0 0.0
    %3440 = vmatpush1.msra.mxu0 %v1893
    %3441 = vmatprep.subr.mxu0 0.0
    %3442 = vmatpush1.msra.mxu0 %v1894
    %3443 = vmatprep.subr.mxu0 0.0
    %3444 = vmatpush1.msra.mxu0 %v1895
    %3445 = vmatprep.subr.mxu0 0.0
    %3446 = vmatpush1.msra.mxu0 %v1896
    %3447 = vmatprep.subr.mxu0 0.0
    %3448 = vmatpush1.msra.mxu0 0.0
    %3449 = vmatprep.subr.mxu0 0.0
    %3450 = vmatpush1.msra.mxu0 0.0
    %3451 = vmatprep.subr.mxu0 0.0
    %3452 = vmatpush1.msra.mxu0 0.0
    %3453 = vmatprep.subr.mxu0 0.0
    %3454 = vmatpush1.msra.mxu0 0.0
    %3455 = vmatprep.subr.mxu0 0.0
    %3456 = vmatpush1.msra.mxu0 0.0
    %3457 = vmatprep.subr.mxu0 0.0
    %3458 = vmatpush1.msra.mxu0 0.0
    %3459 = vmatprep.subr.mxu0 0.0
    %3460 = vmatpush1.msra.mxu0 0.0
    %3461 = vmatprep.subr.mxu0 0.0
    %3462 = vmatpush1.msra.mxu0 0.0
    %3463 = vmatprep.subr.mxu0 0.0
    %3464 = vmatpush1.msra.mxu0 0.0
    %3465 = vmatprep.subr.mxu0 0.0
    %3466 = vmatpush1.msra.mxu0 0.0
    %3467 = vmatprep.subr.mxu0 0.0
    %3468 = vmatpush1.msra.mxu0 0.0
    %3469 = vmatprep.subr.mxu0 0.0
    %3470 = vmatpush1.msra.mxu0 0.0
    %3471 = vmatprep.subr.mxu0 0.0
    %3472 = vmatpush1.msra.mxu0 0.0
    %3473 = vmatprep.subr.mxu0 0.0
    %3474 = vmatpush1.msra.mxu0 0.0
    %3475 = vmatprep.subr.mxu0 0.0
    %3476 = vmatpush1.msra.mxu0 0.0
    %3477 = vmatprep.subr.mxu0 0.0
    %3478 = vmatpush1.msra.mxu0 0.0
    %3479 = vmatprep.subr.mxu0 0.0
    %3480 = vmatpush1.msra.mxu0 0.0
    %3481 = vmatprep.subr.mxu0 0.0
    %3482 = vmatpush1.msra.mxu0 0.0
    %3483 = vmatprep.subr.mxu0 0.0
    %3484 = vmatpush1.msra.mxu0 0.0
    %3485 = vmatprep.subr.mxu0 0.0
    %3486 = vmatpush1.msra.mxu0 0.0
    %3487 = vmatprep.subr.mxu0 0.0
    %3488 = vmatpush1.msra.mxu0 0.0
    %3489 = vmatprep.subr.mxu0 0.0
    %3490 = vmatpush1.msra.mxu0 0.0
    %3491 = vmatprep.subr.mxu0 0.0
    %3492 = vmatpush1.msra.mxu0 0.0
    %3493 = vmatprep.subr.mxu0 0.0
    %3494 = vmatpush1.msra.mxu0 0.0
    %3495 = vmatprep.subr.mxu0 0.0
    %3496 = vmatpush1.msra.mxu0 0.0
    %3497 = vmatprep.subr.mxu0 0.0
    %3498 = vmatpush1.msra.mxu0 0.0
    %3499 = vmatprep.subr.mxu0 0.0
    %3500 = vmatpush1.msra.mxu0 0.0
    %3501 = vmatprep.subr.mxu0 0.0
    %3502 = vmatpush1.msra.mxu0 0.0
    %3503 = vmatprep.mubr.f32.mxu0 0.0
    %3504 = vmatmul.mubr.f32.gmra.mrb[0].mxu0 %v3434
    %v3505 = vpop.f32.mrb[0].mxu0
    %v3506 = vadd.f32 %v3431, %v3505
    %v3507 = vpop.f32.mrb[0].mxu0
    %3508 = vmatprep.mubr.f32.mxu0 0.0
    %3509 = vmatmul.mubr.f32.gmra.mrb[0].mxu0 %v3437
    %v3510 = vpop.f32.mrb[0].mxu0
    %v3511 = vadd.f32 %v3431, %v3510
    %v3512 = vpop.f32.mrb[0].mxu0
    %3513 = vdwg.mxu0
    %3516 = vrot.lane.b32.xlu0 %v3506, 32
    %v3517 = vpop.permute.xlu0 %3516
    %3518 = vrot.lane.b32.xlu0 %v3511, 32
    %v3519 = vpop.permute.xlu0 %3518
    %v3522 = vsel %vm262, %v1880, %v3517
    %v3523 = vsel %vm262, %v1885, %v3519
    %v3524 = vld [vmem:[%s2] sm:$0xff]
    %v3525 = vld [vmem:[%s2 + $0x8] sm:$0xff]
    %v3527 = vsel %vm1795, %v3524, 0
    %v3530 = vsel %vm1795, %v3525, 0
    %3532 = vmatprep.subr.mxu0 0.0
    %3533 = vmatpush1.msra.mxu0 %v3522
    %3534 = vmatprep.subr.mxu0 0.0
    %3535 = vmatpush1.msra.mxu0 %v3523
    %3536 = vmatprep.subr.mxu0 0.0
    %3537 = vmatpush1.msra.mxu0 0.0
    %3538 = vmatprep.subr.mxu0 0.0
    %3539 = vmatpush1.msra.mxu0 0.0
    %3540 = vmatprep.subr.mxu0 0.0
    %3541 = vmatpush1.msra.mxu0 0.0
    %3542 = vmatprep.subr.mxu0 0.0
    %3543 = vmatpush1.msra.mxu0 0.0
    %3544 = vmatprep.subr.mxu0 0.0
    %3545 = vmatpush1.msra.mxu0 0.0
    %3546 = vmatprep.subr.mxu0 0.0
    %3547 = vmatpush1.msra.mxu0 0.0
    %3548 = vmatprep.subr.mxu0 0.0
    %3549 = vmatpush1.msra.mxu0 0.0
    %3550 = vmatprep.subr.mxu0 0.0
    %3551 = vmatpush1.msra.mxu0 0.0
    %3552 = vmatprep.subr.mxu0 0.0
    %3553 = vmatpush1.msra.mxu0 0.0
    %3554 = vmatprep.subr.mxu0 0.0
    %3555 = vmatpush1.msra.mxu0 0.0
    %3556 = vmatprep.subr.mxu0 0.0
    %3557 = vmatpush1.msra.mxu0 0.0
    %3558 = vmatprep.subr.mxu0 0.0
    %3559 = vmatpush1.msra.mxu0 0.0
    %3560 = vmatprep.subr.mxu0 0.0
    %3561 = vmatpush1.msra.mxu0 0.0
    %3562 = vmatprep.subr.mxu0 0.0
    %3563 = vmatpush1.msra.mxu0 0.0
    %3564 = vmatprep.subr.mxu0 0.0
    %3565 = vmatpush1.msra.mxu0 0.0
    %3566 = vmatprep.subr.mxu0 0.0
    %3567 = vmatpush1.msra.mxu0 0.0
    %3568 = vmatprep.subr.mxu0 0.0
    %3569 = vmatpush1.msra.mxu0 0.0
    %3570 = vmatprep.subr.mxu0 0.0
    %3571 = vmatpush1.msra.mxu0 0.0
    %3572 = vmatprep.subr.mxu0 0.0
    %3573 = vmatpush1.msra.mxu0 0.0
    %3574 = vmatprep.subr.mxu0 0.0
    %3575 = vmatpush1.msra.mxu0 0.0
    %3576 = vmatprep.subr.mxu0 0.0
    %3577 = vmatpush1.msra.mxu0 0.0
    %3578 = vmatprep.subr.mxu0 0.0
    %3579 = vmatpush1.msra.mxu0 0.0
    %3580 = vmatprep.subr.mxu0 0.0
    %3581 = vmatpush1.msra.mxu0 0.0
    %3582 = vmatprep.subr.mxu0 0.0
    %3583 = vmatpush1.msra.mxu0 0.0
    %3584 = vmatprep.subr.mxu0 0.0
    %3585 = vmatpush1.msra.mxu0 0.0
    %3586 = vmatprep.subr.mxu0 0.0
    %3587 = vmatpush1.msra.mxu0 0.0
    %3588 = vmatprep.subr.mxu0 0.0
    %3589 = vmatpush1.msra.mxu0 0.0
    %3590 = vmatprep.subr.mxu0 0.0
    %3591 = vmatpush1.msra.mxu0 0.0
    %3592 = vmatprep.subr.mxu0 0.0
    %3593 = vmatpush1.msra.mxu0 0.0
    %3594 = vmatprep.subr.mxu0 0.0
    %3595 = vmatpush1.msra.mxu0 0.0
    %3596 = vmatprep.mubr.f32.mxu0 0.0
    %3597 = vmatmul.mubr.f32.gmra.mrb[0].mxu0 %v3527
    %v3598 = vpop.f32.mrb[0].mxu0
    %v3599 = vadd.f32 0.0, %v3598
    %v3600 = vpop.f32.mrb[0].mxu0
    %3601 = vmatprep.mubr.f32.mxu0 0.0
    %3602 = vmatmul.mubr.f32.gmra.mrb[0].mxu0 %v3530
    %v3603 = vpop.f32.mrb[0].mxu0
    %v3604 = vadd.f32 0.0, %v3603
    %v3605 = vpop.f32.mrb[0].mxu0
    %3606 = vdwg.mxu0
    %v3607 = vld [vmem:[#allocation2] sm:$0xff]
    %v3608 = vld [vmem:[#allocation2 + $0x8] sm:$0xff]
    %v3609 = vld [vmem:[#allocation2 + $0x10] sm:$0xff]
    %v3610 = vld [vmem:[#allocation2 + $0x18] sm:$0xff]
    %v3611 = vld [vmem:[#allocation2 + $0x20] sm:$0xff]
    %v3612 = vld [vmem:[#allocation2 + $0x28] sm:$0xff]
    %v3613 = vld [vmem:[#allocation2 + $0x30] sm:$0xff]
    %v3614 = vld [vmem:[#allocation2 + $0x38] sm:$0xff]
    %v3615 = vld [vmem:[#allocation2 + $0x40] sm:$0xff]
    %v3616 = vld [vmem:[#allocation2 + $0x48] sm:$0xff]
    %v3617 = vld [vmem:[#allocation2 + $0x50] sm:$0xff]
    %v3618 = vld [vmem:[#allocation2 + $0x58] sm:$0xff]
    %v3619 = vld [vmem:[#allocation2 + $0x60] sm:$0xff]
    %v3620 = vld [vmem:[#allocation2 + $0x68] sm:$0xff]
    %v3621 = vld [vmem:[#allocation2 + $0x70] sm:$0xff]
    %v3622 = vld [vmem:[#allocation2 + $0x78] sm:$0xff]
    %v3623 = vld [vmem:[#allocation2 + $0x80] sm:$0xff]
    %v3624 = vld [vmem:[#allocation2 + $0x88] sm:$0xff]
    %v3625 = vld [vmem:[#allocation2 + $0x90] sm:$0xff]
    %v3626 = vld [vmem:[#allocation2 + $0x98] sm:$0xff]
    %v3627 = vld [vmem:[#allocation2 + $0xa0] sm:$0xff]
    %v3628 = vld [vmem:[#allocation2 + $0xa8] sm:$0xff]
    %v3629 = vld [vmem:[#allocation2 + $0xb0] sm:$0xff]
    %v3630 = vld [vmem:[#allocation2 + $0xb8] sm:$0xff]
    %v3631 = vld [vmem:[#allocation2 + $0xc0] sm:$0xff]
    %v3632 = vld [vmem:[#allocation2 + $0xc8] sm:$0xff]
    %v3633 = vld [vmem:[#allocation2 + $0xd0] sm:$0xff]
    %v3634 = vld [vmem:[#allocation2 + $0xd8] sm:$0xff]
    %v3635 = vld [vmem:[#allocation2 + $0xe0] sm:$0xff]
    %v3636 = vld [vmem:[#allocation2 + $0xe8] sm:$0xff]
    %v3637 = vld [vmem:[#allocation2 + $0xf0] sm:$0xff]
    %v3638 = vld [vmem:[#allocation2 + $0xf8] sm:$0xff]
    %v3639 = vld [vmem:[#allocation2 + $0x100] sm:$0xff]
    %v3640 = vld [vmem:[#allocation2 + $0x108] sm:$0xff]
    %v3641 = vld [vmem:[#allocation2 + $0x110] sm:$0xff]
    %v3642 = vld [vmem:[#allocation2 + $0x118] sm:$0xff]
    %v3643 = vld [vmem:[#allocation2 + $0x120] sm:$0xff]
    %v3644 = vld [vmem:[#allocation2 + $0x128] sm:$0xff]
    %v3645 = vld [vmem:[#allocation2 + $0x130] sm:$0xff]
    %v3646 = vld [vmem:[#allocation2 + $0x138] sm:$0xff]
    %v3647 = vld [vmem:[#allocation2 + $0x140] sm:$0xff]
    %v3648 = vld [vmem:[#allocation2 + $0x148] sm:$0xff]
    %v3649 = vld [vmem:[#allocation2 + $0x150] sm:$0xff]
    %v3650 = vld [vmem:[#allocation2 + $0x158] sm:$0xff]
    %v3651 = vld [vmem:[#allocation2 + $0x160] sm:$0xff]
    %v3652 = vld [vmem:[#allocation2 + $0x168] sm:$0xff]
    %v3653 = vld [vmem:[#allocation2 + $0x170] sm:$0xff]
    %v3654 = vld [vmem:[#allocation2 + $0x178] sm:$0xff]
    %v3655 = vld [vmem:[%s17] sm:$0x3f]
    %v3657 = vlaneseq
    %v3658 = vshrl.u32 %v3657, 7
    %v3659 = vsub.s32 0, %v3658
    %v3660 = vrot.slane %v3655, %v3659
    %v3661 = vlaneseq
    %v3662 = vshrl.u32 %v3661, 7
    %v3663 = vsub.s32 1, %v3662
    %v3664 = vrot.slane %v3655, %v3663
    %v3665 = vlaneseq
    %v3666 = vshrl.u32 %v3665, 7
    %v3667 = vsub.s32 2, %v3666
    %v3668 = vrot.slane %v3655, %v3667
    %v3669 = vlaneseq
    %v3670 = vshrl.u32 %v3669, 7
    %v3671 = vsub.s32 3, %v3670
    %v3672 = vrot.slane %v3655, %v3671
    %v3673 = vlaneseq
    %v3674 = vshrl.u32 %v3673, 7
    %v3675 = vsub.s32 4, %v3674
    %v3676 = vrot.slane %v3655, %v3675
    %v3677 = vlaneseq
    %v3678 = vshrl.u32 %v3677, 7
    %v3679 = vsub.s32 5, %v3678
    %v3680 = vrot.slane %v3655, %v3679
    %vm3687 = vcmask 523264
    %v3689 = vsel %vm3687, %v3599, 0
    %v3692 = vsel %vm3687, %v3604, 0
    %3694 = vmatprep.subr.mxu0 %v3608
    %3695 = vmatpush1.msra.mxu0 %v3607
    %3696 = vmatprep.subr.mxu0 %v3614
    %3697 = vmatpush1.msra.mxu0 %v3613
    %3698 = vmatprep.subr.mxu0 %v3620
    %3699 = vmatpush1.msra.mxu0 %v3619
    %3700 = vmatprep.subr.mxu0 %v3626
    %3701 = vmatpush1.msra.mxu0 %v3625
    %3702 = vmatprep.subr.mxu0 %v3632
    %3703 = vmatpush1.msra.mxu0 %v3631
    %3704 = vmatprep.subr.mxu0 %v3638
    %3705 = vmatpush1.msra.mxu0 %v3637
    %3706 = vmatprep.subr.mxu0 %v3644
    %3707 = vmatpush1.msra.mxu0 %v3643
    %3708 = vmatprep.subr.mxu0 %v3650
    %3709 = vmatpush1.msra.mxu0 %v3649
    %3710 = vmatprep.subr.mxu0 0.0
    %3711 = vmatpush1.msra.mxu0 0.0
    %3712 = vmatprep.subr.mxu0 0.0
    %3713 = vmatpush1.msra.mxu0 0.0
    %3714 = vmatprep.subr.mxu0 0.0
    %3715 = vmatpush1.msra.mxu0 0.0
    %3716 = vmatprep.subr.mxu0 0.0
    %3717 = vmatpush1.msra.mxu0 0.0
    %3718 = vmatprep.subr.mxu0 0.0
    %3719 = vmatpush1.msra.mxu0 0.0
    %3720 = vmatprep.subr.mxu0 0.0
    %3721 = vmatpush1.msra.mxu0 0.0
    %3722 = vmatprep.subr.mxu0 0.0
    %3723 = vmatpush1.msra.mxu0 0.0
    %3724 = vmatprep.subr.mxu0 0.0
    %3725 = vmatpush1.msra.mxu0 0.0
    %3726 = vmatprep.subr.mxu0 0.0
    %3727 = vmatpush1.msra.mxu0 0.0
    %3728 = vmatprep.subr.mxu0 0.0
    %3729 = vmatpush1.msra.mxu0 0.0
    %3730 = vmatprep.subr.mxu0 0.0
    %3731 = vmatpush1.msra.mxu0 0.0
    %3732 = vmatprep.subr.mxu0 0.0
    %3733 = vmatpush1.msra.mxu0 0.0
    %3734 = vmatprep.subr.mxu0 0.0
    %3735 = vmatpush1.msra.mxu0 0.0
    %3736 = vmatprep.subr.mxu0 0.0
    %3737 = vmatpush1.msra.mxu0 0.0
    %3738 = vmatprep.subr.mxu0 0.0
    %3739 = vmatpush1.msra.mxu0 0.0
    %3740 = vmatprep.subr.mxu0 0.0
    %3741 = vmatpush1.msra.mxu0 0.0
    %3742 = vmatprep.subr.mxu0 0.0
    %3743 = vmatpush1.msra.mxu0 0.0
    %3744 = vmatprep.subr.mxu0 0.0
    %3745 = vmatpush1.msra.mxu0 0.0
    %3746 = vmatprep.subr.mxu0 0.0
    %3747 = vmatpush1.msra.mxu0 0.0
    %3748 = vmatprep.subr.mxu0 0.0
    %3749 = vmatpush1.msra.mxu0 0.0
    %3750 = vmatprep.subr.mxu0 0.0
    %3751 = vmatpush1.msra.mxu0 0.0
    %3752 = vmatprep.subr.mxu0 0.0
    %3753 = vmatpush1.msra.mxu0 0.0
    %3754 = vmatprep.subr.mxu0 0.0
    %3755 = vmatpush1.msra.mxu0 0.0
    %3756 = vmatprep.subr.mxu0 0.0
    %3757 = vmatpush1.msra.mxu0 0.0
    %3758 = vmatprep.mubr.f32.mxu0 0.0
    %3759 = vmatmul.mubr.f32.gmra.mrb[0].mxu0 %v3689
    %v3760 = vpop.f32.mrb[0].mxu0
    %v3761 = vadd.f32 %v3660, %v3760
    %v3762 = vpop.f32.mrb[0].mxu0
    %v3763 = vadd.f32 %v3664, %v3762
    %3764 = vmatprep.mubr.f32.mxu0 0.0
    %3765 = vmatmul.mubr.f32.gmra.mrb[0].mxu0 %v3692
    %v3766 = vpop.f32.mrb[0].mxu0
    %v3767 = vadd.f32 %v3660, %v3766
    %v3768 = vpop.f32.mrb[0].mxu0
    %v3769 = vadd.f32 %v3664, %v3768
    %3770 = vdwg.mxu0
    %3771 = vmatprep.subr.mxu0 %v3610
    %3772 = vmatpush1.msra.mxu0 %v3609
    %3773 = vmatprep.subr.mxu0 %v3616
    %3774 = vmatpush1.msra.mxu0 %v3615
    %3775 = vmatprep.subr.mxu0 %v3622
    %3776 = vmatpush1.msra.mxu0 %v3621
    %3777 = vmatprep.subr.mxu0 %v3628
    %3778 = vmatpush1.msra.mxu0 %v3627
    %3779 = vmatprep.subr.mxu0 %v3634
    %3780 = vmatpush1.msra.mxu0 %v3633
    %3781 = vmatprep.subr.mxu0 %v3640
    %3782 = vmatpush1.msra.mxu0 %v3639
    %3783 = vmatprep.subr.mxu0 %v3646
    %3784 = vmatpush1.msra.mxu0 %v3645
    %3785 = vmatprep.subr.mxu0 %v3652
    %3786 = vmatpush1.msra.mxu0 %v3651
    %3787 = vmatprep.subr.mxu0 0.0
    %3788 = vmatpush1.msra.mxu0 0.0
    %3789 = vmatprep.subr.mxu0 0.0
    %3790 = vmatpush1.msra.mxu0 0.0
    %3791 = vmatprep.subr.mxu0 0.0
    %3792 = vmatpush1.msra.mxu0 0.0
    %3793 = vmatprep.subr.mxu0 0.0
    %3794 = vmatpush1.msra.mxu0 0.0
    %3795 = vmatprep.subr.mxu0 0.0
    %3796 = vmatpush1.msra.mxu0 0.0
    %3797 = vmatprep.subr.mxu0 0.0
    %3798 = vmatpush1.msra.mxu0 0.0
    %3799 = vmatprep.subr.mxu0 0.0
    %3800 = vmatpush1.msra.mxu0 0.0
    %3801 = vmatprep.subr.mxu0 0.0
    %3802 = vmatpush1.msra.mxu0 0.0
    %3803 = vmatprep.subr.mxu0 0.0
    %3804 = vmatpush1.msra.mxu0 0.0
    %3805 = vmatprep.subr.mxu0 0.0
    %3806 = vmatpush1.msra.mxu0 0.0
    %3807 = vmatprep.subr.mxu0 0.0
    %3808 = vmatpush1.msra.mxu0 0.0
    %3809 = vmatprep.subr.mxu0 0.0
    %3810 = vmatpush1.msra.mxu0 0.0
    %3811 = vmatprep.subr.mxu0 0.0
    %3812 = vmatpush1.msra.mxu0 0.0
    %3813 = vmatprep.subr.mxu0 0.0
    %3814 = vmatpush1.msra.mxu0 0.0
    %3815 = vmatprep.subr.mxu0 0.0
    %3816 = vmatpush1.msra.mxu0 0.0
    %3817 = vmatprep.subr.mxu0 0.0
    %3818 = vmatpush1.msra.mxu0 0.0
    %3819 = vmatprep.subr.mxu0 0.0
    %3820 = vmatpush1.msra.mxu0 0.0
    %3821 = vmatprep.subr.mxu0 0.0
    %3822 = vmatpush1.msra.mxu0 0.0
    %3823 = vmatprep.subr.mxu0 0.0
    %3824 = vmatpush1.msra.mxu0 0.0
    %3825 = vmatprep.subr.mxu0 0.0
    %3826 = vmatpush1.msra.mxu0 0.0
    %3827 = vmatprep.subr.mxu0 0.0
    %3828 = vmatpush1.msra.mxu0 0.0
    %3829 = vmatprep.subr.mxu0 0.0
    %3830 = vmatpush1.msra.mxu0 0.0
    %3831 = vmatprep.subr.mxu0 0.0
    %3832 = vmatpush1.msra.mxu0 0.0
    %3833 = vmatprep.subr.mxu0 0.0
    %3834 = vmatpush1.msra.mxu0 0.0
    %3835 = vmatprep.mubr.f32.mxu0 0.0
    %3836 = vmatmul.mubr.f32.gmra.mrb[0].mxu0 %v3689
    %v3837 = vpop.f32.mrb[0].mxu0
    %v3838 = vadd.f32 %v3668, %v3837
    %v3839 = vpop.f32.mrb[0].mxu0
    %v3840 = vadd.f32 %v3672, %v3839
    %3841 = vmatprep.mubr.f32.mxu0 0.0
    %3842 = vmatmul.mubr.f32.gmra.mrb[0].mxu0 %v3692
    %v3843 = vpop.f32.mrb[0].mxu0
    %v3844 = vadd.f32 %v3668, %v3843
    %v3845 = vpop.f32.mrb[0].mxu0
    %v3846 = vadd.f32 %v3672, %v3845
    %3847 = vdwg.mxu0
    %3848 = vmatprep.subr.mxu0 %v3612
    %3849 = vmatpush1.msra.mxu0 %v3611
    %3850 = vmatprep.subr.mxu0 %v3618
    %3851 = vmatpush1.msra.mxu0 %v3617
    %3852 = vmatprep.subr.mxu0 %v3624
    %3853 = vmatpush1.msra.mxu0 %v3623
    %3854 = vmatprep.subr.mxu0 %v3630
    %3855 = vmatpush1.msra.mxu0 %v3629
    %3856 = vmatprep.subr.mxu0 %v3636
    %3857 = vmatpush1.msra.mxu0 %v3635
    %3858 = vmatprep.subr.mxu0 %v3642
    %3859 = vmatpush1.msra.mxu0 %v3641
    %3860 = vmatprep.subr.mxu0 %v3648
    %3861 = vmatpush1.msra.mxu0 %v3647
    %3862 = vmatprep.subr.mxu0 %v3654
    %3863 = vmatpush1.msra.mxu0 %v3653
    %3864 = vmatprep.subr.mxu0 0.0
    %3865 = vmatpush1.msra.mxu0 0.0
    %3866 = vmatprep.subr.mxu0 0.0
    %3867 = vmatpush1.msra.mxu0 0.0
    %3868 = vmatprep.subr.mxu0 0.0
    %3869 = vmatpush1.msra.mxu0 0.0
    %3870 = vmatprep.subr.mxu0 0.0
    %3871 = vmatpush1.msra.mxu0 0.0
    %3872 = vmatprep.subr.mxu0 0.0
    %3873 = vmatpush1.msra.mxu0 0.0
    %3874 = vmatprep.subr.mxu0 0.0
    %3875 = vmatpush1.msra.mxu0 0.0
    %3876 = vmatprep.subr.mxu0 0.0
    %3877 = vmatpush1.msra.mxu0 0.0
    %3878 = vmatprep.subr.mxu0 0.0
    %3879 = vmatpush1.msra.mxu0 0.0
    %3880 = vmatprep.subr.mxu0 0.0
    %3881 = vmatpush1.msra.mxu0 0.0
    %3882 = vmatprep.subr.mxu0 0.0
    %3883 = vmatpush1.msra.mxu0 0.0
    %3884 = vmatprep.subr.mxu0 0.0
    %3885 = vmatpush1.msra.mxu0 0.0
    %3886 = vmatprep.subr.mxu0 0.0
    %3887 = vmatpush1.msra.mxu0 0.0
    %3888 = vmatprep.subr.mxu0 0.0
    %3889 = vmatpush1.msra.mxu0 0.0
    %3890 = vmatprep.subr.mxu0 0.0
    %3891 = vmatpush1.msra.mxu0 0.0
    %3892 = vmatprep.subr.mxu0 0.0
    %3893 = vmatpush1.msra.mxu0 0.0
    %3894 = vmatprep.subr.mxu0 0.0
    %3895 = vmatpush1.msra.mxu0 0.0
    %3896 = vmatprep.subr.mxu0 0.0
    %3897 = vmatpush1.msra.mxu0 0.0
    %3898 = vmatprep.subr.mxu0 0.0
    %3899 = vmatpush1.msra.mxu0 0.0
    %3900 = vmatprep.subr.mxu0 0.0
    %3901 = vmatpush1.msra.mxu0 0.0
    %3902 = vmatprep.subr.mxu0 0.0
    %3903 = vmatpush1.msra.mxu0 0.0
    %3904 = vmatprep.subr.mxu0 0.0
    %3905 = vmatpush1.msra.mxu0 0.0
    %3906 = vmatprep.subr.mxu0 0.0
    %3907 = vmatpush1.msra.mxu0 0.0
    %3908 = vmatprep.subr.mxu0 0.0
    %3909 = vmatpush1.msra.mxu0 0.0
    %3910 = vmatprep.subr.mxu0 0.0
    %3911 = vmatpush1.msra.mxu0 0.0
    %3912 = vmatprep.mubr.f32.mxu0 0.0
    %3913 = vmatmul.mubr.f32.gmra.mrb[0].mxu0 %v3689
    %v3914 = vpop.f32.mrb[0].mxu0
    %v3915 = vadd.f32 %v3676, %v3914
    %v3916 = vpop.f32.mrb[0].mxu0
    %v3917 = vadd.f32 %v3680, %v3916
    %3918 = vmatprep.mubr.f32.mxu0 0.0
    %3919 = vmatmul.mubr.f32.gmra.mrb[0].mxu0 %v3692
    %v3920 = vpop.f32.mrb[0].mxu0
    %v3921 = vadd.f32 %v3676, %v3920
    %v3922 = vpop.f32.mrb[0].mxu0
    %v3923 = vadd.f32 %v3680, %v3922
    %3924 = vdwg.mxu0
    %v3925 = vld [vmem:[#allocation4] sm:$0xff]
    %v3926 = vld [vmem:[#allocation4 + $0x8] sm:$0xff]
    %v3927 = vld [vmem:[#allocation4 + $0x10] sm:$0xff]
    %v3928 = vld [vmem:[#allocation4 + $0x18] sm:$0xff]
    %v3929 = vld [vmem:[#allocation4 + $0x20] sm:$0xff]
    %v3930 = vld [vmem:[#allocation4 + $0x28] sm:$0xff]
    %v3931 = vld [vmem:[#allocation4 + $0x30] sm:$0xff]
    %v3932 = vld [vmem:[#allocation4 + $0x38] sm:$0xff]
    %v3933 = vld [vmem:[#allocation4 + $0x40] sm:$0xff]
    %v3934 = vld [vmem:[#allocation4 + $0x48] sm:$0xff]
    %v3935 = vld [vmem:[#allocation4 + $0x50] sm:$0xff]
    %v3936 = vld [vmem:[#allocation4 + $0x58] sm:$0xff]
    %v3937 = vld [vmem:[#allocation4 + $0x60] sm:$0xff]
    %v3938 = vld [vmem:[#allocation4 + $0x68] sm:$0xff]
    %v3939 = vld [vmem:[#allocation4 + $0x70] sm:$0xff]
    %v3940 = vld [vmem:[#allocation4 + $0x78] sm:$0xff]
    %v3941 = vld [vmem:[#allocation4 + $0x80] sm:$0xff]
    %v3942 = vld [vmem:[#allocation4 + $0x88] sm:$0xff]
    %v3943 = vld [vmem:[#allocation4 + $0x90] sm:$0xff]
    %v3944 = vld [vmem:[#allocation4 + $0x98] sm:$0xff]
    %v3945 = vld [vmem:[#allocation4 + $0xa0] sm:$0xff]
    %v3946 = vld [vmem:[#allocation4 + $0xa8] sm:$0xff]
    %v3947 = vld [vmem:[#allocation4 + $0xb0] sm:$0xff]
    %v3948 = vld [vmem:[#allocation4 + $0xb8] sm:$0xff]
    %v3949 = vld [vmem:[#allocation4 + $0xc0] sm:$0xff]
    %v3950 = vld [vmem:[#allocation4 + $0xc8] sm:$0xff]
    %v3951 = vld [vmem:[#allocation4 + $0xd0] sm:$0xff]
    %v3952 = vld [vmem:[#allocation4 + $0xd8] sm:$0xff]
    %v3953 = vld [vmem:[#allocation4 + $0xe0] sm:$0xff]
    %v3954 = vld [vmem:[#allocation4 + $0xe8] sm:$0xff]
    %v3955 = vld [vmem:[#allocation4 + $0xf0] sm:$0xff]
    %v3956 = vld [vmem:[#allocation4 + $0xf8] sm:$0xff]
    %v3957 = vld [vmem:[#allocation4 + $0x100] sm:$0xff]
    %v3958 = vld [vmem:[#allocation4 + $0x108] sm:$0xff]
    %v3959 = vld [vmem:[#allocation4 + $0x110] sm:$0xff]
    %v3960 = vld [vmem:[#allocation4 + $0x118] sm:$0xff]
    %v3961 = vld [vmem:[#allocation4 + $0x120] sm:$0xff]
    %v3962 = vld [vmem:[#allocation4 + $0x128] sm:$0xff]
    %v3963 = vld [vmem:[#allocation4 + $0x130] sm:$0xff]
    %v3964 = vld [vmem:[#allocation4 + $0x138] sm:$0xff]
    %v3965 = vld [vmem:[#allocation4 + $0x140] sm:$0xff]
    %v3966 = vld [vmem:[#allocation4 + $0x148] sm:$0xff]
    %v3967 = vld [vmem:[#allocation4 + $0x150] sm:$0xff]
    %v3968 = vld [vmem:[#allocation4 + $0x158] sm:$0xff]
    %v3969 = vld [vmem:[#allocation4 + $0x160] sm:$0xff]
    %v3970 = vld [vmem:[#allocation4 + $0x168] sm:$0xff]
    %v3971 = vld [vmem:[#allocation4 + $0x170] sm:$0xff]
    %v3972 = vld [vmem:[#allocation4 + $0x178] sm:$0xff]
    %v3973 = vld [vmem:[#allocation4 + $0x180] sm:$0xff]
    %v3974 = vld [vmem:[#allocation4 + $0x188] sm:$0xff]
    %v3975 = vld [vmem:[#allocation4 + $0x190] sm:$0xff]
    %v3976 = vld [vmem:[#allocation4 + $0x198] sm:$0xff]
    %v3977 = vld [vmem:[#allocation4 + $0x1a0] sm:$0xff]
    %v3978 = vld [vmem:[#allocation4 + $0x1a8] sm:$0xff]
    %v3979 = vld [vmem:[#allocation4 + $0x1b0] sm:$0xff]
    %v3980 = vld [vmem:[#allocation4 + $0x1b8] sm:$0xff]
    %v3981 = vld [vmem:[#allocation4 + $0x1c0] sm:$0xff]
    %v3982 = vld [vmem:[#allocation4 + $0x1c8] sm:$0xff]
    %v3983 = vld [vmem:[#allocation4 + $0x1d0] sm:$0xff]
    %v3984 = vld [vmem:[#allocation4 + $0x1d8] sm:$0xff]
    %v3985 = vld [vmem:[#allocation4 + $0x1e0] sm:$0xff]
    %v3986 = vld [vmem:[#allocation4 + $0x1e8] sm:$0xff]
    %v3987 = vld [vmem:[#allocation4 + $0x1f0] sm:$0xff]
    %v3988 = vld [vmem:[#allocation4 + $0x1f8] sm:$0xff]
    %v3989 = vld [vmem:[#allocation4 + $0x200] sm:$0xff]
    %v3990 = vld [vmem:[#allocation4 + $0x208] sm:$0xff]
    %v3991 = vld [vmem:[#allocation4 + $0x210] sm:$0xff]
    %v3992 = vld [vmem:[#allocation4 + $0x218] sm:$0xff]
    %v3993 = vld [vmem:[#allocation4 + $0x220] sm:$0xff]
    %v3994 = vld [vmem:[#allocation4 + $0x228] sm:$0xff]
    %v3995 = vld [vmem:[#allocation4 + $0x230] sm:$0xff]
    %v3996 = vld [vmem:[#allocation4 + $0x238] sm:$0xff]
    %v3997 = vld [vmem:[#allocation4 + $0x240] sm:$0xff]
    %v3998 = vld [vmem:[#allocation4 + $0x248] sm:$0xff]
    %v3999 = vld [vmem:[#allocation4 + $0x250] sm:$0xff]
    %v4000 = vld [vmem:[#allocation4 + $0x258] sm:$0xff]
    %v4001 = vld [vmem:[#allocation4 + $0x260] sm:$0xff]
    %v4002 = vld [vmem:[#allocation4 + $0x268] sm:$0xff]
    %v4003 = vld [vmem:[#allocation4 + $0x270] sm:$0xff]
    %v4004 = vld [vmem:[#allocation4 + $0x278] sm:$0xff]
    %v4005 = vld [vmem:[#allocation4 + $0x280] sm:$0xff]
    %v4006 = vld [vmem:[#allocation4 + $0x288] sm:$0xff]
    %v4007 = vld [vmem:[#allocation4 + $0x290] sm:$0xff]
    %v4008 = vld [vmem:[#allocation4 + $0x298] sm:$0xff]
    %v4009 = vld [vmem:[#allocation4 + $0x2a0] sm:$0xff]
    %v4010 = vld [vmem:[#allocation4 + $0x2a8] sm:$0xff]
    %v4011 = vld [vmem:[#allocation4 + $0x2b0] sm:$0xff]
    %v4012 = vld [vmem:[#allocation4 + $0x2b8] sm:$0xff]
    %v4013 = vld [vmem:[#allocation4 + $0x2c0] sm:$0xff]
    %v4014 = vld [vmem:[#allocation4 + $0x2c8] sm:$0xff]
    %v4015 = vld [vmem:[#allocation4 + $0x2d0] sm:$0xff]
    %v4016 = vld [vmem:[#allocation4 + $0x2d8] sm:$0xff]
    %v4017 = vld [vmem:[#allocation4 + $0x2e0] sm:$0xff]
    %v4018 = vld [vmem:[#allocation4 + $0x2e8] sm:$0xff]
    %v4019 = vld [vmem:[#allocation4 + $0x2f0] sm:$0xff]
    %v4020 = vld [vmem:[#allocation4 + $0x2f8] sm:$0xff]
    %v4021 = vld [vmem:[#allocation4 + $0x300] sm:$0xff]
    %v4022 = vld [vmem:[#allocation4 + $0x308] sm:$0xff]
    %v4023 = vld [vmem:[#allocation4 + $0x310] sm:$0xff]
    %v4024 = vld [vmem:[#allocation4 + $0x318] sm:$0xff]
    %v4025 = vld [vmem:[#allocation4 + $0x320] sm:$0xff]
    %v4026 = vld [vmem:[#allocation4 + $0x328] sm:$0xff]
    %v4027 = vld [vmem:[#allocation4 + $0x330] sm:$0xff]
    %v4028 = vld [vmem:[#allocation4 + $0x338] sm:$0xff]
    %v4029 = vld [vmem:[#allocation4 + $0x340] sm:$0xff]
    %v4030 = vld [vmem:[#allocation4 + $0x348] sm:$0xff]
    %v4031 = vld [vmem:[#allocation4 + $0x350] sm:$0xff]
    %v4032 = vld [vmem:[#allocation4 + $0x358] sm:$0xff]
    %v4033 = vld [vmem:[#allocation4 + $0x360] sm:$0xff]
    %v4034 = vld [vmem:[#allocation4 + $0x368] sm:$0xff]
    %v4035 = vld [vmem:[#allocation4 + $0x370] sm:$0xff]
    %v4036 = vld [vmem:[#allocation4 + $0x378] sm:$0xff]
    %v4037 = vld [vmem:[#allocation4 + $0x380] sm:$0xff]
    %v4038 = vld [vmem:[#allocation4 + $0x388] sm:$0xff]
    %v4039 = vld [vmem:[#allocation4 + $0x390] sm:$0xff]
    %v4040 = vld [vmem:[#allocation4 + $0x398] sm:$0xff]
    %v4041 = vld [vmem:[#allocation4 + $0x3a0] sm:$0xff]
    %v4042 = vld [vmem:[#allocation4 + $0x3a8] sm:$0xff]
    %v4043 = vld [vmem:[#allocation4 + $0x3b0] sm:$0xff]
    %v4044 = vld [vmem:[#allocation4 + $0x3b8] sm:$0xff]
    %v4045 = vld [vmem:[#allocation4 + $0x3c0] sm:$0xff]
    %v4046 = vld [vmem:[#allocation4 + $0x3c8] sm:$0xff]
    %v4047 = vld [vmem:[#allocation4 + $0x3d0] sm:$0xff]
    %v4048 = vld [vmem:[#allocation4 + $0x3d8] sm:$0xff]
    %v4049 = vld [vmem:[#allocation4 + $0x3e0] sm:$0xff]
    %v4050 = vld [vmem:[#allocation4 + $0x3e8] sm:$0xff]
    %v4051 = vld [vmem:[#allocation4 + $0x3f0] sm:$0xff]
    %v4052 = vld [vmem:[#allocation4 + $0x3f8] sm:$0xff]
    %v4053 = vld [vmem:[#allocation4 + $0x400] sm:$0xff]
    %v4054 = vld [vmem:[#allocation4 + $0x408] sm:$0xff]
    %v4055 = vld [vmem:[#allocation4 + $0x410] sm:$0xff]
    %v4056 = vld [vmem:[#allocation4 + $0x418] sm:$0xff]
    %v4057 = vld [vmem:[#allocation4 + $0x420] sm:$0xff]
    %v4058 = vld [vmem:[#allocation4 + $0x428] sm:$0xff]
    %v4059 = vld [vmem:[#allocation4 + $0x430] sm:$0xff]
    %v4060 = vld [vmem:[#allocation4 + $0x438] sm:$0xff]
    %v4061 = vld [vmem:[#allocation4 + $0x440] sm:$0xff]
    %v4062 = vld [vmem:[#allocation4 + $0x448] sm:$0xff]
    %v4063 = vld [vmem:[#allocation4 + $0x450] sm:$0xff]
    %v4064 = vld [vmem:[#allocation4 + $0x458] sm:$0xff]
    %v4065 = vld [vmem:[#allocation4 + $0x460] sm:$0xff]
    %v4066 = vld [vmem:[#allocation4 + $0x468] sm:$0xff]
    %v4067 = vld [vmem:[#allocation4 + $0x470] sm:$0xff]
    %v4068 = vld [vmem:[#allocation4 + $0x478] sm:$0xff]
    %v4069 = vld [vmem:[#allocation4 + $0x480] sm:$0xff]
    %v4070 = vld [vmem:[#allocation4 + $0x488] sm:$0xff]
    %v4071 = vld [vmem:[#allocation4 + $0x490] sm:$0xff]
    %v4072 = vld [vmem:[#allocation4 + $0x498] sm:$0xff]
    %v4073 = vld [vmem:[#allocation4 + $0x4a0] sm:$0xff]
    %v4074 = vld [vmem:[#allocation4 + $0x4a8] sm:$0xff]
    %v4075 = vld [vmem:[#allocation4 + $0x4b0] sm:$0xff]
    %v4076 = vld [vmem:[#allocation4 + $0x4b8] sm:$0xff]
    %v4077 = vld [vmem:[#allocation4 + $0x4c0] sm:$0xff]
    %v4078 = vld [vmem:[#allocation4 + $0x4c8] sm:$0xff]
    %v4079 = vld [vmem:[#allocation4 + $0x4d0] sm:$0xff]
    %v4080 = vld [vmem:[#allocation4 + $0x4d8] sm:$0xff]
    %v4081 = vld [vmem:[#allocation4 + $0x4e0] sm:$0xff]
    %v4082 = vld [vmem:[#allocation4 + $0x4e8] sm:$0xff]
    %v4083 = vld [vmem:[#allocation4 + $0x4f0] sm:$0xff]
    %v4084 = vld [vmem:[#allocation4 + $0x4f8] sm:$0xff]
    %v4085 = vld [vmem:[#allocation4 + $0x500] sm:$0xff]
    %v4086 = vld [vmem:[#allocation4 + $0x508] sm:$0xff]
    %v4087 = vld [vmem:[#allocation4 + $0x510] sm:$0xff]
    %v4088 = vld [vmem:[#allocation4 + $0x518] sm:$0xff]
    %v4089 = vld [vmem:[#allocation4 + $0x520] sm:$0xff]
    %v4090 = vld [vmem:[#allocation4 + $0x528] sm:$0xff]
    %v4091 = vld [vmem:[#allocation4 + $0x530] sm:$0xff]
    %v4092 = vld [vmem:[#allocation4 + $0x538] sm:$0xff]
    %v4093 = vld [vmem:[#allocation4 + $0x540] sm:$0xff]
    %v4094 = vld [vmem:[#allocation4 + $0x548] sm:$0xff]
    %v4095 = vld [vmem:[#allocation4 + $0x550] sm:$0xff]
    %v4096 = vld [vmem:[#allocation4 + $0x558] sm:$0xff]
    %v4097 = vld [vmem:[#allocation4 + $0x560] sm:$0xff]
    %v4098 = vld [vmem:[#allocation4 + $0x568] sm:$0xff]
    %v4099 = vld [vmem:[#allocation4 + $0x570] sm:$0xff]
    %v4100 = vld [vmem:[#allocation4 + $0x578] sm:$0xff]
    %v4101 = vld [vmem:[#allocation4 + $0x580] sm:$0xff]
    %v4102 = vld [vmem:[#allocation4 + $0x588] sm:$0xff]
    %v4103 = vld [vmem:[#allocation4 + $0x590] sm:$0xff]
    %v4104 = vld [vmem:[#allocation4 + $0x598] sm:$0xff]
    %v4105 = vld [vmem:[#allocation4 + $0x5a0] sm:$0xff]
    %v4106 = vld [vmem:[#allocation4 + $0x5a8] sm:$0xff]
    %v4107 = vld [vmem:[#allocation4 + $0x5b0] sm:$0xff]
    %v4108 = vld [vmem:[#allocation4 + $0x5b8] sm:$0xff]
    %v4109 = vld [vmem:[#allocation4 + $0x5c0] sm:$0xff]
    %v4110 = vld [vmem:[#allocation4 + $0x5c8] sm:$0xff]
    %v4111 = vld [vmem:[#allocation4 + $0x5d0] sm:$0xff]
    %v4112 = vld [vmem:[#allocation4 + $0x5d8] sm:$0xff]
    %v4113 = vld [vmem:[#allocation4 + $0x5e0] sm:$0xff]
    %v4114 = vld [vmem:[#allocation4 + $0x5e8] sm:$0xff]
    %v4115 = vld [vmem:[#allocation4 + $0x5f0] sm:$0xff]
    %v4116 = vld [vmem:[#allocation4 + $0x5f8] sm:$0xff]
    %v4117 = vld [vmem:[%s18] sm:$0x3f]
    %v4119 = vlaneseq
    %v4120 = vshrl.u32 %v4119, 7
    %v4121 = vsub.s32 0, %v4120
    %v4122 = vrot.slane %v4117, %v4121
    %v4123 = vlaneseq
    %v4124 = vshrl.u32 %v4123, 7
    %v4125 = vsub.s32 1, %v4124
    %v4126 = vrot.slane %v4117, %v4125
    %v4127 = vlaneseq
    %v4128 = vshrl.u32 %v4127, 7
    %v4129 = vsub.s32 2, %v4128
    %v4130 = vrot.slane %v4117, %v4129
    %v4131 = vlaneseq
    %v4132 = vshrl.u32 %v4131, 7
    %v4133 = vsub.s32 3, %v4132
    %v4134 = vrot.slane %v4117, %v4133
    %v4135 = vlaneseq
    %v4136 = vshrl.u32 %v4135, 7
    %v4137 = vsub.s32 4, %v4136
    %v4138 = vrot.slane %v4117, %v4137
    %v4139 = vlaneseq
    %v4140 = vshrl.u32 %v4139, 7
    %v4141 = vsub.s32 5, %v4140
    %v4142 = vrot.slane %v4117, %v4141
    %4149 = vmatprep.subr.mxu0 %v3926
    %4150 = vmatpush1.msra.mxu0 %v3925
    %4151 = vmatprep.subr.mxu0 %v3932
    %4152 = vmatpush1.msra.mxu0 %v3931
    %4153 = vmatprep.subr.mxu0 %v3938
    %4154 = vmatpush1.msra.mxu0 %v3937
    %4155 = vmatprep.subr.mxu0 %v3944
    %4156 = vmatpush1.msra.mxu0 %v3943
    %4157 = vmatprep.subr.mxu0 %v3950
    %4158 = vmatpush1.msra.mxu0 %v3949
    %4159 = vmatprep.subr.mxu0 %v3956
    %4160 = vmatpush1.msra.mxu0 %v3955
    %4161 = vmatprep.subr.mxu0 %v3962
    %4162 = vmatpush1.msra.mxu0 %v3961
    %4163 = vmatprep.subr.mxu0 %v3968
    %4164 = vmatpush1.msra.mxu0 %v3967
    %4165 = vmatprep.subr.mxu0 %v3974
    %4166 = vmatpush1.msra.mxu0 %v3973
    %4167 = vmatprep.subr.mxu0 %v3980
    %4168 = vmatpush1.msra.mxu0 %v3979
    %4169 = vmatprep.subr.mxu0 %v3986
    %4170 = vmatpush1.msra.mxu0 %v3985
    %4171 = vmatprep.subr.mxu0 %v3992
    %4172 = vmatpush1.msra.mxu0 %v3991
    %4173 = vmatprep.subr.mxu0 %v3998
    %4174 = vmatpush1.msra.mxu0 %v3997
    %4175 = vmatprep.subr.mxu0 %v4004
    %4176 = vmatpush1.msra.mxu0 %v4003
    %4177 = vmatprep.subr.mxu0 %v4010
    %4178 = vmatpush1.msra.mxu0 %v4009
    %4179 = vmatprep.subr.mxu0 %v4016
    %4180 = vmatpush1.msra.mxu0 %v4015
    %4181 = vmatprep.subr.mxu0 %v4022
    %4182 = vmatpush1.msra.mxu0 %v4021
    %4183 = vmatprep.subr.mxu0 %v4028
    %4184 = vmatpush1.msra.mxu0 %v4027
    %4185 = vmatprep.subr.mxu0 %v4034
    %4186 = vmatpush1.msra.mxu0 %v4033
    %4187 = vmatprep.subr.mxu0 %v4040
    %4188 = vmatpush1.msra.mxu0 %v4039
    %4189 = vmatprep.subr.mxu0 %v4046
    %4190 = vmatpush1.msra.mxu0 %v4045
    %4191 = vmatprep.subr.mxu0 %v4052
    %4192 = vmatpush1.msra.mxu0 %v4051
    %4193 = vmatprep.subr.mxu0 %v4058
    %4194 = vmatpush1.msra.mxu0 %v4057
    %4195 = vmatprep.subr.mxu0 %v4064
    %4196 = vmatpush1.msra.mxu0 %v4063
    %4197 = vmatprep.subr.mxu0 %v4070
    %4198 = vmatpush1.msra.mxu0 %v4069
    %4199 = vmatprep.subr.mxu0 %v4076
    %4200 = vmatpush1.msra.mxu0 %v4075
    %4201 = vmatprep.subr.mxu0 %v4082
    %4202 = vmatpush1.msra.mxu0 %v4081
    %4203 = vmatprep.subr.mxu0 %v4088
    %4204 = vmatpush1.msra.mxu0 %v4087
    %4205 = vmatprep.subr.mxu0 %v4094
    %4206 = vmatpush1.msra.mxu0 %v4093
    %4207 = vmatprep.subr.mxu0 %v4100
    %4208 = vmatpush1.msra.mxu0 %v4099
    %4209 = vmatprep.subr.mxu0 %v4106
    %4210 = vmatpush1.msra.mxu0 %v4105
    %4211 = vmatprep.subr.mxu0 %v4112
    %4212 = vmatpush1.msra.mxu0 %v4111
    %4213 = vmatprep.mubr.f32.mxu0 0.0
    %4214 = vmatmul.mubr.f32.gmra.mrb[0].mxu0 0.0
    %v4215 = vpop.f32.mrb[0].mxu0
    %v4216 = vadd.f32 %v4122, %v4215
    %v4217 = vpop.f32.mrb[0].mxu0
    %v4218 = vadd.f32 %v4126, %v4217
    %4219 = vdwg.mxu0
    %4220 = vmatprep.subr.mxu0 %v3928
    %4221 = vmatpush1.msra.mxu0 %v3927
    %4222 = vmatprep.subr.mxu0 %v3934
    %4223 = vmatpush1.msra.mxu0 %v3933
    %4224 = vmatprep.subr.mxu0 %v3940
    %4225 = vmatpush1.msra.mxu0 %v3939
    %4226 = vmatprep.subr.mxu0 %v3946
    %4227 = vmatpush1.msra.mxu0 %v3945
    %4228 = vmatprep.subr.mxu0 %v3952
    %4229 = vmatpush1.msra.mxu0 %v3951
    %4230 = vmatprep.subr.mxu0 %v3958
    %4231 = vmatpush1.msra.mxu0 %v3957
    %4232 = vmatprep.subr.mxu0 %v3964
    %4233 = vmatpush1.msra.mxu0 %v3963
    %4234 = vmatprep.subr.mxu0 %v3970
    %4235 = vmatpush1.msra.mxu0 %v3969
    %4236 = vmatprep.subr.mxu0 %v3976
    %4237 = vmatpush1.msra.mxu0 %v3975
    %4238 = vmatprep.subr.mxu0 %v3982
    %4239 = vmatpush1.msra.mxu0 %v3981
    %4240 = vmatprep.subr.mxu0 %v3988
    %4241 = vmatpush1.msra.mxu0 %v3987
    %4242 = vmatprep.subr.mxu0 %v3994
    %4243 = vmatpush1.msra.mxu0 %v3993
    %4244 = vmatprep.subr.mxu0 %v4000
    %4245 = vmatpush1.msra.mxu0 %v3999
    %4246 = vmatprep.subr.mxu0 %v4006
    %4247 = vmatpush1.msra.mxu0 %v4005
    %4248 = vmatprep.subr.mxu0 %v4012
    %4249 = vmatpush1.msra.mxu0 %v4011
    %4250 = vmatprep.subr.mxu0 %v4018
    %4251 = vmatpush1.msra.mxu0 %v4017
    %4252 = vmatprep.subr.mxu0 %v4024
    %4253 = vmatpush1.msra.mxu0 %v4023
    %4254 = vmatprep.subr.mxu0 %v4030
    %4255 = vmatpush1.msra.mxu0 %v4029
    %4256 = vmatprep.subr.mxu0 %v4036
    %4257 = vmatpush1.msra.mxu0 %v4035
    %4258 = vmatprep.subr.mxu0 %v4042
    %4259 = vmatpush1.msra.mxu0 %v4041
    %4260 = vmatprep.subr.mxu0 %v4048
    %4261 = vmatpush1.msra.mxu0 %v4047
    %4262 = vmatprep.subr.mxu0 %v4054
    %4263 = vmatpush1.msra.mxu0 %v4053
    %4264 = vmatprep.subr.mxu0 %v4060
    %4265 = vmatpush1.msra.mxu0 %v4059
    %4266 = vmatprep.subr.mxu0 %v4066
    %4267 = vmatpush1.msra.mxu0 %v4065
    %4268 = vmatprep.subr.mxu0 %v4072
    %4269 = vmatpush1.msra.mxu0 %v4071
    %4270 = vmatprep.subr.mxu0 %v4078
    %4271 = vmatpush1.msra.mxu0 %v4077
    %4272 = vmatprep.subr.mxu0 %v4084
    %4273 = vmatpush1.msra.mxu0 %v4083
    %4274 = vmatprep.subr.mxu0 %v4090
    %4275 = vmatpush1.msra.mxu0 %v4089
    %4276 = vmatprep.subr.mxu0 %v4096
    %4277 = vmatpush1.msra.mxu0 %v4095
    %4278 = vmatprep.subr.mxu0 %v4102
    %4279 = vmatpush1.msra.mxu0 %v4101
    %4280 = vmatprep.subr.mxu0 %v4108
    %4281 = vmatpush1.msra.mxu0 %v4107
    %4282 = vmatprep.subr.mxu0 %v4114
    %4283 = vmatpush1.msra.mxu0 %v4113
    %4284 = vmatprep.mubr.f32.mxu0 0.0
    %4285 = vmatmul.mubr.f32.gmra.mrb[0].mxu0 0.0
    %v4286 = vpop.f32.mrb[0].mxu0
    %v4287 = vadd.f32 %v4130, %v4286
    %v4288 = vpop.f32.mrb[0].mxu0
    %v4289 = vadd.f32 %v4134, %v4288
    %4290 = vdwg.mxu0
    %4291 = vmatprep.subr.mxu0 %v3930
    %4292 = vmatpush1.msra.mxu0 %v3929
    %4293 = vmatprep.subr.mxu0 %v3936
    %4294 = vmatpush1.msra.mxu0 %v3935
    %4295 = vmatprep.subr.mxu0 %v3942
    %4296 = vmatpush1.msra.mxu0 %v3941
    %4297 = vmatprep.subr.mxu0 %v3948
    %4298 = vmatpush1.msra.mxu0 %v3947
    %4299 = vmatprep.subr.mxu0 %v3954
    %4300 = vmatpush1.msra.mxu0 %v3953
    %4301 = vmatprep.subr.mxu0 %v3960
    %4302 = vmatpush1.msra.mxu0 %v3959
    %4303 = vmatprep.subr.mxu0 %v3966
    %4304 = vmatpush1.msra.mxu0 %v3965
    %4305 = vmatprep.subr.mxu0 %v3972
    %4306 = vmatpush1.msra.mxu0 %v3971
    %4307 = vmatprep.subr.mxu0 %v3978
    %4308 = vmatpush1.msra.mxu0 %v3977
    %4309 = vmatprep.subr.mxu0 %v3984
    %4310 = vmatpush1.msra.mxu0 %v3983
    %4311 = vmatprep.subr.mxu0 %v3990
    %4312 = vmatpush1.msra.mxu0 %v3989
    %4313 = vmatprep.subr.mxu0 %v3996
    %4314 = vmatpush1.msra.mxu0 %v3995
    %4315 = vmatprep.subr.mxu0 %v4002
    %4316 = vmatpush1.msra.mxu0 %v4001
    %4317 = vmatprep.subr.mxu0 %v4008
    %4318 = vmatpush1.msra.mxu0 %v4007
    %4319 = vmatprep.subr.mxu0 %v4014
    %4320 = vmatpush1.msra.mxu0 %v4013
    %4321 = vmatprep.subr.mxu0 %v4020
    %4322 = vmatpush1.msra.mxu0 %v4019
    %4323 = vmatprep.subr.mxu0 %v4026
    %4324 = vmatpush1.msra.mxu0 %v4025
    %4325 = vmatprep.subr.mxu0 %v4032
    %4326 = vmatpush1.msra.mxu0 %v4031
    %4327 = vmatprep.subr.mxu0 %v4038
    %4328 = vmatpush1.msra.mxu0 %v4037
    %4329 = vmatprep.subr.mxu0 %v4044
    %4330 = vmatpush1.msra.mxu0 %v4043
    %4331 = vmatprep.subr.mxu0 %v4050
    %4332 = vmatpush1.msra.mxu0 %v4049
    %4333 = vmatprep.subr.mxu0 %v4056
    %4334 = vmatpush1.msra.mxu0 %v4055
    %4335 = vmatprep.subr.mxu0 %v4062
    %4336 = vmatpush1.msra.mxu0 %v4061
    %4337 = vmatprep.subr.mxu0 %v4068
    %4338 = vmatpush1.msra.mxu0 %v4067
    %4339 = vmatprep.subr.mxu0 %v4074
    %4340 = vmatpush1.msra.mxu0 %v4073
    %4341 = vmatprep.subr.mxu0 %v4080
    %4342 = vmatpush1.msra.mxu0 %v4079
    %4343 = vmatprep.subr.mxu0 %v4086
    %4344 = vmatpush1.msra.mxu0 %v4085
    %4345 = vmatprep.subr.mxu0 %v4092
    %4346 = vmatpush1.msra.mxu0 %v4091
    %4347 = vmatprep.subr.mxu0 %v4098
    %4348 = vmatpush1.msra.mxu0 %v4097
    %4349 = vmatprep.subr.mxu0 %v4104
    %4350 = vmatpush1.msra.mxu0 %v4103
    %4351 = vmatprep.subr.mxu0 %v4110
    %4352 = vmatpush1.msra.mxu0 %v4109
    %4353 = vmatprep.subr.mxu0 %v4116
    %4354 = vmatpush1.msra.mxu0 %v4115
    %4355 = vmatprep.mubr.f32.mxu0 0.0
    %4356 = vmatmul.mubr.f32.gmra.mrb[0].mxu0 0.0
    %v4357 = vpop.f32.mrb[0].mxu0
    %v4358 = vadd.f32 %v4138, %v4357
    %v4359 = vpop.f32.mrb[0].mxu0
    %v4360 = vadd.f32 %v4142, %v4359
    %4361 = vdwg.mxu0
    %v4362 = vadd.f32 %v3761, %v4216
    %v4363 = vadd.f32 %v3763, %v4218
    %v4364 = vxor.u32 %v4362, 2147483648
    %v4365 = vxor.u32 %v4363, 2147483648
    %v4366 = vmul.f32 %v4364, 1.442695
    %v4367 = vpow.pop %v4366
    %v4368 = vmul.f32 %v4365, 1.442695
    %v4369 = vpow.pop %v4368
    %v4370 = vadd.f32 %v4367, 1.0
    %v4371 = vadd.f32 %v4369, 1.0
    %v4372 = vrcp.pop %v4370
    %v4373 = vmul.f32 1.0, %v4372
    %v4374 = vrcp.pop %v4371
    %v4375 = vmul.f32 1.0, %v4374
    %v4376 = vadd.f32 %v3838, %v4287
    %v4377 = vadd.f32 %v3840, %v4289
    %v4378 = vxor.u32 %v4376, 2147483648
    %v4379 = vxor.u32 %v4377, 2147483648
    %v4380 = vmul.f32 %v4378, 1.442695
    %v4381 = vpow.pop %v4380
    %v4382 = vmul.f32 %v4379, 1.442695
    %v4383 = vpow.pop %v4382
    %v4384 = vadd.f32 %v4381, 1.0
    %v4385 = vadd.f32 %v4383, 1.0
    %v4386 = vrcp.pop %v4384
    %v4387 = vmul.f32 1.0, %v4386
    %v4388 = vrcp.pop %v4385
    %v4389 = vmul.f32 1.0, %v4388
    %v4390 = vmul.f32 %v4373, %v4358
    %v4391 = vmul.f32 %v4375, %v4360
    %v4392 = vadd.f32 %v3915, %v4390
    %v4393 = vadd.f32 %v3917, %v4391
    %v4394 = vtanh.pop %v4392
    %v4395 = vtanh.pop %v4393
    %v4396 = vsub.f32 1.0, %v4387
    %v4397 = vsub.f32 1.0, %v4389
    %v4398 = vmul.f32 %v4396, %v4394
    %v4399 = vmul.f32 %v4397, %v4395
    %v4400 = vmul.f32 %v4387, 0.0
    %v4401 = vmul.f32 %v4389, 0.0
    %v4402 = vadd.f32 %v4398, %v4400
    %v4403 = vadd.f32 %v4399, %v4401
    %4404 = vmatprep.subr.mxu0 %v3926
    %4405 = vmatpush1.msra.mxu0 %v3925
    %4406 = vmatprep.subr.mxu0 %v3932
    %4407 = vmatpush1.msra.mxu0 %v3931
    %4408 = vmatprep.subr.mxu0 %v3938
    %4409 = vmatpush1.msra.mxu0 %v3937
    %4410 = vmatprep.subr.mxu0 %v3944
    %4411 = vmatpush1.msra.mxu0 %v3943
    %4412 = vmatprep.subr.mxu0 %v3950
    %4413 = vmatpush1.msra.mxu0 %v3949
    %4414 = vmatprep.subr.mxu0 %v3956
    %4415 = vmatpush1.msra.mxu0 %v3955
    %4416 = vmatprep.subr.mxu0 %v3962
    %4417 = vmatpush1.msra.mxu0 %v3961
    %4418 = vmatprep.subr.mxu0 %v3968
    %4419 = vmatpush1.msra.mxu0 %v3967
    %4420 = vmatprep.subr.mxu0 %v3974
    %4421 = vmatpush1.msra.mxu0 %v3973
    %4422 = vmatprep.subr.mxu0 %v3980
    %4423 = vmatpush1.msra.mxu0 %v3979
    %4424 = vmatprep.subr.mxu0 %v3986
    %4425 = vmatpush1.msra.mxu0 %v3985
    %4426 = vmatprep.subr.mxu0 %v3992
    %4427 = vmatpush1.msra.mxu0 %v3991
    %4428 = vmatprep.subr.mxu0 %v3998
    %4429 = vmatpush1.msra.mxu0 %v3997
    %4430 = vmatprep.subr.mxu0 %v4004
    %4431 = vmatpush1.msra.mxu0 %v4003
    %4432 = vmatprep.subr.mxu0 %v4010
    %4433 = vmatpush1.msra.mxu0 %v4009
    %4434 = vmatprep.subr.mxu0 %v4016
    %4435 = vmatpush1.msra.mxu0 %v4015
    %4436 = vmatprep.subr.mxu0 %v4022
    %4437 = vmatpush1.msra.mxu0 %v4021
    %4438 = vmatprep.subr.mxu0 %v4028
    %4439 = vmatpush1.msra.mxu0 %v4027
    %4440 = vmatprep.subr.mxu0 %v4034
    %4441 = vmatpush1.msra.mxu0 %v4033
    %4442 = vmatprep.subr.mxu0 %v4040
    %4443 = vmatpush1.msra.mxu0 %v4039
    %4444 = vmatprep.subr.mxu0 %v4046
    %4445 = vmatpush1.msra.mxu0 %v4045
    %4446 = vmatprep.subr.mxu0 %v4052
    %4447 = vmatpush1.msra.mxu0 %v4051
    %4448 = vmatprep.subr.mxu0 %v4058
    %4449 = vmatpush1.msra.mxu0 %v4057
    %4450 = vmatprep.subr.mxu0 %v4064
    %4451 = vmatpush1.msra.mxu0 %v4063
    %4452 = vmatprep.subr.mxu0 %v4070
    %4453 = vmatpush1.msra.mxu0 %v4069
    %4454 = vmatprep.subr.mxu0 %v4076
    %4455 = vmatpush1.msra.mxu0 %v4075
    %4456 = vmatprep.subr.mxu0 %v4082
    %4457 = vmatpush1.msra.mxu0 %v4081
    %4458 = vmatprep.subr.mxu0 %v4088
    %4459 = vmatpush1.msra.mxu0 %v4087
    %4460 = vmatprep.subr.mxu0 %v4094
    %4461 = vmatpush1.msra.mxu0 %v4093
    %4462 = vmatprep.subr.mxu0 %v4100
    %4463 = vmatpush1.msra.mxu0 %v4099
    %4464 = vmatprep.subr.mxu0 %v4106
    %4465 = vmatpush1.msra.mxu0 %v4105
    %4466 = vmatprep.subr.mxu0 %v4112
    %4467 = vmatpush1.msra.mxu0 %v4111
    %4468 = vmatprep.mubr.f32.mxu0 %v4403
    %4469 = vmatmul.mubr.f32.gmra.mrb[0].mxu0 %v4402
    %v4470 = vpop.f32.mrb[0].mxu0
    %v4471 = vadd.f32 %v4122, %v4470
    %v4472 = vpop.f32.mrb[0].mxu0
    %v4473 = vadd.f32 %v4126, %v4472
    %4474 = vdwg.mxu0
    %4475 = vmatprep.subr.mxu0 %v3928
    %4476 = vmatpush1.msra.mxu0 %v3927
    %4477 = vmatprep.subr.mxu0 %v3934
    %4478 = vmatpush1.msra.mxu0 %v3933
    %4479 = vmatprep.subr.mxu0 %v3940
    %4480 = vmatpush1.msra.mxu0 %v3939
    %4481 = vmatprep.subr.mxu0 %v3946
    %4482 = vmatpush1.msra.mxu0 %v3945
    %4483 = vmatprep.subr.mxu0 %v3952
    %4484 = vmatpush1.msra.mxu0 %v3951
    %4485 = vmatprep.subr.mxu0 %v3958
    %4486 = vmatpush1.msra.mxu0 %v3957
    %4487 = vmatprep.subr.mxu0 %v3964
    %4488 = vmatpush1.msra.mxu0 %v3963
    %4489 = vmatprep.subr.mxu0 %v3970
    %4490 = vmatpush1.msra.mxu0 %v3969
    %4491 = vmatprep.subr.mxu0 %v3976
    %4492 = vmatpush1.msra.mxu0 %v3975
    %4493 = vmatprep.subr.mxu0 %v3982
    %4494 = vmatpush1.msra.mxu0 %v3981
    %4495 = vmatprep.subr.mxu0 %v3988
    %4496 = vmatpush1.msra.mxu0 %v3987
    %4497 = vmatprep.subr.mxu0 %v3994
    %4498 = vmatpush1.msra.mxu0 %v3993
    %4499 = vmatprep.subr.mxu0 %v4000
    %4500 = vmatpush1.msra.mxu0 %v3999
    %4501 = vmatprep.subr.mxu0 %v4006
    %4502 = vmatpush1.msra.mxu0 %v4005
    %4503 = vmatprep.subr.mxu0 %v4012
    %4504 = vmatpush1.msra.mxu0 %v4011
    %4505 = vmatprep.subr.mxu0 %v4018
    %4506 = vmatpush1.msra.mxu0 %v4017
    %4507 = vmatprep.subr.mxu0 %v4024
    %4508 = vmatpush1.msra.mxu0 %v4023
    %4509 = vmatprep.subr.mxu0 %v4030
    %4510 = vmatpush1.msra.mxu0 %v4029
    %4511 = vmatprep.subr.mxu0 %v4036
    %4512 = vmatpush1.msra.mxu0 %v4035
    %4513 = vmatprep.subr.mxu0 %v4042
    %4514 = vmatpush1.msra.mxu0 %v4041
    %4515 = vmatprep.subr.mxu0 %v4048
    %4516 = vmatpush1.msra.mxu0 %v4047
    %4517 = vmatprep.subr.mxu0 %v4054
    %4518 = vmatpush1.msra.mxu0 %v4053
    %4519 = vmatprep.subr.mxu0 %v4060
    %4520 = vmatpush1.msra.mxu0 %v4059
    %4521 = vmatprep.subr.mxu0 %v4066
    %4522 = vmatpush1.msra.mxu0 %v4065
    %4523 = vmatprep.subr.mxu0 %v4072
    %4524 = vmatpush1.msra.mxu0 %v4071
    %4525 = vmatprep.subr.mxu0 %v4078
    %4526 = vmatpush1.msra.mxu0 %v4077
    %4527 = vmatprep.subr.mxu0 %v4084
    %4528 = vmatpush1.msra.mxu0 %v4083
    %4529 = vmatprep.subr.mxu0 %v4090
    %4530 = vmatpush1.msra.mxu0 %v4089
    %4531 = vmatprep.subr.mxu0 %v4096
    %4532 = vmatpush1.msra.mxu0 %v4095
    %4533 = vmatprep.subr.mxu0 %v4102
    %4534 = vmatpush1.msra.mxu0 %v4101
    %4535 = vmatprep.subr.mxu0 %v4108
    %4536 = vmatpush1.msra.mxu0 %v4107
    %4537 = vmatprep.subr.mxu0 %v4114
    %4538 = vmatpush1.msra.mxu0 %v4113
    %4539 = vmatprep.mubr.f32.mxu0 %v4403
    %4540 = vmatmul.mubr.f32.gmra.mrb[0].mxu0 %v4402
    %v4541 = vpop.f32.mrb[0].mxu0
    %v4542 = vadd.f32 %v4130, %v4541
    %v4543 = vpop.f32.mrb[0].mxu0
    %v4544 = vadd.f32 %v4134, %v4543
    %4545 = vdwg.mxu0
    %4546 = vmatprep.subr.mxu0 %v3930
    %4547 = vmatpush1.msra.mxu0 %v3929
    %4548 = vmatprep.subr.mxu0 %v3936
    %4549 = vmatpush1.msra.mxu0 %v3935
    %4550 = vmatprep.subr.mxu0 %v3942
    %4551 = vmatpush1.msra.mxu0 %v3941
    %4552 = vmatprep.subr.mxu0 %v3948
    %4553 = vmatpush1.msra.mxu0 %v3947
    %4554 = vmatprep.subr.mxu0 %v3954
    %4555 = vmatpush1.msra.mxu0 %v3953
    %4556 = vmatprep.subr.mxu0 %v3960
    %4557 = vmatpush1.msra.mxu0 %v3959
    %4558 = vmatprep.subr.mxu0 %v3966
    %4559 = vmatpush1.msra.mxu0 %v3965
    %4560 = vmatprep.subr.mxu0 %v3972
    %4561 = vmatpush1.msra.mxu0 %v3971
    %4562 = vmatprep.subr.mxu0 %v3978
    %4563 = vmatpush1.msra.mxu0 %v3977
    %4564 = vmatprep.subr.mxu0 %v3984
    %4565 = vmatpush1.msra.mxu0 %v3983
    %4566 = vmatprep.subr.mxu0 %v3990
    %4567 = vmatpush1.msra.mxu0 %v3989
    %4568 = vmatprep.subr.mxu0 %v3996
    %4569 = vmatpush1.msra.mxu0 %v3995
    %4570 = vmatprep.subr.mxu0 %v4002
    %4571 = vmatpush1.msra.mxu0 %v4001
    %4572 = vmatprep.subr.mxu0 %v4008
    %4573 = vmatpush1.msra.mxu0 %v4007
    %4574 = vmatprep.subr.mxu0 %v4014
    %4575 = vmatpush1.msra.mxu0 %v4013
    %4576 = vmatprep.subr.mxu0 %v4020
    %4577 = vmatpush1.msra.mxu0 %v4019
    %4578 = vmatprep.subr.mxu0 %v4026
    %4579 = vmatpush1.msra.mxu0 %v4025
    %4580 = vmatprep.subr.mxu0 %v4032
    %4581 = vmatpush1.msra.mxu0 %v4031
    %4582 = vmatprep.subr.mxu0 %v4038
    %4583 = vmatpush1.msra.mxu0 %v4037
    %4584 = vmatprep.subr.mxu0 %v4044
    %4585 = vmatpush1.msra.mxu0 %v4043
    %4586 = vmatprep.subr.mxu0 %v4050
    %4587 = vmatpush1.msra.mxu0 %v4049
    %4588 = vmatprep.subr.mxu0 %v4056
    %4589 = vmatpush1.msra.mxu0 %v4055
    %4590 = vmatprep.subr.mxu0 %v4062
    %4591 = vmatpush1.msra.mxu0 %v4061
    %4592 = vmatprep.subr.mxu0 %v4068
    %4593 = vmatpush1.msra.mxu0 %v4067
    %4594 = vmatprep.subr.mxu0 %v4074
    %4595 = vmatpush1.msra.mxu0 %v4073
    %4596 = vmatprep.subr.mxu0 %v4080
    %4597 = vmatpush1.msra.mxu0 %v4079
    %4598 = vmatprep.subr.mxu0 %v4086
    %4599 = vmatpush1.msra.mxu0 %v4085
    %4600 = vmatprep.subr.mxu0 %v4092
    %4601 = vmatpush1.msra.mxu0 %v4091
    %4602 = vmatprep.subr.mxu0 %v4098
    %4603 = vmatpush1.msra.mxu0 %v4097
    %4604 = vmatprep.subr.mxu0 %v4104
    %4605 = vmatpush1.msra.mxu0 %v4103
    %4606 = vmatprep.subr.mxu0 %v4110
    %4607 = vmatpush1.msra.mxu0 %v4109
    %4608 = vmatprep.subr.mxu0 %v4116
    %4609 = vmatpush1.msra.mxu0 %v4115
    %4610 = vmatprep.mubr.f32.mxu0 %v4403
    %4611 = vmatmul.mubr.f32.gmra.mrb[0].mxu0 %v4402
    %v4612 = vpop.f32.mrb[0].mxu0
    %v4613 = vadd.f32 %v4138, %v4612
    %v4614 = vpop.f32.mrb[0].mxu0
    %v4615 = vadd.f32 %v4142, %v4614
    %4616 = vdwg.mxu0
    %v4619 = vrot.slane %v4471, 6
    %v4620 = vrot.slane %v4473, 6
    %v4623 = vadd.f32 %v3761, %v4619
    %v4624 = vadd.f32 %v3763, %v4620
    %v4625 = vxor.u32 %v4623, 2147483648
    %v4626 = vxor.u32 %v4624, 2147483648
    %v4627 = vmul.f32 %v4625, 1.442695
    %v4628 = vpow.pop %v4627
    %v4629 = vmul.f32 %v4626, 1.442695
    %v4630 = vpow.pop %v4629
    %v4631 = vadd.f32 %v4628, 1.0
    %v4632 = vadd.f32 %v4630, 1.0
    %v4633 = vrcp.pop %v4631
    %v4634 = vmul.f32 1.0, %v4633
    %v4635 = vrcp.pop %v4632
    %v4636 = vmul.f32 1.0, %v4635
    %v4639 = vrot.slane %v4542, 6
    %v4640 = vrot.slane %v4544, 6
    %v4643 = vadd.f32 %v3838, %v4639
    %v4644 = vadd.f32 %v3840, %v4640
    %v4645 = vxor.u32 %v4643, 2147483648
    %v4646 = vxor.u32 %v4644, 2147483648
    %v4647 = vmul.f32 %v4645, 1.442695
    %v4648 = vpow.pop %v4647
    %v4649 = vmul.f32 %v4646, 1.442695
    %v4650 = vpow.pop %v4649
    %v4651 = vadd.f32 %v4648, 1.0
    %v4652 = vadd.f32 %v4650, 1.0
    %v4653 = vrcp.pop %v4651
    %v4654 = vmul.f32 1.0, %v4653
    %v4655 = vrcp.pop %v4652
    %v4656 = vmul.f32 1.0, %v4655
    %v4659 = vrot.slane %v4613, 6
    %v4660 = vrot.slane %v4615, 6
    %v4663 = vmul.f32 %v4634, %v4659
    %v4664 = vmul.f32 %v4636, %v4660
    %v4665 = vadd.f32 %v3915, %v4663
    %v4666 = vadd.f32 %v3917, %v4664
    %v4667 = vtanh.pop %v4665
    %v4668 = vtanh.pop %v4666
    %v4669 = vsub.f32 1.0, %v4654
    %v4670 = vsub.f32 1.0, %v4656
    %v4671 = vmul.f32 %v4669, %v4667
    %v4672 = vmul.f32 %v4670, %v4668
    %v4675 = vrot.slane %v4402, 6
    %v4676 = vrot.slane %v4403, 6
    %v4679 = vmul.f32 %v4654, %v4675
    %v4680 = vmul.f32 %v4656, %v4676
    %v4681 = vadd.f32 %v4671, %v4679
    %v4682 = vadd.f32 %v4672, %v4680
    %v4685 = vrot.slane %v4681, 2
    %v4686 = vrot.slane %v4682, 2
    %4689 = vmatprep.subr.mxu0 %v3926
    %4690 = vmatpush1.msra.mxu0 %v3925
    %4691 = vmatprep.subr.mxu0 %v3932
    %4692 = vmatpush1.msra.mxu0 %v3931
    %4693 = vmatprep.subr.mxu0 %v3938
    %4694 = vmatpush1.msra.mxu0 %v3937
    %4695 = vmatprep.subr.mxu0 %v3944
    %4696 = vmatpush1.msra.mxu0 %v3943
    %4697 = vmatprep.subr.mxu0 %v3950
    %4698 = vmatpush1.msra.mxu0 %v3949
    %4699 = vmatprep.subr.mxu0 %v3956
    %4700 = vmatpush1.msra.mxu0 %v3955
    %4701 = vmatprep.subr.mxu0 %v3962
    %4702 = vmatpush1.msra.mxu0 %v3961
    %4703 = vmatprep.subr.mxu0 %v3968
    %4704 = vmatpush1.msra.mxu0 %v3967
    %4705 = vmatprep.subr.mxu0 %v3974
    %4706 = vmatpush1.msra.mxu0 %v3973
    %4707 = vmatprep.subr.mxu0 %v3980
    %4708 = vmatpush1.msra.mxu0 %v3979
    %4709 = vmatprep.subr.mxu0 %v3986
    %4710 = vmatpush1.msra.mxu0 %v3985
    %4711 = vmatprep.subr.mxu0 %v3992
    %4712 = vmatpush1.msra.mxu0 %v3991
    %4713 = vmatprep.subr.mxu0 %v3998
    %4714 = vmatpush1.msra.mxu0 %v3997
    %4715 = vmatprep.subr.mxu0 %v4004
    %4716 = vmatpush1.msra.mxu0 %v4003
    %4717 = vmatprep.subr.mxu0 %v4010
    %4718 = vmatpush1.msra.mxu0 %v4009
    %4719 = vmatprep.subr.mxu0 %v4016
    %4720 = vmatpush1.msra.mxu0 %v4015
    %4721 = vmatprep.subr.mxu0 %v4022
    %4722 = vmatpush1.msra.mxu0 %v4021
    %4723 = vmatprep.subr.mxu0 %v4028
    %4724 = vmatpush1.msra.mxu0 %v4027
    %4725 = vmatprep.subr.mxu0 %v4034
    %4726 = vmatpush1.msra.mxu0 %v4033
    %4727 = vmatprep.subr.mxu0 %v4040
    %4728 = vmatpush1.msra.mxu0 %v4039
    %4729 = vmatprep.subr.mxu0 %v4046
    %4730 = vmatpush1.msra.mxu0 %v4045
    %4731 = vmatprep.subr.mxu0 %v4052
    %4732 = vmatpush1.msra.mxu0 %v4051
    %4733 = vmatprep.subr.mxu0 %v4058
    %4734 = vmatpush1.msra.mxu0 %v4057
    %4735 = vmatprep.subr.mxu0 %v4064
    %4736 = vmatpush1.msra.mxu0 %v4063
    %4737 = vmatprep.subr.mxu0 %v4070
    %4738 = vmatpush1.msra.mxu0 %v4069
    %4739 = vmatprep.subr.mxu0 %v4076
    %4740 = vmatpush1.msra.mxu0 %v4075
    %4741 = vmatprep.subr.mxu0 %v4082
    %4742 = vmatpush1.msra.mxu0 %v4081
    %4743 = vmatprep.subr.mxu0 %v4088
    %4744 = vmatpush1.msra.mxu0 %v4087
    %4745 = vmatprep.subr.mxu0 %v4094
    %4746 = vmatpush1.msra.mxu0 %v4093
    %4747 = vmatprep.subr.mxu0 %v4100
    %4748 = vmatpush1.msra.mxu0 %v4099
    %4749 = vmatprep.subr.mxu0 %v4106
    %4750 = vmatpush1.msra.mxu0 %v4105
    %4751 = vmatprep.subr.mxu0 %v4112
    %4752 = vmatpush1.msra.mxu0 %v4111
    %4753 = vmatprep.mubr.f32.mxu0 %v4686
    %4754 = vmatmul.mubr.f32.gmra.mrb[0].mxu0 %v4685
    %v4755 = vpop.f32.mrb[0].mxu0
    %v4756 = vadd.f32 %v4122, %v4755
    %v4757 = vpop.f32.mrb[0].mxu0
    %v4758 = vadd.f32 %v4126, %v4757
    %4759 = vdwg.mxu0
    %4760 = vmatprep.subr.mxu0 %v3928
    %4761 = vmatpush1.msra.mxu0 %v3927
    %4762 = vmatprep.subr.mxu0 %v3934
    %4763 = vmatpush1.msra.mxu0 %v3933
    %4764 = vmatprep.subr.mxu0 %v3940
    %4765 = vmatpush1.msra.mxu0 %v3939
    %4766 = vmatprep.subr.mxu0 %v3946
    %4767 = vmatpush1.msra.mxu0 %v3945
    %4768 = vmatprep.subr.mxu0 %v3952
    %4769 = vmatpush1.msra.mxu0 %v3951
    %4770 = vmatprep.subr.mxu0 %v3958
    %4771 = vmatpush1.msra.mxu0 %v3957
    %4772 = vmatprep.subr.mxu0 %v3964
    %4773 = vmatpush1.msra.mxu0 %v3963
    %4774 = vmatprep.subr.mxu0 %v3970
    %4775 = vmatpush1.msra.mxu0 %v3969
    %4776 = vmatprep.subr.mxu0 %v3976
    %4777 = vmatpush1.msra.mxu0 %v3975
    %4778 = vmatprep.subr.mxu0 %v3982
    %4779 = vmatpush1.msra.mxu0 %v3981
    %4780 = vmatprep.subr.mxu0 %v3988
    %4781 = vmatpush1.msra.mxu0 %v3987
    %4782 = vmatprep.subr.mxu0 %v3994
    %4783 = vmatpush1.msra.mxu0 %v3993
    %4784 = vmatprep.subr.mxu0 %v4000
    %4785 = vmatpush1.msra.mxu0 %v3999
    %4786 = vmatprep.subr.mxu0 %v4006
    %4787 = vmatpush1.msra.mxu0 %v4005
    %4788 = vmatprep.subr.mxu0 %v4012
    %4789 = vmatpush1.msra.mxu0 %v4011
    %4790 = vmatprep.subr.mxu0 %v4018
    %4791 = vmatpush1.msra.mxu0 %v4017
    %4792 = vmatprep.subr.mxu0 %v4024
    %4793 = vmatpush1.msra.mxu0 %v4023
    %4794 = vmatprep.subr.mxu0 %v4030
    %4795 = vmatpush1.msra.mxu0 %v4029
    %4796 = vmatprep.subr.mxu0 %v4036
    %4797 = vmatpush1.msra.mxu0 %v4035
    %4798 = vmatprep.subr.mxu0 %v4042
    %4799 = vmatpush1.msra.mxu0 %v4041
    %4800 = vmatprep.subr.mxu0 %v4048
    %4801 = vmatpush1.msra.mxu0 %v4047
    %4802 = vmatprep.subr.mxu0 %v4054
    %4803 = vmatpush1.msra.mxu0 %v4053
    %4804 = vmatprep.subr.mxu0 %v4060
    %4805 = vmatpush1.msra.mxu0 %v4059
    %4806 = vmatprep.subr.mxu0 %v4066
    %4807 = vmatpush1.msra.mxu0 %v4065
    %4808 = vmatprep.subr.mxu0 %v4072
    %4809 = vmatpush1.msra.mxu0 %v4071
    %4810 = vmatprep.subr.mxu0 %v4078
    %4811 = vmatpush1.msra.mxu0 %v4077
    %4812 = vmatprep.subr.mxu0 %v4084
    %4813 = vmatpush1.msra.mxu0 %v4083
    %4814 = vmatprep.subr.mxu0 %v4090
    %4815 = vmatpush1.msra.mxu0 %v4089
    %4816 = vmatprep.subr.mxu0 %v4096
    %4817 = vmatpush1.msra.mxu0 %v4095
    %4818 = vmatprep.subr.mxu0 %v4102
    %4819 = vmatpush1.msra.mxu0 %v4101
    %4820 = vmatprep.subr.mxu0 %v4108
    %4821 = vmatpush1.msra.mxu0 %v4107
    %4822 = vmatprep.subr.mxu0 %v4114
    %4823 = vmatpush1.msra.mxu0 %v4113
    %4824 = vmatprep.mubr.f32.mxu0 %v4686
    %4825 = vmatmul.mubr.f32.gmra.mrb[0].mxu0 %v4685
    %v4826 = vpop.f32.mrb[0].mxu0
    %v4827 = vadd.f32 %v4130, %v4826
    %v4828 = vpop.f32.mrb[0].mxu0
    %v4829 = vadd.f32 %v4134, %v4828
    %4830 = vdwg.mxu0
    %4831 = vmatprep.subr.mxu0 %v3930
    %4832 = vmatpush1.msra.mxu0 %v3929
    %4833 = vmatprep.subr.mxu0 %v3936
    %4834 = vmatpush1.msra.mxu0 %v3935
    %4835 = vmatprep.subr.mxu0 %v3942
    %4836 = vmatpush1.msra.mxu0 %v3941
    %4837 = vmatprep.subr.mxu0 %v3948
    %4838 = vmatpush1.msra.mxu0 %v3947
    %4839 = vmatprep.subr.mxu0 %v3954
    %4840 = vmatpush1.msra.mxu0 %v3953
    %4841 = vmatprep.subr.mxu0 %v3960
    %4842 = vmatpush1.msra.mxu0 %v3959
    %4843 = vmatprep.subr.mxu0 %v3966
    %4844 = vmatpush1.msra.mxu0 %v3965
    %4845 = vmatprep.subr.mxu0 %v3972
    %4846 = vmatpush1.msra.mxu0 %v3971
    %4847 = vmatprep.subr.mxu0 %v3978
    %4848 = vmatpush1.msra.mxu0 %v3977
    %4849 = vmatprep.subr.mxu0 %v3984
    %4850 = vmatpush1.msra.mxu0 %v3983
    %4851 = vmatprep.subr.mxu0 %v3990
    %4852 = vmatpush1.msra.mxu0 %v3989
    %4853 = vmatprep.subr.mxu0 %v3996
    %4854 = vmatpush1.msra.mxu0 %v3995
    %4855 = vmatprep.subr.mxu0 %v4002
    %4856 = vmatpush1.msra.mxu0 %v4001
    %4857 = vmatprep.subr.mxu0 %v4008
    %4858 = vmatpush1.msra.mxu0 %v4007
    %4859 = vmatprep.subr.mxu0 %v4014
    %4860 = vmatpush1.msra.mxu0 %v4013
    %4861 = vmatprep.subr.mxu0 %v4020
    %4862 = vmatpush1.msra.mxu0 %v4019
    %4863 = vmatprep.subr.mxu0 %v4026
    %4864 = vmatpush1.msra.mxu0 %v4025
    %4865 = vmatprep.subr.mxu0 %v4032
    %4866 = vmatpush1.msra.mxu0 %v4031
    %4867 = vmatprep.subr.mxu0 %v4038
    %4868 = vmatpush1.msra.mxu0 %v4037
    %4869 = vmatprep.subr.mxu0 %v4044
    %4870 = vmatpush1.msra.mxu0 %v4043
    %4871 = vmatprep.subr.mxu0 %v4050
    %4872 = vmatpush1.msra.mxu0 %v4049
    %4873 = vmatprep.subr.mxu0 %v4056
    %4874 = vmatpush1.msra.mxu0 %v4055
    %4875 = vmatprep.subr.mxu0 %v4062
    %4876 = vmatpush1.msra.mxu0 %v4061
    %4877 = vmatprep.subr.mxu0 %v4068
    %4878 = vmatpush1.msra.mxu0 %v4067
    %4879 = vmatprep.subr.mxu0 %v4074
    %4880 = vmatpush1.msra.mxu0 %v4073
    %4881 = vmatprep.subr.mxu0 %v4080
    %4882 = vmatpush1.msra.mxu0 %v4079
    %4883 = vmatprep.subr.mxu0 %v4086
    %4884 = vmatpush1.msra.mxu0 %v4085
    %4885 = vmatprep.subr.mxu0 %v4092
    %4886 = vmatpush1.msra.mxu0 %v4091
    %4887 = vmatprep.subr.mxu0 %v4098
    %4888 = vmatpush1.msra.mxu0 %v4097
    %4889 = vmatprep.subr.mxu0 %v4104
    %4890 = vmatpush1.msra.mxu0 %v4103
    %4891 = vmatprep.subr.mxu0 %v4110
    %4892 = vmatpush1.msra.mxu0 %v4109
    %4893 = vmatprep.subr.mxu0 %v4116
    %4894 = vmatpush1.msra.mxu0 %v4115
    %4895 = vmatprep.mubr.f32.mxu0 %v4686
    %4896 = vmatmul.mubr.f32.gmra.mrb[0].mxu0 %v4685
    %v4897 = vpop.f32.mrb[0].mxu0
    %v4898 = vadd.f32 %v4138, %v4897
    %v4899 = vpop.f32.mrb[0].mxu0
    %v4900 = vadd.f32 %v4142, %v4899
    %4901 = vdwg.mxu0
    %v4904 = vrot.slane %v4756, 4
    %v4905 = vrot.slane %v4758, 4
    %v4908 = vadd.f32 %v3761, %v4904
    %v4909 = vadd.f32 %v3763, %v4905
    %v4910 = vxor.u32 %v4908, 2147483648
    %v4911 = vxor.u32 %v4909, 2147483648
    %v4912 = vmul.f32 %v4910, 1.442695
    %v4913 = vpow.pop %v4912
    %v4914 = vmul.f32 %v4911, 1.442695
    %v4915 = vpow.pop %v4914
    %v4916 = vadd.f32 %v4913, 1.0
    %v4917 = vadd.f32 %v4915, 1.0
    %v4918 = vrcp.pop %v4916
    %v4919 = vmul.f32 1.0, %v4918
    %v4920 = vrcp.pop %v4917
    %v4921 = vmul.f32 1.0, %v4920
    %v4924 = vrot.slane %v4827, 4
    %v4925 = vrot.slane %v4829, 4
    %v4928 = vadd.f32 %v3838, %v4924
    %v4929 = vadd.f32 %v3840, %v4925
    %v4930 = vxor.u32 %v4928, 2147483648
    %v4931 = vxor.u32 %v4929, 2147483648
    %v4932 = vmul.f32 %v4930, 1.442695
    %v4933 = vpow.pop %v4932
    %v4934 = vmul.f32 %v4931, 1.442695
    %v4935 = vpow.pop %v4934
    %v4936 = vadd.f32 %v4933, 1.0
    %v4937 = vadd.f32 %v4935, 1.0
    %v4938 = vrcp.pop %v4936
    %v4939 = vmul.f32 1.0, %v4938
    %v4940 = vrcp.pop %v4937
    %v4941 = vmul.f32 1.0, %v4940
    %v4944 = vrot.slane %v4898, 4
    %v4945 = vrot.slane %v4900, 4
    %v4948 = vmul.f32 %v4919, %v4944
    %v4949 = vmul.f32 %v4921, %v4945
    %v4950 = vadd.f32 %v3915, %v4948
    %v4951 = vadd.f32 %v3917, %v4949
    %v4952 = vtanh.pop %v4950
    %v4953 = vtanh.pop %v4951
    %v4954 = vsub.f32 1.0, %v4939
    %v4955 = vsub.f32 1.0, %v4941
    %v4956 = vmul.f32 %v4954, %v4952
    %v4957 = vmul.f32 %v4955, %v4953
    %v4958 = vrot.slane %v4681, 6
    %v4959 = vrot.slane %v4682, 6
    %v4962 = vmul.f32 %v4939, %v4958
    %v4963 = vmul.f32 %v4941, %v4959
    %v4964 = vadd.f32 %v4956, %v4962
    %v4965 = vadd.f32 %v4957, %v4963
    %v4968 = vrot.slane %v4964, 4
    %v4969 = vrot.slane %v4965, 4
    %4972 = vmatprep.subr.mxu0 %v3926
    %4973 = vmatpush1.msra.mxu0 %v3925
    %4974 = vmatprep.subr.mxu0 %v3932
    %4975 = vmatpush1.msra.mxu0 %v3931
    %4976 = vmatprep.subr.mxu0 %v3938
    %4977 = vmatpush1.msra.mxu0 %v3937
    %4978 = vmatprep.subr.mxu0 %v3944
    %4979 = vmatpush1.msra.mxu0 %v3943
    %4980 = vmatprep.subr.mxu0 %v3950
    %4981 = vmatpush1.msra.mxu0 %v3949
    %4982 = vmatprep.subr.mxu0 %v3956
    %4983 = vmatpush1.msra.mxu0 %v3955
    %4984 = vmatprep.subr.mxu0 %v3962
    %4985 = vmatpush1.msra.mxu0 %v3961
    %4986 = vmatprep.subr.mxu0 %v3968
    %4987 = vmatpush1.msra.mxu0 %v3967
    %4988 = vmatprep.subr.mxu0 %v3974
    %4989 = vmatpush1.msra.mxu0 %v3973
    %4990 = vmatprep.subr.mxu0 %v3980
    %4991 = vmatpush1.msra.mxu0 %v3979
    %4992 = vmatprep.subr.mxu0 %v3986
    %4993 = vmatpush1.msra.mxu0 %v3985
    %4994 = vmatprep.subr.mxu0 %v3992
    %4995 = vmatpush1.msra.mxu0 %v3991
    %4996 = vmatprep.subr.mxu0 %v3998
    %4997 = vmatpush1.msra.mxu0 %v3997
    %4998 = vmatprep.subr.mxu0 %v4004
    %4999 = vmatpush1.msra.mxu0 %v4003
    %5000 = vmatprep.subr.mxu0 %v4010
    %5001 = vmatpush1.msra.mxu0 %v4009
    %5002 = vmatprep.subr.mxu0 %v4016
    %5003 = vmatpush1.msra.mxu0 %v4015
    %5004 = vmatprep.subr.mxu0 %v4022
    %5005 = vmatpush1.msra.mxu0 %v4021
    %5006 = vmatprep.subr.mxu0 %v4028
    %5007 = vmatpush1.msra.mxu0 %v4027
    %5008 = vmatprep.subr.mxu0 %v4034
    %5009 = vmatpush1.msra.mxu0 %v4033
    %5010 = vmatprep.subr.mxu0 %v4040
    %5011 = vmatpush1.msra.mxu0 %v4039
    %5012 = vmatprep.subr.mxu0 %v4046
    %5013 = vmatpush1.msra.mxu0 %v4045
    %5014 = vmatprep.subr.mxu0 %v4052
    %5015 = vmatpush1.msra.mxu0 %v4051
    %5016 = vmatprep.subr.mxu0 %v4058
    %5017 = vmatpush1.msra.mxu0 %v4057
    %5018 = vmatprep.subr.mxu0 %v4064
    %5019 = vmatpush1.msra.mxu0 %v4063
    %5020 = vmatprep.subr.mxu0 %v4070
    %5021 = vmatpush1.msra.mxu0 %v4069
    %5022 = vmatprep.subr.mxu0 %v4076
    %5023 = vmatpush1.msra.mxu0 %v4075
    %5024 = vmatprep.subr.mxu0 %v4082
    %5025 = vmatpush1.msra.mxu0 %v4081
    %5026 = vmatprep.subr.mxu0 %v4088
    %5027 = vmatpush1.msra.mxu0 %v4087
    %5028 = vmatprep.subr.mxu0 %v4094
    %5029 = vmatpush1.msra.mxu0 %v4093
    %5030 = vmatprep.subr.mxu0 %v4100
    %5031 = vmatpush1.msra.mxu0 %v4099
    %5032 = vmatprep.subr.mxu0 %v4106
    %5033 = vmatpush1.msra.mxu0 %v4105
    %5034 = vmatprep.subr.mxu0 %v4112
    %5035 = vmatpush1.msra.mxu0 %v4111
    %5036 = vmatprep.mubr.f32.mxu0 %v4969
    %5037 = vmatmul.mubr.f32.gmra.mrb[0].mxu0 %v4968
    %v5038 = vpop.f32.mrb[0].mxu0
    %v5039 = vadd.f32 %v4122, %v5038
    %v5040 = vpop.f32.mrb[0].mxu0
    %v5041 = vadd.f32 %v4126, %v5040
    %5042 = vdwg.mxu0
    %5043 = vmatprep.subr.mxu0 %v3928
    %5044 = vmatpush1.msra.mxu0 %v3927
    %5045 = vmatprep.subr.mxu0 %v3934
    %5046 = vmatpush1.msra.mxu0 %v3933
    %5047 = vmatprep.subr.mxu0 %v3940
    %5048 = vmatpush1.msra.mxu0 %v3939
    %5049 = vmatprep.subr.mxu0 %v3946
    %5050 = vmatpush1.msra.mxu0 %v3945
    %5051 = vmatprep.subr.mxu0 %v3952
    %5052 = vmatpush1.msra.mxu0 %v3951
    %5053 = vmatprep.subr.mxu0 %v3958
    %5054 = vmatpush1.msra.mxu0 %v3957
    %5055 = vmatprep.subr.mxu0 %v3964
    %5056 = vmatpush1.msra.mxu0 %v3963
    %5057 = vmatprep.subr.mxu0 %v3970
    %5058 = vmatpush1.msra.mxu0 %v3969
    %5059 = vmatprep.subr.mxu0 %v3976
    %5060 = vmatpush1.msra.mxu0 %v3975
    %5061 = vmatprep.subr.mxu0 %v3982
    %5062 = vmatpush1.msra.mxu0 %v3981
    %5063 = vmatprep.subr.mxu0 %v3988
    %5064 = vmatpush1.msra.mxu0 %v3987
    %5065 = vmatprep.subr.mxu0 %v3994
    %5066 = vmatpush1.msra.mxu0 %v3993
    %5067 = vmatprep.subr.mxu0 %v4000
    %5068 = vmatpush1.msra.mxu0 %v3999
    %5069 = vmatprep.subr.mxu0 %v4006
    %5070 = vmatpush1.msra.mxu0 %v4005
    %5071 = vmatprep.subr.mxu0 %v4012
    %5072 = vmatpush1.msra.mxu0 %v4011
    %5073 = vmatprep.subr.mxu0 %v4018
    %5074 = vmatpush1.msra.mxu0 %v4017
    %5075 = vmatprep.subr.mxu0 %v4024
    %5076 = vmatpush1.msra.mxu0 %v4023
    %5077 = vmatprep.subr.mxu0 %v4030
    %5078 = vmatpush1.msra.mxu0 %v4029
    %5079 = vmatprep.subr.mxu0 %v4036
    %5080 = vmatpush1.msra.mxu0 %v4035
    %5081 = vmatprep.subr.mxu0 %v4042
    %5082 = vmatpush1.msra.mxu0 %v4041
    %5083 = vmatprep.subr.mxu0 %v4048
    %5084 = vmatpush1.msra.mxu0 %v4047
    %5085 = vmatprep.subr.mxu0 %v4054
    %5086 = vmatpush1.msra.mxu0 %v4053
    %5087 = vmatprep.subr.mxu0 %v4060
    %5088 = vmatpush1.msra.mxu0 %v4059
    %5089 = vmatprep.subr.mxu0 %v4066
    %5090 = vmatpush1.msra.mxu0 %v4065
    %5091 = vmatprep.subr.mxu0 %v4072
    %5092 = vmatpush1.msra.mxu0 %v4071
    %5093 = vmatprep.subr.mxu0 %v4078
    %5094 = vmatpush1.msra.mxu0 %v4077
    %5095 = vmatprep.subr.mxu0 %v4084
    %5096 = vmatpush1.msra.mxu0 %v4083
    %5097 = vmatprep.subr.mxu0 %v4090
    %5098 = vmatpush1.msra.mxu0 %v4089
    %5099 = vmatprep.subr.mxu0 %v4096
    %5100 = vmatpush1.msra.mxu0 %v4095
    %5101 = vmatprep.subr.mxu0 %v4102
    %5102 = vmatpush1.msra.mxu0 %v4101
    %5103 = vmatprep.subr.mxu0 %v4108
    %5104 = vmatpush1.msra.mxu0 %v4107
    %5105 = vmatprep.subr.mxu0 %v4114
    %5106 = vmatpush1.msra.mxu0 %v4113
    %5107 = vmatprep.mubr.f32.mxu0 %v4969
    %5108 = vmatmul.mubr.f32.gmra.mrb[0].mxu0 %v4968
    %v5109 = vpop.f32.mrb[0].mxu0
    %v5110 = vadd.f32 %v4130, %v5109
    %v5111 = vpop.f32.mrb[0].mxu0
    %v5112 = vadd.f32 %v4134, %v5111
    %5113 = vdwg.mxu0
    %5114 = vmatprep.subr.mxu0 %v3930
    %5115 = vmatpush1.msra.mxu0 %v3929
    %5116 = vmatprep.subr.mxu0 %v3936
    %5117 = vmatpush1.msra.mxu0 %v3935
    %5118 = vmatprep.subr.mxu0 %v3942
    %5119 = vmatpush1.msra.mxu0 %v3941
    %5120 = vmatprep.subr.mxu0 %v3948
    %5121 = vmatpush1.msra.mxu0 %v3947
    %5122 = vmatprep.subr.mxu0 %v3954
    %5123 = vmatpush1.msra.mxu0 %v3953
    %5124 = vmatprep.subr.mxu0 %v3960
    %5125 = vmatpush1.msra.mxu0 %v3959
    %5126 = vmatprep.subr.mxu0 %v3966
    %5127 = vmatpush1.msra.mxu0 %v3965
    %5128 = vmatprep.subr.mxu0 %v3972
    %5129 = vmatpush1.msra.mxu0 %v3971
    %5130 = vmatprep.subr.mxu0 %v3978
    %5131 = vmatpush1.msra.mxu0 %v3977
    %5132 = vmatprep.subr.mxu0 %v3984
    %5133 = vmatpush1.msra.mxu0 %v3983
    %5134 = vmatprep.subr.mxu0 %v3990
    %5135 = vmatpush1.msra.mxu0 %v3989
    %5136 = vmatprep.subr.mxu0 %v3996
    %5137 = vmatpush1.msra.mxu0 %v3995
    %5138 = vmatprep.subr.mxu0 %v4002
    %5139 = vmatpush1.msra.mxu0 %v4001
    %5140 = vmatprep.subr.mxu0 %v4008
    %5141 = vmatpush1.msra.mxu0 %v4007
    %5142 = vmatprep.subr.mxu0 %v4014
    %5143 = vmatpush1.msra.mxu0 %v4013
    %5144 = vmatprep.subr.mxu0 %v4020
    %5145 = vmatpush1.msra.mxu0 %v4019
    %5146 = vmatprep.subr.mxu0 %v4026
    %5147 = vmatpush1.msra.mxu0 %v4025
    %5148 = vmatprep.subr.mxu0 %v4032
    %5149 = vmatpush1.msra.mxu0 %v4031
    %5150 = vmatprep.subr.mxu0 %v4038
    %5151 = vmatpush1.msra.mxu0 %v4037
    %5152 = vmatprep.subr.mxu0 %v4044
    %5153 = vmatpush1.msra.mxu0 %v4043
    %5154 = vmatprep.subr.mxu0 %v4050
    %5155 = vmatpush1.msra.mxu0 %v4049
    %5156 = vmatprep.subr.mxu0 %v4056
    %5157 = vmatpush1.msra.mxu0 %v4055
    %5158 = vmatprep.subr.mxu0 %v4062
    %5159 = vmatpush1.msra.mxu0 %v4061
    %5160 = vmatprep.subr.mxu0 %v4068
    %5161 = vmatpush1.msra.mxu0 %v4067
    %5162 = vmatprep.subr.mxu0 %v4074
    %5163 = vmatpush1.msra.mxu0 %v4073
    %5164 = vmatprep.subr.mxu0 %v4080
    %5165 = vmatpush1.msra.mxu0 %v4079
    %5166 = vmatprep.subr.mxu0 %v4086
    %5167 = vmatpush1.msra.mxu0 %v4085
    %5168 = vmatprep.subr.mxu0 %v4092
    %5169 = vmatpush1.msra.mxu0 %v4091
    %5170 = vmatprep.subr.mxu0 %v4098
    %5171 = vmatpush1.msra.mxu0 %v4097
    %5172 = vmatprep.subr.mxu0 %v4104
    %5173 = vmatpush1.msra.mxu0 %v4103
    %5174 = vmatprep.subr.mxu0 %v4110
    %5175 = vmatpush1.msra.mxu0 %v4109
    %5176 = vmatprep.subr.mxu0 %v4116
    %5177 = vmatpush1.msra.mxu0 %v4115
    %5178 = vmatprep.mubr.f32.mxu0 %v4969
    %5179 = vmatmul.mubr.f32.gmra.mrb[0].mxu0 %v4968
    %v5180 = vpop.f32.mrb[0].mxu0
    %v5181 = vadd.f32 %v4138, %v5180
    %v5182 = vpop.f32.mrb[0].mxu0
    %v5183 = vadd.f32 %v4142, %v5182
    %5184 = vdwg.mxu0
    %v5187 = vrot.slane %v5039, 2
    %v5188 = vrot.slane %v5041, 2
    %v5191 = vadd.f32 %v3761, %v5187
    %v5192 = vadd.f32 %v3763, %v5188
    %v5193 = vxor.u32 %v5191, 2147483648
    %v5194 = vxor.u32 %v5192, 2147483648
    %v5195 = vmul.f32 %v5193, 1.442695
    %v5196 = vpow.pop %v5195
    %v5197 = vmul.f32 %v5194, 1.442695
    %v5198 = vpow.pop %v5197
    %v5199 = vadd.f32 %v5196, 1.0
    %v5200 = vadd.f32 %v5198, 1.0
    %v5201 = vrcp.pop %v5199
    %v5202 = vmul.f32 1.0, %v5201
    %v5203 = vrcp.pop %v5200
    %v5204 = vmul.f32 1.0, %v5203
    %v5207 = vrot.slane %v5110, 2
    %v5208 = vrot.slane %v5112, 2
    %v5211 = vadd.f32 %v3838, %v5207
    %v5212 = vadd.f32 %v3840, %v5208
    %v5213 = vxor.u32 %v5211, 2147483648
    %v5214 = vxor.u32 %v5212, 2147483648
    %v5215 = vmul.f32 %v5213, 1.442695
    %v5216 = vpow.pop %v5215
    %v5217 = vmul.f32 %v5214, 1.442695
    %v5218 = vpow.pop %v5217
    %v5219 = vadd.f32 %v5216, 1.0
    %v5220 = vadd.f32 %v5218, 1.0
    %v5221 = vrcp.pop %v5219
    %v5222 = vmul.f32 1.0, %v5221
    %v5223 = vrcp.pop %v5220
    %v5224 = vmul.f32 1.0, %v5223
    %v5227 = vrot.slane %v5181, 2
    %v5228 = vrot.slane %v5183, 2
    %v5231 = vmul.f32 %v5202, %v5227
    %v5232 = vmul.f32 %v5204, %v5228
    %v5233 = vadd.f32 %v3915, %v5231
    %v5234 = vadd.f32 %v3917, %v5232
    %v5235 = vtanh.pop %v5233
    %v5236 = vtanh.pop %v5234
    %v5237 = vsub.f32 1.0, %v5222
    %v5238 = vsub.f32 1.0, %v5224
    %v5239 = vmul.f32 %v5237, %v5235
    %v5240 = vmul.f32 %v5238, %v5236
    %v5241 = vrot.slane %v4964, 6
    %v5242 = vrot.slane %v4965, 6
    %v5245 = vmul.f32 %v5222, %v5241
    %v5246 = vmul.f32 %v5224, %v5242
    %v5247 = vadd.f32 %v5239, %v5245
    %v5248 = vadd.f32 %v5240, %v5246
    %v5251 = vrot.slane %v5247, 6
    %v5252 = vrot.slane %v5248, 6
    %5255 = vmatprep.subr.mxu0 %v3926
    %5256 = vmatpush1.msra.mxu0 %v3925
    %5257 = vmatprep.subr.mxu0 %v3932
    %5258 = vmatpush1.msra.mxu0 %v3931
    %5259 = vmatprep.subr.mxu0 %v3938
    %5260 = vmatpush1.msra.mxu0 %v3937
    %5261 = vmatprep.subr.mxu0 %v3944
    %5262 = vmatpush1.msra.mxu0 %v3943
    %5263 = vmatprep.subr.mxu0 %v3950
    %5264 = vmatpush1.msra.mxu0 %v3949
    %5265 = vmatprep.subr.mxu0 %v3956
    %5266 = vmatpush1.msra.mxu0 %v3955
    %5267 = vmatprep.subr.mxu0 %v3962
    %5268 = vmatpush1.msra.mxu0 %v3961
    %5269 = vmatprep.subr.mxu0 %v3968
    %5270 = vmatpush1.msra.mxu0 %v3967
    %5271 = vmatprep.subr.mxu0 %v3974
    %5272 = vmatpush1.msra.mxu0 %v3973
    %5273 = vmatprep.subr.mxu0 %v3980
    %5274 = vmatpush1.msra.mxu0 %v3979
    %5275 = vmatprep.subr.mxu0 %v3986
    %5276 = vmatpush1.msra.mxu0 %v3985
    %5277 = vmatprep.subr.mxu0 %v3992
    %5278 = vmatpush1.msra.mxu0 %v3991
    %5279 = vmatprep.subr.mxu0 %v3998
    %5280 = vmatpush1.msra.mxu0 %v3997
    %5281 = vmatprep.subr.mxu0 %v4004
    %5282 = vmatpush1.msra.mxu0 %v4003
    %5283 = vmatprep.subr.mxu0 %v4010
    %5284 = vmatpush1.msra.mxu0 %v4009
    %5285 = vmatprep.subr.mxu0 %v4016
    %5286 = vmatpush1.msra.mxu0 %v4015
    %5287 = vmatprep.subr.mxu0 %v4022
    %5288 = vmatpush1.msra.mxu0 %v4021
    %5289 = vmatprep.subr.mxu0 %v4028
    %5290 = vmatpush1.msra.mxu0 %v4027
    %5291 = vmatprep.subr.mxu0 %v4034
    %5292 = vmatpush1.msra.mxu0 %v4033
    %5293 = vmatprep.subr.mxu0 %v4040
    %5294 = vmatpush1.msra.mxu0 %v4039
    %5295 = vmatprep.subr.mxu0 %v4046
    %5296 = vmatpush1.msra.mxu0 %v4045
    %5297 = vmatprep.subr.mxu0 %v4052
    %5298 = vmatpush1.msra.mxu0 %v4051
    %5299 = vmatprep.subr.mxu0 %v4058
    %5300 = vmatpush1.msra.mxu0 %v4057
    %5301 = vmatprep.subr.mxu0 %v4064
    %5302 = vmatpush1.msra.mxu0 %v4063
    %5303 = vmatprep.subr.mxu0 %v4070
    %5304 = vmatpush1.msra.mxu0 %v4069
    %5305 = vmatprep.subr.mxu0 %v4076
    %5306 = vmatpush1.msra.mxu0 %v4075
    %5307 = vmatprep.subr.mxu0 %v4082
    %5308 = vmatpush1.msra.mxu0 %v4081
    %5309 = vmatprep.subr.mxu0 %v4088
    %5310 = vmatpush1.msra.mxu0 %v4087
    %5311 = vmatprep.subr.mxu0 %v4094
    %5312 = vmatpush1.msra.mxu0 %v4093
    %5313 = vmatprep.subr.mxu0 %v4100
    %5314 = vmatpush1.msra.mxu0 %v4099
    %5315 = vmatprep.subr.mxu0 %v4106
    %5316 = vmatpush1.msra.mxu0 %v4105
    %5317 = vmatprep.subr.mxu0 %v4112
    %5318 = vmatpush1.msra.mxu0 %v4111
    %5319 = vmatprep.mubr.f32.mxu0 %v5252
    %5320 = vmatmul.mubr.f32.gmra.mrb[0].mxu0 %v5251
    %v5321 = vpop.f32.mrb[0].mxu0
    %v5322 = vadd.f32 %v4122, %v5321
    %v5323 = vpop.f32.mrb[0].mxu0
    %v5324 = vadd.f32 %v4126, %v5323
    %5325 = vdwg.mxu0
    %5326 = vmatprep.subr.mxu0 %v3928
    %5327 = vmatpush1.msra.mxu0 %v3927
    %5328 = vmatprep.subr.mxu0 %v3934
    %5329 = vmatpush1.msra.mxu0 %v3933
    %5330 = vmatprep.subr.mxu0 %v3940
    %5331 = vmatpush1.msra.mxu0 %v3939
    %5332 = vmatprep.subr.mxu0 %v3946
    %5333 = vmatpush1.msra.mxu0 %v3945
    %5334 = vmatprep.subr.mxu0 %v3952
    %5335 = vmatpush1.msra.mxu0 %v3951
    %5336 = vmatprep.subr.mxu0 %v3958
    %5337 = vmatpush1.msra.mxu0 %v3957
    %5338 = vmatprep.subr.mxu0 %v3964
    %5339 = vmatpush1.msra.mxu0 %v3963
    %5340 = vmatprep.subr.mxu0 %v3970
    %5341 = vmatpush1.msra.mxu0 %v3969
    %5342 = vmatprep.subr.mxu0 %v3976
    %5343 = vmatpush1.msra.mxu0 %v3975
    %5344 = vmatprep.subr.mxu0 %v3982
    %5345 = vmatpush1.msra.mxu0 %v3981
    %5346 = vmatprep.subr.mxu0 %v3988
    %5347 = vmatpush1.msra.mxu0 %v3987
    %5348 = vmatprep.subr.mxu0 %v3994
    %5349 = vmatpush1.msra.mxu0 %v3993
    %5350 = vmatprep.subr.mxu0 %v4000
    %5351 = vmatpush1.msra.mxu0 %v3999
    %5352 = vmatprep.subr.mxu0 %v4006
    %5353 = vmatpush1.msra.mxu0 %v4005
    %5354 = vmatprep.subr.mxu0 %v4012
    %5355 = vmatpush1.msra.mxu0 %v4011
    %5356 = vmatprep.subr.mxu0 %v4018
    %5357 = vmatpush1.msra.mxu0 %v4017
    %5358 = vmatprep.subr.mxu0 %v4024
    %5359 = vmatpush1.msra.mxu0 %v4023
    %5360 = vmatprep.subr.mxu0 %v4030
    %5361 = vmatpush1.msra.mxu0 %v4029
    %5362 = vmatprep.subr.mxu0 %v4036
    %5363 = vmatpush1.msra.mxu0 %v4035
    %5364 = vmatprep.subr.mxu0 %v4042
    %5365 = vmatpush1.msra.mxu0 %v4041
    %5366 = vmatprep.subr.mxu0 %v4048
    %5367 = vmatpush1.msra.mxu0 %v4047
    %5368 = vmatprep.subr.mxu0 %v4054
    %5369 = vmatpush1.msra.mxu0 %v4053
    %5370 = vmatprep.subr.mxu0 %v4060
    %5371 = vmatpush1.msra.mxu0 %v4059
    %5372 = vmatprep.subr.mxu0 %v4066
    %5373 = vmatpush1.msra.mxu0 %v4065
    %5374 = vmatprep.subr.mxu0 %v4072
    %5375 = vmatpush1.msra.mxu0 %v4071
    %5376 = vmatprep.subr.mxu0 %v4078
    %5377 = vmatpush1.msra.mxu0 %v4077
    %5378 = vmatprep.subr.mxu0 %v4084
    %5379 = vmatpush1.msra.mxu0 %v4083
    %5380 = vmatprep.subr.mxu0 %v4090
    %5381 = vmatpush1.msra.mxu0 %v4089
    %5382 = vmatprep.subr.mxu0 %v4096
    %5383 = vmatpush1.msra.mxu0 %v4095
    %5384 = vmatprep.subr.mxu0 %v4102
    %5385 = vmatpush1.msra.mxu0 %v4101
    %5386 = vmatprep.subr.mxu0 %v4108
    %5387 = vmatpush1.msra.mxu0 %v4107
    %5388 = vmatprep.subr.mxu0 %v4114
    %5389 = vmatpush1.msra.mxu0 %v4113
    %5390 = vmatprep.mubr.f32.mxu0 %v5252
    %5391 = vmatmul.mubr.f32.gmra.mrb[0].mxu0 %v5251
    %v5392 = vpop.f32.mrb[0].mxu0
    %v5393 = vadd.f32 %v4130, %v5392
    %v5394 = vpop.f32.mrb[0].mxu0
    %v5395 = vadd.f32 %v4134, %v5394
    %5396 = vdwg.mxu0
    %5397 = vmatprep.subr.mxu0 %v3930
    %5398 = vmatpush1.msra.mxu0 %v3929
    %5399 = vmatprep.subr.mxu0 %v3936
    %5400 = vmatpush1.msra.mxu0 %v3935
    %5401 = vmatprep.subr.mxu0 %v3942
    %5402 = vmatpush1.msra.mxu0 %v3941
    %5403 = vmatprep.subr.mxu0 %v3948
    %5404 = vmatpush1.msra.mxu0 %v3947
    %5405 = vmatprep.subr.mxu0 %v3954
    %5406 = vmatpush1.msra.mxu0 %v3953
    %5407 = vmatprep.subr.mxu0 %v3960
    %5408 = vmatpush1.msra.mxu0 %v3959
    %5409 = vmatprep.subr.mxu0 %v3966
    %5410 = vmatpush1.msra.mxu0 %v3965
    %5411 = vmatprep.subr.mxu0 %v3972
    %5412 = vmatpush1.msra.mxu0 %v3971
    %5413 = vmatprep.subr.mxu0 %v3978
    %5414 = vmatpush1.msra.mxu0 %v3977
    %5415 = vmatprep.subr.mxu0 %v3984
    %5416 = vmatpush1.msra.mxu0 %v3983
    %5417 = vmatprep.subr.mxu0 %v3990
    %5418 = vmatpush1.msra.mxu0 %v3989
    %5419 = vmatprep.subr.mxu0 %v3996
    %5420 = vmatpush1.msra.mxu0 %v3995
    %5421 = vmatprep.subr.mxu0 %v4002
    %5422 = vmatpush1.msra.mxu0 %v4001
    %5423 = vmatprep.subr.mxu0 %v4008
    %5424 = vmatpush1.msra.mxu0 %v4007
    %5425 = vmatprep.subr.mxu0 %v4014
    %5426 = vmatpush1.msra.mxu0 %v4013
    %5427 = vmatprep.subr.mxu0 %v4020
    %5428 = vmatpush1.msra.mxu0 %v4019
    %5429 = vmatprep.subr.mxu0 %v4026
    %5430 = vmatpush1.msra.mxu0 %v4025
    %5431 = vmatprep.subr.mxu0 %v4032
    %5432 = vmatpush1.msra.mxu0 %v4031
    %5433 = vmatprep.subr.mxu0 %v4038
    %5434 = vmatpush1.msra.mxu0 %v4037
    %5435 = vmatprep.subr.mxu0 %v4044
    %5436 = vmatpush1.msra.mxu0 %v4043
    %5437 = vmatprep.subr.mxu0 %v4050
    %5438 = vmatpush1.msra.mxu0 %v4049
    %5439 = vmatprep.subr.mxu0 %v4056
    %5440 = vmatpush1.msra.mxu0 %v4055
    %5441 = vmatprep.subr.mxu0 %v4062
    %5442 = vmatpush1.msra.mxu0 %v4061
    %5443 = vmatprep.subr.mxu0 %v4068
    %5444 = vmatpush1.msra.mxu0 %v4067
    %5445 = vmatprep.subr.mxu0 %v4074
    %5446 = vmatpush1.msra.mxu0 %v4073
    %5447 = vmatprep.subr.mxu0 %v4080
    %5448 = vmatpush1.msra.mxu0 %v4079
    %5449 = vmatprep.subr.mxu0 %v4086
    %5450 = vmatpush1.msra.mxu0 %v4085
    %5451 = vmatprep.subr.mxu0 %v4092
    %5452 = vmatpush1.msra.mxu0 %v4091
    %5453 = vmatprep.subr.mxu0 %v4098
    %5454 = vmatpush1.msra.mxu0 %v4097
    %5455 = vmatprep.subr.mxu0 %v4104
    %5456 = vmatpush1.msra.mxu0 %v4103
    %5457 = vmatprep.subr.mxu0 %v4110
    %5458 = vmatpush1.msra.mxu0 %v4109
    %5459 = vmatprep.subr.mxu0 %v4116
    %5460 = vmatpush1.msra.mxu0 %v4115
    %5461 = vmatprep.mubr.f32.mxu0 %v5252
    %5462 = vmatmul.mubr.f32.gmra.mrb[0].mxu0 %v5251
    %v5463 = vpop.f32.mrb[0].mxu0
    %v5464 = vadd.f32 %v4138, %v5463
    %v5465 = vpop.f32.mrb[0].mxu0
    %v5466 = vadd.f32 %v4142, %v5465
    %5467 = vdwg.mxu0
    %v5468 = vadd.f32 %v3767, %v5322
    %v5469 = vadd.f32 %v3769, %v5324
    %v5470 = vxor.u32 %v5468, 2147483648
    %v5471 = vxor.u32 %v5469, 2147483648
    %v5472 = vmul.f32 %v5470, 1.442695
    %v5473 = vpow.pop %v5472
    %v5474 = vmul.f32 %v5471, 1.442695
    %v5475 = vpow.pop %v5474
    %v5476 = vadd.f32 %v5473, 1.0
    %v5477 = vadd.f32 %v5475, 1.0
    %v5478 = vrcp.pop %v5476
    %v5479 = vmul.f32 1.0, %v5478
    %v5480 = vrcp.pop %v5477
    %v5481 = vmul.f32 1.0, %v5480
    %v5482 = vadd.f32 %v3844, %v5393
    %v5483 = vadd.f32 %v3846, %v5395
    %v5484 = vxor.u32 %v5482, 2147483648
    %v5485 = vxor.u32 %v5483, 2147483648
    %v5486 = vmul.f32 %v5484, 1.442695
    %v5487 = vpow.pop %v5486
    %v5488 = vmul.f32 %v5485, 1.442695
    %v5489 = vpow.pop %v5488
    %v5490 = vadd.f32 %v5487, 1.0
    %v5491 = vadd.f32 %v5489, 1.0
    %v5492 = vrcp.pop %v5490
    %v5493 = vmul.f32 1.0, %v5492
    %v5494 = vrcp.pop %v5491
    %v5495 = vmul.f32 1.0, %v5494
    %v5496 = vmul.f32 %v5479, %v5464
    %v5497 = vmul.f32 %v5481, %v5466
    %v5498 = vadd.f32 %v3921, %v5496
    %v5499 = vadd.f32 %v3923, %v5497
    %v5500 = vtanh.pop %v5498
    %v5501 = vtanh.pop %v5499
    %v5502 = vsub.f32 1.0, %v5493
    %v5503 = vsub.f32 1.0, %v5495
    %v5504 = vmul.f32 %v5502, %v5500
    %v5505 = vmul.f32 %v5503, %v5501
    %v5506 = vmul.f32 %v5493, %v5251
    %v5507 = vmul.f32 %v5495, %v5252
    %v5508 = vadd.f32 %v5504, %v5506
    %v5509 = vadd.f32 %v5505, %v5507
    %5510 = vmatprep.subr.mxu0 %v3926
    %5511 = vmatpush1.msra.mxu0 %v3925
    %5512 = vmatprep.subr.mxu0 %v3932
    %5513 = vmatpush1.msra.mxu0 %v3931
    %5514 = vmatprep.subr.mxu0 %v3938
    %5515 = vmatpush1.msra.mxu0 %v3937
    %5516 = vmatprep.subr.mxu0 %v3944
    %5517 = vmatpush1.msra.mxu0 %v3943
    %5518 = vmatprep.subr.mxu0 %v3950
    %5519 = vmatpush1.msra.mxu0 %v3949
    %5520 = vmatprep.subr.mxu0 %v3956
    %5521 = vmatpush1.msra.mxu0 %v3955
    %5522 = vmatprep.subr.mxu0 %v3962
    %5523 = vmatpush1.msra.mxu0 %v3961
    %5524 = vmatprep.subr.mxu0 %v3968
    %5525 = vmatpush1.msra.mxu0 %v3967
    %5526 = vmatprep.subr.mxu0 %v3974
    %5527 = vmatpush1.msra.mxu0 %v3973
    %5528 = vmatprep.subr.mxu0 %v3980
    %5529 = vmatpush1.msra.mxu0 %v3979
    %5530 = vmatprep.subr.mxu0 %v3986
    %5531 = vmatpush1.msra.mxu0 %v3985
    %5532 = vmatprep.subr.mxu0 %v3992
    %5533 = vmatpush1.msra.mxu0 %v3991
    %5534 = vmatprep.subr.mxu0 %v3998
    %5535 = vmatpush1.msra.mxu0 %v3997
    %5536 = vmatprep.subr.mxu0 %v4004
    %5537 = vmatpush1.msra.mxu0 %v4003
    %5538 = vmatprep.subr.mxu0 %v4010
    %5539 = vmatpush1.msra.mxu0 %v4009
    %5540 = vmatprep.subr.mxu0 %v4016
    %5541 = vmatpush1.msra.mxu0 %v4015
    %5542 = vmatprep.subr.mxu0 %v4022
    %5543 = vmatpush1.msra.mxu0 %v4021
    %5544 = vmatprep.subr.mxu0 %v4028
    %5545 = vmatpush1.msra.mxu0 %v4027
    %5546 = vmatprep.subr.mxu0 %v4034
    %5547 = vmatpush1.msra.mxu0 %v4033
    %5548 = vmatprep.subr.mxu0 %v4040
    %5549 = vmatpush1.msra.mxu0 %v4039
    %5550 = vmatprep.subr.mxu0 %v4046
    %5551 = vmatpush1.msra.mxu0 %v4045
    %5552 = vmatprep.subr.mxu0 %v4052
    %5553 = vmatpush1.msra.mxu0 %v4051
    %5554 = vmatprep.subr.mxu0 %v4058
    %5555 = vmatpush1.msra.mxu0 %v4057
    %5556 = vmatprep.subr.mxu0 %v4064
    %5557 = vmatpush1.msra.mxu0 %v4063
    %5558 = vmatprep.subr.mxu0 %v4070
    %5559 = vmatpush1.msra.mxu0 %v4069
    %5560 = vmatprep.subr.mxu0 %v4076
    %5561 = vmatpush1.msra.mxu0 %v4075
    %5562 = vmatprep.subr.mxu0 %v4082
    %5563 = vmatpush1.msra.mxu0 %v4081
    %5564 = vmatprep.subr.mxu0 %v4088
    %5565 = vmatpush1.msra.mxu0 %v4087
    %5566 = vmatprep.subr.mxu0 %v4094
    %5567 = vmatpush1.msra.mxu0 %v4093
    %5568 = vmatprep.subr.mxu0 %v4100
    %5569 = vmatpush1.msra.mxu0 %v4099
    %5570 = vmatprep.subr.mxu0 %v4106
    %5571 = vmatpush1.msra.mxu0 %v4105
    %5572 = vmatprep.subr.mxu0 %v4112
    %5573 = vmatpush1.msra.mxu0 %v4111
    %5574 = vmatprep.mubr.f32.mxu0 %v5509
    %5575 = vmatmul.mubr.f32.gmra.mrb[0].mxu0 %v5508
    %v5576 = vpop.f32.mrb[0].mxu0
    %v5577 = vadd.f32 %v4122, %v5576
    %v5578 = vpop.f32.mrb[0].mxu0
    %v5579 = vadd.f32 %v4126, %v5578
    %5580 = vdwg.mxu0
    %5581 = vmatprep.subr.mxu0 %v3928
    %5582 = vmatpush1.msra.mxu0 %v3927
    %5583 = vmatprep.subr.mxu0 %v3934
    %5584 = vmatpush1.msra.mxu0 %v3933
    %5585 = vmatprep.subr.mxu0 %v3940
    %5586 = vmatpush1.msra.mxu0 %v3939
    %5587 = vmatprep.subr.mxu0 %v3946
    %5588 = vmatpush1.msra.mxu0 %v3945
    %5589 = vmatprep.subr.mxu0 %v3952
    %5590 = vmatpush1.msra.mxu0 %v3951
    %5591 = vmatprep.subr.mxu0 %v3958
    %5592 = vmatpush1.msra.mxu0 %v3957
    %5593 = vmatprep.subr.mxu0 %v3964
    %5594 = vmatpush1.msra.mxu0 %v3963
    %5595 = vmatprep.subr.mxu0 %v3970
    %5596 = vmatpush1.msra.mxu0 %v3969
    %5597 = vmatprep.subr.mxu0 %v3976
    %5598 = vmatpush1.msra.mxu0 %v3975
    %5599 = vmatprep.subr.mxu0 %v3982
    %5600 = vmatpush1.msra.mxu0 %v3981
    %5601 = vmatprep.subr.mxu0 %v3988
    %5602 = vmatpush1.msra.mxu0 %v3987
    %5603 = vmatprep.subr.mxu0 %v3994
    %5604 = vmatpush1.msra.mxu0 %v3993
    %5605 = vmatprep.subr.mxu0 %v4000
    %5606 = vmatpush1.msra.mxu0 %v3999
    %5607 = vmatprep.subr.mxu0 %v4006
    %5608 = vmatpush1.msra.mxu0 %v4005
    %5609 = vmatprep.subr.mxu0 %v4012
    %5610 = vmatpush1.msra.mxu0 %v4011
    %5611 = vmatprep.subr.mxu0 %v4018
    %5612 = vmatpush1.msra.mxu0 %v4017
    %5613 = vmatprep.subr.mxu0 %v4024
    %5614 = vmatpush1.msra.mxu0 %v4023
    %5615 = vmatprep.subr.mxu0 %v4030
    %5616 = vmatpush1.msra.mxu0 %v4029
    %5617 = vmatprep.subr.mxu0 %v4036
    %5618 = vmatpush1.msra.mxu0 %v4035
    %5619 = vmatprep.subr.mxu0 %v4042
    %5620 = vmatpush1.msra.mxu0 %v4041
    %5621 = vmatprep.subr.mxu0 %v4048
    %5622 = vmatpush1.msra.mxu0 %v4047
    %5623 = vmatprep.subr.mxu0 %v4054
    %5624 = vmatpush1.msra.mxu0 %v4053
    %5625 = vmatprep.subr.mxu0 %v4060
    %5626 = vmatpush1.msra.mxu0 %v4059
    %5627 = vmatprep.subr.mxu0 %v4066
    %5628 = vmatpush1.msra.mxu0 %v4065
    %5629 = vmatprep.subr.mxu0 %v4072
    %5630 = vmatpush1.msra.mxu0 %v4071
    %5631 = vmatprep.subr.mxu0 %v4078
    %5632 = vmatpush1.msra.mxu0 %v4077
    %5633 = vmatprep.subr.mxu0 %v4084
    %5634 = vmatpush1.msra.mxu0 %v4083
    %5635 = vmatprep.subr.mxu0 %v4090
    %5636 = vmatpush1.msra.mxu0 %v4089
    %5637 = vmatprep.subr.mxu0 %v4096
    %5638 = vmatpush1.msra.mxu0 %v4095
    %5639 = vmatprep.subr.mxu0 %v4102
    %5640 = vmatpush1.msra.mxu0 %v4101
    %5641 = vmatprep.subr.mxu0 %v4108
    %5642 = vmatpush1.msra.mxu0 %v4107
    %5643 = vmatprep.subr.mxu0 %v4114
    %5644 = vmatpush1.msra.mxu0 %v4113
    %5645 = vmatprep.mubr.f32.mxu0 %v5509
    %5646 = vmatmul.mubr.f32.gmra.mrb[0].mxu0 %v5508
    %v5647 = vpop.f32.mrb[0].mxu0
    %v5648 = vadd.f32 %v4130, %v5647
    %v5649 = vpop.f32.mrb[0].mxu0
    %v5650 = vadd.f32 %v4134, %v5649
    %5651 = vdwg.mxu0
    %5652 = vmatprep.subr.mxu0 %v3930
    %5653 = vmatpush1.msra.mxu0 %v3929
    %5654 = vmatprep.subr.mxu0 %v3936
    %5655 = vmatpush1.msra.mxu0 %v3935
    %5656 = vmatprep.subr.mxu0 %v3942
    %5657 = vmatpush1.msra.mxu0 %v3941
    %5658 = vmatprep.subr.mxu0 %v3948
    %5659 = vmatpush1.msra.mxu0 %v3947
    %5660 = vmatprep.subr.mxu0 %v3954
    %5661 = vmatpush1.msra.mxu0 %v3953
    %5662 = vmatprep.subr.mxu0 %v3960
    %5663 = vmatpush1.msra.mxu0 %v3959
    %5664 = vmatprep.subr.mxu0 %v3966
    %5665 = vmatpush1.msra.mxu0 %v3965
    %5666 = vmatprep.subr.mxu0 %v3972
    %5667 = vmatpush1.msra.mxu0 %v3971
    %5668 = vmatprep.subr.mxu0 %v3978
    %5669 = vmatpush1.msra.mxu0 %v3977
    %5670 = vmatprep.subr.mxu0 %v3984
    %5671 = vmatpush1.msra.mxu0 %v3983
    %5672 = vmatprep.subr.mxu0 %v3990
    %5673 = vmatpush1.msra.mxu0 %v3989
    %5674 = vmatprep.subr.mxu0 %v3996
    %5675 = vmatpush1.msra.mxu0 %v3995
    %5676 = vmatprep.subr.mxu0 %v4002
    %5677 = vmatpush1.msra.mxu0 %v4001
    %5678 = vmatprep.subr.mxu0 %v4008
    %5679 = vmatpush1.msra.mxu0 %v4007
    %5680 = vmatprep.subr.mxu0 %v4014
    %5681 = vmatpush1.msra.mxu0 %v4013
    %5682 = vmatprep.subr.mxu0 %v4020
    %5683 = vmatpush1.msra.mxu0 %v4019
    %5684 = vmatprep.subr.mxu0 %v4026
    %5685 = vmatpush1.msra.mxu0 %v4025
    %5686 = vmatprep.subr.mxu0 %v4032
    %5687 = vmatpush1.msra.mxu0 %v4031
    %5688 = vmatprep.subr.mxu0 %v4038
    %5689 = vmatpush1.msra.mxu0 %v4037
    %5690 = vmatprep.subr.mxu0 %v4044
    %5691 = vmatpush1.msra.mxu0 %v4043
    %5692 = vmatprep.subr.mxu0 %v4050
    %5693 = vmatpush1.msra.mxu0 %v4049
    %5694 = vmatprep.subr.mxu0 %v4056
    %5695 = vmatpush1.msra.mxu0 %v4055
    %5696 = vmatprep.subr.mxu0 %v4062
    %5697 = vmatpush1.msra.mxu0 %v4061
    %5698 = vmatprep.subr.mxu0 %v4068
    %5699 = vmatpush1.msra.mxu0 %v4067
    %5700 = vmatprep.subr.mxu0 %v4074
    %5701 = vmatpush1.msra.mxu0 %v4073
    %5702 = vmatprep.subr.mxu0 %v4080
    %5703 = vmatpush1.msra.mxu0 %v4079
    %5704 = vmatprep.subr.mxu0 %v4086
    %5705 = vmatpush1.msra.mxu0 %v4085
    %5706 = vmatprep.subr.mxu0 %v4092
    %5707 = vmatpush1.msra.mxu0 %v4091
    %5708 = vmatprep.subr.mxu0 %v4098
    %5709 = vmatpush1.msra.mxu0 %v4097
    %5710 = vmatprep.subr.mxu0 %v4104
    %5711 = vmatpush1.msra.mxu0 %v4103
    %5712 = vmatprep.subr.mxu0 %v4110
    %5713 = vmatpush1.msra.mxu0 %v4109
    %5714 = vmatprep.subr.mxu0 %v4116
    %5715 = vmatpush1.msra.mxu0 %v4115
    %5716 = vmatprep.mubr.f32.mxu0 %v5509
    %5717 = vmatmul.mubr.f32.gmra.mrb[0].mxu0 %v5508
    %v5718 = vpop.f32.mrb[0].mxu0
    %v5719 = vadd.f32 %v4138, %v5718
    %v5720 = vpop.f32.mrb[0].mxu0
    %v5721 = vadd.f32 %v4142, %v5720
    %5722 = vdwg.mxu0
    %v5725 = vrot.slane %v5577, 6
    %v5726 = vrot.slane %v5579, 6
    %v5729 = vadd.f32 %v3767, %v5725
    %v5730 = vadd.f32 %v3769, %v5726
    %v5731 = vxor.u32 %v5729, 2147483648
    %v5732 = vxor.u32 %v5730, 2147483648
    %v5733 = vmul.f32 %v5731, 1.442695
    %v5734 = vpow.pop %v5733
    %v5735 = vmul.f32 %v5732, 1.442695
    %v5736 = vpow.pop %v5735
    %v5737 = vadd.f32 %v5734, 1.0
    %v5738 = vadd.f32 %v5736, 1.0
    %v5739 = vrcp.pop %v5737
    %v5740 = vmul.f32 1.0, %v5739
    %v5741 = vrcp.pop %v5738
    %v5742 = vmul.f32 1.0, %v5741
    %v5745 = vrot.slane %v5648, 6
    %v5746 = vrot.slane %v5650, 6
    %v5749 = vadd.f32 %v3844, %v5745
    %v5750 = vadd.f32 %v3846, %v5746
    %v5751 = vxor.u32 %v5749, 2147483648
    %v5752 = vxor.u32 %v5750, 2147483648
    %v5753 = vmul.f32 %v5751, 1.442695
    %v5754 = vpow.pop %v5753
    %v5755 = vmul.f32 %v5752, 1.442695
    %v5756 = vpow.pop %v5755
    %v5757 = vadd.f32 %v5754, 1.0
    %v5758 = vadd.f32 %v5756, 1.0
    %v5759 = vrcp.pop %v5757
    %v5760 = vmul.f32 1.0, %v5759
    %v5761 = vrcp.pop %v5758
    %v5762 = vmul.f32 1.0, %v5761
    %v5765 = vrot.slane %v5719, 6
    %v5766 = vrot.slane %v5721, 6
    %v5769 = vmul.f32 %v5740, %v5765
    %v5770 = vmul.f32 %v5742, %v5766
    %v5771 = vadd.f32 %v3921, %v5769
    %v5772 = vadd.f32 %v3923, %v5770
    %v5773 = vtanh.pop %v5771
    %v5774 = vtanh.pop %v5772
    %v5775 = vsub.f32 1.0, %v5760
    %v5776 = vsub.f32 1.0, %v5762
    %v5777 = vmul.f32 %v5775, %v5773
    %v5778 = vmul.f32 %v5776, %v5774
    %v5781 = vrot.slane %v5508, 6
    %v5782 = vrot.slane %v5509, 6
    %v5785 = vmul.f32 %v5760, %v5781
    %v5786 = vmul.f32 %v5762, %v5782
    %v5787 = vadd.f32 %v5777, %v5785
    %v5788 = vadd.f32 %v5778, %v5786
    %v5791 = vrot.slane %v5787, 2
    %v5792 = vrot.slane %v5788, 2
    %5795 = vmatprep.subr.mxu0 %v3926
    %5796 = vmatpush1.msra.mxu0 %v3925
    %5797 = vmatprep.subr.mxu0 %v3932
    %5798 = vmatpush1.msra.mxu0 %v3931
    %5799 = vmatprep.subr.mxu0 %v3938
    %5800 = vmatpush1.msra.mxu0 %v3937
    %5801 = vmatprep.subr.mxu0 %v3944
    %5802 = vmatpush1.msra.mxu0 %v3943
    %5803 = vmatprep.subr.mxu0 %v3950
    %5804 = vmatpush1.msra.mxu0 %v3949
    %5805 = vmatprep.subr.mxu0 %v3956
    %5806 = vmatpush1.msra.mxu0 %v3955
    %5807 = vmatprep.subr.mxu0 %v3962
    %5808 = vmatpush1.msra.mxu0 %v3961
    %5809 = vmatprep.subr.mxu0 %v3968
    %5810 = vmatpush1.msra.mxu0 %v3967
    %5811 = vmatprep.subr.mxu0 %v3974
    %5812 = vmatpush1.msra.mxu0 %v3973
    %5813 = vmatprep.subr.mxu0 %v3980
    %5814 = vmatpush1.msra.mxu0 %v3979
    %5815 = vmatprep.subr.mxu0 %v3986
    %5816 = vmatpush1.msra.mxu0 %v3985
    %5817 = vmatprep.subr.mxu0 %v3992
    %5818 = vmatpush1.msra.mxu0 %v3991
    %5819 = vmatprep.subr.mxu0 %v3998
    %5820 = vmatpush1.msra.mxu0 %v3997
    %5821 = vmatprep.subr.mxu0 %v4004
    %5822 = vmatpush1.msra.mxu0 %v4003
    %5823 = vmatprep.subr.mxu0 %v4010
    %5824 = vmatpush1.msra.mxu0 %v4009
    %5825 = vmatprep.subr.mxu0 %v4016
    %5826 = vmatpush1.msra.mxu0 %v4015
    %5827 = vmatprep.subr.mxu0 %v4022
    %5828 = vmatpush1.msra.mxu0 %v4021
    %5829 = vmatprep.subr.mxu0 %v4028
    %5830 = vmatpush1.msra.mxu0 %v4027
    %5831 = vmatprep.subr.mxu0 %v4034
    %5832 = vmatpush1.msra.mxu0 %v4033
    %5833 = vmatprep.subr.mxu0 %v4040
    %5834 = vmatpush1.msra.mxu0 %v4039
    %5835 = vmatprep.subr.mxu0 %v4046
    %5836 = vmatpush1.msra.mxu0 %v4045
    %5837 = vmatprep.subr.mxu0 %v4052
    %5838 = vmatpush1.msra.mxu0 %v4051
    %5839 = vmatprep.subr.mxu0 %v4058
    %5840 = vmatpush1.msra.mxu0 %v4057
    %5841 = vmatprep.subr.mxu0 %v4064
    %5842 = vmatpush1.msra.mxu0 %v4063
    %5843 = vmatprep.subr.mxu0 %v4070
    %5844 = vmatpush1.msra.mxu0 %v4069
    %5845 = vmatprep.subr.mxu0 %v4076
    %5846 = vmatpush1.msra.mxu0 %v4075
    %5847 = vmatprep.subr.mxu0 %v4082
    %5848 = vmatpush1.msra.mxu0 %v4081
    %5849 = vmatprep.subr.mxu0 %v4088
    %5850 = vmatpush1.msra.mxu0 %v4087
    %5851 = vmatprep.subr.mxu0 %v4094
    %5852 = vmatpush1.msra.mxu0 %v4093
    %5853 = vmatprep.subr.mxu0 %v4100
    %5854 = vmatpush1.msra.mxu0 %v4099
    %5855 = vmatprep.subr.mxu0 %v4106
    %5856 = vmatpush1.msra.mxu0 %v4105
    %5857 = vmatprep.subr.mxu0 %v4112
    %5858 = vmatpush1.msra.mxu0 %v4111
    %5859 = vmatprep.mubr.f32.mxu0 %v5792
    %5860 = vmatmul.mubr.f32.gmra.mrb[0].mxu0 %v5791
    %v5861 = vpop.f32.mrb[0].mxu0
    %v5862 = vadd.f32 %v4122, %v5861
    %v5863 = vpop.f32.mrb[0].mxu0
    %v5864 = vadd.f32 %v4126, %v5863
    %5865 = vdwg.mxu0
    %5866 = vmatprep.subr.mxu0 %v3928
    %5867 = vmatpush1.msra.mxu0 %v3927
    %5868 = vmatprep.subr.mxu0 %v3934
    %5869 = vmatpush1.msra.mxu0 %v3933
    %5870 = vmatprep.subr.mxu0 %v3940
    %5871 = vmatpush1.msra.mxu0 %v3939
    %5872 = vmatprep.subr.mxu0 %v3946
    %5873 = vmatpush1.msra.mxu0 %v3945
    %5874 = vmatprep.subr.mxu0 %v3952
    %5875 = vmatpush1.msra.mxu0 %v3951
    %5876 = vmatprep.subr.mxu0 %v3958
    %5877 = vmatpush1.msra.mxu0 %v3957
    %5878 = vmatprep.subr.mxu0 %v3964
    %5879 = vmatpush1.msra.mxu0 %v3963
    %5880 = vmatprep.subr.mxu0 %v3970
    %5881 = vmatpush1.msra.mxu0 %v3969
    %5882 = vmatprep.subr.mxu0 %v3976
    %5883 = vmatpush1.msra.mxu0 %v3975
    %5884 = vmatprep.subr.mxu0 %v3982
    %5885 = vmatpush1.msra.mxu0 %v3981
    %5886 = vmatprep.subr.mxu0 %v3988
    %5887 = vmatpush1.msra.mxu0 %v3987
    %5888 = vmatprep.subr.mxu0 %v3994
    %5889 = vmatpush1.msra.mxu0 %v3993
    %5890 = vmatprep.subr.mxu0 %v4000
    %5891 = vmatpush1.msra.mxu0 %v3999
    %5892 = vmatprep.subr.mxu0 %v4006
    %5893 = vmatpush1.msra.mxu0 %v4005
    %5894 = vmatprep.subr.mxu0 %v4012
    %5895 = vmatpush1.msra.mxu0 %v4011
    %5896 = vmatprep.subr.mxu0 %v4018
    %5897 = vmatpush1.msra.mxu0 %v4017
    %5898 = vmatprep.subr.mxu0 %v4024
    %5899 = vmatpush1.msra.mxu0 %v4023
    %5900 = vmatprep.subr.mxu0 %v4030
    %5901 = vmatpush1.msra.mxu0 %v4029
    %5902 = vmatprep.subr.mxu0 %v4036
    %5903 = vmatpush1.msra.mxu0 %v4035
    %5904 = vmatprep.subr.mxu0 %v4042
    %5905 = vmatpush1.msra.mxu0 %v4041
    %5906 = vmatprep.subr.mxu0 %v4048
    %5907 = vmatpush1.msra.mxu0 %v4047
    %5908 = vmatprep.subr.mxu0 %v4054
    %5909 = vmatpush1.msra.mxu0 %v4053
    %5910 = vmatprep.subr.mxu0 %v4060
    %5911 = vmatpush1.msra.mxu0 %v4059
    %5912 = vmatprep.subr.mxu0 %v4066
    %5913 = vmatpush1.msra.mxu0 %v4065
    %5914 = vmatprep.subr.mxu0 %v4072
    %5915 = vmatpush1.msra.mxu0 %v4071
    %5916 = vmatprep.subr.mxu0 %v4078
    %5917 = vmatpush1.msra.mxu0 %v4077
    %5918 = vmatprep.subr.mxu0 %v4084
    %5919 = vmatpush1.msra.mxu0 %v4083
    %5920 = vmatprep.subr.mxu0 %v4090
    %5921 = vmatpush1.msra.mxu0 %v4089
    %5922 = vmatprep.subr.mxu0 %v4096
    %5923 = vmatpush1.msra.mxu0 %v4095
    %5924 = vmatprep.subr.mxu0 %v4102
    %5925 = vmatpush1.msra.mxu0 %v4101
    %5926 = vmatprep.subr.mxu0 %v4108
    %5927 = vmatpush1.msra.mxu0 %v4107
    %5928 = vmatprep.subr.mxu0 %v4114
    %5929 = vmatpush1.msra.mxu0 %v4113
    %5930 = vmatprep.mubr.f32.mxu0 %v5792
    %5931 = vmatmul.mubr.f32.gmra.mrb[0].mxu0 %v5791
    %v5932 = vpop.f32.mrb[0].mxu0
    %v5933 = vadd.f32 %v4130, %v5932
    %v5934 = vpop.f32.mrb[0].mxu0
    %v5935 = vadd.f32 %v4134, %v5934
    %5936 = vdwg.mxu0
    %5937 = vmatprep.subr.mxu0 %v3930
    %5938 = vmatpush1.msra.mxu0 %v3929
    %5939 = vmatprep.subr.mxu0 %v3936
    %5940 = vmatpush1.msra.mxu0 %v3935
    %5941 = vmatprep.subr.mxu0 %v3942
    %5942 = vmatpush1.msra.mxu0 %v3941
    %5943 = vmatprep.subr.mxu0 %v3948
    %5944 = vmatpush1.msra.mxu0 %v3947
    %5945 = vmatprep.subr.mxu0 %v3954
    %5946 = vmatpush1.msra.mxu0 %v3953
    %5947 = vmatprep.subr.mxu0 %v3960
    %5948 = vmatpush1.msra.mxu0 %v3959
    %5949 = vmatprep.subr.mxu0 %v3966
    %5950 = vmatpush1.msra.mxu0 %v3965
    %5951 = vmatprep.subr.mxu0 %v3972
    %5952 = vmatpush1.msra.mxu0 %v3971
    %5953 = vmatprep.subr.mxu0 %v3978
    %5954 = vmatpush1.msra.mxu0 %v3977
    %5955 = vmatprep.subr.mxu0 %v3984
    %5956 = vmatpush1.msra.mxu0 %v3983
    %5957 = vmatprep.subr.mxu0 %v3990
    %5958 = vmatpush1.msra.mxu0 %v3989
    %5959 = vmatprep.subr.mxu0 %v3996
    %5960 = vmatpush1.msra.mxu0 %v3995
    %5961 = vmatprep.subr.mxu0 %v4002
    %5962 = vmatpush1.msra.mxu0 %v4001
    %5963 = vmatprep.subr.mxu0 %v4008
    %5964 = vmatpush1.msra.mxu0 %v4007
    %5965 = vmatprep.subr.mxu0 %v4014
    %5966 = vmatpush1.msra.mxu0 %v4013
    %5967 = vmatprep.subr.mxu0 %v4020
    %5968 = vmatpush1.msra.mxu0 %v4019
    %5969 = vmatprep.subr.mxu0 %v4026
    %5970 = vmatpush1.msra.mxu0 %v4025
    %5971 = vmatprep.subr.mxu0 %v4032
    %5972 = vmatpush1.msra.mxu0 %v4031
    %5973 = vmatprep.subr.mxu0 %v4038
    %5974 = vmatpush1.msra.mxu0 %v4037
    %5975 = vmatprep.subr.mxu0 %v4044
    %5976 = vmatpush1.msra.mxu0 %v4043
    %5977 = vmatprep.subr.mxu0 %v4050
    %5978 = vmatpush1.msra.mxu0 %v4049
    %5979 = vmatprep.subr.mxu0 %v4056
    %5980 = vmatpush1.msra.mxu0 %v4055
    %5981 = vmatprep.subr.mxu0 %v4062
    %5982 = vmatpush1.msra.mxu0 %v4061
    %5983 = vmatprep.subr.mxu0 %v4068
    %5984 = vmatpush1.msra.mxu0 %v4067
    %5985 = vmatprep.subr.mxu0 %v4074
    %5986 = vmatpush1.msra.mxu0 %v4073
    %5987 = vmatprep.subr.mxu0 %v4080
    %5988 = vmatpush1.msra.mxu0 %v4079
    %5989 = vmatprep.subr.mxu0 %v4086
    %5990 = vmatpush1.msra.mxu0 %v4085
    %5991 = vmatprep.subr.mxu0 %v4092
    %5992 = vmatpush1.msra.mxu0 %v4091
    %5993 = vmatprep.subr.mxu0 %v4098
    %5994 = vmatpush1.msra.mxu0 %v4097
    %5995 = vmatprep.subr.mxu0 %v4104
    %5996 = vmatpush1.msra.mxu0 %v4103
    %5997 = vmatprep.subr.mxu0 %v4110
    %5998 = vmatpush1.msra.mxu0 %v4109
    %5999 = vmatprep.subr.mxu0 %v4116
    %6000 = vmatpush1.msra.mxu0 %v4115
    %6001 = vmatprep.mubr.f32.mxu0 %v5792
    %6002 = vmatmul.mubr.f32.gmra.mrb[0].mxu0 %v5791
    %v6003 = vpop.f32.mrb[0].mxu0
    %v6004 = vadd.f32 %v4138, %v6003
    %v6005 = vpop.f32.mrb[0].mxu0
    %v6006 = vadd.f32 %v4142, %v6005
    %6007 = vdwg.mxu0
    %v6010 = vrot.slane %v5862, 4
    %v6011 = vrot.slane %v5864, 4
    %v6014 = vadd.f32 %v3767, %v6010
    %v6015 = vadd.f32 %v3769, %v6011
    %v6016 = vxor.u32 %v6014, 2147483648
    %v6017 = vxor.u32 %v6015, 2147483648
    %v6018 = vmul.f32 %v6016, 1.442695
    %v6019 = vpow.pop %v6018
    %v6020 = vmul.f32 %v6017, 1.442695
    %v6021 = vpow.pop %v6020
    %v6022 = vadd.f32 %v6019, 1.0
    %v6023 = vadd.f32 %v6021, 1.0
    %v6024 = vrcp.pop %v6022
    %v6025 = vmul.f32 1.0, %v6024
    %v6026 = vrcp.pop %v6023
    %v6027 = vmul.f32 1.0, %v6026
    %v6030 = vrot.slane %v5933, 4
    %v6031 = vrot.slane %v5935, 4
    %v6034 = vadd.f32 %v3844, %v6030
    %v6035 = vadd.f32 %v3846, %v6031
    %v6036 = vxor.u32 %v6034, 2147483648
    %v6037 = vxor.u32 %v6035, 2147483648
    %v6038 = vmul.f32 %v6036, 1.442695
    %v6039 = vpow.pop %v6038
    %v6040 = vmul.f32 %v6037, 1.442695
    %v6041 = vpow.pop %v6040
    %v6042 = vadd.f32 %v6039, 1.0
    %v6043 = vadd.f32 %v6041, 1.0
    %v6044 = vrcp.pop %v6042
    %v6045 = vmul.f32 1.0, %v6044
    %v6046 = vrcp.pop %v6043
    %v6047 = vmul.f32 1.0, %v6046
    %v6050 = vrot.slane %v6004, 4
    %v6051 = vrot.slane %v6006, 4
    %v6054 = vmul.f32 %v6025, %v6050
    %v6055 = vmul.f32 %v6027, %v6051
    %v6056 = vadd.f32 %v3921, %v6054
    %v6057 = vadd.f32 %v3923, %v6055
    %v6058 = vtanh.pop %v6056
    %v6059 = vtanh.pop %v6057
    %v6060 = vsub.f32 1.0, %v6045
    %v6061 = vsub.f32 1.0, %v6047
    %v6062 = vmul.f32 %v6060, %v6058
    %v6063 = vmul.f32 %v6061, %v6059
    %v6064 = vrot.slane %v5787, 6
    %v6065 = vrot.slane %v5788, 6
    %v6068 = vmul.f32 %v6045, %v6064
    %v6069 = vmul.f32 %v6047, %v6065
    %v6070 = vadd.f32 %v6062, %v6068
    %v6071 = vadd.f32 %v6063, %v6069
    %v6074 = vrot.slane %v6070, 4
    %v6075 = vrot.slane %v6071, 4
    %6078 = vmatprep.subr.mxu0 %v3926
    %6079 = vmatpush1.msra.mxu0 %v3925
    %6080 = vmatprep.subr.mxu0 %v3932
    %6081 = vmatpush1.msra.mxu0 %v3931
    %6082 = vmatprep.subr.mxu0 %v3938
    %6083 = vmatpush1.msra.mxu0 %v3937
    %6084 = vmatprep.subr.mxu0 %v3944
    %6085 = vmatpush1.msra.mxu0 %v3943
    %6086 = vmatprep.subr.mxu0 %v3950
    %6087 = vmatpush1.msra.mxu0 %v3949
    %6088 = vmatprep.subr.mxu0 %v3956
    %6089 = vmatpush1.msra.mxu0 %v3955
    %6090 = vmatprep.subr.mxu0 %v3962
    %6091 = vmatpush1.msra.mxu0 %v3961
    %6092 = vmatprep.subr.mxu0 %v3968
    %6093 = vmatpush1.msra.mxu0 %v3967
    %6094 = vmatprep.subr.mxu0 %v3974
    %6095 = vmatpush1.msra.mxu0 %v3973
    %6096 = vmatprep.subr.mxu0 %v3980
    %6097 = vmatpush1.msra.mxu0 %v3979
    %6098 = vmatprep.subr.mxu0 %v3986
    %6099 = vmatpush1.msra.mxu0 %v3985
    %6100 = vmatprep.subr.mxu0 %v3992
    %6101 = vmatpush1.msra.mxu0 %v3991
    %6102 = vmatprep.subr.mxu0 %v3998
    %6103 = vmatpush1.msra.mxu0 %v3997
    %6104 = vmatprep.subr.mxu0 %v4004
    %6105 = vmatpush1.msra.mxu0 %v4003
    %6106 = vmatprep.subr.mxu0 %v4010
    %6107 = vmatpush1.msra.mxu0 %v4009
    %6108 = vmatprep.subr.mxu0 %v4016
    %6109 = vmatpush1.msra.mxu0 %v4015
    %6110 = vmatprep.subr.mxu0 %v4022
    %6111 = vmatpush1.msra.mxu0 %v4021
    %6112 = vmatprep.subr.mxu0 %v4028
    %6113 = vmatpush1.msra.mxu0 %v4027
    %6114 = vmatprep.subr.mxu0 %v4034
    %6115 = vmatpush1.msra.mxu0 %v4033
    %6116 = vmatprep.subr.mxu0 %v4040
    %6117 = vmatpush1.msra.mxu0 %v4039
    %6118 = vmatprep.subr.mxu0 %v4046
    %6119 = vmatpush1.msra.mxu0 %v4045
    %6120 = vmatprep.subr.mxu0 %v4052
    %6121 = vmatpush1.msra.mxu0 %v4051
    %6122 = vmatprep.subr.mxu0 %v4058
    %6123 = vmatpush1.msra.mxu0 %v4057
    %6124 = vmatprep.subr.mxu0 %v4064
    %6125 = vmatpush1.msra.mxu0 %v4063
    %6126 = vmatprep.subr.mxu0 %v4070
    %6127 = vmatpush1.msra.mxu0 %v4069
    %6128 = vmatprep.subr.mxu0 %v4076
    %6129 = vmatpush1.msra.mxu0 %v4075
    %6130 = vmatprep.subr.mxu0 %v4082
    %6131 = vmatpush1.msra.mxu0 %v4081
    %6132 = vmatprep.subr.mxu0 %v4088
    %6133 = vmatpush1.msra.mxu0 %v4087
    %6134 = vmatprep.subr.mxu0 %v4094
    %6135 = vmatpush1.msra.mxu0 %v4093
    %6136 = vmatprep.subr.mxu0 %v4100
    %6137 = vmatpush1.msra.mxu0 %v4099
    %6138 = vmatprep.subr.mxu0 %v4106
    %6139 = vmatpush1.msra.mxu0 %v4105
    %6140 = vmatprep.subr.mxu0 %v4112
    %6141 = vmatpush1.msra.mxu0 %v4111
    %6142 = vmatprep.mubr.f32.mxu0 %v6075
    %6143 = vmatmul.mubr.f32.gmra.mrb[0].mxu0 %v6074
    %v6144 = vpop.f32.mrb[0].mxu0
    %v6145 = vadd.f32 %v4122, %v6144
    %v6146 = vpop.f32.mrb[0].mxu0
    %v6147 = vadd.f32 %v4126, %v6146
    %6148 = vdwg.mxu0
    %6149 = vmatprep.subr.mxu0 %v3928
    %6150 = vmatpush1.msra.mxu0 %v3927
    %6151 = vmatprep.subr.mxu0 %v3934
    %6152 = vmatpush1.msra.mxu0 %v3933
    %6153 = vmatprep.subr.mxu0 %v3940
    %6154 = vmatpush1.msra.mxu0 %v3939
    %6155 = vmatprep.subr.mxu0 %v3946
    %6156 = vmatpush1.msra.mxu0 %v3945
    %6157 = vmatprep.subr.mxu0 %v3952
    %6158 = vmatpush1.msra.mxu0 %v3951
    %6159 = vmatprep.subr.mxu0 %v3958
    %6160 = vmatpush1.msra.mxu0 %v3957
    %6161 = vmatprep.subr.mxu0 %v3964
    %6162 = vmatpush1.msra.mxu0 %v3963
    %6163 = vmatprep.subr.mxu0 %v3970
    %6164 = vmatpush1.msra.mxu0 %v3969
    %6165 = vmatprep.subr.mxu0 %v3976
    %6166 = vmatpush1.msra.mxu0 %v3975
    %6167 = vmatprep.subr.mxu0 %v3982
    %6168 = vmatpush1.msra.mxu0 %v3981
    %6169 = vmatprep.subr.mxu0 %v3988
    %6170 = vmatpush1.msra.mxu0 %v3987
    %6171 = vmatprep.subr.mxu0 %v3994
    %6172 = vmatpush1.msra.mxu0 %v3993
    %6173 = vmatprep.subr.mxu0 %v4000
    %6174 = vmatpush1.msra.mxu0 %v3999
    %6175 = vmatprep.subr.mxu0 %v4006
    %6176 = vmatpush1.msra.mxu0 %v4005
    %6177 = vmatprep.subr.mxu0 %v4012
    %6178 = vmatpush1.msra.mxu0 %v4011
    %6179 = vmatprep.subr.mxu0 %v4018
    %6180 = vmatpush1.msra.mxu0 %v4017
    %6181 = vmatprep.subr.mxu0 %v4024
    %6182 = vmatpush1.msra.mxu0 %v4023
    %6183 = vmatprep.subr.mxu0 %v4030
    %6184 = vmatpush1.msra.mxu0 %v4029
    %6185 = vmatprep.subr.mxu0 %v4036
    %6186 = vmatpush1.msra.mxu0 %v4035
    %6187 = vmatprep.subr.mxu0 %v4042
    %6188 = vmatpush1.msra.mxu0 %v4041
    %6189 = vmatprep.subr.mxu0 %v4048
    %6190 = vmatpush1.msra.mxu0 %v4047
    %6191 = vmatprep.subr.mxu0 %v4054
    %6192 = vmatpush1.msra.mxu0 %v4053
    %6193 = vmatprep.subr.mxu0 %v4060
    %6194 = vmatpush1.msra.mxu0 %v4059
    %6195 = vmatprep.subr.mxu0 %v4066
    %6196 = vmatpush1.msra.mxu0 %v4065
    %6197 = vmatprep.subr.mxu0 %v4072
    %6198 = vmatpush1.msra.mxu0 %v4071
    %6199 = vmatprep.subr.mxu0 %v4078
    %6200 = vmatpush1.msra.mxu0 %v4077
    %6201 = vmatprep.subr.mxu0 %v4084
    %6202 = vmatpush1.msra.mxu0 %v4083
    %6203 = vmatprep.subr.mxu0 %v4090
    %6204 = vmatpush1.msra.mxu0 %v4089
    %6205 = vmatprep.subr.mxu0 %v4096
    %6206 = vmatpush1.msra.mxu0 %v4095
    %6207 = vmatprep.subr.mxu0 %v4102
    %6208 = vmatpush1.msra.mxu0 %v4101
    %6209 = vmatprep.subr.mxu0 %v4108
    %6210 = vmatpush1.msra.mxu0 %v4107
    %6211 = vmatprep.subr.mxu0 %v4114
    %6212 = vmatpush1.msra.mxu0 %v4113
    %6213 = vmatprep.mubr.f32.mxu0 %v6075
    %6214 = vmatmul.mubr.f32.gmra.mrb[0].mxu0 %v6074
    %v6215 = vpop.f32.mrb[0].mxu0
    %v6216 = vadd.f32 %v4130, %v6215
    %v6217 = vpop.f32.mrb[0].mxu0
    %v6218 = vadd.f32 %v4134, %v6217
    %6219 = vdwg.mxu0
    %6220 = vmatprep.subr.mxu0 %v3930
    %6221 = vmatpush1.msra.mxu0 %v3929
    %6222 = vmatprep.subr.mxu0 %v3936
    %6223 = vmatpush1.msra.mxu0 %v3935
    %6224 = vmatprep.subr.mxu0 %v3942
    %6225 = vmatpush1.msra.mxu0 %v3941
    %6226 = vmatprep.subr.mxu0 %v3948
    %6227 = vmatpush1.msra.mxu0 %v3947
    %6228 = vmatprep.subr.mxu0 %v3954
    %6229 = vmatpush1.msra.mxu0 %v3953
    %6230 = vmatprep.subr.mxu0 %v3960
    %6231 = vmatpush1.msra.mxu0 %v3959
    %6232 = vmatprep.subr.mxu0 %v3966
    %6233 = vmatpush1.msra.mxu0 %v3965
    %6234 = vmatprep.subr.mxu0 %v3972
    %6235 = vmatpush1.msra.mxu0 %v3971
    %6236 = vmatprep.subr.mxu0 %v3978
    %6237 = vmatpush1.msra.mxu0 %v3977
    %6238 = vmatprep.subr.mxu0 %v3984
    %6239 = vmatpush1.msra.mxu0 %v3983
    %6240 = vmatprep.subr.mxu0 %v3990
    %6241 = vmatpush1.msra.mxu0 %v3989
    %6242 = vmatprep.subr.mxu0 %v3996
    %6243 = vmatpush1.msra.mxu0 %v3995
    %6244 = vmatprep.subr.mxu0 %v4002
    %6245 = vmatpush1.msra.mxu0 %v4001
    %6246 = vmatprep.subr.mxu0 %v4008
    %6247 = vmatpush1.msra.mxu0 %v4007
    %6248 = vmatprep.subr.mxu0 %v4014
    %6249 = vmatpush1.msra.mxu0 %v4013
    %6250 = vmatprep.subr.mxu0 %v4020
    %6251 = vmatpush1.msra.mxu0 %v4019
    %6252 = vmatprep.subr.mxu0 %v4026
    %6253 = vmatpush1.msra.mxu0 %v4025
    %6254 = vmatprep.subr.mxu0 %v4032
    %6255 = vmatpush1.msra.mxu0 %v4031
    %6256 = vmatprep.subr.mxu0 %v4038
    %6257 = vmatpush1.msra.mxu0 %v4037
    %6258 = vmatprep.subr.mxu0 %v4044
    %6259 = vmatpush1.msra.mxu0 %v4043
    %6260 = vmatprep.subr.mxu0 %v4050
    %6261 = vmatpush1.msra.mxu0 %v4049
    %6262 = vmatprep.subr.mxu0 %v4056
    %6263 = vmatpush1.msra.mxu0 %v4055
    %6264 = vmatprep.subr.mxu0 %v4062
    %6265 = vmatpush1.msra.mxu0 %v4061
    %6266 = vmatprep.subr.mxu0 %v4068
    %6267 = vmatpush1.msra.mxu0 %v4067
    %6268 = vmatprep.subr.mxu0 %v4074
    %6269 = vmatpush1.msra.mxu0 %v4073
    %6270 = vmatprep.subr.mxu0 %v4080
    %6271 = vmatpush1.msra.mxu0 %v4079
    %6272 = vmatprep.subr.mxu0 %v4086
    %6273 = vmatpush1.msra.mxu0 %v4085
    %6274 = vmatprep.subr.mxu0 %v4092
    %6275 = vmatpush1.msra.mxu0 %v4091
    %6276 = vmatprep.subr.mxu0 %v4098
    %6277 = vmatpush1.msra.mxu0 %v4097
    %6278 = vmatprep.subr.mxu0 %v4104
    %6279 = vmatpush1.msra.mxu0 %v4103
    %6280 = vmatprep.subr.mxu0 %v4110
    %6281 = vmatpush1.msra.mxu0 %v4109
    %6282 = vmatprep.subr.mxu0 %v4116
    %6283 = vmatpush1.msra.mxu0 %v4115
    %6284 = vmatprep.mubr.f32.mxu0 %v6075
    %6285 = vmatmul.mubr.f32.gmra.mrb[0].mxu0 %v6074
    %v6286 = vpop.f32.mrb[0].mxu0
    %v6287 = vadd.f32 %v4138, %v6286
    %v6288 = vpop.f32.mrb[0].mxu0
    %v6289 = vadd.f32 %v4142, %v6288
    %6290 = vdwg.mxu0
    %v6293 = vrot.slane %v6145, 2
    %v6294 = vrot.slane %v6147, 2
    %v6297 = vadd.f32 %v3767, %v6293
    %v6298 = vadd.f32 %v3769, %v6294
    %v6299 = vxor.u32 %v6297, 2147483648
    %v6300 = vxor.u32 %v6298, 2147483648
    %v6301 = vmul.f32 %v6299, 1.442695
    %v6302 = vpow.pop %v6301
    %v6303 = vmul.f32 %v6300, 1.442695
    %v6304 = vpow.pop %v6303
    %v6305 = vadd.f32 %v6302, 1.0
    %v6306 = vadd.f32 %v6304, 1.0
    %v6307 = vrcp.pop %v6305
    %v6308 = vmul.f32 1.0, %v6307
    %v6309 = vrcp.pop %v6306
    %v6310 = vmul.f32 1.0, %v6309
    %v6313 = vrot.slane %v6216, 2
    %v6314 = vrot.slane %v6218, 2
    %v6317 = vadd.f32 %v3844, %v6313
    %v6318 = vadd.f32 %v3846, %v6314
    %v6319 = vxor.u32 %v6317, 2147483648
    %v6320 = vxor.u32 %v6318, 2147483648
    %v6321 = vmul.f32 %v6319, 1.442695
    %v6322 = vpow.pop %v6321
    %v6323 = vmul.f32 %v6320, 1.442695
    %v6324 = vpow.pop %v6323
    %v6325 = vadd.f32 %v6322, 1.0
    %v6326 = vadd.f32 %v6324, 1.0
    %v6327 = vrcp.pop %v6325
    %v6328 = vmul.f32 1.0, %v6327
    %v6329 = vrcp.pop %v6326
    %v6330 = vmul.f32 1.0, %v6329
    %v6333 = vrot.slane %v6287, 2
    %v6334 = vrot.slane %v6289, 2
    %v6337 = vmul.f32 %v6308, %v6333
    %v6338 = vmul.f32 %v6310, %v6334
    %v6339 = vadd.f32 %v3921, %v6337
    %v6340 = vadd.f32 %v3923, %v6338
    %v6341 = vtanh.pop %v6339
    %v6342 = vtanh.pop %v6340
    %v6343 = vsub.f32 1.0, %v6328
    %v6344 = vsub.f32 1.0, %v6330
    %v6345 = vmul.f32 %v6343, %v6341
    %v6346 = vmul.f32 %v6344, %v6342
    %v6347 = vrot.slane %v6070, 6
    %v6348 = vrot.slane %v6071, 6
    %v6351 = vmul.f32 %v6328, %v6347
    %v6352 = vmul.f32 %v6330, %v6348
    %v6353 = vadd.f32 %v6345, %v6351
    %v6354 = vadd.f32 %v6346, %v6352
    %v6355 = vld [vmem:[#allocation6] sm:$0xff]
    %v6356 = vld [vmem:[#allocation6 + $0x8] sm:$0xff]
    %v6357 = vld [vmem:[#allocation6 + $0x10] sm:$0xff]
    %v6358 = vld [vmem:[#allocation6 + $0x18] sm:$0xff]
    %v6359 = vld [vmem:[#allocation6 + $0x20] sm:$0xff]
    %v6360 = vld [vmem:[#allocation6 + $0x28] sm:$0xff]
    %v6361 = vld [vmem:[#allocation6 + $0x30] sm:$0xff]
    %v6362 = vld [vmem:[#allocation6 + $0x38] sm:$0xff]
    %v6363 = vld [vmem:[#allocation6 + $0x40] sm:$0xff]
    %v6364 = vld [vmem:[#allocation6 + $0x48] sm:$0xff]
    %v6365 = vld [vmem:[#allocation6 + $0x50] sm:$0xff]
    %v6366 = vld [vmem:[#allocation6 + $0x58] sm:$0xff]
    %v6367 = vld [vmem:[#allocation6 + $0x60] sm:$0xff]
    %v6368 = vld [vmem:[#allocation6 + $0x68] sm:$0xff]
    %v6369 = vld [vmem:[#allocation6 + $0x70] sm:$0xff]
    %v6370 = vld [vmem:[#allocation6 + $0x78] sm:$0xff]
    %v6371 = vld [vmem:[#allocation6 + $0x80] sm:$0xff]
    %v6372 = vld [vmem:[#allocation6 + $0x88] sm:$0xff]
    %v6373 = vld [vmem:[#allocation6 + $0x90] sm:$0xff]
    %v6374 = vld [vmem:[#allocation6 + $0x98] sm:$0xff]
    %v6375 = vld [vmem:[#allocation6 + $0xa0] sm:$0xff]
    %v6376 = vld [vmem:[#allocation6 + $0xa8] sm:$0xff]
    %v6377 = vld [vmem:[#allocation6 + $0xb0] sm:$0xff]
    %v6378 = vld [vmem:[#allocation6 + $0xb8] sm:$0xff]
    %v6379 = vld [vmem:[#allocation6 + $0xc0] sm:$0xff]
    %v6380 = vld [vmem:[#allocation6 + $0xc8] sm:$0xff]
    %v6381 = vld [vmem:[#allocation6 + $0xd0] sm:$0xff]
    %v6382 = vld [vmem:[#allocation6 + $0xd8] sm:$0xff]
    %v6383 = vld [vmem:[#allocation6 + $0xe0] sm:$0xff]
    %v6384 = vld [vmem:[#allocation6 + $0xe8] sm:$0xff]
    %v6385 = vld [vmem:[#allocation6 + $0xf0] sm:$0xff]
    %v6386 = vld [vmem:[#allocation6 + $0xf8] sm:$0xff]
    %v6387 = vld [vmem:[%s20] sm:$0x1]
    %v6389 = vlaneseq
    %v6390 = vshrl.u32 %v6389, 7
    %v6391 = vsub.s32 0, %v6390
    %v6392 = vrot.slane %v6387, %v6391
    %v6396 = vrot.slane %v6353, 6
    %v6397 = vrot.slane %v6354, 6
    %6400 = vmatprep.subr.mxu0 0.0
    %6401 = vmatpush1.msra.mxu0 %v6355
    %6402 = vmatprep.subr.mxu0 0.0
    %6403 = vmatpush1.msra.mxu0 %v6356
    %6404 = vmatprep.subr.mxu0 0.0
    %6405 = vmatpush1.msra.mxu0 %v6357
    %6406 = vmatprep.subr.mxu0 0.0
    %6407 = vmatpush1.msra.mxu0 %v6358
    %6408 = vmatprep.subr.mxu0 0.0
    %6409 = vmatpush1.msra.mxu0 %v6359
    %6410 = vmatprep.subr.mxu0 0.0
    %6411 = vmatpush1.msra.mxu0 %v6360
    %6412 = vmatprep.subr.mxu0 0.0
    %6413 = vmatpush1.msra.mxu0 %v6361
    %6414 = vmatprep.subr.mxu0 0.0
    %6415 = vmatpush1.msra.mxu0 %v6362
    %6416 = vmatprep.subr.mxu0 0.0
    %6417 = vmatpush1.msra.mxu0 %v6363
    %6418 = vmatprep.subr.mxu0 0.0
    %6419 = vmatpush1.msra.mxu0 %v6364
    %6420 = vmatprep.subr.mxu0 0.0
    %6421 = vmatpush1.msra.mxu0 %v6365
    %6422 = vmatprep.subr.mxu0 0.0
    %6423 = vmatpush1.msra.mxu0 %v6366
    %6424 = vmatprep.subr.mxu0 0.0
    %6425 = vmatpush1.msra.mxu0 %v6367
    %6426 = vmatprep.subr.mxu0 0.0
    %6427 = vmatpush1.msra.mxu0 %v6368
    %6428 = vmatprep.subr.mxu0 0.0
    %6429 = vmatpush1.msra.mxu0 %v6369
    %6430 = vmatprep.subr.mxu0 0.0
    %6431 = vmatpush1.msra.mxu0 %v6370
    %6432 = vmatprep.subr.mxu0 0.0
    %6433 = vmatpush1.msra.mxu0 %v6371
    %6434 = vmatprep.subr.mxu0 0.0
    %6435 = vmatpush1.msra.mxu0 %v6372
    %6436 = vmatprep.subr.mxu0 0.0
    %6437 = vmatpush1.msra.mxu0 %v6373
    %6438 = vmatprep.subr.mxu0 0.0
    %6439 = vmatpush1.msra.mxu0 %v6374
    %6440 = vmatprep.subr.mxu0 0.0
    %6441 = vmatpush1.msra.mxu0 %v6375
    %6442 = vmatprep.subr.mxu0 0.0
    %6443 = vmatpush1.msra.mxu0 %v6376
    %6444 = vmatprep.subr.mxu0 0.0
    %6445 = vmatpush1.msra.mxu0 %v6377
    %6446 = vmatprep.subr.mxu0 0.0
    %6447 = vmatpush1.msra.mxu0 %v6378
    %6448 = vmatprep.subr.mxu0 0.0
    %6449 = vmatpush1.msra.mxu0 %v6379
    %6450 = vmatprep.subr.mxu0 0.0
    %6451 = vmatpush1.msra.mxu0 %v6380
    %6452 = vmatprep.subr.mxu0 0.0
    %6453 = vmatpush1.msra.mxu0 %v6381
    %6454 = vmatprep.subr.mxu0 0.0
    %6455 = vmatpush1.msra.mxu0 %v6382
    %6456 = vmatprep.subr.mxu0 0.0
    %6457 = vmatpush1.msra.mxu0 %v6383
    %6458 = vmatprep.subr.mxu0 0.0
    %6459 = vmatpush1.msra.mxu0 %v6384
    %6460 = vmatprep.subr.mxu0 0.0
    %6461 = vmatpush1.msra.mxu0 %v6385
    %6462 = vmatprep.subr.mxu0 0.0
    %6463 = vmatpush1.msra.mxu0 %v6386
    %6464 = vmatprep.mubr.f32.mxu0 %v6397
    %6465 = vmatmul.mubr.f32.gmra.mrb[0].mxu0 %v6396
    %v6466 = vpop.f32.mrb[0].mxu0
    %v6467 = vadd.f32 %v6392, %v6466
    %v6468 = vpop.f32.mrb[0].mxu0
    %6469 = vdwg.mxu0
    %v6470 = vmax.f32 %v6467, 0.0
    %v6471 = vld [vmem:[#allocation7] sm:$0xff]
    %v6472 = vld [vmem:[#allocation7 + $0x8] sm:$0xff]
    %v6473 = vld [vmem:[#allocation7 + $0x10] sm:$0xff]
    %v6474 = vld [vmem:[#allocation7 + $0x18] sm:$0xff]
    %v6475 = vld [vmem:[#allocation7 + $0x20] sm:$0xff]
    %v6476 = vld [vmem:[#allocation7 + $0x28] sm:$0xff]
    %v6477 = vld [vmem:[#allocation7 + $0x30] sm:$0xff]
    %v6478 = vld [vmem:[#allocation7 + $0x38] sm:$0xff]
    %v6479 = vld [vmem:[#allocation7 + $0x40] sm:$0xff]
    %v6480 = vld [vmem:[#allocation7 + $0x48] sm:$0xff]
    %v6481 = vld [vmem:[#allocation7 + $0x50] sm:$0xff]
    %v6482 = vld [vmem:[#allocation7 + $0x58] sm:$0xff]
    %v6483 = vld [vmem:[#allocation7 + $0x60] sm:$0xff]
    %v6484 = vld [vmem:[#allocation7 + $0x68] sm:$0xff]
    %v6485 = vld [vmem:[#allocation7 + $0x70] sm:$0xff]
    %v6486 = vld [vmem:[#allocation7 + $0x78] sm:$0xff]
    %v6487 = vld [vmem:[#allocation7 + $0x80] sm:$0xff]
    %v6488 = vld [vmem:[#allocation7 + $0x88] sm:$0xff]
    %v6489 = vld [vmem:[#allocation7 + $0x90] sm:$0xff]
    %v6490 = vld [vmem:[#allocation7 + $0x98] sm:$0xff]
    %v6491 = vld [vmem:[#allocation7 + $0xa0] sm:$0xff]
    %v6492 = vld [vmem:[#allocation7 + $0xa8] sm:$0xff]
    %v6493 = vld [vmem:[#allocation7 + $0xb0] sm:$0xff]
    %v6494 = vld [vmem:[#allocation7 + $0xb8] sm:$0xff]
    %v6495 = vld [vmem:[#allocation7 + $0xc0] sm:$0xff]
    %v6496 = vld [vmem:[#allocation7 + $0xc8] sm:$0xff]
    %v6497 = vld [vmem:[#allocation7 + $0xd0] sm:$0xff]
    %v6498 = vld [vmem:[#allocation7 + $0xd8] sm:$0xff]
    %v6499 = vld [vmem:[#allocation7 + $0xe0] sm:$0xff]
    %v6500 = vld [vmem:[#allocation7 + $0xe8] sm:$0xff]
    %v6501 = vld [vmem:[#allocation7 + $0xf0] sm:$0xff]
    %v6502 = vld [vmem:[#allocation7 + $0xf8] sm:$0xff]
    %v6503 = vld [vmem:[#allocation7 + $0x100] sm:$0xff]
    %v6504 = vld [vmem:[#allocation7 + $0x108] sm:$0xff]
    %v6505 = vld [vmem:[#allocation7 + $0x110] sm:$0xff]
    %v6506 = vld [vmem:[#allocation7 + $0x118] sm:$0xff]
    %v6507 = vld [vmem:[#allocation7 + $0x120] sm:$0xff]
    %v6508 = vld [vmem:[#allocation7 + $0x128] sm:$0xff]
    %v6509 = vld [vmem:[#allocation7 + $0x130] sm:$0xff]
    %v6510 = vld [vmem:[#allocation7 + $0x138] sm:$0xff]
    %v6511 = vld [vmem:[#allocation7 + $0x140] sm:$0xff]
    %v6512 = vld [vmem:[#allocation7 + $0x148] sm:$0xff]
    %v6513 = vld [vmem:[#allocation7 + $0x150] sm:$0xff]
    %v6514 = vld [vmem:[#allocation7 + $0x158] sm:$0xff]
    %v6515 = vld [vmem:[#allocation7 + $0x160] sm:$0xff]
    %v6516 = vld [vmem:[#allocation7 + $0x168] sm:$0xff]
    %v6517 = vld [vmem:[#allocation7 + $0x170] sm:$0xff]
    %v6518 = vld [vmem:[#allocation7 + $0x178] sm:$0xff]
    %v6519 = vld [vmem:[%s23] sm:$0x7]
    %v6521 = vlaneseq
    %v6522 = vshrl.u32 %v6521, 7
    %v6523 = vsub.s32 0, %v6522
    %v6524 = vrot.slane %v6519, %v6523
    %v6525 = vlaneseq
    %v6526 = vshrl.u32 %v6525, 7
    %v6527 = vsub.s32 1, %v6526
    %v6528 = vrot.slane %v6519, %v6527
    %v6529 = vlaneseq
    %v6530 = vshrl.u32 %v6529, 7
    %v6531 = vsub.s32 2, %v6530
    %v6532 = vrot.slane %v6519, %v6531
    %6536 = vmatprep.subr.mxu0 %v6472
    %6537 = vmatpush1.msra.mxu0 %v6471
    %6538 = vmatprep.subr.mxu0 %v6475
    %6539 = vmatpush1.msra.mxu0 %v6474
    %6540 = vmatprep.subr.mxu0 %v6478
    %6541 = vmatpush1.msra.mxu0 %v6477
    %6542 = vmatprep.subr.mxu0 %v6481
    %6543 = vmatpush1.msra.mxu0 %v6480
    %6544 = vmatprep.subr.mxu0 %v6484
    %6545 = vmatpush1.msra.mxu0 %v6483
    %6546 = vmatprep.subr.mxu0 %v6487
    %6547 = vmatpush1.msra.mxu0 %v6486
    %6548 = vmatprep.subr.mxu0 %v6490
    %6549 = vmatpush1.msra.mxu0 %v6489
    %6550 = vmatprep.subr.mxu0 %v6493
    %6551 = vmatpush1.msra.mxu0 %v6492
    %6552 = vmatprep.subr.mxu0 %v6496
    %6553 = vmatpush1.msra.mxu0 %v6495
    %6554 = vmatprep.subr.mxu0 %v6499
    %6555 = vmatpush1.msra.mxu0 %v6498
    %6556 = vmatprep.subr.mxu0 %v6502
    %6557 = vmatpush1.msra.mxu0 %v6501
    %6558 = vmatprep.subr.mxu0 %v6505
    %6559 = vmatpush1.msra.mxu0 %v6504
    %6560 = vmatprep.subr.mxu0 %v6508
    %6561 = vmatpush1.msra.mxu0 %v6507
    %6562 = vmatprep.subr.mxu0 %v6511
    %6563 = vmatpush1.msra.mxu0 %v6510
    %6564 = vmatprep.subr.mxu0 %v6514
    %6565 = vmatpush1.msra.mxu0 %v6513
    %6566 = vmatprep.subr.mxu0 %v6517
    %6567 = vmatpush1.msra.mxu0 %v6516
    %6568 = vmatprep.subr.mxu0 0.0
    %6569 = vmatpush1.msra.mxu0 0.0
    %6570 = vmatprep.subr.mxu0 0.0
    %6571 = vmatpush1.msra.mxu0 0.0
    %6572 = vmatprep.subr.mxu0 0.0
    %6573 = vmatpush1.msra.mxu0 0.0
    %6574 = vmatprep.subr.mxu0 0.0
    %6575 = vmatpush1.msra.mxu0 0.0
    %6576 = vmatprep.subr.mxu0 0.0
    %6577 = vmatpush1.msra.mxu0 0.0
    %6578 = vmatprep.subr.mxu0 0.0
    %6579 = vmatpush1.msra.mxu0 0.0
    %6580 = vmatprep.subr.mxu0 0.0
    %6581 = vmatpush1.msra.mxu0 0.0
    %6582 = vmatprep.subr.mxu0 0.0
    %6583 = vmatpush1.msra.mxu0 0.0
    %6584 = vmatprep.subr.mxu0 0.0
    %6585 = vmatpush1.msra.mxu0 0.0
    %6586 = vmatprep.subr.mxu0 0.0
    %6587 = vmatpush1.msra.mxu0 0.0
    %6588 = vmatprep.subr.mxu0 0.0
    %6589 = vmatpush1.msra.mxu0 0.0
    %6590 = vmatprep.subr.mxu0 0.0
    %6591 = vmatpush1.msra.mxu0 0.0
    %6592 = vmatprep.subr.mxu0 0.0
    %6593 = vmatpush1.msra.mxu0 0.0
    %6594 = vmatprep.subr.mxu0 0.0
    %6595 = vmatpush1.msra.mxu0 0.0
    %6596 = vmatprep.subr.mxu0 0.0
    %6597 = vmatpush1.msra.mxu0 0.0
    %6598 = vmatprep.subr.mxu0 0.0
    %6599 = vmatpush1.msra.mxu0 0.0
    %6600 = vmatprep.mubr.f32.mxu0 0.0
    %6601 = vmatmul.mubr.f32.gmra.mrb[0].mxu0 %v6470
    %v6602 = vpop.f32.mrb[0].mxu0
    %v6603 = vadd.f32 %v6524, %v6602
    %v6604 = vpop.f32.mrb[0].mxu0
    %v6605 = vadd.f32 %v6528, %v6604
    %6606 = vdwg.mxu0
    %6607 = vmatprep.subr.mxu0 0.0
    %6608 = vmatpush1.msra.mxu0 %v6473
    %6609 = vmatprep.subr.mxu0 0.0
    %6610 = vmatpush1.msra.mxu0 %v6476
    %6611 = vmatprep.subr.mxu0 0.0
    %6612 = vmatpush1.msra.mxu0 %v6479
    %6613 = vmatprep.subr.mxu0 0.0
    %6614 = vmatpush1.msra.mxu0 %v6482
    %6615 = vmatprep.subr.mxu0 0.0
    %6616 = vmatpush1.msra.mxu0 %v6485
    %6617 = vmatprep.subr.mxu0 0.0
    %6618 = vmatpush1.msra.mxu0 %v6488
    %6619 = vmatprep.subr.mxu0 0.0
    %6620 = vmatpush1.msra.mxu0 %v6491
    %6621 = vmatprep.subr.mxu0 0.0
    %6622 = vmatpush1.msra.mxu0 %v6494
    %6623 = vmatprep.subr.mxu0 0.0
    %6624 = vmatpush1.msra.mxu0 %v6497
    %6625 = vmatprep.subr.mxu0 0.0
    %6626 = vmatpush1.msra.mxu0 %v6500
    %6627 = vmatprep.subr.mxu0 0.0
    %6628 = vmatpush1.msra.mxu0 %v6503
    %6629 = vmatprep.subr.mxu0 0.0
    %6630 = vmatpush1.msra.mxu0 %v6506
    %6631 = vmatprep.subr.mxu0 0.0
    %6632 = vmatpush1.msra.mxu0 %v6509
    %6633 = vmatprep.subr.mxu0 0.0
    %6634 = vmatpush1.msra.mxu0 %v6512
    %6635 = vmatprep.subr.mxu0 0.0
    %6636 = vmatpush1.msra.mxu0 %v6515
    %6637 = vmatprep.subr.mxu0 0.0
    %6638 = vmatpush1.msra.mxu0 %v6518
    %6639 = vmatprep.subr.mxu0 0.0
    %6640 = vmatpush1.msra.mxu0 0.0
    %6641 = vmatprep.subr.mxu0 0.0
    %6642 = vmatpush1.msra.mxu0 0.0
    %6643 = vmatprep.subr.mxu0 0.0
    %6644 = vmatpush1.msra.mxu0 0.0
    %6645 = vmatprep.subr.mxu0 0.0
    %6646 = vmatpush1.msra.mxu0 0.0
    %6647 = vmatprep.subr.mxu0 0.0
    %6648 = vmatpush1.msra.mxu0 0.0
    %6649 = vmatprep.subr.mxu0 0.0
    %6650 = vmatpush1.msra.mxu0 0.0
    %6651 = vmatprep.subr.mxu0 0.0
    %6652 = vmatpush1.msra.mxu0 0.0
    %6653 = vmatprep.subr.mxu0 0.0
    %6654 = vmatpush1.msra.mxu0 0.0
    %6655 = vmatprep.subr.mxu0 0.0
    %6656 = vmatpush1.msra.mxu0 0.0
    %6657 = vmatprep.subr.mxu0 0.0
    %6658 = vmatpush1.msra.mxu0 0.0
    %6659 = vmatprep.subr.mxu0 0.0
    %6660 = vmatpush1.msra.mxu0 0.0
    %6661 = vmatprep.subr.mxu0 0.0
    %6662 = vmatpush1.msra.mxu0 0.0
    %6663 = vmatprep.subr.mxu0 0.0
    %6664 = vmatpush1.msra.mxu0 0.0
    %6665 = vmatprep.subr.mxu0 0.0
    %6666 = vmatpush1.msra.mxu0 0.0
    %6667 = vmatprep.subr.mxu0 0.0
    %6668 = vmatpush1.msra.mxu0 0.0
    %6669 = vmatprep.subr.mxu0 0.0
    %6670 = vmatpush1.msra.mxu0 0.0
    %6671 = vmatprep.mubr.f32.mxu0 0.0
    %6672 = vmatmul.mubr.f32.gmra.mrb[0].mxu0 %v6470
    %v6673 = vpop.f32.mrb[0].mxu0
    %v6674 = vadd.f32 %v6532, %v6673
    %v6675 = vpop.f32.mrb[0].mxu0
    %6676 = vdwg.mxu0
    %v6677 = vld [vmem:[#allocation9] sm:$0xff]
    %v6678 = vld [vmem:[#allocation9 + $0x8] sm:$0xff]
    %v6679 = vld [vmem:[#allocation9 + $0x10] sm:$0xff]
    %v6680 = vld [vmem:[#allocation9 + $0x18] sm:$0xff]
    %v6681 = vld [vmem:[#allocation9 + $0x20] sm:$0xff]
    %v6682 = vld [vmem:[#allocation9 + $0x28] sm:$0xff]
    %v6683 = vld [vmem:[#allocation9 + $0x30] sm:$0xff]
    %v6684 = vld [vmem:[#allocation9 + $0x38] sm:$0xff]
    %v6685 = vld [vmem:[#allocation9 + $0x40] sm:$0xff]
    %v6686 = vld [vmem:[#allocation9 + $0x48] sm:$0xff]
    %v6687 = vld [vmem:[#allocation9 + $0x50] sm:$0xff]
    %v6688 = vld [vmem:[#allocation9 + $0x58] sm:$0xff]
    %v6689 = vld [vmem:[#allocation9 + $0x60] sm:$0xff]
    %v6690 = vld [vmem:[#allocation9 + $0x68] sm:$0xff]
    %v6691 = vld [vmem:[#allocation9 + $0x70] sm:$0xff]
    %v6692 = vld [vmem:[#allocation9 + $0x78] sm:$0xff]
    %v6693 = vld [vmem:[#allocation9 + $0x80] sm:$0xff]
    %v6694 = vld [vmem:[#allocation9 + $0x88] sm:$0xff]
    %v6695 = vld [vmem:[#allocation9 + $0x90] sm:$0xff]
    %v6696 = vld [vmem:[#allocation9 + $0x98] sm:$0xff]
    %v6697 = vld [vmem:[#allocation9 + $0xa0] sm:$0xff]
    %v6698 = vld [vmem:[#allocation9 + $0xa8] sm:$0xff]
    %v6699 = vld [vmem:[#allocation9 + $0xb0] sm:$0xff]
    %v6700 = vld [vmem:[#allocation9 + $0xb8] sm:$0xff]
    %v6701 = vld [vmem:[#allocation9 + $0xc0] sm:$0xff]
    %v6702 = vld [vmem:[#allocation9 + $0xc8] sm:$0xff]
    %v6703 = vld [vmem:[#allocation9 + $0xd0] sm:$0xff]
    %v6704 = vld [vmem:[#allocation9 + $0xd8] sm:$0xff]
    %v6705 = vld [vmem:[#allocation9 + $0xe0] sm:$0xff]
    %v6706 = vld [vmem:[#allocation9 + $0xe8] sm:$0xff]
    %v6707 = vld [vmem:[#allocation9 + $0xf0] sm:$0xff]
    %v6708 = vld [vmem:[#allocation9 + $0xf8] sm:$0xff]
    %v6709 = vld [vmem:[#allocation9 + $0x100] sm:$0xff]
    %v6710 = vld [vmem:[#allocation9 + $0x108] sm:$0xff]
    %v6711 = vld [vmem:[#allocation9 + $0x110] sm:$0xff]
    %v6712 = vld [vmem:[#allocation9 + $0x118] sm:$0xff]
    %v6713 = vld [vmem:[#allocation9 + $0x120] sm:$0xff]
    %v6714 = vld [vmem:[#allocation9 + $0x128] sm:$0xff]
    %v6715 = vld [vmem:[#allocation9 + $0x130] sm:$0xff]
    %v6716 = vld [vmem:[#allocation9 + $0x138] sm:$0xff]
    %v6717 = vld [vmem:[#allocation9 + $0x140] sm:$0xff]
    %v6718 = vld [vmem:[#allocation9 + $0x148] sm:$0xff]
    %v6719 = vld [vmem:[#allocation9 + $0x150] sm:$0xff]
    %v6720 = vld [vmem:[#allocation9 + $0x158] sm:$0xff]
    %v6721 = vld [vmem:[#allocation9 + $0x160] sm:$0xff]
    %v6722 = vld [vmem:[#allocation9 + $0x168] sm:$0xff]
    %v6723 = vld [vmem:[#allocation9 + $0x170] sm:$0xff]
    %v6724 = vld [vmem:[#allocation9 + $0x178] sm:$0xff]
    %v6725 = vld [vmem:[%s24] sm:$0x7]
    %v6727 = vlaneseq
    %v6728 = vshrl.u32 %v6727, 7
    %v6729 = vsub.s32 0, %v6728
    %v6730 = vrot.slane %v6725, %v6729
    %v6731 = vlaneseq
    %v6732 = vshrl.u32 %v6731, 7
    %v6733 = vsub.s32 1, %v6732
    %v6734 = vrot.slane %v6725, %v6733
    %v6735 = vlaneseq
    %v6736 = vshrl.u32 %v6735, 7
    %v6737 = vsub.s32 2, %v6736
    %v6738 = vrot.slane %v6725, %v6737
    %6742 = vmatprep.subr.mxu0 %v6678
    %6743 = vmatpush1.msra.mxu0 %v6677
    %6744 = vmatprep.subr.mxu0 %v6681
    %6745 = vmatpush1.msra.mxu0 %v6680
    %6746 = vmatprep.subr.mxu0 %v6684
    %6747 = vmatpush1.msra.mxu0 %v6683
    %6748 = vmatprep.subr.mxu0 %v6687
    %6749 = vmatpush1.msra.mxu0 %v6686
    %6750 = vmatprep.subr.mxu0 %v6690
    %6751 = vmatpush1.msra.mxu0 %v6689
    %6752 = vmatprep.subr.mxu0 %v6693
    %6753 = vmatpush1.msra.mxu0 %v6692
    %6754 = vmatprep.subr.mxu0 %v6696
    %6755 = vmatpush1.msra.mxu0 %v6695
    %6756 = vmatprep.subr.mxu0 %v6699
    %6757 = vmatpush1.msra.mxu0 %v6698
    %6758 = vmatprep.subr.mxu0 %v6702
    %6759 = vmatpush1.msra.mxu0 %v6701
    %6760 = vmatprep.subr.mxu0 %v6705
    %6761 = vmatpush1.msra.mxu0 %v6704
    %6762 = vmatprep.subr.mxu0 %v6708
    %6763 = vmatpush1.msra.mxu0 %v6707
    %6764 = vmatprep.subr.mxu0 %v6711
    %6765 = vmatpush1.msra.mxu0 %v6710
    %6766 = vmatprep.subr.mxu0 %v6714
    %6767 = vmatpush1.msra.mxu0 %v6713
    %6768 = vmatprep.subr.mxu0 %v6717
    %6769 = vmatpush1.msra.mxu0 %v6716
    %6770 = vmatprep.subr.mxu0 %v6720
    %6771 = vmatpush1.msra.mxu0 %v6719
    %6772 = vmatprep.subr.mxu0 %v6723
    %6773 = vmatpush1.msra.mxu0 %v6722
    %6774 = vmatprep.subr.mxu0 0.0
    %6775 = vmatpush1.msra.mxu0 0.0
    %6776 = vmatprep.subr.mxu0 0.0
    %6777 = vmatpush1.msra.mxu0 0.0
    %6778 = vmatprep.subr.mxu0 0.0
    %6779 = vmatpush1.msra.mxu0 0.0
    %6780 = vmatprep.subr.mxu0 0.0
    %6781 = vmatpush1.msra.mxu0 0.0
    %6782 = vmatprep.subr.mxu0 0.0
    %6783 = vmatpush1.msra.mxu0 0.0
    %6784 = vmatprep.subr.mxu0 0.0
    %6785 = vmatpush1.msra.mxu0 0.0
    %6786 = vmatprep.subr.mxu0 0.0
    %6787 = vmatpush1.msra.mxu0 0.0
    %6788 = vmatprep.subr.mxu0 0.0
    %6789 = vmatpush1.msra.mxu0 0.0
    %6790 = vmatprep.subr.mxu0 0.0
    %6791 = vmatpush1.msra.mxu0 0.0
    %6792 = vmatprep.subr.mxu0 0.0
    %6793 = vmatpush1.msra.mxu0 0.0
    %6794 = vmatprep.subr.mxu0 0.0
    %6795 = vmatpush1.msra.mxu0 0.0
    %6796 = vmatprep.subr.mxu0 0.0
    %6797 = vmatpush1.msra.mxu0 0.0
    %6798 = vmatprep.subr.mxu0 0.0
    %6799 = vmatpush1.msra.mxu0 0.0
    %6800 = vmatprep.subr.mxu0 0.0
    %6801 = vmatpush1.msra.mxu0 0.0
    %6802 = vmatprep.subr.mxu0 0.0
    %6803 = vmatpush1.msra.mxu0 0.0
    %6804 = vmatprep.subr.mxu0 0.0
    %6805 = vmatpush1.msra.mxu0 0.0
    %6806 = vmatprep.mubr.f32.mxu0 0.0
    %6807 = vmatmul.mubr.f32.gmra.mrb[0].mxu0 0.0
    %v6808 = vpop.f32.mrb[0].mxu0
    %v6809 = vadd.f32 %v6730, %v6808
    %v6810 = vpop.f32.mrb[0].mxu0
    %v6811 = vadd.f32 %v6734, %v6810
    %6812 = vdwg.mxu0
    %6813 = vmatprep.subr.mxu0 0.0
    %6814 = vmatpush1.msra.mxu0 %v6679
    %6815 = vmatprep.subr.mxu0 0.0
    %6816 = vmatpush1.msra.mxu0 %v6682
    %6817 = vmatprep.subr.mxu0 0.0
    %6818 = vmatpush1.msra.mxu0 %v6685
    %6819 = vmatprep.subr.mxu0 0.0
    %6820 = vmatpush1.msra.mxu0 %v6688
    %6821 = vmatprep.subr.mxu0 0.0
    %6822 = vmatpush1.msra.mxu0 %v6691
    %6823 = vmatprep.subr.mxu0 0.0
    %6824 = vmatpush1.msra.mxu0 %v6694
    %6825 = vmatprep.subr.mxu0 0.0
    %6826 = vmatpush1.msra.mxu0 %v6697
    %6827 = vmatprep.subr.mxu0 0.0
    %6828 = vmatpush1.msra.mxu0 %v6700
    %6829 = vmatprep.subr.mxu0 0.0
    %6830 = vmatpush1.msra.mxu0 %v6703
    %6831 = vmatprep.subr.mxu0 0.0
    %6832 = vmatpush1.msra.mxu0 %v6706
    %6833 = vmatprep.subr.mxu0 0.0
    %6834 = vmatpush1.msra.mxu0 %v6709
    %6835 = vmatprep.subr.mxu0 0.0
    %6836 = vmatpush1.msra.mxu0 %v6712
    %6837 = vmatprep.subr.mxu0 0.0
    %6838 = vmatpush1.msra.mxu0 %v6715
    %6839 = vmatprep.subr.mxu0 0.0
    %6840 = vmatpush1.msra.mxu0 %v6718
    %6841 = vmatprep.subr.mxu0 0.0
    %6842 = vmatpush1.msra.mxu0 %v6721
    %6843 = vmatprep.subr.mxu0 0.0
    %6844 = vmatpush1.msra.mxu0 %v6724
    %6845 = vmatprep.subr.mxu0 0.0
    %6846 = vmatpush1.msra.mxu0 0.0
    %6847 = vmatprep.subr.mxu0 0.0
    %6848 = vmatpush1.msra.mxu0 0.0
    %6849 = vmatprep.subr.mxu0 0.0
    %6850 = vmatpush1.msra.mxu0 0.0
    %6851 = vmatprep.subr.mxu0 0.0
    %6852 = vmatpush1.msra.mxu0 0.0
    %6853 = vmatprep.subr.mxu0 0.0
    %6854 = vmatpush1.msra.mxu0 0.0
    %6855 = vmatprep.subr.mxu0 0.0
    %6856 = vmatpush1.msra.mxu0 0.0
    %6857 = vmatprep.subr.mxu0 0.0
    %6858 = vmatpush1.msra.mxu0 0.0
    %6859 = vmatprep.subr.mxu0 0.0
    %6860 = vmatpush1.msra.mxu0 0.0
    %6861 = vmatprep.subr.mxu0 0.0
    %6862 = vmatpush1.msra.mxu0 0.0
    %6863 = vmatprep.subr.mxu0 0.0
    %6864 = vmatpush1.msra.mxu0 0.0
    %6865 = vmatprep.subr.mxu0 0.0
    %6866 = vmatpush1.msra.mxu0 0.0
    %6867 = vmatprep.subr.mxu0 0.0
    %6868 = vmatpush1.msra.mxu0 0.0
    %6869 = vmatprep.subr.mxu0 0.0
    %6870 = vmatpush1.msra.mxu0 0.0
    %6871 = vmatprep.subr.mxu0 0.0
    %6872 = vmatpush1.msra.mxu0 0.0
    %6873 = vmatprep.subr.mxu0 0.0
    %6874 = vmatpush1.msra.mxu0 0.0
    %6875 = vmatprep.subr.mxu0 0.0
    %6876 = vmatpush1.msra.mxu0 0.0
    %6877 = vmatprep.mubr.f32.mxu0 0.0
    %6878 = vmatmul.mubr.f32.gmra.mrb[0].mxu0 0.0
    %v6879 = vpop.f32.mrb[0].mxu0
    %v6880 = vadd.f32 %v6738, %v6879
    %v6881 = vpop.f32.mrb[0].mxu0
    %6882 = vdwg.mxu0
    %v6883 = vadd.f32 %v6603, %v6809
    %v6884 = vxor.u32 %v6883, 2147483648
    %v6885 = vmul.f32 %v6884, 1.442695
    %v6886 = vpow.pop %v6885
    %v6887 = vadd.f32 %v6886, 1.0
    %v6888 = vrcp.pop %v6887
    %v6889 = vmul.f32 1.0, %v6888
    %v6890 = vadd.f32 %v6605, %v6811
    %v6891 = vxor.u32 %v6890, 2147483648
    %v6892 = vmul.f32 %v6891, 1.442695
    %v6893 = vpow.pop %v6892
    %v6894 = vadd.f32 %v6893, 1.0
    %v6895 = vrcp.pop %v6894
    %v6896 = vmul.f32 1.0, %v6895
    %v6897 = vmul.f32 %v6889, %v6880
    %v6898 = vadd.f32 %v6674, %v6897
    %v6899 = vtanh.pop %v6898
    %v6900 = vsub.f32 1.0, %v6896
    %v6901 = vmul.f32 %v6900, %v6899
    %v6902 = vmul.f32 %v6896, 0.0
    %v6903 = vadd.f32 %v6901, %v6902
    %6904 = vmatprep.subr.mxu0 %v6678
    %6905 = vmatpush1.msra.mxu0 %v6677
    %6906 = vmatprep.subr.mxu0 %v6681
    %6907 = vmatpush1.msra.mxu0 %v6680
    %6908 = vmatprep.subr.mxu0 %v6684
    %6909 = vmatpush1.msra.mxu0 %v6683
    %6910 = vmatprep.subr.mxu0 %v6687
    %6911 = vmatpush1.msra.mxu0 %v6686
    %6912 = vmatprep.subr.mxu0 %v6690
    %6913 = vmatpush1.msra.mxu0 %v6689
    %6914 = vmatprep.subr.mxu0 %v6693
    %6915 = vmatpush1.msra.mxu0 %v6692
    %6916 = vmatprep.subr.mxu0 %v6696
    %6917 = vmatpush1.msra.mxu0 %v6695
    %6918 = vmatprep.subr.mxu0 %v6699
    %6919 = vmatpush1.msra.mxu0 %v6698
    %6920 = vmatprep.subr.mxu0 %v6702
    %6921 = vmatpush1.msra.mxu0 %v6701
    %6922 = vmatprep.subr.mxu0 %v6705
    %6923 = vmatpush1.msra.mxu0 %v6704
    %6924 = vmatprep.subr.mxu0 %v6708
    %6925 = vmatpush1.msra.mxu0 %v6707
    %6926 = vmatprep.subr.mxu0 %v6711
    %6927 = vmatpush1.msra.mxu0 %v6710
    %6928 = vmatprep.subr.mxu0 %v6714
    %6929 = vmatpush1.msra.mxu0 %v6713
    %6930 = vmatprep.subr.mxu0 %v6717
    %6931 = vmatpush1.msra.mxu0 %v6716
    %6932 = vmatprep.subr.mxu0 %v6720
    %6933 = vmatpush1.msra.mxu0 %v6719
    %6934 = vmatprep.subr.mxu0 %v6723
    %6935 = vmatpush1.msra.mxu0 %v6722
    %6936 = vmatprep.subr.mxu0 0.0
    %6937 = vmatpush1.msra.mxu0 0.0
    %6938 = vmatprep.subr.mxu0 0.0
    %6939 = vmatpush1.msra.mxu0 0.0
    %6940 = vmatprep.subr.mxu0 0.0
    %6941 = vmatpush1.msra.mxu0 0.0
    %6942 = vmatprep.subr.mxu0 0.0
    %6943 = vmatpush1.msra.mxu0 0.0
    %6944 = vmatprep.subr.mxu0 0.0
    %6945 = vmatpush1.msra.mxu0 0.0
    %6946 = vmatprep.subr.mxu0 0.0
    %6947 = vmatpush1.msra.mxu0 0.0
    %6948 = vmatprep.subr.mxu0 0.0
    %6949 = vmatpush1.msra.mxu0 0.0
    %6950 = vmatprep.subr.mxu0 0.0
    %6951 = vmatpush1.msra.mxu0 0.0
    %6952 = vmatprep.subr.mxu0 0.0
    %6953 = vmatpush1.msra.mxu0 0.0
    %6954 = vmatprep.subr.mxu0 0.0
    %6955 = vmatpush1.msra.mxu0 0.0
    %6956 = vmatprep.subr.mxu0 0.0
    %6957 = vmatpush1.msra.mxu0 0.0
    %6958 = vmatprep.subr.mxu0 0.0
    %6959 = vmatpush1.msra.mxu0 0.0
    %6960 = vmatprep.subr.mxu0 0.0
    %6961 = vmatpush1.msra.mxu0 0.0
    %6962 = vmatprep.subr.mxu0 0.0
    %6963 = vmatpush1.msra.mxu0 0.0
    %6964 = vmatprep.subr.mxu0 0.0
    %6965 = vmatpush1.msra.mxu0 0.0
    %6966 = vmatprep.subr.mxu0 0.0
    %6967 = vmatpush1.msra.mxu0 0.0
    %6968 = vmatprep.mubr.f32.mxu0 0.0
    %6969 = vmatmul.mubr.f32.gmra.mrb[0].mxu0 %v6903
    %v6970 = vpop.f32.mrb[0].mxu0
    %v6971 = vadd.f32 %v6730, %v6970
    %v6972 = vpop.f32.mrb[0].mxu0
    %v6973 = vadd.f32 %v6734, %v6972
    %6974 = vdwg.mxu0
    %6975 = vmatprep.subr.mxu0 0.0
    %6976 = vmatpush1.msra.mxu0 %v6679
    %6977 = vmatprep.subr.mxu0 0.0
    %6978 = vmatpush1.msra.mxu0 %v6682
    %6979 = vmatprep.subr.mxu0 0.0
    %6980 = vmatpush1.msra.mxu0 %v6685
    %6981 = vmatprep.subr.mxu0 0.0
    %6982 = vmatpush1.msra.mxu0 %v6688
    %6983 = vmatprep.subr.mxu0 0.0
    %6984 = vmatpush1.msra.mxu0 %v6691
    %6985 = vmatprep.subr.mxu0 0.0
    %6986 = vmatpush1.msra.mxu0 %v6694
    %6987 = vmatprep.subr.mxu0 0.0
    %6988 = vmatpush1.msra.mxu0 %v6697
    %6989 = vmatprep.subr.mxu0 0.0
    %6990 = vmatpush1.msra.mxu0 %v6700
    %6991 = vmatprep.subr.mxu0 0.0
    %6992 = vmatpush1.msra.mxu0 %v6703
    %6993 = vmatprep.subr.mxu0 0.0
    %6994 = vmatpush1.msra.mxu0 %v6706
    %6995 = vmatprep.subr.mxu0 0.0
    %6996 = vmatpush1.msra.mxu0 %v6709
    %6997 = vmatprep.subr.mxu0 0.0
    %6998 = vmatpush1.msra.mxu0 %v6712
    %6999 = vmatprep.subr.mxu0 0.0
    %7000 = vmatpush1.msra.mxu0 %v6715
    %7001 = vmatprep.subr.mxu0 0.0
    %7002 = vmatpush1.msra.mxu0 %v6718
    %7003 = vmatprep.subr.mxu0 0.0
    %7004 = vmatpush1.msra.mxu0 %v6721
    %7005 = vmatprep.subr.mxu0 0.0
    %7006 = vmatpush1.msra.mxu0 %v6724
    %7007 = vmatprep.subr.mxu0 0.0
    %7008 = vmatpush1.msra.mxu0 0.0
    %7009 = vmatprep.subr.mxu0 0.0
    %7010 = vmatpush1.msra.mxu0 0.0
    %7011 = vmatprep.subr.mxu0 0.0
    %7012 = vmatpush1.msra.mxu0 0.0
    %7013 = vmatprep.subr.mxu0 0.0
    %7014 = vmatpush1.msra.mxu0 0.0
    %7015 = vmatprep.subr.mxu0 0.0
    %7016 = vmatpush1.msra.mxu0 0.0
    %7017 = vmatprep.subr.mxu0 0.0
    %7018 = vmatpush1.msra.mxu0 0.0
    %7019 = vmatprep.subr.mxu0 0.0
    %7020 = vmatpush1.msra.mxu0 0.0
    %7021 = vmatprep.subr.mxu0 0.0
    %7022 = vmatpush1.msra.mxu0 0.0
    %7023 = vmatprep.subr.mxu0 0.0
    %7024 = vmatpush1.msra.mxu0 0.0
    %7025 = vmatprep.subr.mxu0 0.0
    %7026 = vmatpush1.msra.mxu0 0.0
    %7027 = vmatprep.subr.mxu0 0.0
    %7028 = vmatpush1.msra.mxu0 0.0
    %7029 = vmatprep.subr.mxu0 0.0
    %7030 = vmatpush1.msra.mxu0 0.0
    %7031 = vmatprep.subr.mxu0 0.0
    %7032 = vmatpush1.msra.mxu0 0.0
    %7033 = vmatprep.subr.mxu0 0.0
    %7034 = vmatpush1.msra.mxu0 0.0
    %7035 = vmatprep.subr.mxu0 0.0
    %7036 = vmatpush1.msra.mxu0 0.0
    %7037 = vmatprep.subr.mxu0 0.0
    %7038 = vmatpush1.msra.mxu0 0.0
    %7039 = vmatprep.mubr.f32.mxu0 0.0
    %7040 = vmatmul.mubr.f32.gmra.mrb[0].mxu0 %v6903
    %v7041 = vpop.f32.mrb[0].mxu0
    %v7042 = vadd.f32 %v6738, %v7041
    %v7043 = vpop.f32.mrb[0].mxu0
    %7044 = vdwg.mxu0
    %v7045 = vadd.f32 %v6603, %v6971
    %v7046 = vxor.u32 %v7045, 2147483648
    %v7047 = vmul.f32 %v7046, 1.442695
    %v7048 = vpow.pop %v7047
    %v7049 = vadd.f32 %v7048, 1.0
    %v7050 = vrcp.pop %v7049
    %v7051 = vmul.f32 1.0, %v7050
    %v7052 = vadd.f32 %v6605, %v6973
    %v7053 = vxor.u32 %v7052, 2147483648
    %v7054 = vmul.f32 %v7053, 1.442695
    %v7055 = vpow.pop %v7054
    %v7056 = vadd.f32 %v7055, 1.0
    %v7057 = vrcp.pop %v7056
    %v7058 = vmul.f32 1.0, %v7057
    %v7059 = vmul.f32 %v7051, %v7042
    %v7060 = vadd.f32 %v6674, %v7059
    %v7061 = vtanh.pop %v7060
    %v7062 = vsub.f32 1.0, %v7058
    %v7063 = vmul.f32 %v7062, %v7061
    %v7064 = vmul.f32 %v7058, %v6903
    %v7065 = vadd.f32 %v7063, %v7064
    %7066 = vmatprep.subr.mxu0 %v6678
    %7067 = vmatpush1.msra.mxu0 %v6677
    %7068 = vmatprep.subr.mxu0 %v6681
    %7069 = vmatpush1.msra.mxu0 %v6680
    %7070 = vmatprep.subr.mxu0 %v6684
    %7071 = vmatpush1.msra.mxu0 %v6683
    %7072 = vmatprep.subr.mxu0 %v6687
    %7073 = vmatpush1.msra.mxu0 %v6686
    %7074 = vmatprep.subr.mxu0 %v6690
    %7075 = vmatpush1.msra.mxu0 %v6689
    %7076 = vmatprep.subr.mxu0 %v6693
    %7077 = vmatpush1.msra.mxu0 %v6692
    %7078 = vmatprep.subr.mxu0 %v6696
    %7079 = vmatpush1.msra.mxu0 %v6695
    %7080 = vmatprep.subr.mxu0 %v6699
    %7081 = vmatpush1.msra.mxu0 %v6698
    %7082 = vmatprep.subr.mxu0 %v6702
    %7083 = vmatpush1.msra.mxu0 %v6701
    %7084 = vmatprep.subr.mxu0 %v6705
    %7085 = vmatpush1.msra.mxu0 %v6704
    %7086 = vmatprep.subr.mxu0 %v6708
    %7087 = vmatpush1.msra.mxu0 %v6707
    %7088 = vmatprep.subr.mxu0 %v6711
    %7089 = vmatpush1.msra.mxu0 %v6710
    %7090 = vmatprep.subr.mxu0 %v6714
    %7091 = vmatpush1.msra.mxu0 %v6713
    %7092 = vmatprep.subr.mxu0 %v6717
    %7093 = vmatpush1.msra.mxu0 %v6716
    %7094 = vmatprep.subr.mxu0 %v6720
    %7095 = vmatpush1.msra.mxu0 %v6719
    %7096 = vmatprep.subr.mxu0 %v6723
    %7097 = vmatpush1.msra.mxu0 %v6722
    %7098 = vmatprep.subr.mxu0 0.0
    %7099 = vmatpush1.msra.mxu0 0.0
    %7100 = vmatprep.subr.mxu0 0.0
    %7101 = vmatpush1.msra.mxu0 0.0
    %7102 = vmatprep.subr.mxu0 0.0
    %7103 = vmatpush1.msra.mxu0 0.0
    %7104 = vmatprep.subr.mxu0 0.0
    %7105 = vmatpush1.msra.mxu0 0.0
    %7106 = vmatprep.subr.mxu0 0.0
    %7107 = vmatpush1.msra.mxu0 0.0
    %7108 = vmatprep.subr.mxu0 0.0
    %7109 = vmatpush1.msra.mxu0 0.0
    %7110 = vmatprep.subr.mxu0 0.0
    %7111 = vmatpush1.msra.mxu0 0.0
    %7112 = vmatprep.subr.mxu0 0.0
    %7113 = vmatpush1.msra.mxu0 0.0
    %7114 = vmatprep.subr.mxu0 0.0
    %7115 = vmatpush1.msra.mxu0 0.0
    %7116 = vmatprep.subr.mxu0 0.0
    %7117 = vmatpush1.msra.mxu0 0.0
    %7118 = vmatprep.subr.mxu0 0.0
    %7119 = vmatpush1.msra.mxu0 0.0
    %7120 = vmatprep.subr.mxu0 0.0
    %7121 = vmatpush1.msra.mxu0 0.0
    %7122 = vmatprep.subr.mxu0 0.0
    %7123 = vmatpush1.msra.mxu0 0.0
    %7124 = vmatprep.subr.mxu0 0.0
    %7125 = vmatpush1.msra.mxu0 0.0
    %7126 = vmatprep.subr.mxu0 0.0
    %7127 = vmatpush1.msra.mxu0 0.0
    %7128 = vmatprep.subr.mxu0 0.0
    %7129 = vmatpush1.msra.mxu0 0.0
    %7130 = vmatprep.mubr.f32.mxu0 0.0
    %7131 = vmatmul.mubr.f32.gmra.mrb[0].mxu0 %v7065
    %v7132 = vpop.f32.mrb[0].mxu0
    %v7133 = vadd.f32 %v6730, %v7132
    %v7134 = vpop.f32.mrb[0].mxu0
    %v7135 = vadd.f32 %v6734, %v7134
    %7136 = vdwg.mxu0
    %7137 = vmatprep.subr.mxu0 0.0
    %7138 = vmatpush1.msra.mxu0 %v6679
    %7139 = vmatprep.subr.mxu0 0.0
    %7140 = vmatpush1.msra.mxu0 %v6682
    %7141 = vmatprep.subr.mxu0 0.0
    %7142 = vmatpush1.msra.mxu0 %v6685
    %7143 = vmatprep.subr.mxu0 0.0
    %7144 = vmatpush1.msra.mxu0 %v6688
    %7145 = vmatprep.subr.mxu0 0.0
    %7146 = vmatpush1.msra.mxu0 %v6691
    %7147 = vmatprep.subr.mxu0 0.0
    %7148 = vmatpush1.msra.mxu0 %v6694
    %7149 = vmatprep.subr.mxu0 0.0
    %7150 = vmatpush1.msra.mxu0 %v6697
    %7151 = vmatprep.subr.mxu0 0.0
    %7152 = vmatpush1.msra.mxu0 %v6700
    %7153 = vmatprep.subr.mxu0 0.0
    %7154 = vmatpush1.msra.mxu0 %v6703
    %7155 = vmatprep.subr.mxu0 0.0
    %7156 = vmatpush1.msra.mxu0 %v6706
    %7157 = vmatprep.subr.mxu0 0.0
    %7158 = vmatpush1.msra.mxu0 %v6709
    %7159 = vmatprep.subr.mxu0 0.0
    %7160 = vmatpush1.msra.mxu0 %v6712
    %7161 = vmatprep.subr.mxu0 0.0
    %7162 = vmatpush1.msra.mxu0 %v6715
    %7163 = vmatprep.subr.mxu0 0.0
    %7164 = vmatpush1.msra.mxu0 %v6718
    %7165 = vmatprep.subr.mxu0 0.0
    %7166 = vmatpush1.msra.mxu0 %v6721
    %7167 = vmatprep.subr.mxu0 0.0
    %7168 = vmatpush1.msra.mxu0 %v6724
    %7169 = vmatprep.subr.mxu0 0.0
    %7170 = vmatpush1.msra.mxu0 0.0
    %7171 = vmatprep.subr.mxu0 0.0
    %7172 = vmatpush1.msra.mxu0 0.0
    %7173 = vmatprep.subr.mxu0 0.0
    %7174 = vmatpush1.msra.mxu0 0.0
    %7175 = vmatprep.subr.mxu0 0.0
    %7176 = vmatpush1.msra.mxu0 0.0
    %7177 = vmatprep.subr.mxu0 0.0
    %7178 = vmatpush1.msra.mxu0 0.0
    %7179 = vmatprep.subr.mxu0 0.0
    %7180 = vmatpush1.msra.mxu0 0.0
    %7181 = vmatprep.subr.mxu0 0.0
    %7182 = vmatpush1.msra.mxu0 0.0
    %7183 = vmatprep.subr.mxu0 0.0
    %7184 = vmatpush1.msra.mxu0 0.0
    %7185 = vmatprep.subr.mxu0 0.0
    %7186 = vmatpush1.msra.mxu0 0.0
    %7187 = vmatprep.subr.mxu0 0.0
    %7188 = vmatpush1.msra.mxu0 0.0
    %7189 = vmatprep.subr.mxu0 0.0
    %7190 = vmatpush1.msra.mxu0 0.0
    %7191 = vmatprep.subr.mxu0 0.0
    %7192 = vmatpush1.msra.mxu0 0.0
    %7193 = vmatprep.subr.mxu0 0.0
    %7194 = vmatpush1.msra.mxu0 0.0
    %7195 = vmatprep.subr.mxu0 0.0
    %7196 = vmatpush1.msra.mxu0 0.0
    %7197 = vmatprep.subr.mxu0 0.0
    %7198 = vmatpush1.msra.mxu0 0.0
    %7199 = vmatprep.subr.mxu0 0.0
    %7200 = vmatpush1.msra.mxu0 0.0
    %7201 = vmatprep.mubr.f32.mxu0 0.0
    %7202 = vmatmul.mubr.f32.gmra.mrb[0].mxu0 %v7065
    %v7203 = vpop.f32.mrb[0].mxu0
    %v7204 = vadd.f32 %v6738, %v7203
    %v7205 = vpop.f32.mrb[0].mxu0
    %7206 = vdwg.mxu0
    %v7207 = vadd.f32 %v6603, %v7133
    %v7208 = vxor.u32 %v7207, 2147483648
    %v7209 = vmul.f32 %v7208, 1.442695
    %v7210 = vpow.pop %v7209
    %v7211 = vadd.f32 %v7210, 1.0
    %v7212 = vrcp.pop %v7211
    %v7213 = vmul.f32 1.0, %v7212
    %v7214 = vadd.f32 %v6605, %v7135
    %v7215 = vxor.u32 %v7214, 2147483648
    %v7216 = vmul.f32 %v7215, 1.442695
    %v7217 = vpow.pop %v7216
    %v7218 = vadd.f32 %v7217, 1.0
    %v7219 = vrcp.pop %v7218
    %v7220 = vmul.f32 1.0, %v7219
    %v7221 = vmul.f32 %v7213, %v7204
    %v7222 = vadd.f32 %v6674, %v7221
    %v7223 = vtanh.pop %v7222
    %v7224 = vsub.f32 1.0, %v7220
    %v7225 = vmul.f32 %v7224, %v7223
    %v7226 = vmul.f32 %v7220, %v7065
    %v7227 = vadd.f32 %v7225, %v7226
    %7228 = vmatprep.subr.mxu0 %v6678
    %7229 = vmatpush1.msra.mxu0 %v6677
    %7230 = vmatprep.subr.mxu0 %v6681
    %7231 = vmatpush1.msra.mxu0 %v6680
    %7232 = vmatprep.subr.mxu0 %v6684
    %7233 = vmatpush1.msra.mxu0 %v6683
    %7234 = vmatprep.subr.mxu0 %v6687
    %7235 = vmatpush1.msra.mxu0 %v6686
    %7236 = vmatprep.subr.mxu0 %v6690
    %7237 = vmatpush1.msra.mxu0 %v6689
    %7238 = vmatprep.subr.mxu0 %v6693
    %7239 = vmatpush1.msra.mxu0 %v6692
    %7240 = vmatprep.subr.mxu0 %v6696
    %7241 = vmatpush1.msra.mxu0 %v6695
    %7242 = vmatprep.subr.mxu0 %v6699
    %7243 = vmatpush1.msra.mxu0 %v6698
    %7244 = vmatprep.subr.mxu0 %v6702
    %7245 = vmatpush1.msra.mxu0 %v6701
    %7246 = vmatprep.subr.mxu0 %v6705
    %7247 = vmatpush1.msra.mxu0 %v6704
    %7248 = vmatprep.subr.mxu0 %v6708
    %7249 = vmatpush1.msra.mxu0 %v6707
    %7250 = vmatprep.subr.mxu0 %v6711
    %7251 = vmatpush1.msra.mxu0 %v6710
    %7252 = vmatprep.subr.mxu0 %v6714
    %7253 = vmatpush1.msra.mxu0 %v6713
    %7254 = vmatprep.subr.mxu0 %v6717
    %7255 = vmatpush1.msra.mxu0 %v6716
    %7256 = vmatprep.subr.mxu0 %v6720
    %7257 = vmatpush1.msra.mxu0 %v6719
    %7258 = vmatprep.subr.mxu0 %v6723
    %7259 = vmatpush1.msra.mxu0 %v6722
    %7260 = vmatprep.subr.mxu0 0.0
    %7261 = vmatpush1.msra.mxu0 0.0
    %7262 = vmatprep.subr.mxu0 0.0
    %7263 = vmatpush1.msra.mxu0 0.0
    %7264 = vmatprep.subr.mxu0 0.0
    %7265 = vmatpush1.msra.mxu0 0.0
    %7266 = vmatprep.subr.mxu0 0.0
    %7267 = vmatpush1.msra.mxu0 0.0
    %7268 = vmatprep.subr.mxu0 0.0
    %7269 = vmatpush1.msra.mxu0 0.0
    %7270 = vmatprep.subr.mxu0 0.0
    %7271 = vmatpush1.msra.mxu0 0.0
    %7272 = vmatprep.subr.mxu0 0.0
    %7273 = vmatpush1.msra.mxu0 0.0
    %7274 = vmatprep.subr.mxu0 0.0
    %7275 = vmatpush1.msra.mxu0 0.0
    %7276 = vmatprep.subr.mxu0 0.0
    %7277 = vmatpush1.msra.mxu0 0.0
    %7278 = vmatprep.subr.mxu0 0.0
    %7279 = vmatpush1.msra.mxu0 0.0
    %7280 = vmatprep.subr.mxu0 0.0
    %7281 = vmatpush1.msra.mxu0 0.0
    %7282 = vmatprep.subr.mxu0 0.0
    %7283 = vmatpush1.msra.mxu0 0.0
    %7284 = vmatprep.subr.mxu0 0.0
    %7285 = vmatpush1.msra.mxu0 0.0
    %7286 = vmatprep.subr.mxu0 0.0
    %7287 = vmatpush1.msra.mxu0 0.0
    %7288 = vmatprep.subr.mxu0 0.0
    %7289 = vmatpush1.msra.mxu0 0.0
    %7290 = vmatprep.subr.mxu0 0.0
    %7291 = vmatpush1.msra.mxu0 0.0
    %7292 = vmatprep.mubr.f32.mxu0 0.0
    %7293 = vmatmul.mubr.f32.gmra.mrb[0].mxu0 %v7227
    %v7294 = vpop.f32.mrb[0].mxu0
    %v7295 = vadd.f32 %v6730, %v7294
    %v7296 = vpop.f32.mrb[0].mxu0
    %v7297 = vadd.f32 %v6734, %v7296
    %7298 = vdwg.mxu0
    %7299 = vmatprep.subr.mxu0 0.0
    %7300 = vmatpush1.msra.mxu0 %v6679
    %7301 = vmatprep.subr.mxu0 0.0
    %7302 = vmatpush1.msra.mxu0 %v6682
    %7303 = vmatprep.subr.mxu0 0.0
    %7304 = vmatpush1.msra.mxu0 %v6685
    %7305 = vmatprep.subr.mxu0 0.0
    %7306 = vmatpush1.msra.mxu0 %v6688
    %7307 = vmatprep.subr.mxu0 0.0
    %7308 = vmatpush1.msra.mxu0 %v6691
    %7309 = vmatprep.subr.mxu0 0.0
    %7310 = vmatpush1.msra.mxu0 %v6694
    %7311 = vmatprep.subr.mxu0 0.0
    %7312 = vmatpush1.msra.mxu0 %v6697
    %7313 = vmatprep.subr.mxu0 0.0
    %7314 = vmatpush1.msra.mxu0 %v6700
    %7315 = vmatprep.subr.mxu0 0.0
    %7316 = vmatpush1.msra.mxu0 %v6703
    %7317 = vmatprep.subr.mxu0 0.0
    %7318 = vmatpush1.msra.mxu0 %v6706
    %7319 = vmatprep.subr.mxu0 0.0
    %7320 = vmatpush1.msra.mxu0 %v6709
    %7321 = vmatprep.subr.mxu0 0.0
    %7322 = vmatpush1.msra.mxu0 %v6712
    %7323 = vmatprep.subr.mxu0 0.0
    %7324 = vmatpush1.msra.mxu0 %v6715
    %7325 = vmatprep.subr.mxu0 0.0
    %7326 = vmatpush1.msra.mxu0 %v6718
    %7327 = vmatprep.subr.mxu0 0.0
    %7328 = vmatpush1.msra.mxu0 %v6721
    %7329 = vmatprep.subr.mxu0 0.0
    %7330 = vmatpush1.msra.mxu0 %v6724
    %7331 = vmatprep.subr.mxu0 0.0
    %7332 = vmatpush1.msra.mxu0 0.0
    %7333 = vmatprep.subr.mxu0 0.0
    %7334 = vmatpush1.msra.mxu0 0.0
    %7335 = vmatprep.subr.mxu0 0.0
    %7336 = vmatpush1.msra.mxu0 0.0
    %7337 = vmatprep.subr.mxu0 0.0
    %7338 = vmatpush1.msra.mxu0 0.0
    %7339 = vmatprep.subr.mxu0 0.0
    %7340 = vmatpush1.msra.mxu0 0.0
    %7341 = vmatprep.subr.mxu0 0.0
    %7342 = vmatpush1.msra.mxu0 0.0
    %7343 = vmatprep.subr.mxu0 0.0
    %7344 = vmatpush1.msra.mxu0 0.0
    %7345 = vmatprep.subr.mxu0 0.0
    %7346 = vmatpush1.msra.mxu0 0.0
    %7347 = vmatprep.subr.mxu0 0.0
    %7348 = vmatpush1.msra.mxu0 0.0
    %7349 = vmatprep.subr.mxu0 0.0
    %7350 = vmatpush1.msra.mxu0 0.0
    %7351 = vmatprep.subr.mxu0 0.0
    %7352 = vmatpush1.msra.mxu0 0.0
    %7353 = vmatprep.subr.mxu0 0.0
    %7354 = vmatpush1.msra.mxu0 0.0
    %7355 = vmatprep.subr.mxu0 0.0
    %7356 = vmatpush1.msra.mxu0 0.0
    %7357 = vmatprep.subr.mxu0 0.0
    %7358 = vmatpush1.msra.mxu0 0.0
    %7359 = vmatprep.subr.mxu0 0.0
    %7360 = vmatpush1.msra.mxu0 0.0
    %7361 = vmatprep.subr.mxu0 0.0
    %7362 = vmatpush1.msra.mxu0 0.0
    %7363 = vmatprep.mubr.f32.mxu0 0.0
    %7364 = vmatmul.mubr.f32.gmra.mrb[0].mxu0 %v7227
    %v7365 = vpop.f32.mrb[0].mxu0
    %v7366 = vadd.f32 %v6738, %v7365
    %v7367 = vpop.f32.mrb[0].mxu0
    %7368 = vdwg.mxu0
    %v7369 = vadd.f32 %v6603, %v7295
    %v7370 = vxor.u32 %v7369, 2147483648
    %v7371 = vmul.f32 %v7370, 1.442695
    %v7372 = vpow.pop %v7371
    %v7373 = vadd.f32 %v7372, 1.0
    %v7374 = vrcp.pop %v7373
    %v7375 = vmul.f32 1.0, %v7374
    %v7376 = vadd.f32 %v6605, %v7297
    %v7377 = vxor.u32 %v7376, 2147483648
    %v7378 = vmul.f32 %v7377, 1.442695
    %v7379 = vpow.pop %v7378
    %v7380 = vadd.f32 %v7379, 1.0
    %v7381 = vrcp.pop %v7380
    %v7382 = vmul.f32 1.0, %v7381
    %v7383 = vmul.f32 %v7375, %v7366
    %v7384 = vadd.f32 %v6674, %v7383
    %v7385 = vtanh.pop %v7384
    %v7386 = vsub.f32 1.0, %v7382
    %v7387 = vmul.f32 %v7386, %v7385
    %v7388 = vmul.f32 %v7382, %v7227
    %v7389 = vadd.f32 %v7387, %v7388
    %7390 = vmatprep.subr.mxu0 %v6678
    %7391 = vmatpush1.msra.mxu0 %v6677
    %7392 = vmatprep.subr.mxu0 %v6681
    %7393 = vmatpush1.msra.mxu0 %v6680
    %7394 = vmatprep.subr.mxu0 %v6684
    %7395 = vmatpush1.msra.mxu0 %v6683
    %7396 = vmatprep.subr.mxu0 %v6687
    %7397 = vmatpush1.msra.mxu0 %v6686
    %7398 = vmatprep.subr.mxu0 %v6690
    %7399 = vmatpush1.msra.mxu0 %v6689
    %7400 = vmatprep.subr.mxu0 %v6693
    %7401 = vmatpush1.msra.mxu0 %v6692
    %7402 = vmatprep.subr.mxu0 %v6696
    %7403 = vmatpush1.msra.mxu0 %v6695
    %7404 = vmatprep.subr.mxu0 %v6699
    %7405 = vmatpush1.msra.mxu0 %v6698
    %7406 = vmatprep.subr.mxu0 %v6702
    %7407 = vmatpush1.msra.mxu0 %v6701
    %7408 = vmatprep.subr.mxu0 %v6705
    %7409 = vmatpush1.msra.mxu0 %v6704
    %7410 = vmatprep.subr.mxu0 %v6708
    %7411 = vmatpush1.msra.mxu0 %v6707
    %7412 = vmatprep.subr.mxu0 %v6711
    %7413 = vmatpush1.msra.mxu0 %v6710
    %7414 = vmatprep.subr.mxu0 %v6714
    %7415 = vmatpush1.msra.mxu0 %v6713
    %7416 = vmatprep.subr.mxu0 %v6717
    %7417 = vmatpush1.msra.mxu0 %v6716
    %7418 = vmatprep.subr.mxu0 %v6720
    %7419 = vmatpush1.msra.mxu0 %v6719
    %7420 = vmatprep.subr.mxu0 %v6723
    %7421 = vmatpush1.msra.mxu0 %v6722
    %7422 = vmatprep.subr.mxu0 0.0
    %7423 = vmatpush1.msra.mxu0 0.0
    %7424 = vmatprep.subr.mxu0 0.0
    %7425 = vmatpush1.msra.mxu0 0.0
    %7426 = vmatprep.subr.mxu0 0.0
    %7427 = vmatpush1.msra.mxu0 0.0
    %7428 = vmatprep.subr.mxu0 0.0
    %7429 = vmatpush1.msra.mxu0 0.0
    %7430 = vmatprep.subr.mxu0 0.0
    %7431 = vmatpush1.msra.mxu0 0.0
    %7432 = vmatprep.subr.mxu0 0.0
    %7433 = vmatpush1.msra.mxu0 0.0
    %7434 = vmatprep.subr.mxu0 0.0
    %7435 = vmatpush1.msra.mxu0 0.0
    %7436 = vmatprep.subr.mxu0 0.0
    %7437 = vmatpush1.msra.mxu0 0.0
    %7438 = vmatprep.subr.mxu0 0.0
    %7439 = vmatpush1.msra.mxu0 0.0
    %7440 = vmatprep.subr.mxu0 0.0
    %7441 = vmatpush1.msra.mxu0 0.0
    %7442 = vmatprep.subr.mxu0 0.0
    %7443 = vmatpush1.msra.mxu0 0.0
    %7444 = vmatprep.subr.mxu0 0.0
    %7445 = vmatpush1.msra.mxu0 0.0
    %7446 = vmatprep.subr.mxu0 0.0
    %7447 = vmatpush1.msra.mxu0 0.0
    %7448 = vmatprep.subr.mxu0 0.0
    %7449 = vmatpush1.msra.mxu0 0.0
    %7450 = vmatprep.subr.mxu0 0.0
    %7451 = vmatpush1.msra.mxu0 0.0
    %7452 = vmatprep.subr.mxu0 0.0
    %7453 = vmatpush1.msra.mxu0 0.0
    %7454 = vmatprep.mubr.f32.mxu0 0.0
    %7455 = vmatmul.mubr.f32.gmra.mrb[0].mxu0 %v7389
    %v7456 = vpop.f32.mrb[0].mxu0
    %v7457 = vadd.f32 %v6730, %v7456
    %v7458 = vpop.f32.mrb[0].mxu0
    %v7459 = vadd.f32 %v6734, %v7458
    %7460 = vdwg.mxu0
    %7461 = vmatprep.subr.mxu0 0.0
    %7462 = vmatpush1.msra.mxu0 %v6679
    %7463 = vmatprep.subr.mxu0 0.0
    %7464 = vmatpush1.msra.mxu0 %v6682
    %7465 = vmatprep.subr.mxu0 0.0
    %7466 = vmatpush1.msra.mxu0 %v6685
    %7467 = vmatprep.subr.mxu0 0.0
    %7468 = vmatpush1.msra.mxu0 %v6688
    %7469 = vmatprep.subr.mxu0 0.0
    %7470 = vmatpush1.msra.mxu0 %v6691
    %7471 = vmatprep.subr.mxu0 0.0
    %7472 = vmatpush1.msra.mxu0 %v6694
    %7473 = vmatprep.subr.mxu0 0.0
    %7474 = vmatpush1.msra.mxu0 %v6697
    %7475 = vmatprep.subr.mxu0 0.0
    %7476 = vmatpush1.msra.mxu0 %v6700
    %7477 = vmatprep.subr.mxu0 0.0
    %7478 = vmatpush1.msra.mxu0 %v6703
    %7479 = vmatprep.subr.mxu0 0.0
    %7480 = vmatpush1.msra.mxu0 %v6706
    %7481 = vmatprep.subr.mxu0 0.0
    %7482 = vmatpush1.msra.mxu0 %v6709
    %7483 = vmatprep.subr.mxu0 0.0
    %7484 = vmatpush1.msra.mxu0 %v6712
    %7485 = vmatprep.subr.mxu0 0.0
    %7486 = vmatpush1.msra.mxu0 %v6715
    %7487 = vmatprep.subr.mxu0 0.0
    %7488 = vmatpush1.msra.mxu0 %v6718
    %7489 = vmatprep.subr.mxu0 0.0
    %7490 = vmatpush1.msra.mxu0 %v6721
    %7491 = vmatprep.subr.mxu0 0.0
    %7492 = vmatpush1.msra.mxu0 %v6724
    %7493 = vmatprep.subr.mxu0 0.0
    %7494 = vmatpush1.msra.mxu0 0.0
    %7495 = vmatprep.subr.mxu0 0.0
    %7496 = vmatpush1.msra.mxu0 0.0
    %7497 = vmatprep.subr.mxu0 0.0
    %7498 = vmatpush1.msra.mxu0 0.0
    %7499 = vmatprep.subr.mxu0 0.0
    %7500 = vmatpush1.msra.mxu0 0.0
    %7501 = vmatprep.subr.mxu0 0.0
    %7502 = vmatpush1.msra.mxu0 0.0
    %7503 = vmatprep.subr.mxu0 0.0
    %7504 = vmatpush1.msra.mxu0 0.0
    %7505 = vmatprep.subr.mxu0 0.0
    %7506 = vmatpush1.msra.mxu0 0.0
    %7507 = vmatprep.subr.mxu0 0.0
    %7508 = vmatpush1.msra.mxu0 0.0
    %7509 = vmatprep.subr.mxu0 0.0
    %7510 = vmatpush1.msra.mxu0 0.0
    %7511 = vmatprep.subr.mxu0 0.0
    %7512 = vmatpush1.msra.mxu0 0.0
    %7513 = vmatprep.subr.mxu0 0.0
    %7514 = vmatpush1.msra.mxu0 0.0
    %7515 = vmatprep.subr.mxu0 0.0
    %7516 = vmatpush1.msra.mxu0 0.0
    %7517 = vmatprep.subr.mxu0 0.0
    %7518 = vmatpush1.msra.mxu0 0.0
    %7519 = vmatprep.subr.mxu0 0.0
    %7520 = vmatpush1.msra.mxu0 0.0
    %7521 = vmatprep.subr.mxu0 0.0
    %7522 = vmatpush1.msra.mxu0 0.0
    %7523 = vmatprep.subr.mxu0 0.0
    %7524 = vmatpush1.msra.mxu0 0.0
    %7525 = vmatprep.mubr.f32.mxu0 0.0
    %7526 = vmatmul.mubr.f32.gmra.mrb[0].mxu0 %v7389
    %v7527 = vpop.f32.mrb[0].mxu0
    %v7528 = vadd.f32 %v6738, %v7527
    %v7529 = vpop.f32.mrb[0].mxu0
    %7530 = vdwg.mxu0
    %v7531 = vadd.f32 %v6603, %v7457
    %v7532 = vxor.u32 %v7531, 2147483648
    %v7533 = vmul.f32 %v7532, 1.442695
    %v7534 = vpow.pop %v7533
    %v7535 = vadd.f32 %v7534, 1.0
    %v7536 = vrcp.pop %v7535
    %v7537 = vmul.f32 1.0, %v7536
    %v7538 = vadd.f32 %v6605, %v7459
    %v7539 = vxor.u32 %v7538, 2147483648
    %v7540 = vmul.f32 %v7539, 1.442695
    %v7541 = vpow.pop %v7540
    %v7542 = vadd.f32 %v7541, 1.0
    %v7543 = vrcp.pop %v7542
    %v7544 = vmul.f32 1.0, %v7543
    %v7545 = vmul.f32 %v7537, %v7528
    %v7546 = vadd.f32 %v6674, %v7545
    %v7547 = vtanh.pop %v7546
    %v7548 = vsub.f32 1.0, %v7544
    %v7549 = vmul.f32 %v7548, %v7547
    %v7550 = vmul.f32 %v7544, %v7389
    %v7551 = vadd.f32 %v7549, %v7550
    %7552 = vmatprep.subr.mxu0 %v6678
    %7553 = vmatpush1.msra.mxu0 %v6677
    %7554 = vmatprep.subr.mxu0 %v6681
    %7555 = vmatpush1.msra.mxu0 %v6680
    %7556 = vmatprep.subr.mxu0 %v6684
    %7557 = vmatpush1.msra.mxu0 %v6683
    %7558 = vmatprep.subr.mxu0 %v6687
    %7559 = vmatpush1.msra.mxu0 %v6686
    %7560 = vmatprep.subr.mxu0 %v6690
    %7561 = vmatpush1.msra.mxu0 %v6689
    %7562 = vmatprep.subr.mxu0 %v6693
    %7563 = vmatpush1.msra.mxu0 %v6692
    %7564 = vmatprep.subr.mxu0 %v6696
    %7565 = vmatpush1.msra.mxu0 %v6695
    %7566 = vmatprep.subr.mxu0 %v6699
    %7567 = vmatpush1.msra.mxu0 %v6698
    %7568 = vmatprep.subr.mxu0 %v6702
    %7569 = vmatpush1.msra.mxu0 %v6701
    %7570 = vmatprep.subr.mxu0 %v6705
    %7571 = vmatpush1.msra.mxu0 %v6704
    %7572 = vmatprep.subr.mxu0 %v6708
    %7573 = vmatpush1.msra.mxu0 %v6707
    %7574 = vmatprep.subr.mxu0 %v6711
    %7575 = vmatpush1.msra.mxu0 %v6710
    %7576 = vmatprep.subr.mxu0 %v6714
    %7577 = vmatpush1.msra.mxu0 %v6713
    %7578 = vmatprep.subr.mxu0 %v6717
    %7579 = vmatpush1.msra.mxu0 %v6716
    %7580 = vmatprep.subr.mxu0 %v6720
    %7581 = vmatpush1.msra.mxu0 %v6719
    %7582 = vmatprep.subr.mxu0 %v6723
    %7583 = vmatpush1.msra.mxu0 %v6722
    %7584 = vmatprep.subr.mxu0 0.0
    %7585 = vmatpush1.msra.mxu0 0.0
    %7586 = vmatprep.subr.mxu0 0.0
    %7587 = vmatpush1.msra.mxu0 0.0
    %7588 = vmatprep.subr.mxu0 0.0
    %7589 = vmatpush1.msra.mxu0 0.0
    %7590 = vmatprep.subr.mxu0 0.0
    %7591 = vmatpush1.msra.mxu0 0.0
    %7592 = vmatprep.subr.mxu0 0.0
    %7593 = vmatpush1.msra.mxu0 0.0
    %7594 = vmatprep.subr.mxu0 0.0
    %7595 = vmatpush1.msra.mxu0 0.0
    %7596 = vmatprep.subr.mxu0 0.0
    %7597 = vmatpush1.msra.mxu0 0.0
    %7598 = vmatprep.subr.mxu0 0.0
    %7599 = vmatpush1.msra.mxu0 0.0
    %7600 = vmatprep.subr.mxu0 0.0
    %7601 = vmatpush1.msra.mxu0 0.0
    %7602 = vmatprep.subr.mxu0 0.0
    %7603 = vmatpush1.msra.mxu0 0.0
    %7604 = vmatprep.subr.mxu0 0.0
    %7605 = vmatpush1.msra.mxu0 0.0
    %7606 = vmatprep.subr.mxu0 0.0
    %7607 = vmatpush1.msra.mxu0 0.0
    %7608 = vmatprep.subr.mxu0 0.0
    %7609 = vmatpush1.msra.mxu0 0.0
    %7610 = vmatprep.subr.mxu0 0.0
    %7611 = vmatpush1.msra.mxu0 0.0
    %7612 = vmatprep.subr.mxu0 0.0
    %7613 = vmatpush1.msra.mxu0 0.0
    %7614 = vmatprep.subr.mxu0 0.0
    %7615 = vmatpush1.msra.mxu0 0.0
    %7616 = vmatprep.mubr.f32.mxu0 0.0
    %7617 = vmatmul.mubr.f32.gmra.mrb[0].mxu0 %v7551
    %v7618 = vpop.f32.mrb[0].mxu0
    %v7619 = vadd.f32 %v6730, %v7618
    %v7620 = vpop.f32.mrb[0].mxu0
    %v7621 = vadd.f32 %v6734, %v7620
    %7622 = vdwg.mxu0
    %7623 = vmatprep.subr.mxu0 0.0
    %7624 = vmatpush1.msra.mxu0 %v6679
    %7625 = vmatprep.subr.mxu0 0.0
    %7626 = vmatpush1.msra.mxu0 %v6682
    %7627 = vmatprep.subr.mxu0 0.0
    %7628 = vmatpush1.msra.mxu0 %v6685
    %7629 = vmatprep.subr.mxu0 0.0
    %7630 = vmatpush1.msra.mxu0 %v6688
    %7631 = vmatprep.subr.mxu0 0.0
    %7632 = vmatpush1.msra.mxu0 %v6691
    %7633 = vmatprep.subr.mxu0 0.0
    %7634 = vmatpush1.msra.mxu0 %v6694
    %7635 = vmatprep.subr.mxu0 0.0
    %7636 = vmatpush1.msra.mxu0 %v6697
    %7637 = vmatprep.subr.mxu0 0.0
    %7638 = vmatpush1.msra.mxu0 %v6700
    %7639 = vmatprep.subr.mxu0 0.0
    %7640 = vmatpush1.msra.mxu0 %v6703
    %7641 = vmatprep.subr.mxu0 0.0
    %7642 = vmatpush1.msra.mxu0 %v6706
    %7643 = vmatprep.subr.mxu0 0.0
    %7644 = vmatpush1.msra.mxu0 %v6709
    %7645 = vmatprep.subr.mxu0 0.0
    %7646 = vmatpush1.msra.mxu0 %v6712
    %7647 = vmatprep.subr.mxu0 0.0
    %7648 = vmatpush1.msra.mxu0 %v6715
    %7649 = vmatprep.subr.mxu0 0.0
    %7650 = vmatpush1.msra.mxu0 %v6718
    %7651 = vmatprep.subr.mxu0 0.0
    %7652 = vmatpush1.msra.mxu0 %v6721
    %7653 = vmatprep.subr.mxu0 0.0
    %7654 = vmatpush1.msra.mxu0 %v6724
    %7655 = vmatprep.subr.mxu0 0.0
    %7656 = vmatpush1.msra.mxu0 0.0
    %7657 = vmatprep.subr.mxu0 0.0
    %7658 = vmatpush1.msra.mxu0 0.0
    %7659 = vmatprep.subr.mxu0 0.0
    %7660 = vmatpush1.msra.mxu0 0.0
    %7661 = vmatprep.subr.mxu0 0.0
    %7662 = vmatpush1.msra.mxu0 0.0
    %7663 = vmatprep.subr.mxu0 0.0
    %7664 = vmatpush1.msra.mxu0 0.0
    %7665 = vmatprep.subr.mxu0 0.0
    %7666 = vmatpush1.msra.mxu0 0.0
    %7667 = vmatprep.subr.mxu0 0.0
    %7668 = vmatpush1.msra.mxu0 0.0
    %7669 = vmatprep.subr.mxu0 0.0
    %7670 = vmatpush1.msra.mxu0 0.0
    %7671 = vmatprep.subr.mxu0 0.0
    %7672 = vmatpush1.msra.mxu0 0.0
    %7673 = vmatprep.subr.mxu0 0.0
    %7674 = vmatpush1.msra.mxu0 0.0
    %7675 = vmatprep.subr.mxu0 0.0
    %7676 = vmatpush1.msra.mxu0 0.0
    %7677 = vmatprep.subr.mxu0 0.0
    %7678 = vmatpush1.msra.mxu0 0.0
    %7679 = vmatprep.subr.mxu0 0.0
    %7680 = vmatpush1.msra.mxu0 0.0
    %7681 = vmatprep.subr.mxu0 0.0
    %7682 = vmatpush1.msra.mxu0 0.0
    %7683 = vmatprep.subr.mxu0 0.0
    %7684 = vmatpush1.msra.mxu0 0.0
    %7685 = vmatprep.subr.mxu0 0.0
    %7686 = vmatpush1.msra.mxu0 0.0
    %7687 = vmatprep.mubr.f32.mxu0 0.0
    %7688 = vmatmul.mubr.f32.gmra.mrb[0].mxu0 %v7551
    %v7689 = vpop.f32.mrb[0].mxu0
    %v7690 = vadd.f32 %v6738, %v7689
    %v7691 = vpop.f32.mrb[0].mxu0
    %7692 = vdwg.mxu0
    %v7693 = vadd.f32 %v6603, %v7619
    %v7694 = vxor.u32 %v7693, 2147483648
    %v7695 = vmul.f32 %v7694, 1.442695
    %v7696 = vpow.pop %v7695
    %v7697 = vadd.f32 %v7696, 1.0
    %v7698 = vrcp.pop %v7697
    %v7699 = vmul.f32 1.0, %v7698
    %v7700 = vadd.f32 %v6605, %v7621
    %v7701 = vxor.u32 %v7700, 2147483648
    %v7702 = vmul.f32 %v7701, 1.442695
    %v7703 = vpow.pop %v7702
    %v7704 = vadd.f32 %v7703, 1.0
    %v7705 = vrcp.pop %v7704
    %v7706 = vmul.f32 1.0, %v7705
    %v7707 = vmul.f32 %v7699, %v7690
    %v7708 = vadd.f32 %v6674, %v7707
    %v7709 = vtanh.pop %v7708
    %v7710 = vsub.f32 1.0, %v7706
    %v7711 = vmul.f32 %v7710, %v7709
    %v7712 = vmul.f32 %v7706, %v7551
    %v7713 = vadd.f32 %v7711, %v7712
    %7714 = vmatprep.subr.mxu0 %v6678
    %7715 = vmatpush1.msra.mxu0 %v6677
    %7716 = vmatprep.subr.mxu0 %v6681
    %7717 = vmatpush1.msra.mxu0 %v6680
    %7718 = vmatprep.subr.mxu0 %v6684
    %7719 = vmatpush1.msra.mxu0 %v6683
    %7720 = vmatprep.subr.mxu0 %v6687
    %7721 = vmatpush1.msra.mxu0 %v6686
    %7722 = vmatprep.subr.mxu0 %v6690
    %7723 = vmatpush1.msra.mxu0 %v6689
    %7724 = vmatprep.subr.mxu0 %v6693
    %7725 = vmatpush1.msra.mxu0 %v6692
    %7726 = vmatprep.subr.mxu0 %v6696
    %7727 = vmatpush1.msra.mxu0 %v6695
    %7728 = vmatprep.subr.mxu0 %v6699
    %7729 = vmatpush1.msra.mxu0 %v6698
    %7730 = vmatprep.subr.mxu0 %v6702
    %7731 = vmatpush1.msra.mxu0 %v6701
    %7732 = vmatprep.subr.mxu0 %v6705
    %7733 = vmatpush1.msra.mxu0 %v6704
    %7734 = vmatprep.subr.mxu0 %v6708
    %7735 = vmatpush1.msra.mxu0 %v6707
    %7736 = vmatprep.subr.mxu0 %v6711
    %7737 = vmatpush1.msra.mxu0 %v6710
    %7738 = vmatprep.subr.mxu0 %v6714
    %7739 = vmatpush1.msra.mxu0 %v6713
    %7740 = vmatprep.subr.mxu0 %v6717
    %7741 = vmatpush1.msra.mxu0 %v6716
    %7742 = vmatprep.subr.mxu0 %v6720
    %7743 = vmatpush1.msra.mxu0 %v6719
    %7744 = vmatprep.subr.mxu0 %v6723
    %7745 = vmatpush1.msra.mxu0 %v6722
    %7746 = vmatprep.subr.mxu0 0.0
    %7747 = vmatpush1.msra.mxu0 0.0
    %7748 = vmatprep.subr.mxu0 0.0
    %7749 = vmatpush1.msra.mxu0 0.0
    %7750 = vmatprep.subr.mxu0 0.0
    %7751 = vmatpush1.msra.mxu0 0.0
    %7752 = vmatprep.subr.mxu0 0.0
    %7753 = vmatpush1.msra.mxu0 0.0
    %7754 = vmatprep.subr.mxu0 0.0
    %7755 = vmatpush1.msra.mxu0 0.0
    %7756 = vmatprep.subr.mxu0 0.0
    %7757 = vmatpush1.msra.mxu0 0.0
    %7758 = vmatprep.subr.mxu0 0.0
    %7759 = vmatpush1.msra.mxu0 0.0
    %7760 = vmatprep.subr.mxu0 0.0
    %7761 = vmatpush1.msra.mxu0 0.0
    %7762 = vmatprep.subr.mxu0 0.0
    %7763 = vmatpush1.msra.mxu0 0.0
    %7764 = vmatprep.subr.mxu0 0.0
    %7765 = vmatpush1.msra.mxu0 0.0
    %7766 = vmatprep.subr.mxu0 0.0
    %7767 = vmatpush1.msra.mxu0 0.0
    %7768 = vmatprep.subr.mxu0 0.0
    %7769 = vmatpush1.msra.mxu0 0.0
    %7770 = vmatprep.subr.mxu0 0.0
    %7771 = vmatpush1.msra.mxu0 0.0
    %7772 = vmatprep.subr.mxu0 0.0
    %7773 = vmatpush1.msra.mxu0 0.0
    %7774 = vmatprep.subr.mxu0 0.0
    %7775 = vmatpush1.msra.mxu0 0.0
    %7776 = vmatprep.subr.mxu0 0.0
    %7777 = vmatpush1.msra.mxu0 0.0
    %7778 = vmatprep.mubr.f32.mxu0 0.0
    %7779 = vmatmul.mubr.f32.gmra.mrb[0].mxu0 %v7713
    %v7780 = vpop.f32.mrb[0].mxu0
    %v7781 = vadd.f32 %v6730, %v7780
    %v7782 = vpop.f32.mrb[0].mxu0
    %v7783 = vadd.f32 %v6734, %v7782
    %7784 = vdwg.mxu0
    %7785 = vmatprep.subr.mxu0 0.0
    %7786 = vmatpush1.msra.mxu0 %v6679
    %7787 = vmatprep.subr.mxu0 0.0
    %7788 = vmatpush1.msra.mxu0 %v6682
    %7789 = vmatprep.subr.mxu0 0.0
    %7790 = vmatpush1.msra.mxu0 %v6685
    %7791 = vmatprep.subr.mxu0 0.0
    %7792 = vmatpush1.msra.mxu0 %v6688
    %7793 = vmatprep.subr.mxu0 0.0
    %7794 = vmatpush1.msra.mxu0 %v6691
    %7795 = vmatprep.subr.mxu0 0.0
    %7796 = vmatpush1.msra.mxu0 %v6694
    %7797 = vmatprep.subr.mxu0 0.0
    %7798 = vmatpush1.msra.mxu0 %v6697
    %7799 = vmatprep.subr.mxu0 0.0
    %7800 = vmatpush1.msra.mxu0 %v6700
    %7801 = vmatprep.subr.mxu0 0.0
    %7802 = vmatpush1.msra.mxu0 %v6703
    %7803 = vmatprep.subr.mxu0 0.0
    %7804 = vmatpush1.msra.mxu0 %v6706
    %7805 = vmatprep.subr.mxu0 0.0
    %7806 = vmatpush1.msra.mxu0 %v6709
    %7807 = vmatprep.subr.mxu0 0.0
    %7808 = vmatpush1.msra.mxu0 %v6712
    %7809 = vmatprep.subr.mxu0 0.0
    %7810 = vmatpush1.msra.mxu0 %v6715
    %7811 = vmatprep.subr.mxu0 0.0
    %7812 = vmatpush1.msra.mxu0 %v6718
    %7813 = vmatprep.subr.mxu0 0.0
    %7814 = vmatpush1.msra.mxu0 %v6721
    %7815 = vmatprep.subr.mxu0 0.0
    %7816 = vmatpush1.msra.mxu0 %v6724
    %7817 = vmatprep.subr.mxu0 0.0
    %7818 = vmatpush1.msra.mxu0 0.0
    %7819 = vmatprep.subr.mxu0 0.0
    %7820 = vmatpush1.msra.mxu0 0.0
    %7821 = vmatprep.subr.mxu0 0.0
    %7822 = vmatpush1.msra.mxu0 0.0
    %7823 = vmatprep.subr.mxu0 0.0
    %7824 = vmatpush1.msra.mxu0 0.0
    %7825 = vmatprep.subr.mxu0 0.0
    %7826 = vmatpush1.msra.mxu0 0.0
    %7827 = vmatprep.subr.mxu0 0.0
    %7828 = vmatpush1.msra.mxu0 0.0
    %7829 = vmatprep.subr.mxu0 0.0
    %7830 = vmatpush1.msra.mxu0 0.0
    %7831 = vmatprep.subr.mxu0 0.0
    %7832 = vmatpush1.msra.mxu0 0.0
    %7833 = vmatprep.subr.mxu0 0.0
    %7834 = vmatpush1.msra.mxu0 0.0
    %7835 = vmatprep.subr.mxu0 0.0
    %7836 = vmatpush1.msra.mxu0 0.0
    %7837 = vmatprep.subr.mxu0 0.0
    %7838 = vmatpush1.msra.mxu0 0.0
    %7839 = vmatprep.subr.mxu0 0.0
    %7840 = vmatpush1.msra.mxu0 0.0
    %7841 = vmatprep.subr.mxu0 0.0
    %7842 = vmatpush1.msra.mxu0 0.0
    %7843 = vmatprep.subr.mxu0 0.0
    %7844 = vmatpush1.msra.mxu0 0.0
    %7845 = vmatprep.subr.mxu0 0.0
    %7846 = vmatpush1.msra.mxu0 0.0
    %7847 = vmatprep.subr.mxu0 0.0
    %7848 = vmatpush1.msra.mxu0 0.0
    %7849 = vmatprep.mubr.f32.mxu0 0.0
    %7850 = vmatmul.mubr.f32.gmra.mrb[0].mxu0 %v7713
    %v7851 = vpop.f32.mrb[0].mxu0
    %v7852 = vadd.f32 %v6738, %v7851
    %v7853 = vpop.f32.mrb[0].mxu0
    %7854 = vdwg.mxu0
    %v7855 = vadd.f32 %v6603, %v7781
    %v7856 = vxor.u32 %v7855, 2147483648
    %v7857 = vmul.f32 %v7856, 1.442695
    %v7858 = vpow.pop %v7857
    %v7859 = vadd.f32 %v7858, 1.0
    %v7860 = vrcp.pop %v7859
    %v7861 = vmul.f32 1.0, %v7860
    %v7862 = vadd.f32 %v6605, %v7783
    %v7863 = vxor.u32 %v7862, 2147483648
    %v7864 = vmul.f32 %v7863, 1.442695
    %v7865 = vpow.pop %v7864
    %v7866 = vadd.f32 %v7865, 1.0
    %v7867 = vrcp.pop %v7866
    %v7868 = vmul.f32 1.0, %v7867
    %v7869 = vmul.f32 %v7861, %v7852
    %v7870 = vadd.f32 %v6674, %v7869
    %v7871 = vtanh.pop %v7870
    %v7872 = vsub.f32 1.0, %v7868
    %v7873 = vmul.f32 %v7872, %v7871
    %v7874 = vmul.f32 %v7868, %v7713
    %v7875 = vadd.f32 %v7873, %v7874
    %7876 = vmatprep.subr.mxu0 %v6678
    %7877 = vmatpush1.msra.mxu0 %v6677
    %7878 = vmatprep.subr.mxu0 %v6681
    %7879 = vmatpush1.msra.mxu0 %v6680
    %7880 = vmatprep.subr.mxu0 %v6684
    %7881 = vmatpush1.msra.mxu0 %v6683
    %7882 = vmatprep.subr.mxu0 %v6687
    %7883 = vmatpush1.msra.mxu0 %v6686
    %7884 = vmatprep.subr.mxu0 %v6690
    %7885 = vmatpush1.msra.mxu0 %v6689
    %7886 = vmatprep.subr.mxu0 %v6693
    %7887 = vmatpush1.msra.mxu0 %v6692
    %7888 = vmatprep.subr.mxu0 %v6696
    %7889 = vmatpush1.msra.mxu0 %v6695
    %7890 = vmatprep.subr.mxu0 %v6699
    %7891 = vmatpush1.msra.mxu0 %v6698
    %7892 = vmatprep.subr.mxu0 %v6702
    %7893 = vmatpush1.msra.mxu0 %v6701
    %7894 = vmatprep.subr.mxu0 %v6705
    %7895 = vmatpush1.msra.mxu0 %v6704
    %7896 = vmatprep.subr.mxu0 %v6708
    %7897 = vmatpush1.msra.mxu0 %v6707
    %7898 = vmatprep.subr.mxu0 %v6711
    %7899 = vmatpush1.msra.mxu0 %v6710
    %7900 = vmatprep.subr.mxu0 %v6714
    %7901 = vmatpush1.msra.mxu0 %v6713
    %7902 = vmatprep.subr.mxu0 %v6717
    %7903 = vmatpush1.msra.mxu0 %v6716
    %7904 = vmatprep.subr.mxu0 %v6720
    %7905 = vmatpush1.msra.mxu0 %v6719
    %7906 = vmatprep.subr.mxu0 %v6723
    %7907 = vmatpush1.msra.mxu0 %v6722
    %7908 = vmatprep.subr.mxu0 0.0
    %7909 = vmatpush1.msra.mxu0 0.0
    %7910 = vmatprep.subr.mxu0 0.0
    %7911 = vmatpush1.msra.mxu0 0.0
    %7912 = vmatprep.subr.mxu0 0.0
    %7913 = vmatpush1.msra.mxu0 0.0
    %7914 = vmatprep.subr.mxu0 0.0
    %7915 = vmatpush1.msra.mxu0 0.0
    %7916 = vmatprep.subr.mxu0 0.0
    %7917 = vmatpush1.msra.mxu0 0.0
    %7918 = vmatprep.subr.mxu0 0.0
    %7919 = vmatpush1.msra.mxu0 0.0
    %7920 = vmatprep.subr.mxu0 0.0
    %7921 = vmatpush1.msra.mxu0 0.0
    %7922 = vmatprep.subr.mxu0 0.0
    %7923 = vmatpush1.msra.mxu0 0.0
    %7924 = vmatprep.subr.mxu0 0.0
    %7925 = vmatpush1.msra.mxu0 0.0
    %7926 = vmatprep.subr.mxu0 0.0
    %7927 = vmatpush1.msra.mxu0 0.0
    %7928 = vmatprep.subr.mxu0 0.0
    %7929 = vmatpush1.msra.mxu0 0.0
    %7930 = vmatprep.subr.mxu0 0.0
    %7931 = vmatpush1.msra.mxu0 0.0
    %7932 = vmatprep.subr.mxu0 0.0
    %7933 = vmatpush1.msra.mxu0 0.0
    %7934 = vmatprep.subr.mxu0 0.0
    %7935 = vmatpush1.msra.mxu0 0.0
    %7936 = vmatprep.subr.mxu0 0.0
    %7937 = vmatpush1.msra.mxu0 0.0
    %7938 = vmatprep.subr.mxu0 0.0
    %7939 = vmatpush1.msra.mxu0 0.0
    %7940 = vmatprep.mubr.f32.mxu0 0.0
    %7941 = vmatmul.mubr.f32.gmra.mrb[0].mxu0 %v7875
    %v7942 = vpop.f32.mrb[0].mxu0
    %v7943 = vadd.f32 %v6730, %v7942
    %v7944 = vpop.f32.mrb[0].mxu0
    %v7945 = vadd.f32 %v6734, %v7944
    %7946 = vdwg.mxu0
    %7947 = vmatprep.subr.mxu0 0.0
    %7948 = vmatpush1.msra.mxu0 %v6679
    %7949 = vmatprep.subr.mxu0 0.0
    %7950 = vmatpush1.msra.mxu0 %v6682
    %7951 = vmatprep.subr.mxu0 0.0
    %7952 = vmatpush1.msra.mxu0 %v6685
    %7953 = vmatprep.subr.mxu0 0.0
    %7954 = vmatpush1.msra.mxu0 %v6688
    %7955 = vmatprep.subr.mxu0 0.0
    %7956 = vmatpush1.msra.mxu0 %v6691
    %7957 = vmatprep.subr.mxu0 0.0
    %7958 = vmatpush1.msra.mxu0 %v6694
    %7959 = vmatprep.subr.mxu0 0.0
    %7960 = vmatpush1.msra.mxu0 %v6697
    %7961 = vmatprep.subr.mxu0 0.0
    %7962 = vmatpush1.msra.mxu0 %v6700
    %7963 = vmatprep.subr.mxu0 0.0
    %7964 = vmatpush1.msra.mxu0 %v6703
    %7965 = vmatprep.subr.mxu0 0.0
    %7966 = vmatpush1.msra.mxu0 %v6706
    %7967 = vmatprep.subr.mxu0 0.0
    %7968 = vmatpush1.msra.mxu0 %v6709
    %7969 = vmatprep.subr.mxu0 0.0
    %7970 = vmatpush1.msra.mxu0 %v6712
    %7971 = vmatprep.subr.mxu0 0.0
    %7972 = vmatpush1.msra.mxu0 %v6715
    %7973 = vmatprep.subr.mxu0 0.0
    %7974 = vmatpush1.msra.mxu0 %v6718
    %7975 = vmatprep.subr.mxu0 0.0
    %7976 = vmatpush1.msra.mxu0 %v6721
    %7977 = vmatprep.subr.mxu0 0.0
    %7978 = vmatpush1.msra.mxu0 %v6724
    %7979 = vmatprep.subr.mxu0 0.0
    %7980 = vmatpush1.msra.mxu0 0.0
    %7981 = vmatprep.subr.mxu0 0.0
    %7982 = vmatpush1.msra.mxu0 0.0
    %7983 = vmatprep.subr.mxu0 0.0
    %7984 = vmatpush1.msra.mxu0 0.0
    %7985 = vmatprep.subr.mxu0 0.0
    %7986 = vmatpush1.msra.mxu0 0.0
    %7987 = vmatprep.subr.mxu0 0.0
    %7988 = vmatpush1.msra.mxu0 0.0
    %7989 = vmatprep.subr.mxu0 0.0
    %7990 = vmatpush1.msra.mxu0 0.0
    %7991 = vmatprep.subr.mxu0 0.0
    %7992 = vmatpush1.msra.mxu0 0.0
    %7993 = vmatprep.subr.mxu0 0.0
    %7994 = vmatpush1.msra.mxu0 0.0
    %7995 = vmatprep.subr.mxu0 0.0
    %7996 = vmatpush1.msra.mxu0 0.0
    %7997 = vmatprep.subr.mxu0 0.0
    %7998 = vmatpush1.msra.mxu0 0.0
    %7999 = vmatprep.subr.mxu0 0.0
    %8000 = vmatpush1.msra.mxu0 0.0
    %8001 = vmatprep.subr.mxu0 0.0
    %8002 = vmatpush1.msra.mxu0 0.0
    %8003 = vmatprep.subr.mxu0 0.0
    %8004 = vmatpush1.msra.mxu0 0.0
    %8005 = vmatprep.subr.mxu0 0.0
    %8006 = vmatpush1.msra.mxu0 0.0
    %8007 = vmatprep.subr.mxu0 0.0
    %8008 = vmatpush1.msra.mxu0 0.0
    %8009 = vmatprep.subr.mxu0 0.0
    %8010 = vmatpush1.msra.mxu0 0.0
    %8011 = vmatprep.mubr.f32.mxu0 0.0
    %8012 = vmatmul.mubr.f32.gmra.mrb[0].mxu0 %v7875
    %v8013 = vpop.f32.mrb[0].mxu0
    %v8014 = vadd.f32 %v6738, %v8013
    %v8015 = vpop.f32.mrb[0].mxu0
    %8016 = vdwg.mxu0
    %v8017 = vadd.f32 %v6603, %v7943
    %v8018 = vxor.u32 %v8017, 2147483648
    %v8019 = vmul.f32 %v8018, 1.442695
    %v8020 = vpow.pop %v8019
    %v8021 = vadd.f32 %v8020, 1.0
    %v8022 = vrcp.pop %v8021
    %v8023 = vmul.f32 1.0, %v8022
    %v8024 = vadd.f32 %v6605, %v7945
    %v8025 = vxor.u32 %v8024, 2147483648
    %v8026 = vmul.f32 %v8025, 1.442695
    %v8027 = vpow.pop %v8026
    %v8028 = vadd.f32 %v8027, 1.0
    %v8029 = vrcp.pop %v8028
    %v8030 = vmul.f32 1.0, %v8029
    %v8031 = vmul.f32 %v8023, %v8014
    %v8032 = vadd.f32 %v6674, %v8031
    %v8033 = vtanh.pop %v8032
    %v8034 = vsub.f32 1.0, %v8030
    %v8035 = vmul.f32 %v8034, %v8033
    %v8036 = vmul.f32 %v8030, %v7875
    %v8037 = vadd.f32 %v8035, %v8036
    %v8039 = vrot.slane %v7065, 6
    %v8042 = vrot.slane %v7227, 4
    %v8045 = vrot.slane %v7389, 2
    %v8048 = vrot.slane %v7713, 6
    %v8051 = vrot.slane %v7875, 4
    %v8054 = vrot.slane %v8037, 2
    %vm8056 = vcmask 1041408
    %v8057 = vsel %vm8056, %v6903, %v8039
    %vm8058 = vcmask 1043456
    %v8059 = vsel %vm8058, %v8057, %v8042
    %vm8060 = vcmask 1045504
    %v8061 = vsel %vm8060, %v8059, %v8045
    %v8062 = vsel %vm8056, %v7551, %v8048
    %v8063 = vsel %vm8058, %v8062, %v8051
    %v8064 = vsel %vm8060, %v8063, %v8054
    %v8065 = vld [vmem:[%s25] sm:$0xff]
    %v8066 = vld [vmem:[%s25 + $0x8] sm:$0xff]
    %v8067 = vld [vmem:[%s25 + $0x10] sm:$0xff]
    %v8068 = vld [vmem:[%s25 + $0x18] sm:$0xff]
    %v8069 = vld [vmem:[%s25 + $0x20] sm:$0xff]
    %v8070 = vld [vmem:[%s25 + $0x28] sm:$0xff]
    %v8071 = vld [vmem:[%s25 + $0x30] sm:$0xff]
    %v8072 = vld [vmem:[%s25 + $0x38] sm:$0xff]
    %v8073 = vld [vmem:[%s25 + $0x40] sm:$0xff]
    %v8074 = vld [vmem:[%s25 + $0x48] sm:$0xff]
    %v8075 = vld [vmem:[%s25 + $0x50] sm:$0xff]
    %v8076 = vld [vmem:[%s25 + $0x58] sm:$0xff]
    %v8077 = vld [vmem:[%s25 + $0x60] sm:$0xff]
    %v8078 = vld [vmem:[%s25 + $0x68] sm:$0xff]
    %v8079 = vld [vmem:[%s25 + $0x70] sm:$0xff]
    %v8080 = vld [vmem:[%s25 + $0x78] sm:$0xff]
    %v8081 = vld [vmem:[%s26] sm:$0x1]
    %v8083 = vlaneseq
    %v8084 = vshrl.u32 %v8083, 7
    %v8085 = vsub.s32 0, %v8084
    %v8086 = vrot.slane %v8081, %v8085
    %8088 = vmatprep.subr.mxu0 0.0
    %8089 = vmatpush1.msra.mxu0 %v8065
    %8090 = vmatprep.subr.mxu0 0.0
    %8091 = vmatpush1.msra.mxu0 %v8066
    %8092 = vmatprep.subr.mxu0 0.0
    %8093 = vmatpush1.msra.mxu0 %v8067
    %8094 = vmatprep.subr.mxu0 0.0
    %8095 = vmatpush1.msra.mxu0 %v8068
    %8096 = vmatprep.subr.mxu0 0.0
    %8097 = vmatpush1.msra.mxu0 %v8069
    %8098 = vmatprep.subr.mxu0 0.0
    %8099 = vmatpush1.msra.mxu0 %v8070
    %8100 = vmatprep.subr.mxu0 0.0
    %8101 = vmatpush1.msra.mxu0 %v8071
    %8102 = vmatprep.subr.mxu0 0.0
    %8103 = vmatpush1.msra.mxu0 %v8072
    %8104 = vmatprep.subr.mxu0 0.0
    %8105 = vmatpush1.msra.mxu0 %v8073
    %8106 = vmatprep.subr.mxu0 0.0
    %8107 = vmatpush1.msra.mxu0 %v8074
    %8108 = vmatprep.subr.mxu0 0.0
    %8109 = vmatpush1.msra.mxu0 %v8075
    %8110 = vmatprep.subr.mxu0 0.0
    %8111 = vmatpush1.msra.mxu0 %v8076
    %8112 = vmatprep.subr.mxu0 0.0
    %8113 = vmatpush1.msra.mxu0 %v8077
    %8114 = vmatprep.subr.mxu0 0.0
    %8115 = vmatpush1.msra.mxu0 %v8078
    %8116 = vmatprep.subr.mxu0 0.0
    %8117 = vmatpush1.msra.mxu0 %v8079
    %8118 = vmatprep.subr.mxu0 0.0
    %8119 = vmatpush1.msra.mxu0 %v8080
    %8120 = vmatprep.subr.mxu0 0.0
    %8121 = vmatpush1.msra.mxu0 0.0
    %8122 = vmatprep.subr.mxu0 0.0
    %8123 = vmatpush1.msra.mxu0 0.0
    %8124 = vmatprep.subr.mxu0 0.0
    %8125 = vmatpush1.msra.mxu0 0.0
    %8126 = vmatprep.subr.mxu0 0.0
    %8127 = vmatpush1.msra.mxu0 0.0
    %8128 = vmatprep.subr.mxu0 0.0
    %8129 = vmatpush1.msra.mxu0 0.0
    %8130 = vmatprep.subr.mxu0 0.0
    %8131 = vmatpush1.msra.mxu0 0.0
    %8132 = vmatprep.subr.mxu0 0.0
    %8133 = vmatpush1.msra.mxu0 0.0
    %8134 = vmatprep.subr.mxu0 0.0
    %8135 = vmatpush1.msra.mxu0 0.0
    %8136 = vmatprep.subr.mxu0 0.0
    %8137 = vmatpush1.msra.mxu0 0.0
    %8138 = vmatprep.subr.mxu0 0.0
    %8139 = vmatpush1.msra.mxu0 0.0
    %8140 = vmatprep.subr.mxu0 0.0
    %8141 = vmatpush1.msra.mxu0 0.0
    %8142 = vmatprep.subr.mxu0 0.0
    %8143 = vmatpush1.msra.mxu0 0.0
    %8144 = vmatprep.subr.mxu0 0.0
    %8145 = vmatpush1.msra.mxu0 0.0
    %8146 = vmatprep.subr.mxu0 0.0
    %8147 = vmatpush1.msra.mxu0 0.0
    %8148 = vmatprep.subr.mxu0 0.0
    %8149 = vmatpush1.msra.mxu0 0.0
    %8150 = vmatprep.subr.mxu0 0.0
    %8151 = vmatpush1.msra.mxu0 0.0
    %8152 = vmatprep.mubr.f32.mxu0 0.0
    %8153 = vmatmul.mubr.f32.gmra.mrb[0].mxu0 %v8061
    %v8154 = vpop.f32.mrb[0].mxu0
    %v8155 = vadd.f32 %v8086, %v8154
    %v8156 = vpop.f32.mrb[0].mxu0
    %8157 = vmatprep.mubr.f32.mxu0 0.0
    %8158 = vmatmul.mubr.f32.gmra.mrb[0].mxu0 %v8064
    %v8159 = vpop.f32.mrb[0].mxu0
    %v8160 = vadd.f32 %v8086, %v8159
    %v8161 = vpop.f32.mrb[0].mxu0
    %8162 = vdwg.mxu0
    %vm8163 = vcmask 15360
    %8164 = vst.msk [vmem:[%s27] sm:$0xff] %vm8163, %v8155
    %8165 = vst.msk [vmem:[%s27 + $0x8] sm:$0xff] %vm8163, %v8160
    // Predicated region
    $region130: #{tpu_custom_call.1} parent=1 // pred_check
      _
    $region131: #{tpu_custom_call.1} parent=1 // pred_check_branch
      %8167 = sbr.rel (0) target = $region133
    $region132: #{tpu_custom_call.1} parent=1 // pred_region
      _
    $region133: #{tpu_custom_call.1} parent=1 // pred_fallthru
      _
    // Predicated region
    $region134: #{tpu_custom_call.1} parent=1 // pred_check
      _
    $region135: #{tpu_custom_call.1} parent=1 // pred_check_branch
      %8169 = sbr.rel (0) target = $region137
    $region136: #{tpu_custom_call.1} parent=1 // pred_region
      _
    $region137: #{tpu_custom_call.1} parent=1 // pred_fallthru
      _
    %8170 = vsyncpa [#allocation3], 1
    %8171 = vsyncpa [#allocation5], 1
    %8172 = vsyncpa [#allocation8], 1

</llo_original>
